<compile_context>
chip_gen: v5e
topology: v5e:2x2
jax: 0.10.0
libtpu: 0.0.40
codegen_flags: <defaults>
</compile_context>

<pallas_src>
import jax
import jax.numpy as jnp
from jax.experimental import pallas as pl
from jax.experimental.pallas import tpu as pltpu


# ------------------------------ Fused kernel ------------------------------- #

def _make_kernel(N, H, W, Cin, Ho, Wo, roffs, ks, couts):
    """Build the fused kernel for static shapes / slab offsets."""
    f32 = jnp.float32

    def kernel(x_ref, w_ref, sb_ref, o_ref,
               y11_scr, padw_scr, padh_scr, y23_scr):

        def wmat(i):
            # im2col weight slice (K_i, Cout_i); roffs[i] is 8-sublane aligned.
            return w_ref[roffs[i]:roffs[i] + ks[i], :couts[i]]

        def bn_relu(y2d, i):
            # folded BatchNorm (eval) + ReLU; scale/shift live in rows 2i, 2i+1.
            s = sb_ref[2 * i:2 * i + 1, :couts[i]]
            b = sb_ref[2 * i + 1:2 * i + 2, :couts[i]]
            return jnp.maximum(y2d * s + b, 0.0)

        def conv3x3_s2(src_ref, i):
            # 3x3 "valid" conv, stride 2, read straight from a (N,H,W,C) VMEM ref:
            #   W stride 2 -> sublane-strided loads; H stride 2 -> parity reshape.
            cc = src_ref.shape[-1]
            cols = jnp.concatenate(
                [src_ref[:, :, pl.ds(j, Wo, stride=2), :].astype(f32)
                 for j in range(3)], axis=-1)                     # (N, H, Wo, 3cc)
            cp = cols.reshape(N, H // 2, 2, Wo, 3 * cc)
            patches = jnp.concatenate(                            # K order (kh,kw,cin)
                [cp[:, 0:Ho, 0], cp[:, 0:Ho, 1], cp[:, 1:1 + Ho, 0]],
                axis=-1).reshape(N * Ho * Wo, 9 * cc)
            y = jnp.dot(patches, wmat(i), preferred_element_type=f32)
            return bn_relu(y, i)                                  # (N*Ho*Wo, Cout)

        # ------------------- shared input for the two 1x1s -------------------
        x2d = x_ref[...].astype(f32).reshape(N * H * W, Cin)

        # ------------------- branch 1: 1x1 -> 3x3 stride 2 -------------------
        y11 = bn_relu(jnp.dot(x2d, wmat(0), preferred_element_type=f32), 0)
        y11_scr[...] = y11.reshape(N, H, W, couts[0])
        br1 = conv3x3_s2(y11_scr, 1)

        # ------ branch 2: 1x1 -> 1x7 (pad W=3) -> 7x1 (pad H=3) -> 3x3 s2 ------
        y21 = bn_relu(jnp.dot(x2d, wmat(2), preferred_element_type=f32), 2)

        padw_scr[...] = jnp.zeros_like(padw_scr)          # zero-padded W border
        padw_scr[:, :, 3:3 + W, :] = y21.reshape(N, H, W, couts[2])
        p = jnp.concatenate([padw_scr[:, :, j:j + W, :] for j in range(7)],
                            axis=-1).reshape(N * H * W, 7 * couts[2])
        y22 = bn_relu(jnp.dot(p, wmat(3), preferred_element_type=f32), 3)

        padh_scr[...] = jnp.zeros_like(padh_scr)          # zero-padded H border
        padh_scr[:, 3:3 + H, :, :] = y22.reshape(N, H, W, couts[3])
        p = jnp.concatenate([padh_scr[:, i:i + H, :, :] for i in range(7)],
                            axis=-1).reshape(N * H * W, 7 * couts[3])
        y23 = bn_relu(jnp.dot(p, wmat(4), preferred_element_type=f32), 4)
        y23_scr[...] = y23.reshape(N, H, W, couts[4])
        br2 = conv3x3_s2(y23_scr, 5)

        # ------------------- branch 3: 3x3 avg-pool stride 2 -------------------
        s = (x_ref[:, :, pl.ds(0, Wo, stride=2), :].astype(f32)
             + x_ref[:, :, pl.ds(1, Wo, stride=2), :]
             + x_ref[:, :, pl.ds(2, Wo, stride=2), :])            # (N, H, Wo, Cin)
        sp = s.reshape(N, H // 2, 2, Wo, Cin)
        br3 = ((sp[:, 0:Ho, 0] + sp[:, 0:Ho, 1] + sp[:, 1:1 + Ho, 0])
               * (1.0 / 9.0)).reshape(N * Ho * Wo, Cin)

        # torch.cat(dim=1)  ==  channel (lane) concat in NHWC.
        o_ref[...] = jnp.concatenate([br1, br2, br3], axis=-1).astype(o_ref.dtype)

    return kernel


# ----------------------------- Param handling ------------------------------ #

def _fold_conv_bn(p, eps=1e-5):
    """Conv2d+BN(eval) -> (im2col weight (kh*kw*Cin, Cout), scale, shift)."""
    cout, cin, kh, kw = p["w"].shape
    w = jnp.transpose(p["w"], (2, 3, 1, 0)).reshape(kh * kw * cin, cout)
    scale = p["gamma"] * jax.lax.rsqrt(p["var"] + eps)
    shift = p["beta"] + scale * (p["b"] - p["mean"])
    return (w.astype(jnp.float32), scale.astype(jnp.float32),
            shift.astype(jnp.float32))


def make_basic_conv_params(key, cin, cout, kh, kw):
    ks = jax.random.split(key, 6)
    return dict(
        w=jax.random.normal(ks[0], (cout, cin, kh, kw), jnp.float32) * 0.1,
        b=jax.random.normal(ks[1], (cout,), jnp.float32) * 0.1,
        gamma=jax.random.uniform(ks[2], (cout,), jnp.float32, 0.5, 1.5),
        beta=jax.random.normal(ks[3], (cout,), jnp.float32) * 0.1,
        mean=jax.random.normal(ks[4], (cout,), jnp.float32) * 0.1,
        var=jax.random.uniform(ks[5], (cout,), jnp.float32, 0.5, 1.5),
    )


# --------------------------------- Module ----------------------------------- #

class InceptionModuleDownsampleE:
    def __init__(self, key, in_ch, out_3x3_reduce, out_3x3,
                 double7x7_reduce, double_7x7):
        # The PyTorch module only shape-checks if double7x7_reduce == double_7x7
        assert double7x7_reduce == double_7x7
        k = jax.random.split(key, 6)
        self.b1_1 = make_basic_conv_params(k[0], in_ch, out_3x3_reduce, 1, 1)
        self.b1_2 = make_basic_conv_params(k[1], out_3x3_reduce, out_3x3, 3, 3)
        self.b2_1 = make_basic_conv_params(k[2], in_ch, double7x7_reduce, 1, 1)
        self.b2_2 = make_basic_conv_params(k[3], double7x7_reduce, double7x7_reduce, 1, 7)
        self.b2_3 = make_basic_conv_params(k[4], double7x7_reduce, double7x7_reduce, 7, 1)
        self.b2_4 = make_basic_conv_params(k[5], double_7x7, double_7x7, 3, 3)
        self.out_3x3 = out_3x3
        self.double_7x7 = double_7x7

        # ---- one-time weight prep + packing (hoisted out of __call__) ----
        prepped = [_fold_conv_bn(p) for p in
                   (self.b1_1, self.b1_2, self.b2_1, self.b2_2, self.b2_3, self.b2_4)]
        self.ks = tuple(w.shape[0] for w, _, _ in prepped)
        self.couts = tuple(w.shape[1] for w, _, _ in prepped)
        cmax = max(self.couts)

        roffs, off = [], 0
        for kk in self.ks:                      # 8-sublane-aligned row offsets
            roffs.append(off)
            off += -(-kk // 8) * 8
        self.roffs = tuple(roffs)

        wslab = jnp.zeros((off, cmax), jnp.float32)                 # all 6 weights
        sb = jnp.zeros((2 * len(prepped), cmax), jnp.float32)       # 6 x (scale, shift)
        for i, ((w, s, b), ro) in enumerate(zip(prepped, roffs)):
            wslab = wslab.at[ro:ro + w.shape[0], :w.shape[1]].set(w)
            sb = sb.at[2 * i, :s.shape[0]].set(s)
            sb = sb.at[2 * i + 1, :b.shape[0]].set(b)
        self.wslab, self.sb = wslab, sb

    def __call__(self, x_nchw):
        x = jnp.transpose(x_nchw, (0, 2, 3, 1))             # NCHW -> NHWC
        N, H, W, Cin = x.shape
        assert H % 2 == 0 and W % 2 == 0, "stride-2 parity tricks assume even H, W"
        Ho = (H - 3) // 2 + 1
        Wo = (W - 3) // 2 + 1
        Ctot = self.couts[1] + self.couts[5] + Cin

        kernel = _make_kernel(N, H, W, Cin, Ho, Wo, self.roffs, self.ks, self.couts)

        # Single grid step: the whole (tiny) batch is folded into the matmul M.
        out = pl.pallas_call(
            kernel,
            out_shape=jax.ShapeDtypeStruct((N * Ho * Wo, Ctot), x.dtype),
            grid=(1,),
            in_specs=[pl.BlockSpec((N, H, W, Cin), lambda g: (0, 0, 0, 0)),
                      pl.BlockSpec(self.wslab.shape, lambda g: (0, 0)),
                      pl.BlockSpec(self.sb.shape, lambda g: (0, 0))],
            out_specs=pl.BlockSpec((N * Ho * Wo, Ctot), lambda g: (0, 0)),
            scratch_shapes=[
                pltpu.VMEM((N, H, W, self.couts[0]), jnp.float32),      # y11
                pltpu.VMEM((N, H, W + 6, self.couts[2]), jnp.float32),  # 1x7 zero-pad
                pltpu.VMEM((N, H + 6, W, self.couts[3]), jnp.float32),  # 7x1 zero-pad
                pltpu.VMEM((N, H, W, self.couts[4]), jnp.float32),      # y23
            ],
        )(x, self.wslab, self.sb)

        out = out.reshape(N, Ho, Wo, Ctot)
        return jnp.transpose(out, (0, 3, 1, 2))             # NHWC -> NCHW


# ------------------------ Pure-JAX reference (check) ------------------------ #

def _ref_basic(x, p, stride=(1, 1), padding=((0, 0), (0, 0)), eps=1e-5):
    y = jax.lax.conv_general_dilated(
        x, p['w'], window_strides=stride, padding=padding,
        dimension_numbers=('NCHW', 'OIHW', 'NCHW'))
    y = y + p['b'][None, :, None, None]
    y = (p['gamma'][None, :, None, None]
         * (y - p['mean'][None, :, None, None])
         * jax.lax.rsqrt(p['var'][None, :, None, None] + eps)
         + p['beta'][None, :, None, None])
    return jnp.maximum(y, 0.0)


def _ref_forward(mod, x):
    b1 = _ref_basic(x, mod.b1_1)
    b1 = _ref_basic(b1, mod.b1_2, stride=(2, 2))
    b2 = _ref_basic(x, mod.b2_1)
    b2 = _ref_basic(b2, mod.b2_2, padding=((0, 0), (3, 3)))
    b2 = _ref_basic(b2, mod.b2_3, padding=((3, 3), (0, 0)))
    b2 = _ref_basic(b2, mod.b2_4, stride=(2, 2))
    b3 = jax.lax.reduce_window(x, 0.0, jax.lax.add,
                               (1, 1, 3, 3), (1, 1, 2, 2), 'VALID') / 9.0
    return jnp.concatenate([b1, b2, b3], axis=1)


# ---------------------------------- Main ------------------------------------ #

if __name__ == "__main__":
    key = jax.random.PRNGKey(0)
    kx, kp = jax.random.split(key)

    in_ch, out_3x3_reduce, out_3x3 = 8, 8, 16
    double7x7_reduce = double_7x7 = 8

    x = jax.random.normal(kx, (2, in_ch, 16, 16), jnp.float32)   # NCHW

    mod = InceptionModuleDownsampleE(kp, in_ch, out_3x3_reduce, out_3x3,
                                     double7x7_reduce, double_7x7)
    out = jax.block_until_ready(mod(x))

    assert out.shape == (2, out_3x3 + double_7x7 + in_ch, 7, 7), out.shape
    ref = _ref_forward(mod, x)
    assert jnp.allclose(out, ref, atol=1e-3, rtol=1e-3), \
        float(jnp.max(jnp.abs(out - ref)))

    print("KERNEL_OK")
</pallas_src>

<mosaic_0001>
module attributes {stable_mosaic.version = 11 : i64} {
  func.func @kernel(%arg0: i32, %arg1: memref<2x16x16x8xf32, #tpu.memory_space<vmem>>, %arg2: memref<272x16xf32, #tpu.memory_space<vmem>>, %arg3: memref<12x16xf32, #tpu.memory_space<vmem>>, %arg4: memref<98x32xf32, #tpu.memory_space<vmem>>, %arg5: memref<2x16x16x8xf32, #tpu.memory_space<vmem>>, %arg6: memref<2x16x22x8xf32, #tpu.memory_space<vmem>>, %arg7: memref<2x22x16x8xf32, #tpu.memory_space<vmem>>, %arg8: memref<2x16x16x8xf32, #tpu.memory_space<vmem>>) attributes {dimension_semantics = [#tpu.dimension_semantics<arbitrary>], iteration_bounds = array<i64: 1>, scalar_prefetch = 0 : i64, scratch_operands = 4 : i64, tpu.core_type = #tpu.core_type<tc>, window_params = [{pipeline_mode = #tpu.pipeline_mode<synchronous>, transform_indices = @transform_0, window_bounds = array<i64: 2, 16, 16, 8>}, {pipeline_mode = #tpu.pipeline_mode<synchronous>, transform_indices = @transform_1, window_bounds = array<i64: 272, 16>}, {pipeline_mode = #tpu.pipeline_mode<synchronous>, transform_indices = @transform_2, window_bounds = array<i64: 12, 16>}, {pipeline_mode = #tpu.pipeline_mode<synchronous>, transform_indices = @transform_3, window_bounds = array<i64: 98, 32>}]} {
    %c0 = arith.constant 0 : index
    %c0_0 = arith.constant 0 : index
    %c0_1 = arith.constant 0 : index
    %c0_2 = arith.constant 0 : index
    %0 = vector.load %arg1[%c0, %c0_0, %c0_1, %c0_2] : memref<2x16x16x8xf32, #tpu.memory_space<vmem>>, vector<2x16x16x8xf32>
    %1 = vector.shape_cast %0 : vector<2x16x16x8xf32> to vector<512x8xf32>
    %c0_3 = arith.constant 0 : index
    %c0_4 = arith.constant 0 : index
    %2 = vector.load %arg2[%c0_3, %c0_4] : memref<272x16xf32, #tpu.memory_space<vmem>>, vector<8x8xf32>
    %cst = arith.constant dense<0.000000e+00> : vector<512x8xf32>
    %3 = tpu.matmul %1, %2, %cst {dimension_numbers = #tpu.dot_dimension_numbers<[1], [0], [0], [1], [0, 0, 1, 1], [], []>} : vector<512x8xf32>, vector<8x8xf32>, vector<512x8xf32> -> vector<512x8xf32>
    %c0_5 = arith.constant 0 : index
    %c0_6 = arith.constant 0 : index
    %4 = vector.load %arg3[%c0_5, %c0_6] : memref<12x16xf32, #tpu.memory_space<vmem>>, vector<1x8xf32>
    %c1 = arith.constant 1 : index
    %c0_7 = arith.constant 0 : index
    %5 = vector.load %arg3[%c1, %c0_7] : memref<12x16xf32, #tpu.memory_space<vmem>>, vector<1x8xf32>
    %6 = vector.broadcast %4 : vector<1x8xf32> to vector<512x8xf32>
    %7 = arith.mulf %3, %6 : vector<512x8xf32>
    %8 = vector.broadcast %5 : vector<1x8xf32> to vector<512x8xf32>
    %9 = arith.addf %7, %8 : vector<512x8xf32>
    %cst_8 = arith.constant 0.000000e+00 : f32
    %10 = vector.broadcast %cst_8 : f32 to vector<512x8xf32>
    %11 = arith.maximumf %9, %10 : vector<512x8xf32>
    %12 = vector.shape_cast %11 : vector<512x8xf32> to vector<2x16x16x8xf32>
    %c0_9 = arith.constant 0 : index
    %c0_10 = arith.constant 0 : index
    %c0_11 = arith.constant 0 : index
    %c0_12 = arith.constant 0 : index
    %13 = vector.load %arg5[%c0_9, %c0_10, %c0_11, %c0_12] : memref<2x16x16x8xf32, #tpu.memory_space<vmem>>, vector<2x16x16x8xf32>
    tpu.vector_store %arg5[%c0_9, %c0_10, %c0_11, %c0_12], %12 {strides = array<i32>} : memref<2x16x16x8xf32, #tpu.memory_space<vmem>>, vector<2x16x16x8xf32>,
    %c0_13 = arith.constant 0 : index
    %c0_14 = arith.constant 0 : index
    %c0_15 = arith.constant 0 : index
    %c0_16 = arith.constant 0 : index
    %14 = tpu.strided_load %arg5[%c0_13, %c0_14, %c0_15, %c0_16] {strides = array<i32: 1, 1, 2, 1>} : memref<2x16x16x8xf32, #tpu.memory_space<vmem>>, vector<2x16x7x8xf32>
    %c0_17 = arith.constant 0 : index
    %c0_18 = arith.constant 0 : index
    %c1_19 = arith.constant 1 : index
    %c0_20 = arith.constant 0 : index
    %15 = tpu.strided_load %arg5[%c0_17, %c0_18, %c1_19, %c0_20] {strides = array<i32: 1, 1, 2, 1>} : memref<2x16x16x8xf32, #tpu.memory_space<vmem>>, vector<2x16x7x8xf32>
    %c0_21 = arith.constant 0 : index
    %c0_22 = arith.constant 0 : index
    %c2 = arith.constant 2 : index
    %c0_23 = arith.constant 0 : index
    %16 = tpu.strided_load %arg5[%c0_21, %c0_22, %c2, %c0_23] {strides = array<i32: 1, 1, 2, 1>} : memref<2x16x16x8xf32, #tpu.memory_space<vmem>>, vector<2x16x7x8xf32>
    %17 = tpu.concatenate %14, %15, %16 in 3 : vector<2x16x7x8xf32>, vector<2x16x7x8xf32>, vector<2x16x7x8xf32> -> vector<2x16x7x24xf32>
    %18 = vector.shape_cast %17 : vector<2x16x7x24xf32> to vector<2x8x2x7x24xf32>
    %19 = vector.extract_strided_slice %18 {offsets = [0, 0, 0, 0, 0], sizes = [2, 7, 1, 7, 24], strides = [1, 1, 1, 1, 1]} : vector<2x8x2x7x24xf32> to vector<2x7x1x7x24xf32>
    %20 = vector.shape_cast %19 : vector<2x7x1x7x24xf32> to vector<2x7x7x24xf32>
    %21 = vector.extract_strided_slice %18 {offsets = [0, 0, 1, 0, 0], sizes = [2, 7, 1, 7, 24], strides = [1, 1, 1, 1, 1]} : vector<2x8x2x7x24xf32> to vector<2x7x1x7x24xf32>
    %22 = vector.shape_cast %21 : vector<2x7x1x7x24xf32> to vector<2x7x7x24xf32>
    %23 = vector.extract_strided_slice %18 {offsets = [0, 1, 0, 0, 0], sizes = [2, 7, 1, 7, 24], strides = [1, 1, 1, 1, 1]} : vector<2x8x2x7x24xf32> to vector<2x7x1x7x24xf32>
    %24 = vector.shape_cast %23 : vector<2x7x1x7x24xf32> to vector<2x7x7x24xf32>
    %25 = tpu.concatenate %20, %22, %24 in 3 : vector<2x7x7x24xf32>, vector<2x7x7x24xf32>, vector<2x7x7x24xf32> -> vector<2x7x7x72xf32>
    %26 = vector.shape_cast %25 : vector<2x7x7x72xf32> to vector<98x72xf32>
    %c8 = arith.constant 8 : index
    %c0_24 = arith.constant 0 : index
    %27 = vector.load %arg2[%c8, %c0_24] : memref<272x16xf32, #tpu.memory_space<vmem>>, vector<72x16xf32>
    %cst_25 = arith.constant dense<0.000000e+00> : vector<98x16xf32>
    %28 = tpu.matmul %26, %27, %cst_25 {dimension_numbers = #tpu.dot_dimension_numbers<[1], [0], [0], [1], [0, 0, 1, 1], [], []>} : vector<98x72xf32>, vector<72x16xf32>, vector<98x16xf32> -> vector<98x16xf32>
    %c2_26 = arith.constant 2 : index
    %c0_27 = arith.constant 0 : index
    %29 = vector.load %arg3[%c2_26, %c0_27] : memref<12x16xf32, #tpu.memory_space<vmem>>, vector<1x16xf32>
    %c3 = arith.constant 3 : index
    %c0_28 = arith.constant 0 : index
    %30 = vector.load %arg3[%c3, %c0_28] : memref<12x16xf32, #tpu.memory_space<vmem>>, vector<1x16xf32>
    %31 = vector.broadcast %29 : vector<1x16xf32> to vector<98x16xf32>
    %32 = arith.mulf %28, %31 : vector<98x16xf32>
    %33 = vector.broadcast %30 : vector<1x16xf32> to vector<98x16xf32>
    %34 = arith.addf %32, %33 : vector<98x16xf32>
    %cst_29 = arith.constant 0.000000e+00 : f32
    %35 = vector.broadcast %cst_29 : f32 to vector<98x16xf32>
    %36 = arith.maximumf %34, %35 : vector<98x16xf32>
    %c80 = arith.constant 80 : index
    %c0_30 = arith.constant 0 : index
    %37 = vector.load %arg2[%c80, %c0_30] : memref<272x16xf32, #tpu.memory_space<vmem>>, vector<8x8xf32>
    %cst_31 = arith.constant dense<0.000000e+00> : vector<512x8xf32>
    %38 = tpu.matmul %1, %37, %cst_31 {dimension_numbers = #tpu.dot_dimension_numbers<[1], [0], [0], [1], [0, 0, 1, 1], [], []>} : vector<512x8xf32>, vector<8x8xf32>, vector<512x8xf32> -> vector<512x8xf32>
    %c4 = arith.constant 4 : index
    %c0_32 = arith.constant 0 : index
    %39 = vector.load %arg3[%c4, %c0_32] : memref<12x16xf32, #tpu.memory_space<vmem>>, vector<1x8xf32>
    %c5 = arith.constant 5 : index
    %c0_33 = arith.constant 0 : index
    %40 = vector.load %arg3[%c5, %c0_33] : memref<12x16xf32, #tpu.memory_space<vmem>>, vector<1x8xf32>
    %41 = vector.broadcast %39 : vector<1x8xf32> to vector<512x8xf32>
    %42 = arith.mulf %38, %41 : vector<512x8xf32>
    %43 = vector.broadcast %40 : vector<1x8xf32> to vector<512x8xf32>
    %44 = arith.addf %42, %43 : vector<512x8xf32>
    %cst_34 = arith.constant 0.000000e+00 : f32
    %45 = vector.broadcast %cst_34 : f32 to vector<512x8xf32>
    %46 = arith.maximumf %44, %45 : vector<512x8xf32>
    %cst_35 = arith.constant 0.000000e+00 : f32
    %47 = vector.broadcast %cst_35 : f32 to vector<2x16x22x8xf32>
    %c0_36 = arith.constant 0 : index
    %c0_37 = arith.constant 0 : index
    %c0_38 = arith.constant 0 : index
    %c0_39 = arith.constant 0 : index
    %48 = vector.load %arg6[%c0_36, %c0_37, %c0_38, %c0_39] : memref<2x16x22x8xf32, #tpu.memory_space<vmem>>, vector<2x16x22x8xf32>
    tpu.vector_store %arg6[%c0_36, %c0_37, %c0_38, %c0_39], %47 {strides = array<i32>} : memref<2x16x22x8xf32, #tpu.memory_space<vmem>>, vector<2x16x22x8xf32>,
    %49 = vector.shape_cast %46 : vector<512x8xf32> to vector<2x16x16x8xf32>
    %c0_40 = arith.constant 0 : index
    %c0_41 = arith.constant 0 : index
    %c3_42 = arith.constant 3 : index
    %c0_43 = arith.constant 0 : index
    %50 = vector.load %arg6[%c0_40, %c0_41, %c3_42, %c0_43] : memref<2x16x22x8xf32, #tpu.memory_space<vmem>>, vector<2x16x16x8xf32>
    tpu.vector_store %arg6[%c0_40, %c0_41, %c3_42, %c0_43], %49 {strides = array<i32>} : memref<2x16x22x8xf32, #tpu.memory_space<vmem>>, vector<2x16x16x8xf32>,
    %c0_44 = arith.constant 0 : index
    %c0_45 = arith.constant 0 : index
    %c0_46 = arith.constant 0 : index
    %c0_47 = arith.constant 0 : index
    %51 = vector.load %arg6[%c0_44, %c0_45, %c0_46, %c0_47] : memref<2x16x22x8xf32, #tpu.memory_space<vmem>>, vector<2x16x16x8xf32>
    %c0_48 = arith.constant 0 : index
    %c0_49 = arith.constant 0 : index
    %c1_50 = arith.constant 1 : index
    %c0_51 = arith.constant 0 : index
    %52 = vector.load %arg6[%c0_48, %c0_49, %c1_50, %c0_51] : memref<2x16x22x8xf32, #tpu.memory_space<vmem>>, vector<2x16x16x8xf32>
    %c0_52 = arith.constant 0 : index
    %c0_53 = arith.constant 0 : index
    %c2_54 = arith.constant 2 : index
    %c0_55 = arith.constant 0 : index
    %53 = vector.load %arg6[%c0_52, %c0_53, %c2_54, %c0_55] : memref<2x16x22x8xf32, #tpu.memory_space<vmem>>, vector<2x16x16x8xf32>
    %c0_56 = arith.constant 0 : index
    %c0_57 = arith.constant 0 : index
    %c3_58 = arith.constant 3 : index
    %c0_59 = arith.constant 0 : index
    %54 = vector.load %arg6[%c0_56, %c0_57, %c3_58, %c0_59] : memref<2x16x22x8xf32, #tpu.memory_space<vmem>>, vector<2x16x16x8xf32>
    %c0_60 = arith.constant 0 : index
    %c0_61 = arith.constant 0 : index
    %c4_62 = arith.constant 4 : index
    %c0_63 = arith.constant 0 : index
    %55 = vector.load %arg6[%c0_60, %c0_61, %c4_62, %c0_63] : memref<2x16x22x8xf32, #tpu.memory_space<vmem>>, vector<2x16x16x8xf32>
    %c0_64 = arith.constant 0 : index
    %c0_65 = arith.constant 0 : index
    %c5_66 = arith.constant 5 : index
    %c0_67 = arith.constant 0 : index
    %56 = vector.load %arg6[%c0_64, %c0_65, %c5_66, %c0_67] : memref<2x16x22x8xf32, #tpu.memory_space<vmem>>, vector<2x16x16x8xf32>
    %c0_68 = arith.constant 0 : index
    %c0_69 = arith.constant 0 : index
    %c6 = arith.constant 6 : index
    %c0_70 = arith.constant 0 : index
    %57 = vector.load %arg6[%c0_68, %c0_69, %c6, %c0_70] : memref<2x16x22x8xf32, #tpu.memory_space<vmem>>, vector<2x16x16x8xf32>
    %58 = tpu.concatenate %51, %52, %53, %54, %55, %56, %57 in 3 : vector<2x16x16x8xf32>, vector<2x16x16x8xf32>, vector<2x16x16x8xf32>, vector<2x16x16x8xf32>, vector<2x16x16x8xf32>, vector<2x16x16x8xf32>, vector<2x16x16x8xf32> -> vector<2x16x16x56xf32>
    %59 = vector.shape_cast %58 : vector<2x16x16x56xf32> to vector<512x56xf32>
    %c88 = arith.constant 88 : index
    %c0_71 = arith.constant 0 : index
    %60 = vector.load %arg2[%c88, %c0_71] : memref<272x16xf32, #tpu.memory_space<vmem>>, vector<56x8xf32>
    %cst_72 = arith.constant dense<0.000000e+00> : vector<512x8xf32>
    %61 = tpu.matmul %59, %60, %cst_72 {dimension_numbers = #tpu.dot_dimension_numbers<[1], [0], [0], [1], [0, 0, 1, 1], [], []>} : vector<512x56xf32>, vector<56x8xf32>, vector<512x8xf32> -> vector<512x8xf32>
    %c6_73 = arith.constant 6 : index
    %c0_74 = arith.constant 0 : index
    %62 = vector.load %arg3[%c6_73, %c0_74] : memref<12x16xf32, #tpu.memory_space<vmem>>, vector<1x8xf32>
    %c7 = arith.constant 7 : index
    %c0_75 = arith.constant 0 : index
    %63 = vector.load %arg3[%c7, %c0_75] : memref<12x16xf32, #tpu.memory_space<vmem>>, vector<1x8xf32>
    %64 = vector.broadcast %62 : vector<1x8xf32> to vector<512x8xf32>
    %65 = arith.mulf %61, %64 : vector<512x8xf32>
    %66 = vector.broadcast %63 : vector<1x8xf32> to vector<512x8xf32>
    %67 = arith.addf %65, %66 : vector<512x8xf32>
    %cst_76 = arith.constant 0.000000e+00 : f32
    %68 = vector.broadcast %cst_76 : f32 to vector<512x8xf32>
    %69 = arith.maximumf %67, %68 : vector<512x8xf32>
    %cst_77 = arith.constant 0.000000e+00 : f32
    %70 = vector.broadcast %cst_77 : f32 to vector<2x22x16x8xf32>
    %c0_78 = arith.constant 0 : index
    %c0_79 = arith.constant 0 : index
    %c0_80 = arith.constant 0 : index
    %c0_81 = arith.constant 0 : index
    %71 = vector.load %arg7[%c0_78, %c0_79, %c0_80, %c0_81] : memref<2x22x16x8xf32, #tpu.memory_space<vmem>>, vector<2x22x16x8xf32>
    tpu.vector_store %arg7[%c0_78, %c0_79, %c0_80, %c0_81], %70 {strides = array<i32>} : memref<2x22x16x8xf32, #tpu.memory_space<vmem>>, vector<2x22x16x8xf32>,
    %72 = vector.shape_cast %69 : vector<512x8xf32> to vector<2x16x16x8xf32>
    %c0_82 = arith.constant 0 : index
    %c3_83 = arith.constant 3 : index
    %c0_84 = arith.constant 0 : index
    %c0_85 = arith.constant 0 : index
    %73 = vector.load %arg7[%c0_82, %c3_83, %c0_84, %c0_85] : memref<2x22x16x8xf32, #tpu.memory_space<vmem>>, vector<2x16x16x8xf32>
    tpu.vector_store %arg7[%c0_82, %c3_83, %c0_84, %c0_85], %72 {strides = array<i32>} : memref<2x22x16x8xf32, #tpu.memory_space<vmem>>, vector<2x16x16x8xf32>,
    %c0_86 = arith.constant 0 : index
    %c0_87 = arith.constant 0 : index
    %c0_88 = arith.constant 0 : index
    %c0_89 = arith.constant 0 : index
    %74 = vector.load %arg7[%c0_86, %c0_87, %c0_88, %c0_89] : memref<2x22x16x8xf32, #tpu.memory_space<vmem>>, vector<2x16x16x8xf32>
    %c0_90 = arith.constant 0 : index
    %c1_91 = arith.constant 1 : index
    %c0_92 = arith.constant 0 : index
    %c0_93 = arith.constant 0 : index
    %75 = vector.load %arg7[%c0_90, %c1_91, %c0_92, %c0_93] : memref<2x22x16x8xf32, #tpu.memory_space<vmem>>, vector<2x16x16x8xf32>
    %c0_94 = arith.constant 0 : index
    %c2_95 = arith.constant 2 : index
    %c0_96 = arith.constant 0 : index
    %c0_97 = arith.constant 0 : index
    %76 = vector.load %arg7[%c0_94, %c2_95, %c0_96, %c0_97] : memref<2x22x16x8xf32, #tpu.memory_space<vmem>>, vector<2x16x16x8xf32>
    %c0_98 = arith.constant 0 : index
    %c3_99 = arith.constant 3 : index
    %c0_100 = arith.constant 0 : index
    %c0_101 = arith.constant 0 : index
    %77 = vector.load %arg7[%c0_98, %c3_99, %c0_100, %c0_101] : memref<2x22x16x8xf32, #tpu.memory_space<vmem>>, vector<2x16x16x8xf32>
    %c0_102 = arith.constant 0 : index
    %c4_103 = arith.constant 4 : index
    %c0_104 = arith.constant 0 : index
    %c0_105 = arith.constant 0 : index
    %78 = vector.load %arg7[%c0_102, %c4_103, %c0_104, %c0_105] : memref<2x22x16x8xf32, #tpu.memory_space<vmem>>, vector<2x16x16x8xf32>
    %c0_106 = arith.constant 0 : index
    %c5_107 = arith.constant 5 : index
    %c0_108 = arith.constant 0 : index
    %c0_109 = arith.constant 0 : index
    %79 = vector.load %arg7[%c0_106, %c5_107, %c0_108, %c0_109] : memref<2x22x16x8xf32, #tpu.memory_space<vmem>>, vector<2x16x16x8xf32>
    %c0_110 = arith.constant 0 : index
    %c6_111 = arith.constant 6 : index
    %c0_112 = arith.constant 0 : index
    %c0_113 = arith.constant 0 : index
    %80 = vector.load %arg7[%c0_110, %c6_111, %c0_112, %c0_113] : memref<2x22x16x8xf32, #tpu.memory_space<vmem>>, vector<2x16x16x8xf32>
    %81 = tpu.concatenate %74, %75, %76, %77, %78, %79, %80 in 3 : vector<2x16x16x8xf32>, vector<2x16x16x8xf32>, vector<2x16x16x8xf32>, vector<2x16x16x8xf32>, vector<2x16x16x8xf32>, vector<2x16x16x8xf32>, vector<2x16x16x8xf32> -> vector<2x16x16x56xf32>
    %82 = vector.shape_cast %81 : vector<2x16x16x56xf32> to vector<512x56xf32>
    %c144 = arith.constant 144 : index
    %c0_114 = arith.constant 0 : index
    %83 = vector.load %arg2[%c144, %c0_114] : memref<272x16xf32, #tpu.memory_space<vmem>>, vector<56x8xf32>
    %cst_115 = arith.constant dense<0.000000e+00> : vector<512x8xf32>
    %84 = tpu.matmul %82, %83, %cst_115 {dimension_numbers = #tpu.dot_dimension_numbers<[1], [0], [0], [1], [0, 0, 1, 1], [], []>} : vector<512x56xf32>, vector<56x8xf32>, vector<512x8xf32> -> vector<512x8xf32>
    %c8_116 = arith.constant 8 : index
    %c0_117 = arith.constant 0 : index
    %85 = vector.load %arg3[%c8_116, %c0_117] : memref<12x16xf32, #tpu.memory_space<vmem>>, vector<1x8xf32>
    %c9 = arith.constant 9 : index
    %c0_118 = arith.constant 0 : index
    %86 = vector.load %arg3[%c9, %c0_118] : memref<12x16xf32, #tpu.memory_space<vmem>>, vector<1x8xf32>
    %87 = vector.broadcast %85 : vector<1x8xf32> to vector<512x8xf32>
    %88 = arith.mulf %84, %87 : vector<512x8xf32>
    %89 = vector.broadcast %86 : vector<1x8xf32> to vector<512x8xf32>
    %90 = arith.addf %88, %89 : vector<512x8xf32>
    %cst_119 = arith.constant 0.000000e+00 : f32
    %91 = vector.broadcast %cst_119 : f32 to vector<512x8xf32>
    %92 = arith.maximumf %90, %91 : vector<512x8xf32>
    %93 = vector.shape_cast %92 : vector<512x8xf32> to vector<2x16x16x8xf32>
    %c0_120 = arith.constant 0 : index
    %c0_121 = arith.constant 0 : index
    %c0_122 = arith.constant 0 : index
    %c0_123 = arith.constant 0 : index
    %94 = vector.load %arg8[%c0_120, %c0_121, %c0_122, %c0_123] : memref<2x16x16x8xf32, #tpu.memory_space<vmem>>, vector<2x16x16x8xf32>
    tpu.vector_store %arg8[%c0_120, %c0_121, %c0_122, %c0_123], %93 {strides = array<i32>} : memref<2x16x16x8xf32, #tpu.memory_space<vmem>>, vector<2x16x16x8xf32>,
    %c0_124 = arith.constant 0 : index
    %c0_125 = arith.constant 0 : index
    %c0_126 = arith.constant 0 : index
    %c0_127 = arith.constant 0 : index
    %95 = tpu.strided_load %arg8[%c0_124, %c0_125, %c0_126, %c0_127] {strides = array<i32: 1, 1, 2, 1>} : memref<2x16x16x8xf32, #tpu.memory_space<vmem>>, vector<2x16x7x8xf32>
    %c0_128 = arith.constant 0 : index
    %c0_129 = arith.constant 0 : index
    %c1_130 = arith.constant 1 : index
    %c0_131 = arith.constant 0 : index
    %96 = tpu.strided_load %arg8[%c0_128, %c0_129, %c1_130, %c0_131] {strides = array<i32: 1, 1, 2, 1>} : memref<2x16x16x8xf32, #tpu.memory_space<vmem>>, vector<2x16x7x8xf32>
    %c0_132 = arith.constant 0 : index
    %c0_133 = arith.constant 0 : index
    %c2_134 = arith.constant 2 : index
    %c0_135 = arith.constant 0 : index
    %97 = tpu.strided_load %arg8[%c0_132, %c0_133, %c2_134, %c0_135] {strides = array<i32: 1, 1, 2, 1>} : memref<2x16x16x8xf32, #tpu.memory_space<vmem>>, vector<2x16x7x8xf32>
    %98 = tpu.concatenate %95, %96, %97 in 3 : vector<2x16x7x8xf32>, vector<2x16x7x8xf32>, vector<2x16x7x8xf32> -> vector<2x16x7x24xf32>
    %99 = vector.shape_cast %98 : vector<2x16x7x24xf32> to vector<2x8x2x7x24xf32>
    %100 = vector.extract_strided_slice %99 {offsets = [0, 0, 0, 0, 0], sizes = [2, 7, 1, 7, 24], strides = [1, 1, 1, 1, 1]} : vector<2x8x2x7x24xf32> to vector<2x7x1x7x24xf32>
    %101 = vector.shape_cast %100 : vector<2x7x1x7x24xf32> to vector<2x7x7x24xf32>
    %102 = vector.extract_strided_slice %99 {offsets = [0, 0, 1, 0, 0], sizes = [2, 7, 1, 7, 24], strides = [1, 1, 1, 1, 1]} : vector<2x8x2x7x24xf32> to vector<2x7x1x7x24xf32>
    %103 = vector.shape_cast %102 : vector<2x7x1x7x24xf32> to vector<2x7x7x24xf32>
    %104 = vector.extract_strided_slice %99 {offsets = [0, 1, 0, 0, 0], sizes = [2, 7, 1, 7, 24], strides = [1, 1, 1, 1, 1]} : vector<2x8x2x7x24xf32> to vector<2x7x1x7x24xf32>
    %105 = vector.shape_cast %104 : vector<2x7x1x7x24xf32> to vector<2x7x7x24xf32>
    %106 = tpu.concatenate %101, %103, %105 in 3 : vector<2x7x7x24xf32>, vector<2x7x7x24xf32>, vector<2x7x7x24xf32> -> vector<2x7x7x72xf32>
    %107 = vector.shape_cast %106 : vector<2x7x7x72xf32> to vector<98x72xf32>
    %c200 = arith.constant 200 : index
    %c0_136 = arith.constant 0 : index
    %108 = vector.load %arg2[%c200, %c0_136] : memref<272x16xf32, #tpu.memory_space<vmem>>, vector<72x8xf32>
    %cst_137 = arith.constant dense<0.000000e+00> : vector<98x8xf32>
    %109 = tpu.matmul %107, %108, %cst_137 {dimension_numbers = #tpu.dot_dimension_numbers<[1], [0], [0], [1], [0, 0, 1, 1], [], []>} : vector<98x72xf32>, vector<72x8xf32>, vector<98x8xf32> -> vector<98x8xf32>
    %c10 = arith.constant 10 : index
    %c0_138 = arith.constant 0 : index
    %110 = vector.load %arg3[%c10, %c0_138] : memref<12x16xf32, #tpu.memory_space<vmem>>, vector<1x8xf32>
    %c11 = arith.constant 11 : index
    %c0_139 = arith.constant 0 : index
    %111 = vector.load %arg3[%c11, %c0_139] : memref<12x16xf32, #tpu.memory_space<vmem>>, vector<1x8xf32>
    %112 = vector.broadcast %110 : vector<1x8xf32> to vector<98x8xf32>
    %113 = arith.mulf %109, %112 : vector<98x8xf32>
    %114 = vector.broadcast %111 : vector<1x8xf32> to vector<98x8xf32>
    %115 = arith.addf %113, %114 : vector<98x8xf32>
    %cst_140 = arith.constant 0.000000e+00 : f32
    %116 = vector.broadcast %cst_140 : f32 to vector<98x8xf32>
    %117 = arith.maximumf %115, %116 : vector<98x8xf32>
    %c0_141 = arith.constant 0 : index
    %c0_142 = arith.constant 0 : index
    %c0_143 = arith.constant 0 : index
    %c0_144 = arith.constant 0 : index
    %118 = tpu.strided_load %arg1[%c0_141, %c0_142, %c0_143, %c0_144] {strides = array<i32: 1, 1, 2, 1>} : memref<2x16x16x8xf32, #tpu.memory_space<vmem>>, vector<2x16x7x8xf32>
    %c0_145 = arith.constant 0 : index
    %c0_146 = arith.constant 0 : index
    %c1_147 = arith.constant 1 : index
    %c0_148 = arith.constant 0 : index
    %119 = tpu.strided_load %arg1[%c0_145, %c0_146, %c1_147, %c0_148] {strides = array<i32: 1, 1, 2, 1>} : memref<2x16x16x8xf32, #tpu.memory_space<vmem>>, vector<2x16x7x8xf32>
    %120 = arith.addf %118, %119 : vector<2x16x7x8xf32>
    %c0_149 = arith.constant 0 : index
    %c0_150 = arith.constant 0 : index
    %c2_151 = arith.constant 2 : index
    %c0_152 = arith.constant 0 : index
    %121 = tpu.strided_load %arg1[%c0_149, %c0_150, %c2_151, %c0_152] {strides = array<i32: 1, 1, 2, 1>} : memref<2x16x16x8xf32, #tpu.memory_space<vmem>>, vector<2x16x7x8xf32>
    %122 = arith.addf %120, %121 : vector<2x16x7x8xf32>
    %123 = vector.shape_cast %122 : vector<2x16x7x8xf32> to vector<2x8x2x7x8xf32>
    %124 = vector.extract_strided_slice %123 {offsets = [0, 0, 0, 0, 0], sizes = [2, 7, 1, 7, 8], strides = [1, 1, 1, 1, 1]} : vector<2x8x2x7x8xf32> to vector<2x7x1x7x8xf32>
    %125 = vector.shape_cast %124 : vector<2x7x1x7x8xf32> to vector<2x7x7x8xf32>
    %126 = vector.extract_strided_slice %123 {offsets = [0, 0, 1, 0, 0], sizes = [2, 7, 1, 7, 8], strides = [1, 1, 1, 1, 1]} : vector<2x8x2x7x8xf32> to vector<2x7x1x7x8xf32>
    %127 = vector.shape_cast %126 : vector<2x7x1x7x8xf32> to vector<2x7x7x8xf32>
    %128 = arith.addf %125, %127 : vector<2x7x7x8xf32>
    %129 = vector.extract_strided_slice %123 {offsets = [0, 1, 0, 0, 0], sizes = [2, 7, 1, 7, 8], strides = [1, 1, 1, 1, 1]} : vector<2x8x2x7x8xf32> to vector<2x7x1x7x8xf32>
    %130 = vector.shape_cast %129 : vector<2x7x1x7x8xf32> to vector<2x7x7x8xf32>
    %131 = arith.addf %128, %130 : vector<2x7x7x8xf32>
    %cst_153 = arith.constant 0.111111112 : f32
    %132 = vector.broadcast %cst_153 : f32 to vector<2x7x7x8xf32>
    %133 = arith.mulf %131, %132 : vector<2x7x7x8xf32>
    %134 = vector.shape_cast %133 : vector<2x7x7x8xf32> to vector<98x8xf32>
    %135 = tpu.concatenate %36, %117, %134 in 1 : vector<98x16xf32>, vector<98x8xf32>, vector<98x8xf32> -> vector<98x32xf32>
    %c0_154 = arith.constant 0 : index
    %c0_155 = arith.constant 0 : index
    %136 = vector.load %arg4[%c0_154, %c0_155] : memref<98x32xf32, #tpu.memory_space<vmem>>, vector<98x32xf32>
    tpu.vector_store %arg4[%c0_154, %c0_155], %135 {strides = array<i32>} : memref<98x32xf32, #tpu.memory_space<vmem>>, vector<98x32xf32>,
    return
  }
  func.func @transform_0(%arg0: i32) -> (i32, i32, i32, i32) {
    %c0_i32 = arith.constant 0 : i32
    %c0_i32_0 = arith.constant 0 : i32
    %c0_i32_1 = arith.constant 0 : i32
    %c0_i32_2 = arith.constant 0 : i32
    %c0_i32_3 = arith.constant 0 : i32
    return %c0_i32, %c0_i32_0, %c0_i32_1, %c0_i32_2 : i32, i32, i32, i32
  }
  func.func @transform_1(%arg0: i32) -> (i32, i32) {
    %c0_i32 = arith.constant 0 : i32
    %c0_i32_0 = arith.constant 0 : i32
    %c0_i32_1 = arith.constant 0 : i32
    return %c0_i32, %c0_i32_0 : i32, i32
  }
  func.func @transform_2(%arg0: i32) -> (i32, i32) {
    %c0_i32 = arith.constant 0 : i32
    %c0_i32_0 = arith.constant 0 : i32
    %c0_i32_1 = arith.constant 0 : i32
    return %c0_i32, %c0_i32_0 : i32, i32
  }
  func.func @transform_3(%arg0: i32) -> (i32, i32) {
    %c0_i32 = arith.constant 0 : i32
    %c0_i32_0 = arith.constant 0 : i32
    %c0_i32_1 = arith.constant 0 : i32
    return %c0_i32, %c0_i32_0 : i32, i32
  }
}

</mosaic_0001>

<llo_original>
// kernel: tpu_custom_call.1
$region0: #{tpu_custom_call.1}
  #allocation0 [shape = 'u32[]', space=smem, size = 0x4, offset = 0x4, fixed_abs, tag = 'smem constant byte address 0x4 - core index']
  #allocation1 [shape = 'u32[72,128]{1,0:T(1,128)}', space=vmem, size = 0x9000, scoped, tag = 'internal scratch']
  #allocation2 [shape = 'f32[2,16,16,8]{3,2,1,0:T(8,128)}', space=vmem, size = 0x40000, scoped, tag = 'scratch operand']
  #allocation3 [shape = 'f32[2,16,22,8]{3,2,1,0:T(8,128)}', space=vmem, size = 0x60000, scoped, tag = 'scratch operand']
  #allocation4 [shape = 'f32[2,22,16,8]{3,2,1,0:T(8,128)}', space=vmem, size = 0x58000, scoped, tag = 'scratch operand']
  #allocation5 [shape = 'f32[2,16,16,8]{3,2,1,0:T(8,128)}', space=vmem, size = 0x40000, scoped, tag = 'scratch operand']
  %s0 = inlined_call_operand.vmem [shape: f32[2,16,16,8], index: 0, kind: input, shape index: {}]
  %s1 = inlined_call_operand.vmem [shape: f32[272,16], index: 1, kind: input, shape index: {}]
  %s2 = inlined_call_operand.vmem [shape: f32[12,16], index: 2, kind: input, shape index: {}]
  %s3 = inlined_call_operand.vmem [shape: f32[98,32], index: 3, kind: output, shape index: {}]
  %s4 = sld [smem:[#allocation0]]
  $region22: #{tpu_custom_call.1} parent=0
    _
  %s6 = ssub.s32 1, %s4
  %s7 = scalar_select 0, %s6, %s4
  // Predicated region
  $region2: #{tpu_custom_call.1} parent=0 // pred_check
    _
  $region3: #{tpu_custom_call.1} parent=0 // pred_check_branch
    %9 = sbr.rel (0) target = $region5
  $region4: #{tpu_custom_call.1} parent=0 // pred_region
    _
  $region5: #{tpu_custom_call.1} parent=0 // pred_fallthru
    _
  // Predicated region
  $region6: #{tpu_custom_call.1} parent=0 // pred_check
    _
  $region7: #{tpu_custom_call.1} parent=0 // pred_check_branch
    %11 = sbr.rel (0) target = $region9
  $region8: #{tpu_custom_call.1} parent=0 // pred_region
    _
  $region9: #{tpu_custom_call.1} parent=0 // pred_fallthru
    _
  // Predicated region
  $region10: #{tpu_custom_call.1} parent=0 // pred_check
    _
  $region11: #{tpu_custom_call.1} parent=0 // pred_check_branch
    %13 = sbr.rel (0) target = $region13
  $region12: #{tpu_custom_call.1} parent=0 // pred_region
    _
  $region13: #{tpu_custom_call.1} parent=0 // pred_fallthru
    _
  %v14 = vld [vmem:[%s0] sm:$0xff]
  %v15 = vld [vmem:[%s0 + $0x8] sm:$0xff]
  %v16 = vld [vmem:[%s0 + $0x10] sm:$0xff]
  %v17 = vld [vmem:[%s0 + $0x18] sm:$0xff]
  %v18 = vld [vmem:[%s0 + $0x20] sm:$0xff]
  %v19 = vld [vmem:[%s0 + $0x28] sm:$0xff]
  %v20 = vld [vmem:[%s0 + $0x30] sm:$0xff]
  %v21 = vld [vmem:[%s0 + $0x38] sm:$0xff]
  %v22 = vld [vmem:[%s0 + $0x40] sm:$0xff]
  %v23 = vld [vmem:[%s0 + $0x48] sm:$0xff]
  %v24 = vld [vmem:[%s0 + $0x50] sm:$0xff]
  %v25 = vld [vmem:[%s0 + $0x58] sm:$0xff]
  %v26 = vld [vmem:[%s0 + $0x60] sm:$0xff]
  %v27 = vld [vmem:[%s0 + $0x68] sm:$0xff]
  %v28 = vld [vmem:[%s0 + $0x70] sm:$0xff]
  %v29 = vld [vmem:[%s0 + $0x78] sm:$0xff]
  %v30 = vld [vmem:[%s0 + $0x80] sm:$0xff]
  %v31 = vld [vmem:[%s0 + $0x88] sm:$0xff]
  %v32 = vld [vmem:[%s0 + $0x90] sm:$0xff]
  %v33 = vld [vmem:[%s0 + $0x98] sm:$0xff]
  %v34 = vld [vmem:[%s0 + $0xa0] sm:$0xff]
  %v35 = vld [vmem:[%s0 + $0xa8] sm:$0xff]
  %v36 = vld [vmem:[%s0 + $0xb0] sm:$0xff]
  %v37 = vld [vmem:[%s0 + $0xb8] sm:$0xff]
  %v38 = vld [vmem:[%s0 + $0xc0] sm:$0xff]
  %v39 = vld [vmem:[%s0 + $0xc8] sm:$0xff]
  %v40 = vld [vmem:[%s0 + $0xd0] sm:$0xff]
  %v41 = vld [vmem:[%s0 + $0xd8] sm:$0xff]
  %v42 = vld [vmem:[%s0 + $0xe0] sm:$0xff]
  %v43 = vld [vmem:[%s0 + $0xe8] sm:$0xff]
  %v44 = vld [vmem:[%s0 + $0xf0] sm:$0xff]
  %v45 = vld [vmem:[%s0 + $0xf8] sm:$0xff]
  %v46 = vld [vmem:[%s0 + $0x100] sm:$0xff]
  %v47 = vld [vmem:[%s0 + $0x108] sm:$0xff]
  %v48 = vld [vmem:[%s0 + $0x110] sm:$0xff]
  %v49 = vld [vmem:[%s0 + $0x118] sm:$0xff]
  %v50 = vld [vmem:[%s0 + $0x120] sm:$0xff]
  %v51 = vld [vmem:[%s0 + $0x128] sm:$0xff]
  %v52 = vld [vmem:[%s0 + $0x130] sm:$0xff]
  %v53 = vld [vmem:[%s0 + $0x138] sm:$0xff]
  %v54 = vld [vmem:[%s0 + $0x140] sm:$0xff]
  %v55 = vld [vmem:[%s0 + $0x148] sm:$0xff]
  %v56 = vld [vmem:[%s0 + $0x150] sm:$0xff]
  %v57 = vld [vmem:[%s0 + $0x158] sm:$0xff]
  %v58 = vld [vmem:[%s0 + $0x160] sm:$0xff]
  %v59 = vld [vmem:[%s0 + $0x168] sm:$0xff]
  %v60 = vld [vmem:[%s0 + $0x170] sm:$0xff]
  %v61 = vld [vmem:[%s0 + $0x178] sm:$0xff]
  %v62 = vld [vmem:[%s0 + $0x180] sm:$0xff]
  %v63 = vld [vmem:[%s0 + $0x188] sm:$0xff]
  %v64 = vld [vmem:[%s0 + $0x190] sm:$0xff]
  %v65 = vld [vmem:[%s0 + $0x198] sm:$0xff]
  %v66 = vld [vmem:[%s0 + $0x1a0] sm:$0xff]
  %v67 = vld [vmem:[%s0 + $0x1a8] sm:$0xff]
  %v68 = vld [vmem:[%s0 + $0x1b0] sm:$0xff]
  %v69 = vld [vmem:[%s0 + $0x1b8] sm:$0xff]
  %v70 = vld [vmem:[%s0 + $0x1c0] sm:$0xff]
  %v71 = vld [vmem:[%s0 + $0x1c8] sm:$0xff]
  %v72 = vld [vmem:[%s0 + $0x1d0] sm:$0xff]
  %v73 = vld [vmem:[%s0 + $0x1d8] sm:$0xff]
  %v74 = vld [vmem:[%s0 + $0x1e0] sm:$0xff]
  %v75 = vld [vmem:[%s0 + $0x1e8] sm:$0xff]
  %v76 = vld [vmem:[%s0 + $0x1f0] sm:$0xff]
  %v77 = vld [vmem:[%s0 + $0x1f8] sm:$0xff]
  %v78 = vld [vmem:[%s1] sm:$0xff]
  %vm79 = vcmask 64512
  %v81 = vsel %vm79, %v14, 0
  %v84 = vsel %vm79, %v15, 0
  %v87 = vsel %vm79, %v16, 0
  %v90 = vsel %vm79, %v17, 0
  %v93 = vsel %vm79, %v18, 0
  %v96 = vsel %vm79, %v19, 0
  %v99 = vsel %vm79, %v20, 0
  %v102 = vsel %vm79, %v21, 0
  %v105 = vsel %vm79, %v22, 0
  %v108 = vsel %vm79, %v23, 0
  %v111 = vsel %vm79, %v24, 0
  %v114 = vsel %vm79, %v25, 0
  %v117 = vsel %vm79, %v26, 0
  %v120 = vsel %vm79, %v27, 0
  %v123 = vsel %vm79, %v28, 0
  %v126 = vsel %vm79, %v29, 0
  %v129 = vsel %vm79, %v30, 0
  %v132 = vsel %vm79, %v31, 0
  %v135 = vsel %vm79, %v32, 0
  %v138 = vsel %vm79, %v33, 0
  %v141 = vsel %vm79, %v34, 0
  %v144 = vsel %vm79, %v35, 0
  %v147 = vsel %vm79, %v36, 0
  %v150 = vsel %vm79, %v37, 0
  %v153 = vsel %vm79, %v38, 0
  %v156 = vsel %vm79, %v39, 0
  %v159 = vsel %vm79, %v40, 0
  %v162 = vsel %vm79, %v41, 0
  %v165 = vsel %vm79, %v42, 0
  %v168 = vsel %vm79, %v43, 0
  %v171 = vsel %vm79, %v44, 0
  %v174 = vsel %vm79, %v45, 0
  %v177 = vsel %vm79, %v46, 0
  %v180 = vsel %vm79, %v47, 0
  %v183 = vsel %vm79, %v48, 0
  %v186 = vsel %vm79, %v49, 0
  %v189 = vsel %vm79, %v50, 0
  %v192 = vsel %vm79, %v51, 0
  %v195 = vsel %vm79, %v52, 0
  %v198 = vsel %vm79, %v53, 0
  %v201 = vsel %vm79, %v54, 0
  %v204 = vsel %vm79, %v55, 0
  %v207 = vsel %vm79, %v56, 0
  %v210 = vsel %vm79, %v57, 0
  %v213 = vsel %vm79, %v58, 0
  %v216 = vsel %vm79, %v59, 0
  %v219 = vsel %vm79, %v60, 0
  %v222 = vsel %vm79, %v61, 0
  %v225 = vsel %vm79, %v62, 0
  %v228 = vsel %vm79, %v63, 0
  %v231 = vsel %vm79, %v64, 0
  %v234 = vsel %vm79, %v65, 0
  %v237 = vsel %vm79, %v66, 0
  %v240 = vsel %vm79, %v67, 0
  %v243 = vsel %vm79, %v68, 0
  %v246 = vsel %vm79, %v69, 0
  %v249 = vsel %vm79, %v70, 0
  %v252 = vsel %vm79, %v71, 0
  %v255 = vsel %vm79, %v72, 0
  %v258 = vsel %vm79, %v73, 0
  %v261 = vsel %vm79, %v74, 0
  %v264 = vsel %vm79, %v75, 0
  %v267 = vsel %vm79, %v76, 0
  %v270 = vsel %vm79, %v77, 0
  %272 = vmatpush.msra.mxu0 0.0
  %273 = vmatpush.msra.mxu0 0.0
  %274 = vmatpush.msra.mxu0 0.0
  %275 = vmatpush.msra.mxu0 0.0
  %276 = vmatpush.msra.mxu0 0.0
  %277 = vmatpush.msra.mxu0 0.0
  %278 = vmatpush.msra.mxu0 0.0
  %279 = vmatpush.msra.mxu0 0.0
  %280 = vmatpush.msra.mxu0 0.0
  %281 = vmatpush.msra.mxu0 0.0
  %282 = vmatpush.msra.mxu0 0.0
  %283 = vmatpush.msra.mxu0 0.0
  %284 = vmatpush.msra.mxu0 0.0
  %285 = vmatpush.msra.mxu0 0.0
  %286 = vmatpush.msra.mxu0 0.0
  %287 = vmatpush.msra.mxu0 %v78
  %288 = vmatmul.f32.gmra.mxu0 %v81
  %v289 = vpop.f32.mrf.mxu0
  %v290 = vadd.f32 0.0, %v289
  %291 = vmatmul.f32.gmra.mxu0 %v84
  %v292 = vpop.f32.mrf.mxu0
  %v293 = vadd.f32 0.0, %v292
  %294 = vmatmul.f32.gmra.mxu0 %v87
  %v295 = vpop.f32.mrf.mxu0
  %v296 = vadd.f32 0.0, %v295
  %297 = vmatmul.f32.gmra.mxu0 %v90
  %v298 = vpop.f32.mrf.mxu0
  %v299 = vadd.f32 0.0, %v298
  %300 = vmatmul.f32.gmra.mxu0 %v93
  %v301 = vpop.f32.mrf.mxu0
  %v302 = vadd.f32 0.0, %v301
  %303 = vmatmul.f32.gmra.mxu0 %v96
  %v304 = vpop.f32.mrf.mxu0
  %v305 = vadd.f32 0.0, %v304
  %306 = vmatmul.f32.gmra.mxu0 %v99
  %v307 = vpop.f32.mrf.mxu0
  %v308 = vadd.f32 0.0, %v307
  %309 = vmatmul.f32.gmra.mxu0 %v102
  %v310 = vpop.f32.mrf.mxu0
  %v311 = vadd.f32 0.0, %v310
  %312 = vmatmul.f32.gmra.mxu0 %v105
  %v313 = vpop.f32.mrf.mxu0
  %v314 = vadd.f32 0.0, %v313
  %315 = vmatmul.f32.gmra.mxu0 %v108
  %v316 = vpop.f32.mrf.mxu0
  %v317 = vadd.f32 0.0, %v316
  %318 = vmatmul.f32.gmra.mxu0 %v111
  %v319 = vpop.f32.mrf.mxu0
  %v320 = vadd.f32 0.0, %v319
  %321 = vmatmul.f32.gmra.mxu0 %v114
  %v322 = vpop.f32.mrf.mxu0
  %v323 = vadd.f32 0.0, %v322
  %324 = vmatmul.f32.gmra.mxu0 %v117
  %v325 = vpop.f32.mrf.mxu0
  %v326 = vadd.f32 0.0, %v325
  %327 = vmatmul.f32.gmra.mxu0 %v120
  %v328 = vpop.f32.mrf.mxu0
  %v329 = vadd.f32 0.0, %v328
  %330 = vmatmul.f32.gmra.mxu0 %v123
  %v331 = vpop.f32.mrf.mxu0
  %v332 = vadd.f32 0.0, %v331
  %333 = vmatmul.f32.gmra.mxu0 %v126
  %v334 = vpop.f32.mrf.mxu0
  %v335 = vadd.f32 0.0, %v334
  %336 = vmatmul.f32.gmra.mxu0 %v129
  %v337 = vpop.f32.mrf.mxu0
  %v338 = vadd.f32 0.0, %v337
  %339 = vmatmul.f32.gmra.mxu0 %v132
  %v340 = vpop.f32.mrf.mxu0
  %v341 = vadd.f32 0.0, %v340
  %342 = vmatmul.f32.gmra.mxu0 %v135
  %v343 = vpop.f32.mrf.mxu0
  %v344 = vadd.f32 0.0, %v343
  %345 = vmatmul.f32.gmra.mxu0 %v138
  %v346 = vpop.f32.mrf.mxu0
  %v347 = vadd.f32 0.0, %v346
  %348 = vmatmul.f32.gmra.mxu0 %v141
  %v349 = vpop.f32.mrf.mxu0
  %v350 = vadd.f32 0.0, %v349
  %351 = vmatmul.f32.gmra.mxu0 %v144
  %v352 = vpop.f32.mrf.mxu0
  %v353 = vadd.f32 0.0, %v352
  %354 = vmatmul.f32.gmra.mxu0 %v147
  %v355 = vpop.f32.mrf.mxu0
  %v356 = vadd.f32 0.0, %v355
  %357 = vmatmul.f32.gmra.mxu0 %v150
  %v358 = vpop.f32.mrf.mxu0
  %v359 = vadd.f32 0.0, %v358
  %360 = vmatmul.f32.gmra.mxu0 %v153
  %v361 = vpop.f32.mrf.mxu0
  %v362 = vadd.f32 0.0, %v361
  %363 = vmatmul.f32.gmra.mxu0 %v156
  %v364 = vpop.f32.mrf.mxu0
  %v365 = vadd.f32 0.0, %v364
  %366 = vmatmul.f32.gmra.mxu0 %v159
  %v367 = vpop.f32.mrf.mxu0
  %v368 = vadd.f32 0.0, %v367
  %369 = vmatmul.f32.gmra.mxu0 %v162
  %v370 = vpop.f32.mrf.mxu0
  %v371 = vadd.f32 0.0, %v370
  %372 = vmatmul.f32.gmra.mxu0 %v165
  %v373 = vpop.f32.mrf.mxu0
  %v374 = vadd.f32 0.0, %v373
  %375 = vmatmul.f32.gmra.mxu0 %v168
  %v376 = vpop.f32.mrf.mxu0
  %v377 = vadd.f32 0.0, %v376
  %378 = vmatmul.f32.gmra.mxu0 %v171
  %v379 = vpop.f32.mrf.mxu0
  %v380 = vadd.f32 0.0, %v379
  %381 = vmatmul.f32.gmra.mxu0 %v174
  %v382 = vpop.f32.mrf.mxu0
  %v383 = vadd.f32 0.0, %v382
  %384 = vmatmul.f32.gmra.mxu0 %v177
  %v385 = vpop.f32.mrf.mxu0
  %v386 = vadd.f32 0.0, %v385
  %387 = vmatmul.f32.gmra.mxu0 %v180
  %v388 = vpop.f32.mrf.mxu0
  %v389 = vadd.f32 0.0, %v388
  %390 = vmatmul.f32.gmra.mxu0 %v183
  %v391 = vpop.f32.mrf.mxu0
  %v392 = vadd.f32 0.0, %v391
  %393 = vmatmul.f32.gmra.mxu0 %v186
  %v394 = vpop.f32.mrf.mxu0
  %v395 = vadd.f32 0.0, %v394
  %396 = vmatmul.f32.gmra.mxu0 %v189
  %v397 = vpop.f32.mrf.mxu0
  %v398 = vadd.f32 0.0, %v397
  %399 = vmatmul.f32.gmra.mxu0 %v192
  %v400 = vpop.f32.mrf.mxu0
  %v401 = vadd.f32 0.0, %v400
  %402 = vmatmul.f32.gmra.mxu0 %v195
  %v403 = vpop.f32.mrf.mxu0
  %v404 = vadd.f32 0.0, %v403
  %405 = vmatmul.f32.gmra.mxu0 %v198
  %v406 = vpop.f32.mrf.mxu0
  %v407 = vadd.f32 0.0, %v406
  %408 = vmatmul.f32.gmra.mxu0 %v201
  %v409 = vpop.f32.mrf.mxu0
  %v410 = vadd.f32 0.0, %v409
  %411 = vmatmul.f32.gmra.mxu0 %v204
  %v412 = vpop.f32.mrf.mxu0
  %v413 = vadd.f32 0.0, %v412
  %414 = vmatmul.f32.gmra.mxu0 %v207
  %v415 = vpop.f32.mrf.mxu0
  %v416 = vadd.f32 0.0, %v415
  %417 = vmatmul.f32.gmra.mxu0 %v210
  %v418 = vpop.f32.mrf.mxu0
  %v419 = vadd.f32 0.0, %v418
  %420 = vmatmul.f32.gmra.mxu0 %v213
  %v421 = vpop.f32.mrf.mxu0
  %v422 = vadd.f32 0.0, %v421
  %423 = vmatmul.f32.gmra.mxu0 %v216
  %v424 = vpop.f32.mrf.mxu0
  %v425 = vadd.f32 0.0, %v424
  %426 = vmatmul.f32.gmra.mxu0 %v219
  %v427 = vpop.f32.mrf.mxu0
  %v428 = vadd.f32 0.0, %v427
  %429 = vmatmul.f32.gmra.mxu0 %v222
  %v430 = vpop.f32.mrf.mxu0
  %v431 = vadd.f32 0.0, %v430
  %432 = vmatmul.f32.gmra.mxu0 %v225
  %v433 = vpop.f32.mrf.mxu0
  %v434 = vadd.f32 0.0, %v433
  %435 = vmatmul.f32.gmra.mxu0 %v228
  %v436 = vpop.f32.mrf.mxu0
  %v437 = vadd.f32 0.0, %v436
  %438 = vmatmul.f32.gmra.mxu0 %v231
  %v439 = vpop.f32.mrf.mxu0
  %v440 = vadd.f32 0.0, %v439
  %441 = vmatmul.f32.gmra.mxu0 %v234
  %v442 = vpop.f32.mrf.mxu0
  %v443 = vadd.f32 0.0, %v442
  %444 = vmatmul.f32.gmra.mxu0 %v237
  %v445 = vpop.f32.mrf.mxu0
  %v446 = vadd.f32 0.0, %v445
  %447 = vmatmul.f32.gmra.mxu0 %v240
  %v448 = vpop.f32.mrf.mxu0
  %v449 = vadd.f32 0.0, %v448
  %450 = vmatmul.f32.gmra.mxu0 %v243
  %v451 = vpop.f32.mrf.mxu0
  %v452 = vadd.f32 0.0, %v451
  %453 = vmatmul.f32.gmra.mxu0 %v246
  %v454 = vpop.f32.mrf.mxu0
  %v455 = vadd.f32 0.0, %v454
  %456 = vmatmul.f32.gmra.mxu0 %v249
  %v457 = vpop.f32.mrf.mxu0
  %v458 = vadd.f32 0.0, %v457
  %459 = vmatmul.f32.gmra.mxu0 %v252
  %v460 = vpop.f32.mrf.mxu0
  %v461 = vadd.f32 0.0, %v460
  %462 = vmatmul.f32.gmra.mxu0 %v255
  %v463 = vpop.f32.mrf.mxu0
  %v464 = vadd.f32 0.0, %v463
  %465 = vmatmul.f32.gmra.mxu0 %v258
  %v466 = vpop.f32.mrf.mxu0
  %v467 = vadd.f32 0.0, %v466
  %468 = vmatmul.f32.gmra.mxu0 %v261
  %v469 = vpop.f32.mrf.mxu0
  %v470 = vadd.f32 0.0, %v469
  %471 = vmatmul.f32.gmra.mxu0 %v264
  %v472 = vpop.f32.mrf.mxu0
  %v473 = vadd.f32 0.0, %v472
  %474 = vmatmul.f32.gmra.mxu0 %v267
  %v475 = vpop.f32.mrf.mxu0
  %v476 = vadd.f32 0.0, %v475
  %477 = vmatmul.f32.gmra.mxu0 %v270
  %v478 = vpop.f32.mrf.mxu0
  %v479 = vadd.f32 0.0, %v478
  %480 = vdwg.mxu0
  %v481 = vld [vmem:[%s2] sm:$0x1]
  %v482 = vld [vmem:[%s2 + $0x1] sm:$0x1]
  %v483 = vperm.slane %v481, 0
  %v484 = vmul.f32 %v290, %v483
  %v485 = vmul.f32 %v293, %v483
  %v486 = vmul.f32 %v296, %v483
  %v487 = vmul.f32 %v299, %v483
  %v488 = vmul.f32 %v302, %v483
  %v489 = vmul.f32 %v305, %v483
  %v490 = vmul.f32 %v308, %v483
  %v491 = vmul.f32 %v311, %v483
  %v492 = vmul.f32 %v314, %v483
  %v493 = vmul.f32 %v317, %v483
  %v494 = vmul.f32 %v320, %v483
  %v495 = vmul.f32 %v323, %v483
  %v496 = vmul.f32 %v326, %v483
  %v497 = vmul.f32 %v329, %v483
  %v498 = vmul.f32 %v332, %v483
  %v499 = vmul.f32 %v335, %v483
  %v500 = vmul.f32 %v338, %v483
  %v501 = vmul.f32 %v341, %v483
  %v502 = vmul.f32 %v344, %v483
  %v503 = vmul.f32 %v347, %v483
  %v504 = vmul.f32 %v350, %v483
  %v505 = vmul.f32 %v353, %v483
  %v506 = vmul.f32 %v356, %v483
  %v507 = vmul.f32 %v359, %v483
  %v508 = vmul.f32 %v362, %v483
  %v509 = vmul.f32 %v365, %v483
  %v510 = vmul.f32 %v368, %v483
  %v511 = vmul.f32 %v371, %v483
  %v512 = vmul.f32 %v374, %v483
  %v513 = vmul.f32 %v377, %v483
  %v514 = vmul.f32 %v380, %v483
  %v515 = vmul.f32 %v383, %v483
  %v516 = vmul.f32 %v386, %v483
  %v517 = vmul.f32 %v389, %v483
  %v518 = vmul.f32 %v392, %v483
  %v519 = vmul.f32 %v395, %v483
  %v520 = vmul.f32 %v398, %v483
  %v521 = vmul.f32 %v401, %v483
  %v522 = vmul.f32 %v404, %v483
  %v523 = vmul.f32 %v407, %v483
  %v524 = vmul.f32 %v410, %v483
  %v525 = vmul.f32 %v413, %v483
  %v526 = vmul.f32 %v416, %v483
  %v527 = vmul.f32 %v419, %v483
  %v528 = vmul.f32 %v422, %v483
  %v529 = vmul.f32 %v425, %v483
  %v530 = vmul.f32 %v428, %v483
  %v531 = vmul.f32 %v431, %v483
  %v532 = vmul.f32 %v434, %v483
  %v533 = vmul.f32 %v437, %v483
  %v534 = vmul.f32 %v440, %v483
  %v535 = vmul.f32 %v443, %v483
  %v536 = vmul.f32 %v446, %v483
  %v537 = vmul.f32 %v449, %v483
  %v538 = vmul.f32 %v452, %v483
  %v539 = vmul.f32 %v455, %v483
  %v540 = vmul.f32 %v458, %v483
  %v541 = vmul.f32 %v461, %v483
  %v542 = vmul.f32 %v464, %v483
  %v543 = vmul.f32 %v467, %v483
  %v544 = vmul.f32 %v470, %v483
  %v545 = vmul.f32 %v473, %v483
  %v546 = vmul.f32 %v476, %v483
  %v547 = vmul.f32 %v479, %v483
  %v548 = vperm.slane %v482, 0
  %v549 = vadd.f32 %v484, %v548
  %v550 = vadd.f32 %v485, %v548
  %v551 = vadd.f32 %v486, %v548
  %v552 = vadd.f32 %v487, %v548
  %v553 = vadd.f32 %v488, %v548
  %v554 = vadd.f32 %v489, %v548
  %v555 = vadd.f32 %v490, %v548
  %v556 = vadd.f32 %v491, %v548
  %v557 = vadd.f32 %v492, %v548
  %v558 = vadd.f32 %v493, %v548
  %v559 = vadd.f32 %v494, %v548
  %v560 = vadd.f32 %v495, %v548
  %v561 = vadd.f32 %v496, %v548
  %v562 = vadd.f32 %v497, %v548
  %v563 = vadd.f32 %v498, %v548
  %v564 = vadd.f32 %v499, %v548
  %v565 = vadd.f32 %v500, %v548
  %v566 = vadd.f32 %v501, %v548
  %v567 = vadd.f32 %v502, %v548
  %v568 = vadd.f32 %v503, %v548
  %v569 = vadd.f32 %v504, %v548
  %v570 = vadd.f32 %v505, %v548
  %v571 = vadd.f32 %v506, %v548
  %v572 = vadd.f32 %v507, %v548
  %v573 = vadd.f32 %v508, %v548
  %v574 = vadd.f32 %v509, %v548
  %v575 = vadd.f32 %v510, %v548
  %v576 = vadd.f32 %v511, %v548
  %v577 = vadd.f32 %v512, %v548
  %v578 = vadd.f32 %v513, %v548
  %v579 = vadd.f32 %v514, %v548
  %v580 = vadd.f32 %v515, %v548
  %v581 = vadd.f32 %v516, %v548
  %v582 = vadd.f32 %v517, %v548
  %v583 = vadd.f32 %v518, %v548
  %v584 = vadd.f32 %v519, %v548
  %v585 = vadd.f32 %v520, %v548
  %v586 = vadd.f32 %v521, %v548
  %v587 = vadd.f32 %v522, %v548
  %v588 = vadd.f32 %v523, %v548
  %v589 = vadd.f32 %v524, %v548
  %v590 = vadd.f32 %v525, %v548
  %v591 = vadd.f32 %v526, %v548
  %v592 = vadd.f32 %v527, %v548
  %v593 = vadd.f32 %v528, %v548
  %v594 = vadd.f32 %v529, %v548
  %v595 = vadd.f32 %v530, %v548
  %v596 = vadd.f32 %v531, %v548
  %v597 = vadd.f32 %v532, %v548
  %v598 = vadd.f32 %v533, %v548
  %v599 = vadd.f32 %v534, %v548
  %v600 = vadd.f32 %v535, %v548
  %v601 = vadd.f32 %v536, %v548
  %v602 = vadd.f32 %v537, %v548
  %v603 = vadd.f32 %v538, %v548
  %v604 = vadd.f32 %v539, %v548
  %v605 = vadd.f32 %v540, %v548
  %v606 = vadd.f32 %v541, %v548
  %v607 = vadd.f32 %v542, %v548
  %v608 = vadd.f32 %v543, %v548
  %v609 = vadd.f32 %v544, %v548
  %v610 = vadd.f32 %v545, %v548
  %v611 = vadd.f32 %v546, %v548
  %v612 = vadd.f32 %v547, %v548
  %v613 = vmax.f32 %v549, 0.0
  %v614 = vmax.f32 %v550, 0.0
  %v615 = vmax.f32 %v551, 0.0
  %v616 = vmax.f32 %v552, 0.0
  %v617 = vmax.f32 %v553, 0.0
  %v618 = vmax.f32 %v554, 0.0
  %v619 = vmax.f32 %v555, 0.0
  %v620 = vmax.f32 %v556, 0.0
  %v621 = vmax.f32 %v557, 0.0
  %v622 = vmax.f32 %v558, 0.0
  %v623 = vmax.f32 %v559, 0.0
  %v624 = vmax.f32 %v560, 0.0
  %v625 = vmax.f32 %v561, 0.0
  %v626 = vmax.f32 %v562, 0.0
  %v627 = vmax.f32 %v563, 0.0
  %v628 = vmax.f32 %v564, 0.0
  %v629 = vmax.f32 %v565, 0.0
  %v630 = vmax.f32 %v566, 0.0
  %v631 = vmax.f32 %v567, 0.0
  %v632 = vmax.f32 %v568, 0.0
  %v633 = vmax.f32 %v569, 0.0
  %v634 = vmax.f32 %v570, 0.0
  %v635 = vmax.f32 %v571, 0.0
  %v636 = vmax.f32 %v572, 0.0
  %v637 = vmax.f32 %v573, 0.0
  %v638 = vmax.f32 %v574, 0.0
  %v639 = vmax.f32 %v575, 0.0
  %v640 = vmax.f32 %v576, 0.0
  %v641 = vmax.f32 %v577, 0.0
  %v642 = vmax.f32 %v578, 0.0
  %v643 = vmax.f32 %v579, 0.0
  %v644 = vmax.f32 %v580, 0.0
  %v645 = vmax.f32 %v581, 0.0
  %v646 = vmax.f32 %v582, 0.0
  %v647 = vmax.f32 %v583, 0.0
  %v648 = vmax.f32 %v584, 0.0
  %v649 = vmax.f32 %v585, 0.0
  %v650 = vmax.f32 %v586, 0.0
  %v651 = vmax.f32 %v587, 0.0
  %v652 = vmax.f32 %v588, 0.0
  %v653 = vmax.f32 %v589, 0.0
  %v654 = vmax.f32 %v590, 0.0
  %v655 = vmax.f32 %v591, 0.0
  %v656 = vmax.f32 %v592, 0.0
  %v657 = vmax.f32 %v593, 0.0
  %v658 = vmax.f32 %v594, 0.0
  %v659 = vmax.f32 %v595, 0.0
  %v660 = vmax.f32 %v596, 0.0
  %v661 = vmax.f32 %v597, 0.0
  %v662 = vmax.f32 %v598, 0.0
  %v663 = vmax.f32 %v599, 0.0
  %v664 = vmax.f32 %v600, 0.0
  %v665 = vmax.f32 %v601, 0.0
  %v666 = vmax.f32 %v602, 0.0
  %v667 = vmax.f32 %v603, 0.0
  %v668 = vmax.f32 %v604, 0.0
  %v669 = vmax.f32 %v605, 0.0
  %v670 = vmax.f32 %v606, 0.0
  %v671 = vmax.f32 %v607, 0.0
  %v672 = vmax.f32 %v608, 0.0
  %v673 = vmax.f32 %v609, 0.0
  %v674 = vmax.f32 %v610, 0.0
  %v675 = vmax.f32 %v611, 0.0
  %v676 = vmax.f32 %v612, 0.0
  %677 = vst.msk [vmem:[#allocation2] sm:$0xff] %vm79, %v613
  %678 = vst.msk [vmem:[#allocation2 + $0x8] sm:$0xff] %vm79, %v614
  %679 = vst.msk [vmem:[#allocation2 + $0x10] sm:$0xff] %vm79, %v615
  %680 = vst.msk [vmem:[#allocation2 + $0x18] sm:$0xff] %vm79, %v616
  %681 = vst.msk [vmem:[#allocation2 + $0x20] sm:$0xff] %vm79, %v617
  %682 = vst.msk [vmem:[#allocation2 + $0x28] sm:$0xff] %vm79, %v618
  %683 = vst.msk [vmem:[#allocation2 + $0x30] sm:$0xff] %vm79, %v619
  %684 = vst.msk [vmem:[#allocation2 + $0x38] sm:$0xff] %vm79, %v620
  %685 = vst.msk [vmem:[#allocation2 + $0x40] sm:$0xff] %vm79, %v621
  %686 = vst.msk [vmem:[#allocation2 + $0x48] sm:$0xff] %vm79, %v622
  %687 = vst.msk [vmem:[#allocation2 + $0x50] sm:$0xff] %vm79, %v623
  %688 = vst.msk [vmem:[#allocation2 + $0x58] sm:$0xff] %vm79, %v624
  %689 = vst.msk [vmem:[#allocation2 + $0x60] sm:$0xff] %vm79, %v625
  %690 = vst.msk [vmem:[#allocation2 + $0x68] sm:$0xff] %vm79, %v626
  %691 = vst.msk [vmem:[#allocation2 + $0x70] sm:$0xff] %vm79, %v627
  %692 = vst.msk [vmem:[#allocation2 + $0x78] sm:$0xff] %vm79, %v628
  %693 = vst.msk [vmem:[#allocation2 + $0x80] sm:$0xff] %vm79, %v629
  %694 = vst.msk [vmem:[#allocation2 + $0x88] sm:$0xff] %vm79, %v630
  %695 = vst.msk [vmem:[#allocation2 + $0x90] sm:$0xff] %vm79, %v631
  %696 = vst.msk [vmem:[#allocation2 + $0x98] sm:$0xff] %vm79, %v632
  %697 = vst.msk [vmem:[#allocation2 + $0xa0] sm:$0xff] %vm79, %v633
  %698 = vst.msk [vmem:[#allocation2 + $0xa8] sm:$0xff] %vm79, %v634
  %699 = vst.msk [vmem:[#allocation2 + $0xb0] sm:$0xff] %vm79, %v635
  %700 = vst.msk [vmem:[#allocation2 + $0xb8] sm:$0xff] %vm79, %v636
  %701 = vst.msk [vmem:[#allocation2 + $0xc0] sm:$0xff] %vm79, %v637
  %702 = vst.msk [vmem:[#allocation2 + $0xc8] sm:$0xff] %vm79, %v638
  %703 = vst.msk [vmem:[#allocation2 + $0xd0] sm:$0xff] %vm79, %v639
  %704 = vst.msk [vmem:[#allocation2 + $0xd8] sm:$0xff] %vm79, %v640
  %705 = vst.msk [vmem:[#allocation2 + $0xe0] sm:$0xff] %vm79, %v641
  %706 = vst.msk [vmem:[#allocation2 + $0xe8] sm:$0xff] %vm79, %v642
  %707 = vst.msk [vmem:[#allocation2 + $0xf0] sm:$0xff] %vm79, %v643
  %708 = vst.msk [vmem:[#allocation2 + $0xf8] sm:$0xff] %vm79, %v644
  %709 = vst.msk [vmem:[#allocation2 + $0x100] sm:$0xff] %vm79, %v645
  %710 = vst.msk [vmem:[#allocation2 + $0x108] sm:$0xff] %vm79, %v646
  %711 = vst.msk [vmem:[#allocation2 + $0x110] sm:$0xff] %vm79, %v647
  %712 = vst.msk [vmem:[#allocation2 + $0x118] sm:$0xff] %vm79, %v648
  %713 = vst.msk [vmem:[#allocation2 + $0x120] sm:$0xff] %vm79, %v649
  %714 = vst.msk [vmem:[#allocation2 + $0x128] sm:$0xff] %vm79, %v650
  %715 = vst.msk [vmem:[#allocation2 + $0x130] sm:$0xff] %vm79, %v651
  %716 = vst.msk [vmem:[#allocation2 + $0x138] sm:$0xff] %vm79, %v652
  %717 = vst.msk [vmem:[#allocation2 + $0x140] sm:$0xff] %vm79, %v653
  %718 = vst.msk [vmem:[#allocation2 + $0x148] sm:$0xff] %vm79, %v654
  %719 = vst.msk [vmem:[#allocation2 + $0x150] sm:$0xff] %vm79, %v655
  %720 = vst.msk [vmem:[#allocation2 + $0x158] sm:$0xff] %vm79, %v656
  %721 = vst.msk [vmem:[#allocation2 + $0x160] sm:$0xff] %vm79, %v657
  %722 = vst.msk [vmem:[#allocation2 + $0x168] sm:$0xff] %vm79, %v658
  %723 = vst.msk [vmem:[#allocation2 + $0x170] sm:$0xff] %vm79, %v659
  %724 = vst.msk [vmem:[#allocation2 + $0x178] sm:$0xff] %vm79, %v660
  %725 = vst.msk [vmem:[#allocation2 + $0x180] sm:$0xff] %vm79, %v661
  %726 = vst.msk [vmem:[#allocation2 + $0x188] sm:$0xff] %vm79, %v662
  %727 = vst.msk [vmem:[#allocation2 + $0x190] sm:$0xff] %vm79, %v663
  %728 = vst.msk [vmem:[#allocation2 + $0x198] sm:$0xff] %vm79, %v664
  %729 = vst.msk [vmem:[#allocation2 + $0x1a0] sm:$0xff] %vm79, %v665
  %730 = vst.msk [vmem:[#allocation2 + $0x1a8] sm:$0xff] %vm79, %v666
  %731 = vst.msk [vmem:[#allocation2 + $0x1b0] sm:$0xff] %vm79, %v667
  %732 = vst.msk [vmem:[#allocation2 + $0x1b8] sm:$0xff] %vm79, %v668
  %733 = vst.msk [vmem:[#allocation2 + $0x1c0] sm:$0xff] %vm79, %v669
  %734 = vst.msk [vmem:[#allocation2 + $0x1c8] sm:$0xff] %vm79, %v670
  %735 = vst.msk [vmem:[#allocation2 + $0x1d0] sm:$0xff] %vm79, %v671
  %736 = vst.msk [vmem:[#allocation2 + $0x1d8] sm:$0xff] %vm79, %v672
  %737 = vst.msk [vmem:[#allocation2 + $0x1e0] sm:$0xff] %vm79, %v673
  %738 = vst.msk [vmem:[#allocation2 + $0x1e8] sm:$0xff] %vm79, %v674
  %739 = vst.msk [vmem:[#allocation2 + $0x1f0] sm:$0xff] %vm79, %v675
  %740 = vst.msk [vmem:[#allocation2 + $0x1f8] sm:$0xff] %vm79, %v676
  %v741 = vld [vmem:[#allocation2] ss:$2 sm:$0x7f]
  %s742 = scalar_lea.vmem [#allocation2], 16
  %v743 = vld [vmem:[%s742] ss:$2 sm:$0x7f]
  %s744 = scalar_lea.vmem [#allocation2], 32
  %v745 = vld [vmem:[%s744] ss:$2 sm:$0x7f]
  %s746 = scalar_lea.vmem [#allocation2], 48
  %v747 = vld [vmem:[%s746] ss:$2 sm:$0x7f]
  %s748 = scalar_lea.vmem [#allocation2], 64
  %v749 = vld [vmem:[%s748] ss:$2 sm:$0x7f]
  %s750 = scalar_lea.vmem [#allocation2], 80
  %v751 = vld [vmem:[%s750] ss:$2 sm:$0x7f]
  %s752 = scalar_lea.vmem [#allocation2], 96
  %v753 = vld [vmem:[%s752] ss:$2 sm:$0x7f]
  %s754 = scalar_lea.vmem [#allocation2], 112
  %v755 = vld [vmem:[%s754] ss:$2 sm:$0x7f]
  %s756 = scalar_lea.vmem [#allocation2], 128
  %v757 = vld [vmem:[%s756] ss:$2 sm:$0x7f]
  %s758 = scalar_lea.vmem [#allocation2], 144
  %v759 = vld [vmem:[%s758] ss:$2 sm:$0x7f]
  %s760 = scalar_lea.vmem [#allocation2], 160
  %v761 = vld [vmem:[%s760] ss:$2 sm:$0x7f]
  %s762 = scalar_lea.vmem [#allocation2], 176
  %v763 = vld [vmem:[%s762] ss:$2 sm:$0x7f]
  %s764 = scalar_lea.vmem [#allocation2], 192
  %v765 = vld [vmem:[%s764] ss:$2 sm:$0x7f]
  %s766 = scalar_lea.vmem [#allocation2], 208
  %v767 = vld [vmem:[%s766] ss:$2 sm:$0x7f]
  %s768 = scalar_lea.vmem [#allocation2], 224
  %v769 = vld [vmem:[%s768] ss:$2 sm:$0x7f]
  %s770 = scalar_lea.vmem [#allocation2], 256
  %v771 = vld [vmem:[%s770] ss:$2 sm:$0x7f]
  %s772 = scalar_lea.vmem [#allocation2], 272
  %v773 = vld [vmem:[%s772] ss:$2 sm:$0x7f]
  %s774 = scalar_lea.vmem [#allocation2], 288
  %v775 = vld [vmem:[%s774] ss:$2 sm:$0x7f]
  %s776 = scalar_lea.vmem [#allocation2], 304
  %v777 = vld [vmem:[%s776] ss:$2 sm:$0x7f]
  %s778 = scalar_lea.vmem [#allocation2], 320
  %v779 = vld [vmem:[%s778] ss:$2 sm:$0x7f]
  %s780 = scalar_lea.vmem [#allocation2], 336
  %v781 = vld [vmem:[%s780] ss:$2 sm:$0x7f]
  %s782 = scalar_lea.vmem [#allocation2], 352
  %v783 = vld [vmem:[%s782] ss:$2 sm:$0x7f]
  %s784 = scalar_lea.vmem [#allocation2], 368
  %v785 = vld [vmem:[%s784] ss:$2 sm:$0x7f]
  %s786 = scalar_lea.vmem [#allocation2], 384
  %v787 = vld [vmem:[%s786] ss:$2 sm:$0x7f]
  %s788 = scalar_lea.vmem [#allocation2], 400
  %v789 = vld [vmem:[%s788] ss:$2 sm:$0x7f]
  %s790 = scalar_lea.vmem [#allocation2], 416
  %v791 = vld [vmem:[%s790] ss:$2 sm:$0x7f]
  %s792 = scalar_lea.vmem [#allocation2], 432
  %v793 = vld [vmem:[%s792] ss:$2 sm:$0x7f]
  %s794 = scalar_lea.vmem [#allocation2], 448
  %v795 = vld [vmem:[%s794] ss:$2 sm:$0x7f]
  %s796 = scalar_lea.vmem [#allocation2], 464
  %v797 = vld [vmem:[%s796] ss:$2 sm:$0x7f]
  %s798 = scalar_lea.vmem [#allocation2], 480
  %v799 = vld [vmem:[%s798] ss:$2 sm:$0x7f]
  %s800 = scalar_lea.vmem [#allocation2], 1
  %v801 = vld [vmem:[%s800] ss:$2 sm:$0x7f]
  %s802 = scalar_lea.vmem [#allocation2], 17
  %v803 = vld [vmem:[%s802] ss:$2 sm:$0x7f]
  %s804 = scalar_lea.vmem [#allocation2], 33
  %v805 = vld [vmem:[%s804] ss:$2 sm:$0x7f]
  %s806 = scalar_lea.vmem [#allocation2], 49
  %v807 = vld [vmem:[%s806] ss:$2 sm:$0x7f]
  %s808 = scalar_lea.vmem [#allocation2], 65
  %v809 = vld [vmem:[%s808] ss:$2 sm:$0x7f]
  %s810 = scalar_lea.vmem [#allocation2], 81
  %v811 = vld [vmem:[%s810] ss:$2 sm:$0x7f]
  %s812 = scalar_lea.vmem [#allocation2], 97
  %v813 = vld [vmem:[%s812] ss:$2 sm:$0x7f]
  %s814 = scalar_lea.vmem [#allocation2], 113
  %v815 = vld [vmem:[%s814] ss:$2 sm:$0x7f]
  %s816 = scalar_lea.vmem [#allocation2], 129
  %v817 = vld [vmem:[%s816] ss:$2 sm:$0x7f]
  %s818 = scalar_lea.vmem [#allocation2], 145
  %v819 = vld [vmem:[%s818] ss:$2 sm:$0x7f]
  %s820 = scalar_lea.vmem [#allocation2], 161
  %v821 = vld [vmem:[%s820] ss:$2 sm:$0x7f]
  %s822 = scalar_lea.vmem [#allocation2], 177
  %v823 = vld [vmem:[%s822] ss:$2 sm:$0x7f]
  %s824 = scalar_lea.vmem [#allocation2], 193
  %v825 = vld [vmem:[%s824] ss:$2 sm:$0x7f]
  %s826 = scalar_lea.vmem [#allocation2], 209
  %v827 = vld [vmem:[%s826] ss:$2 sm:$0x7f]
  %s828 = scalar_lea.vmem [#allocation2], 225
  %v829 = vld [vmem:[%s828] ss:$2 sm:$0x7f]
  %s830 = scalar_lea.vmem [#allocation2], 257
  %v831 = vld [vmem:[%s830] ss:$2 sm:$0x7f]
  %s832 = scalar_lea.vmem [#allocation2], 273
  %v833 = vld [vmem:[%s832] ss:$2 sm:$0x7f]
  %s834 = scalar_lea.vmem [#allocation2], 289
  %v835 = vld [vmem:[%s834] ss:$2 sm:$0x7f]
  %s836 = scalar_lea.vmem [#allocation2], 305
  %v837 = vld [vmem:[%s836] ss:$2 sm:$0x7f]
  %s838 = scalar_lea.vmem [#allocation2], 321
  %v839 = vld [vmem:[%s838] ss:$2 sm:$0x7f]
  %s840 = scalar_lea.vmem [#allocation2], 337
  %v841 = vld [vmem:[%s840] ss:$2 sm:$0x7f]
  %s842 = scalar_lea.vmem [#allocation2], 353
  %v843 = vld [vmem:[%s842] ss:$2 sm:$0x7f]
  %s844 = scalar_lea.vmem [#allocation2], 369
  %v845 = vld [vmem:[%s844] ss:$2 sm:$0x7f]
  %s846 = scalar_lea.vmem [#allocation2], 385
  %v847 = vld [vmem:[%s846] ss:$2 sm:$0x7f]
  %s848 = scalar_lea.vmem [#allocation2], 401
  %v849 = vld [vmem:[%s848] ss:$2 sm:$0x7f]
  %s850 = scalar_lea.vmem [#allocation2], 417
  %v851 = vld [vmem:[%s850] ss:$2 sm:$0x7f]
  %s852 = scalar_lea.vmem [#allocation2], 433
  %v853 = vld [vmem:[%s852] ss:$2 sm:$0x7f]
  %s854 = scalar_lea.vmem [#allocation2], 449
  %v855 = vld [vmem:[%s854] ss:$2 sm:$0x7f]
  %s856 = scalar_lea.vmem [#allocation2], 465
  %v857 = vld [vmem:[%s856] ss:$2 sm:$0x7f]
  %s858 = scalar_lea.vmem [#allocation2], 481
  %v859 = vld [vmem:[%s858] ss:$2 sm:$0x7f]
  %s860 = scalar_lea.vmem [#allocation2], 2
  %v861 = vld [vmem:[%s860] ss:$2 sm:$0x7f]
  %s862 = scalar_lea.vmem [#allocation2], 18
  %v863 = vld [vmem:[%s862] ss:$2 sm:$0x7f]
  %s864 = scalar_lea.vmem [#allocation2], 34
  %v865 = vld [vmem:[%s864] ss:$2 sm:$0x7f]
  %s866 = scalar_lea.vmem [#allocation2], 50
  %v867 = vld [vmem:[%s866] ss:$2 sm:$0x7f]
  %s868 = scalar_lea.vmem [#allocation2], 66
  %v869 = vld [vmem:[%s868] ss:$2 sm:$0x7f]
  %s870 = scalar_lea.vmem [#allocation2], 82
  %v871 = vld [vmem:[%s870] ss:$2 sm:$0x7f]
  %s872 = scalar_lea.vmem [#allocation2], 98
  %v873 = vld [vmem:[%s872] ss:$2 sm:$0x7f]
  %s874 = scalar_lea.vmem [#allocation2], 114
  %v875 = vld [vmem:[%s874] ss:$2 sm:$0x7f]
  %s876 = scalar_lea.vmem [#allocation2], 130
  %v877 = vld [vmem:[%s876] ss:$2 sm:$0x7f]
  %s878 = scalar_lea.vmem [#allocation2], 146
  %v879 = vld [vmem:[%s878] ss:$2 sm:$0x7f]
  %s880 = scalar_lea.vmem [#allocation2], 162
  %v881 = vld [vmem:[%s880] ss:$2 sm:$0x7f]
  %s882 = scalar_lea.vmem [#allocation2], 178
  %v883 = vld [vmem:[%s882] ss:$2 sm:$0x7f]
  %s884 = scalar_lea.vmem [#allocation2], 194
  %v885 = vld [vmem:[%s884] ss:$2 sm:$0x7f]
  %s886 = scalar_lea.vmem [#allocation2], 210
  %v887 = vld [vmem:[%s886] ss:$2 sm:$0x7f]
  %s888 = scalar_lea.vmem [#allocation2], 226
  %v889 = vld [vmem:[%s888] ss:$2 sm:$0x7f]
  %s890 = scalar_lea.vmem [#allocation2], 258
  %v891 = vld [vmem:[%s890] ss:$2 sm:$0x7f]
  %s892 = scalar_lea.vmem [#allocation2], 274
  %v893 = vld [vmem:[%s892] ss:$2 sm:$0x7f]
  %s894 = scalar_lea.vmem [#allocation2], 290
  %v895 = vld [vmem:[%s894] ss:$2 sm:$0x7f]
  %s896 = scalar_lea.vmem [#allocation2], 306
  %v897 = vld [vmem:[%s896] ss:$2 sm:$0x7f]
  %s898 = scalar_lea.vmem [#allocation2], 322
  %v899 = vld [vmem:[%s898] ss:$2 sm:$0x7f]
  %s900 = scalar_lea.vmem [#allocation2], 338
  %v901 = vld [vmem:[%s900] ss:$2 sm:$0x7f]
  %s902 = scalar_lea.vmem [#allocation2], 354
  %v903 = vld [vmem:[%s902] ss:$2 sm:$0x7f]
  %s904 = scalar_lea.vmem [#allocation2], 370
  %v905 = vld [vmem:[%s904] ss:$2 sm:$0x7f]
  %s906 = scalar_lea.vmem [#allocation2], 386
  %v907 = vld [vmem:[%s906] ss:$2 sm:$0x7f]
  %s908 = scalar_lea.vmem [#allocation2], 402
  %v909 = vld [vmem:[%s908] ss:$2 sm:$0x7f]
  %s910 = scalar_lea.vmem [#allocation2], 418
  %v911 = vld [vmem:[%s910] ss:$2 sm:$0x7f]
  %s912 = scalar_lea.vmem [#allocation2], 434
  %v913 = vld [vmem:[%s912] ss:$2 sm:$0x7f]
  %s914 = scalar_lea.vmem [#allocation2], 450
  %v915 = vld [vmem:[%s914] ss:$2 sm:$0x7f]
  %s916 = scalar_lea.vmem [#allocation2], 466
  %v917 = vld [vmem:[%s916] ss:$2 sm:$0x7f]
  %s918 = scalar_lea.vmem [#allocation2], 482
  %v919 = vld [vmem:[%s918] ss:$2 sm:$0x7f]
  %950 = vrot.lane.b32.xlu0 %v801, 8
  %v951 = vpop.permute.xlu0 %950
  %952 = vrot.lane.b32.xlu0 %v803, 8
  %v953 = vpop.permute.xlu0 %952
  %954 = vrot.lane.b32.xlu0 %v805, 8
  %v955 = vpop.permute.xlu0 %954
  %956 = vrot.lane.b32.xlu0 %v807, 8
  %v957 = vpop.permute.xlu0 %956
  %958 = vrot.lane.b32.xlu0 %v809, 8
  %v959 = vpop.permute.xlu0 %958
  %960 = vrot.lane.b32.xlu0 %v811, 8
  %v961 = vpop.permute.xlu0 %960
  %962 = vrot.lane.b32.xlu0 %v813, 8
  %v963 = vpop.permute.xlu0 %962
  %964 = vrot.lane.b32.xlu0 %v815, 8
  %v965 = vpop.permute.xlu0 %964
  %966 = vrot.lane.b32.xlu0 %v817, 8
  %v967 = vpop.permute.xlu0 %966
  %968 = vrot.lane.b32.xlu0 %v819, 8
  %v969 = vpop.permute.xlu0 %968
  %970 = vrot.lane.b32.xlu0 %v821, 8
  %v971 = vpop.permute.xlu0 %970
  %972 = vrot.lane.b32.xlu0 %v823, 8
  %v973 = vpop.permute.xlu0 %972
  %974 = vrot.lane.b32.xlu0 %v825, 8
  %v975 = vpop.permute.xlu0 %974
  %976 = vrot.lane.b32.xlu0 %v827, 8
  %v977 = vpop.permute.xlu0 %976
  %978 = vrot.lane.b32.xlu0 %v829, 8
  %v979 = vpop.permute.xlu0 %978
  %980 = vrot.lane.b32.xlu0 %v831, 8
  %v981 = vpop.permute.xlu0 %980
  %982 = vrot.lane.b32.xlu0 %v833, 8
  %v983 = vpop.permute.xlu0 %982
  %984 = vrot.lane.b32.xlu0 %v835, 8
  %v985 = vpop.permute.xlu0 %984
  %986 = vrot.lane.b32.xlu0 %v837, 8
  %v987 = vpop.permute.xlu0 %986
  %988 = vrot.lane.b32.xlu0 %v839, 8
  %v989 = vpop.permute.xlu0 %988
  %990 = vrot.lane.b32.xlu0 %v841, 8
  %v991 = vpop.permute.xlu0 %990
  %992 = vrot.lane.b32.xlu0 %v843, 8
  %v993 = vpop.permute.xlu0 %992
  %994 = vrot.lane.b32.xlu0 %v845, 8
  %v995 = vpop.permute.xlu0 %994
  %996 = vrot.lane.b32.xlu0 %v847, 8
  %v997 = vpop.permute.xlu0 %996
  %998 = vrot.lane.b32.xlu0 %v849, 8
  %v999 = vpop.permute.xlu0 %998
  %1000 = vrot.lane.b32.xlu0 %v851, 8
  %v1001 = vpop.permute.xlu0 %1000
  %1002 = vrot.lane.b32.xlu0 %v853, 8
  %v1003 = vpop.permute.xlu0 %1002
  %1004 = vrot.lane.b32.xlu0 %v855, 8
  %v1005 = vpop.permute.xlu0 %1004
  %1006 = vrot.lane.b32.xlu0 %v857, 8
  %v1007 = vpop.permute.xlu0 %1006
  %1008 = vrot.lane.b32.xlu0 %v859, 8
  %v1009 = vpop.permute.xlu0 %1008
  %1070 = vrot.lane.b32.xlu0 %v861, 16
  %v1071 = vpop.permute.xlu0 %1070
  %1072 = vrot.lane.b32.xlu0 %v863, 16
  %v1073 = vpop.permute.xlu0 %1072
  %1074 = vrot.lane.b32.xlu0 %v865, 16
  %v1075 = vpop.permute.xlu0 %1074
  %1076 = vrot.lane.b32.xlu0 %v867, 16
  %v1077 = vpop.permute.xlu0 %1076
  %1078 = vrot.lane.b32.xlu0 %v869, 16
  %v1079 = vpop.permute.xlu0 %1078
  %1080 = vrot.lane.b32.xlu0 %v871, 16
  %v1081 = vpop.permute.xlu0 %1080
  %1082 = vrot.lane.b32.xlu0 %v873, 16
  %v1083 = vpop.permute.xlu0 %1082
  %1084 = vrot.lane.b32.xlu0 %v875, 16
  %v1085 = vpop.permute.xlu0 %1084
  %1086 = vrot.lane.b32.xlu0 %v877, 16
  %v1087 = vpop.permute.xlu0 %1086
  %1088 = vrot.lane.b32.xlu0 %v879, 16
  %v1089 = vpop.permute.xlu0 %1088
  %1090 = vrot.lane.b32.xlu0 %v881, 16
  %v1091 = vpop.permute.xlu0 %1090
  %1092 = vrot.lane.b32.xlu0 %v883, 16
  %v1093 = vpop.permute.xlu0 %1092
  %1094 = vrot.lane.b32.xlu0 %v885, 16
  %v1095 = vpop.permute.xlu0 %1094
  %1096 = vrot.lane.b32.xlu0 %v887, 16
  %v1097 = vpop.permute.xlu0 %1096
  %1098 = vrot.lane.b32.xlu0 %v889, 16
  %v1099 = vpop.permute.xlu0 %1098
  %1100 = vrot.lane.b32.xlu0 %v891, 16
  %v1101 = vpop.permute.xlu0 %1100
  %1102 = vrot.lane.b32.xlu0 %v893, 16
  %v1103 = vpop.permute.xlu0 %1102
  %1104 = vrot.lane.b32.xlu0 %v895, 16
  %v1105 = vpop.permute.xlu0 %1104
  %1106 = vrot.lane.b32.xlu0 %v897, 16
  %v1107 = vpop.permute.xlu0 %1106
  %1108 = vrot.lane.b32.xlu0 %v899, 16
  %v1109 = vpop.permute.xlu0 %1108
  %1110 = vrot.lane.b32.xlu0 %v901, 16
  %v1111 = vpop.permute.xlu0 %1110
  %1112 = vrot.lane.b32.xlu0 %v903, 16
  %v1113 = vpop.permute.xlu0 %1112
  %1114 = vrot.lane.b32.xlu0 %v905, 16
  %v1115 = vpop.permute.xlu0 %1114
  %1116 = vrot.lane.b32.xlu0 %v907, 16
  %v1117 = vpop.permute.xlu0 %1116
  %1118 = vrot.lane.b32.xlu0 %v909, 16
  %v1119 = vpop.permute.xlu0 %1118
  %1120 = vrot.lane.b32.xlu0 %v911, 16
  %v1121 = vpop.permute.xlu0 %1120
  %1122 = vrot.lane.b32.xlu0 %v913, 16
  %v1123 = vpop.permute.xlu0 %1122
  %1124 = vrot.lane.b32.xlu0 %v915, 16
  %v1125 = vpop.permute.xlu0 %1124
  %1126 = vrot.lane.b32.xlu0 %v917, 16
  %v1127 = vpop.permute.xlu0 %1126
  %1128 = vrot.lane.b32.xlu0 %v919, 16
  %v1129 = vpop.permute.xlu0 %1128
  %v1160 = vsel %vm79, %v741, %v951
  %v1161 = vsel %vm79, %v743, %v953
  %v1162 = vsel %vm79, %v745, %v955
  %v1163 = vsel %vm79, %v747, %v957
  %v1164 = vsel %vm79, %v749, %v959
  %v1165 = vsel %vm79, %v751, %v961
  %v1166 = vsel %vm79, %v753, %v963
  %v1167 = vsel %vm79, %v755, %v965
  %v1168 = vsel %vm79, %v757, %v967
  %v1169 = vsel %vm79, %v759, %v969
  %v1170 = vsel %vm79, %v761, %v971
  %v1171 = vsel %vm79, %v763, %v973
  %v1172 = vsel %vm79, %v765, %v975
  %v1173 = vsel %vm79, %v767, %v977
  %v1174 = vsel %vm79, %v769, %v979
  %v1175 = vsel %vm79, %v771, %v981
  %v1176 = vsel %vm79, %v773, %v983
  %v1177 = vsel %vm79, %v775, %v985
  %v1178 = vsel %vm79, %v777, %v987
  %v1179 = vsel %vm79, %v779, %v989
  %v1180 = vsel %vm79, %v781, %v991
  %v1181 = vsel %vm79, %v783, %v993
  %v1182 = vsel %vm79, %v785, %v995
  %v1183 = vsel %vm79, %v787, %v997
  %v1184 = vsel %vm79, %v789, %v999
  %v1185 = vsel %vm79, %v791, %v1001
  %v1186 = vsel %vm79, %v793, %v1003
  %v1187 = vsel %vm79, %v795, %v1005
  %v1188 = vsel %vm79, %v797, %v1007
  %v1189 = vsel %vm79, %v799, %v1009
  %vm1190 = vcmask 130048
  %v1191 = vsel %vm1190, %v1160, %v1071
  %v1192 = vsel %vm1190, %v1161, %v1073
  %v1193 = vsel %vm1190, %v1162, %v1075
  %v1194 = vsel %vm1190, %v1163, %v1077
  %v1195 = vsel %vm1190, %v1164, %v1079
  %v1196 = vsel %vm1190, %v1165, %v1081
  %v1197 = vsel %vm1190, %v1166, %v1083
  %v1198 = vsel %vm1190, %v1167, %v1085
  %v1199 = vsel %vm1190, %v1168, %v1087
  %v1200 = vsel %vm1190, %v1169, %v1089
  %v1201 = vsel %vm1190, %v1170, %v1091
  %v1202 = vsel %vm1190, %v1171, %v1093
  %v1203 = vsel %vm1190, %v1172, %v1095
  %v1204 = vsel %vm1190, %v1173, %v1097
  %v1205 = vsel %vm1190, %v1174, %v1099
  %v1206 = vsel %vm1190, %v1175, %v1101
  %v1207 = vsel %vm1190, %v1176, %v1103
  %v1208 = vsel %vm1190, %v1177, %v1105
  %v1209 = vsel %vm1190, %v1178, %v1107
  %v1210 = vsel %vm1190, %v1179, %v1109
  %v1211 = vsel %vm1190, %v1180, %v1111
  %v1212 = vsel %vm1190, %v1181, %v1113
  %v1213 = vsel %vm1190, %v1182, %v1115
  %v1214 = vsel %vm1190, %v1183, %v1117
  %v1215 = vsel %vm1190, %v1184, %v1119
  %v1216 = vsel %vm1190, %v1185, %v1121
  %v1217 = vsel %vm1190, %v1186, %v1123
  %v1218 = vsel %vm1190, %v1187, %v1125
  %v1219 = vsel %vm1190, %v1188, %v1127
  %v1220 = vsel %vm1190, %v1189, %v1129
  %1235 = vrot.lane.b32.xlu0 %v1192, 24
  %v1236 = vpop.permute.xlu0 %1235
  %1237 = vrot.lane.b32.xlu0 %v1194, 24
  %v1238 = vpop.permute.xlu0 %1237
  %1239 = vrot.lane.b32.xlu0 %v1196, 24
  %v1240 = vpop.permute.xlu0 %1239
  %1241 = vrot.lane.b32.xlu0 %v1198, 24
  %v1242 = vpop.permute.xlu0 %1241
  %1243 = vrot.lane.b32.xlu0 %v1200, 24
  %v1244 = vpop.permute.xlu0 %1243
  %1245 = vrot.lane.b32.xlu0 %v1202, 24
  %v1246 = vpop.permute.xlu0 %1245
  %1247 = vrot.lane.b32.xlu0 %v1204, 24
  %v1248 = vpop.permute.xlu0 %1247
  %1249 = vrot.lane.b32.xlu0 %v1207, 24
  %v1250 = vpop.permute.xlu0 %1249
  %1251 = vrot.lane.b32.xlu0 %v1209, 24
  %v1252 = vpop.permute.xlu0 %1251
  %1253 = vrot.lane.b32.xlu0 %v1211, 24
  %v1254 = vpop.permute.xlu0 %1253
  %1255 = vrot.lane.b32.xlu0 %v1213, 24
  %v1256 = vpop.permute.xlu0 %1255
  %1257 = vrot.lane.b32.xlu0 %v1215, 24
  %v1258 = vpop.permute.xlu0 %1257
  %1259 = vrot.lane.b32.xlu0 %v1217, 24
  %v1260 = vpop.permute.xlu0 %1259
  %1261 = vrot.lane.b32.xlu0 %v1219, 24
  %v1262 = vpop.permute.xlu0 %1261
  %1291 = vrot.lane.b32.xlu0 %v1193, 48
  %v1292 = vpop.permute.xlu0 %1291
  %1293 = vrot.lane.b32.xlu0 %v1195, 48
  %v1294 = vpop.permute.xlu0 %1293
  %1295 = vrot.lane.b32.xlu0 %v1197, 48
  %v1296 = vpop.permute.xlu0 %1295
  %1297 = vrot.lane.b32.xlu0 %v1199, 48
  %v1298 = vpop.permute.xlu0 %1297
  %1299 = vrot.lane.b32.xlu0 %v1201, 48
  %v1300 = vpop.permute.xlu0 %1299
  %1301 = vrot.lane.b32.xlu0 %v1203, 48
  %v1302 = vpop.permute.xlu0 %1301
  %1303 = vrot.lane.b32.xlu0 %v1205, 48
  %v1304 = vpop.permute.xlu0 %1303
  %1305 = vrot.lane.b32.xlu0 %v1208, 48
  %v1306 = vpop.permute.xlu0 %1305
  %1307 = vrot.lane.b32.xlu0 %v1210, 48
  %v1308 = vpop.permute.xlu0 %1307
  %1309 = vrot.lane.b32.xlu0 %v1212, 48
  %v1310 = vpop.permute.xlu0 %1309
  %1311 = vrot.lane.b32.xlu0 %v1214, 48
  %v1312 = vpop.permute.xlu0 %1311
  %1313 = vrot.lane.b32.xlu0 %v1216, 48
  %v1314 = vpop.permute.xlu0 %1313
  %1315 = vrot.lane.b32.xlu0 %v1218, 48
  %v1316 = vpop.permute.xlu0 %1315
  %1317 = vrot.lane.b32.xlu0 %v1220, 48
  %v1318 = vpop.permute.xlu0 %1317
  %vm1333 = vcmask 195584
  %v1334 = vsel %vm1333, %v1191, %v1236
  %v1335 = vsel %vm1333, %v1193, %v1238
  %v1336 = vsel %vm1333, %v1195, %v1240
  %v1337 = vsel %vm1333, %v1197, %v1242
  %v1338 = vsel %vm1333, %v1199, %v1244
  %v1339 = vsel %vm1333, %v1201, %v1246
  %v1340 = vsel %vm1333, %v1203, %v1248
  %v1341 = vsel %vm1333, %v1206, %v1250
  %v1342 = vsel %vm1333, %v1208, %v1252
  %v1343 = vsel %vm1333, %v1210, %v1254
  %v1344 = vsel %vm1333, %v1212, %v1256
  %v1345 = vsel %vm1333, %v1214, %v1258
  %v1346 = vsel %vm1333, %v1216, %v1260
  %v1347 = vsel %vm1333, %v1218, %v1262
  %vm1348 = vcmask 392192
  %v1349 = vsel %vm1348, %v1334, %v1292
  %v1350 = vsel %vm1348, %v1335, %v1294
  %v1351 = vsel %vm1348, %v1336, %v1296
  %v1352 = vsel %vm1348, %v1337, %v1298
  %v1353 = vsel %vm1348, %v1338, %v1300
  %v1354 = vsel %vm1348, %v1339, %v1302
  %v1355 = vsel %vm1348, %v1340, %v1304
  %v1356 = vsel %vm1348, %v1341, %v1306
  %v1357 = vsel %vm1348, %v1342, %v1308
  %v1358 = vsel %vm1348, %v1343, %v1310
  %v1359 = vsel %vm1348, %v1344, %v1312
  %v1360 = vsel %vm1348, %v1345, %v1314
  %v1361 = vsel %vm1348, %v1346, %v1316
  %v1362 = vsel %vm1348, %v1347, %v1318
  %v1377 = vrot.slane %v1349, 1
  %v1378 = vrot.slane %v1349, 2
  %v1379 = vrot.slane %v1349, 3
  %v1380 = vrot.slane %v1349, 4
  %v1381 = vrot.slane %v1349, 5
  %v1382 = vrot.slane %v1349, 6
  %v1383 = vrot.slane %v1350, 1
  %v1384 = vrot.slane %v1350, 2
  %v1385 = vrot.slane %v1350, 3
  %v1386 = vrot.slane %v1350, 4
  %v1387 = vrot.slane %v1350, 5
  %v1388 = vrot.slane %v1350, 6
  %v1389 = vrot.slane %v1351, 1
  %v1390 = vrot.slane %v1351, 2
  %v1391 = vrot.slane %v1351, 3
  %v1392 = vrot.slane %v1351, 4
  %v1393 = vrot.slane %v1351, 5
  %v1394 = vrot.slane %v1351, 6
  %v1395 = vrot.slane %v1352, 1
  %v1396 = vrot.slane %v1352, 2
  %v1397 = vrot.slane %v1352, 3
  %v1398 = vrot.slane %v1352, 4
  %v1399 = vrot.slane %v1352, 5
  %v1400 = vrot.slane %v1352, 6
  %v1401 = vrot.slane %v1353, 1
  %v1402 = vrot.slane %v1353, 2
  %v1403 = vrot.slane %v1353, 3
  %v1404 = vrot.slane %v1353, 4
  %v1405 = vrot.slane %v1353, 5
  %v1406 = vrot.slane %v1353, 6
  %v1407 = vrot.slane %v1354, 1
  %v1408 = vrot.slane %v1354, 2
  %v1409 = vrot.slane %v1354, 3
  %v1410 = vrot.slane %v1354, 4
  %v1411 = vrot.slane %v1354, 5
  %v1412 = vrot.slane %v1354, 6
  %v1413 = vrot.slane %v1355, 1
  %v1414 = vrot.slane %v1355, 2
  %v1415 = vrot.slane %v1355, 3
  %v1416 = vrot.slane %v1355, 4
  %v1417 = vrot.slane %v1355, 5
  %v1418 = vrot.slane %v1355, 6
  %v1419 = vrot.slane %v1356, 1
  %v1420 = vrot.slane %v1356, 2
  %v1421 = vrot.slane %v1356, 3
  %v1422 = vrot.slane %v1356, 4
  %v1423 = vrot.slane %v1356, 5
  %v1424 = vrot.slane %v1356, 6
  %v1425 = vrot.slane %v1357, 1
  %v1426 = vrot.slane %v1357, 2
  %v1427 = vrot.slane %v1357, 3
  %v1428 = vrot.slane %v1357, 4
  %v1429 = vrot.slane %v1357, 5
  %v1430 = vrot.slane %v1357, 6
  %v1431 = vrot.slane %v1358, 1
  %v1432 = vrot.slane %v1358, 2
  %v1433 = vrot.slane %v1358, 3
  %v1434 = vrot.slane %v1358, 4
  %v1435 = vrot.slane %v1358, 5
  %v1436 = vrot.slane %v1358, 6
  %v1437 = vrot.slane %v1359, 1
  %v1438 = vrot.slane %v1359, 2
  %v1439 = vrot.slane %v1359, 3
  %v1440 = vrot.slane %v1359, 4
  %v1441 = vrot.slane %v1359, 5
  %v1442 = vrot.slane %v1359, 6
  %v1443 = vrot.slane %v1360, 1
  %v1444 = vrot.slane %v1360, 2
  %v1445 = vrot.slane %v1360, 3
  %v1446 = vrot.slane %v1360, 4
  %v1447 = vrot.slane %v1360, 5
  %v1448 = vrot.slane %v1360, 6
  %v1449 = vrot.slane %v1361, 1
  %v1450 = vrot.slane %v1361, 2
  %v1451 = vrot.slane %v1361, 3
  %v1452 = vrot.slane %v1361, 4
  %v1453 = vrot.slane %v1361, 5
  %v1454 = vrot.slane %v1361, 6
  %v1455 = vrot.slane %v1362, 1
  %v1456 = vrot.slane %v1362, 2
  %v1457 = vrot.slane %v1362, 3
  %v1458 = vrot.slane %v1362, 4
  %v1459 = vrot.slane %v1362, 5
  %v1460 = vrot.slane %v1362, 6
  %v1461 = vld [vmem:[%s1 + $0x8] sm:$0xff]
  %v1462 = vld [vmem:[%s1 + $0x10] sm:$0xff]
  %v1463 = vld [vmem:[%s1 + $0x18] sm:$0xff]
  %v1464 = vld [vmem:[%s1 + $0x20] sm:$0xff]
  %v1465 = vld [vmem:[%s1 + $0x28] sm:$0xff]
  %v1466 = vld [vmem:[%s1 + $0x30] sm:$0xff]
  %v1467 = vld [vmem:[%s1 + $0x38] sm:$0xff]
  %v1468 = vld [vmem:[%s1 + $0x40] sm:$0xff]
  %v1469 = vld [vmem:[%s1 + $0x48] sm:$0xff]
  %1470 = vst [vmem:[#allocation1] ss:$9 sm:$0xff] %v1349
  %s1471 = scalar_lea.vmem [#allocation1], 1
  %1472 = vst [vmem:[%s1471] ss:$9 sm:$0xff] %v1377
  %s1473 = scalar_lea.vmem [#allocation1], 2
  %1474 = vst [vmem:[%s1473] ss:$9 sm:$0xff] %v1378
  %s1475 = scalar_lea.vmem [#allocation1], 3
  %1476 = vst [vmem:[%s1475] ss:$9 sm:$0xff] %v1379
  %s1477 = scalar_lea.vmem [#allocation1], 4
  %1478 = vst [vmem:[%s1477] ss:$9 sm:$0xff] %v1380
  %s1479 = scalar_lea.vmem [#allocation1], 5
  %1480 = vst [vmem:[%s1479] ss:$9 sm:$0xff] %v1381
  %s1481 = scalar_lea.vmem [#allocation1], 6
  %1482 = vst [vmem:[%s1481] ss:$9 sm:$0xff] %v1382
  %s1483 = scalar_lea.vmem [#allocation1], 7
  %1484 = vst [vmem:[%s1483] ss:$9 sm:$0xff] %v1350
  %v1485 = vld [vmem:[#allocation1] sm:$0xff]
  %1486 = vst [vmem:[#allocation1] ss:$9 sm:$0xff] %v1383
  %1487 = vst [vmem:[%s1471] ss:$9 sm:$0xff] %v1384
  %1488 = vst [vmem:[%s1473] ss:$9 sm:$0xff] %v1385
  %1489 = vst [vmem:[%s1475] ss:$9 sm:$0xff] %v1386
  %1490 = vst [vmem:[%s1477] ss:$9 sm:$0xff] %v1387
  %1491 = vst [vmem:[%s1479] ss:$9 sm:$0xff] %v1388
  %1492 = vst [vmem:[%s1481] ss:$9 sm:$0xff] %v1351
  %1493 = vst [vmem:[%s1483] ss:$9 sm:$0xff] %v1389
  %v1494 = vld [vmem:[#allocation1] sm:$0xff]
  %1495 = vst [vmem:[#allocation1] ss:$9 sm:$0xff] %v1390
  %1496 = vst [vmem:[%s1471] ss:$9 sm:$0xff] %v1391
  %1497 = vst [vmem:[%s1473] ss:$9 sm:$0xff] %v1392
  %1498 = vst [vmem:[%s1475] ss:$9 sm:$0xff] %v1393
  %1499 = vst [vmem:[%s1477] ss:$9 sm:$0xff] %v1394
  %1500 = vst [vmem:[%s1479] ss:$9 sm:$0xff] %v1352
  %1501 = vst [vmem:[%s1481] ss:$9 sm:$0xff] %v1395
  %1502 = vst [vmem:[%s1483] ss:$9 sm:$0xff] %v1396
  %v1503 = vld [vmem:[#allocation1] sm:$0xff]
  %1504 = vst [vmem:[#allocation1] ss:$9 sm:$0xff] %v1397
  %1505 = vst [vmem:[%s1471] ss:$9 sm:$0xff] %v1398
  %1506 = vst [vmem:[%s1473] ss:$9 sm:$0xff] %v1399
  %1507 = vst [vmem:[%s1475] ss:$9 sm:$0xff] %v1400
  %1508 = vst [vmem:[%s1477] ss:$9 sm:$0xff] %v1353
  %1509 = vst [vmem:[%s1479] ss:$9 sm:$0xff] %v1401
  %1510 = vst [vmem:[%s1481] ss:$9 sm:$0xff] %v1402
  %1511 = vst [vmem:[%s1483] ss:$9 sm:$0xff] %v1403
  %v1512 = vld [vmem:[#allocation1] sm:$0xff]
  %1513 = vst [vmem:[#allocation1] ss:$9 sm:$0xff] %v1404
  %1514 = vst [vmem:[%s1471] ss:$9 sm:$0xff] %v1405
  %1515 = vst [vmem:[%s1473] ss:$9 sm:$0xff] %v1406
  %1516 = vst [vmem:[%s1475] ss:$9 sm:$0xff] %v1354
  %1517 = vst [vmem:[%s1477] ss:$9 sm:$0xff] %v1407
  %1518 = vst [vmem:[%s1479] ss:$9 sm:$0xff] %v1408
  %1519 = vst [vmem:[%s1481] ss:$9 sm:$0xff] %v1409
  %1520 = vst [vmem:[%s1483] ss:$9 sm:$0xff] %v1410
  %v1521 = vld [vmem:[#allocation1] sm:$0xff]
  %1522 = vst [vmem:[#allocation1] ss:$9 sm:$0xff] %v1411
  %1523 = vst [vmem:[%s1471] ss:$9 sm:$0xff] %v1412
  %1524 = vst [vmem:[%s1473] ss:$9 sm:$0xff] %v1355
  %1525 = vst [vmem:[%s1475] ss:$9 sm:$0xff] %v1413
  %1526 = vst [vmem:[%s1477] ss:$9 sm:$0xff] %v1414
  %1527 = vst [vmem:[%s1479] ss:$9 sm:$0xff] %v1415
  %1528 = vst [vmem:[%s1481] ss:$9 sm:$0xff] %v1416
  %1529 = vst [vmem:[%s1483] ss:$9 sm:$0xff] %v1417
  %v1530 = vld [vmem:[#allocation1] sm:$0xff]
  %1531 = vst [vmem:[#allocation1] ss:$9 sm:$0xff] %v1418
  %1532 = vst [vmem:[%s1471] ss:$9 sm:$0xff] %v1356
  %1533 = vst [vmem:[%s1473] ss:$9 sm:$0xff] %v1419
  %1534 = vst [vmem:[%s1475] ss:$9 sm:$0xff] %v1420
  %1535 = vst [vmem:[%s1477] ss:$9 sm:$0xff] %v1421
  %1536 = vst [vmem:[%s1479] ss:$9 sm:$0xff] %v1422
  %1537 = vst [vmem:[%s1481] ss:$9 sm:$0xff] %v1423
  %1538 = vst [vmem:[%s1483] ss:$9 sm:$0xff] %v1424
  %v1539 = vld [vmem:[#allocation1] sm:$0xff]
  %1540 = vst [vmem:[#allocation1] ss:$9 sm:$0xff] %v1357
  %1541 = vst [vmem:[%s1471] ss:$9 sm:$0xff] %v1425
  %1542 = vst [vmem:[%s1473] ss:$9 sm:$0xff] %v1426
  %1543 = vst [vmem:[%s1475] ss:$9 sm:$0xff] %v1427
  %1544 = vst [vmem:[%s1477] ss:$9 sm:$0xff] %v1428
  %1545 = vst [vmem:[%s1479] ss:$9 sm:$0xff] %v1429
  %1546 = vst [vmem:[%s1481] ss:$9 sm:$0xff] %v1430
  %1547 = vst [vmem:[%s1483] ss:$9 sm:$0xff] %v1358
  %v1548 = vld [vmem:[#allocation1] sm:$0xff]
  %1549 = vst [vmem:[#allocation1] ss:$9 sm:$0xff] %v1431
  %1550 = vst [vmem:[%s1471] ss:$9 sm:$0xff] %v1432
  %1551 = vst [vmem:[%s1473] ss:$9 sm:$0xff] %v1433
  %1552 = vst [vmem:[%s1475] ss:$9 sm:$0xff] %v1434
  %1553 = vst [vmem:[%s1477] ss:$9 sm:$0xff] %v1435
  %1554 = vst [vmem:[%s1479] ss:$9 sm:$0xff] %v1436
  %1555 = vst [vmem:[%s1481] ss:$9 sm:$0xff] %v1359
  %1556 = vst [vmem:[%s1483] ss:$9 sm:$0xff] %v1437
  %v1557 = vld [vmem:[#allocation1] sm:$0xff]
  %1558 = vst [vmem:[#allocation1] ss:$9 sm:$0xff] %v1438
  %1559 = vst [vmem:[%s1471] ss:$9 sm:$0xff] %v1439
  %1560 = vst [vmem:[%s1473] ss:$9 sm:$0xff] %v1440
  %1561 = vst [vmem:[%s1475] ss:$9 sm:$0xff] %v1441
  %1562 = vst [vmem:[%s1477] ss:$9 sm:$0xff] %v1442
  %1563 = vst [vmem:[%s1479] ss:$9 sm:$0xff] %v1360
  %1564 = vst [vmem:[%s1481] ss:$9 sm:$0xff] %v1443
  %1565 = vst [vmem:[%s1483] ss:$9 sm:$0xff] %v1444
  %v1566 = vld [vmem:[#allocation1] sm:$0xff]
  %1567 = vst [vmem:[#allocation1] ss:$9 sm:$0xff] %v1445
  %1568 = vst [vmem:[%s1471] ss:$9 sm:$0xff] %v1446
  %1569 = vst [vmem:[%s1473] ss:$9 sm:$0xff] %v1447
  %1570 = vst [vmem:[%s1475] ss:$9 sm:$0xff] %v1448
  %1571 = vst [vmem:[%s1477] ss:$9 sm:$0xff] %v1361
  %1572 = vst [vmem:[%s1479] ss:$9 sm:$0xff] %v1449
  %1573 = vst [vmem:[%s1481] ss:$9 sm:$0xff] %v1450
  %1574 = vst [vmem:[%s1483] ss:$9 sm:$0xff] %v1451
  %v1575 = vld [vmem:[#allocation1] sm:$0xff]
  %1576 = vst [vmem:[#allocation1] ss:$9 sm:$0xff] %v1452
  %1577 = vst [vmem:[%s1471] ss:$9 sm:$0xff] %v1453
  %1578 = vst [vmem:[%s1473] ss:$9 sm:$0xff] %v1454
  %1579 = vst [vmem:[%s1475] ss:$9 sm:$0xff] %v1362
  %1580 = vst [vmem:[%s1477] ss:$9 sm:$0xff] %v1455
  %1581 = vst [vmem:[%s1479] ss:$9 sm:$0xff] %v1456
  %1582 = vst [vmem:[%s1481] ss:$9 sm:$0xff] %v1457
  %1583 = vst [vmem:[%s1483] ss:$9 sm:$0xff] %v1458
  %v1584 = vld [vmem:[#allocation1] sm:$0xff]
  %1585 = vst [vmem:[#allocation1] ss:$9 sm:$0xff] %v1459
  %1586 = vst [vmem:[%s1471] ss:$9 sm:$0xff] %v1460
  %v1587 = vld [vmem:[#allocation1] sm:$0xff]
  %vm1588 = vcmask 588800
  %v1589 = vsel %vm1588, %v1485, 0
  %v1591 = vsel %vm1588, %v1494, 0
  %v1593 = vsel %vm1588, %v1503, 0
  %v1595 = vsel %vm1588, %v1512, 0
  %v1597 = vsel %vm1588, %v1521, 0
  %v1599 = vsel %vm1588, %v1530, 0
  %v1601 = vsel %vm1588, %v1539, 0
  %v1603 = vsel %vm1588, %v1548, 0
  %v1605 = vsel %vm1588, %v1557, 0
  %v1607 = vsel %vm1588, %v1566, 0
  %v1609 = vsel %vm1588, %v1575, 0
  %v1611 = vsel %vm1588, %v1584, 0
  %v1613 = vsel %vm1588, %v1587, 0
  %1615 = vmatpush.msra.mxu0 0.0
  %1616 = vmatpush.msra.mxu0 0.0
  %1617 = vmatpush.msra.mxu0 0.0
  %1618 = vmatpush.msra.mxu0 0.0
  %1619 = vmatpush.msra.mxu0 0.0
  %1620 = vmatpush.msra.mxu0 0.0
  %1621 = vmatpush.msra.mxu0 0.0
  %1622 = vmatpush.msra.mxu0 %v1469
  %1623 = vmatpush.msra.mxu0 %v1468
  %1624 = vmatpush.msra.mxu0 %v1467
  %1625 = vmatpush.msra.mxu0 %v1466
  %1626 = vmatpush.msra.mxu0 %v1465
  %1627 = vmatpush.msra.mxu0 %v1464
  %1628 = vmatpush.msra.mxu0 %v1463
  %1629 = vmatpush.msra.mxu0 %v1462
  %1630 = vmatpush.msra.mxu0 %v1461
  %1631 = vmatmul.f32.gmra.mxu0 %v1589
  %v1632 = vpop.f32.mrf.mxu0
  %v1633 = vadd.f32 0.0, %v1632
  %1634 = vmatmul.f32.gmra.mxu0 %v1591
  %v1635 = vpop.f32.mrf.mxu0
  %v1636 = vadd.f32 0.0, %v1635
  %1637 = vmatmul.f32.gmra.mxu0 %v1593
  %v1638 = vpop.f32.mrf.mxu0
  %v1639 = vadd.f32 0.0, %v1638
  %1640 = vmatmul.f32.gmra.mxu0 %v1595
  %v1641 = vpop.f32.mrf.mxu0
  %v1642 = vadd.f32 0.0, %v1641
  %1643 = vmatmul.f32.gmra.mxu0 %v1597
  %v1644 = vpop.f32.mrf.mxu0
  %v1645 = vadd.f32 0.0, %v1644
  %1646 = vmatmul.f32.gmra.mxu0 %v1599
  %v1647 = vpop.f32.mrf.mxu0
  %v1648 = vadd.f32 0.0, %v1647
  %1649 = vmatmul.f32.gmra.mxu0 %v1601
  %v1650 = vpop.f32.mrf.mxu0
  %v1651 = vadd.f32 0.0, %v1650
  %1652 = vmatmul.f32.gmra.mxu0 %v1603
  %v1653 = vpop.f32.mrf.mxu0
  %v1654 = vadd.f32 0.0, %v1653
  %1655 = vmatmul.f32.gmra.mxu0 %v1605
  %v1656 = vpop.f32.mrf.mxu0
  %v1657 = vadd.f32 0.0, %v1656
  %1658 = vmatmul.f32.gmra.mxu0 %v1607
  %v1659 = vpop.f32.mrf.mxu0
  %v1660 = vadd.f32 0.0, %v1659
  %1661 = vmatmul.f32.gmra.mxu0 %v1609
  %v1662 = vpop.f32.mrf.mxu0
  %v1663 = vadd.f32 0.0, %v1662
  %1664 = vmatmul.f32.gmra.mxu0 %v1611
  %v1665 = vpop.f32.mrf.mxu0
  %v1666 = vadd.f32 0.0, %v1665
  %1667 = vmatmul.f32.gmra.mxu0 %v1613
  %v1668 = vpop.f32.mrf.mxu0
  %v1669 = vadd.f32 0.0, %v1668
  %1670 = vdwg.mxu0
  %v1671 = vld [vmem:[%s2 + $0x2] sm:$0x1]
  %v1672 = vld [vmem:[%s2 + $0x3] sm:$0x1]
  %v1673 = vperm.slane %v1671, 0
  %v1674 = vmul.f32 %v1633, %v1673
  %v1675 = vmul.f32 %v1636, %v1673
  %v1676 = vmul.f32 %v1639, %v1673
  %v1677 = vmul.f32 %v1642, %v1673
  %v1678 = vmul.f32 %v1645, %v1673
  %v1679 = vmul.f32 %v1648, %v1673
  %v1680 = vmul.f32 %v1651, %v1673
  %v1681 = vmul.f32 %v1654, %v1673
  %v1682 = vmul.f32 %v1657, %v1673
  %v1683 = vmul.f32 %v1660, %v1673
  %v1684 = vmul.f32 %v1663, %v1673
  %v1685 = vmul.f32 %v1666, %v1673
  %v1686 = vmul.f32 %v1669, %v1673
  %v1687 = vperm.slane %v1672, 0
  %v1688 = vadd.f32 %v1674, %v1687
  %v1689 = vadd.f32 %v1675, %v1687
  %v1690 = vadd.f32 %v1676, %v1687
  %v1691 = vadd.f32 %v1677, %v1687
  %v1692 = vadd.f32 %v1678, %v1687
  %v1693 = vadd.f32 %v1679, %v1687
  %v1694 = vadd.f32 %v1680, %v1687
  %v1695 = vadd.f32 %v1681, %v1687
  %v1696 = vadd.f32 %v1682, %v1687
  %v1697 = vadd.f32 %v1683, %v1687
  %v1698 = vadd.f32 %v1684, %v1687
  %v1699 = vadd.f32 %v1685, %v1687
  %v1700 = vadd.f32 %v1686, %v1687
  %v1701 = vmax.f32 %v1688, 0.0
  %v1702 = vmax.f32 %v1689, 0.0
  %v1703 = vmax.f32 %v1690, 0.0
  %v1704 = vmax.f32 %v1691, 0.0
  %v1705 = vmax.f32 %v1692, 0.0
  %v1706 = vmax.f32 %v1693, 0.0
  %v1707 = vmax.f32 %v1694, 0.0
  %v1708 = vmax.f32 %v1695, 0.0
  %v1709 = vmax.f32 %v1696, 0.0
  %v1710 = vmax.f32 %v1697, 0.0
  %v1711 = vmax.f32 %v1698, 0.0
  %v1712 = vmax.f32 %v1699, 0.0
  %v1713 = vmax.f32 %v1700, 0.0
  %v1714 = vld [vmem:[%s1 + $0x50] sm:$0xff]
  %1715 = vmatpush.msra.mxu0 0.0
  %1716 = vmatpush.msra.mxu0 0.0
  %1717 = vmatpush.msra.mxu0 0.0
  %1718 = vmatpush.msra.mxu0 0.0
  %1719 = vmatpush.msra.mxu0 0.0
  %1720 = vmatpush.msra.mxu0 0.0
  %1721 = vmatpush.msra.mxu0 0.0
  %1722 = vmatpush.msra.mxu0 0.0
  %1723 = vmatpush.msra.mxu0 0.0
  %1724 = vmatpush.msra.mxu0 0.0
  %1725 = vmatpush.msra.mxu0 0.0
  %1726 = vmatpush.msra.mxu0 0.0
  %1727 = vmatpush.msra.mxu0 0.0
  %1728 = vmatpush.msra.mxu0 0.0
  %1729 = vmatpush.msra.mxu0 0.0
  %1730 = vmatpush.msra.mxu0 %v1714
  %1731 = vmatmul.f32.gmra.mxu0 %v81
  %v1732 = vpop.f32.mrf.mxu0
  %v1733 = vadd.f32 0.0, %v1732
  %1734 = vmatmul.f32.gmra.mxu0 %v84
  %v1735 = vpop.f32.mrf.mxu0
  %v1736 = vadd.f32 0.0, %v1735
  %1737 = vmatmul.f32.gmra.mxu0 %v87
  %v1738 = vpop.f32.mrf.mxu0
  %v1739 = vadd.f32 0.0, %v1738
  %1740 = vmatmul.f32.gmra.mxu0 %v90
  %v1741 = vpop.f32.mrf.mxu0
  %v1742 = vadd.f32 0.0, %v1741
  %1743 = vmatmul.f32.gmra.mxu0 %v93
  %v1744 = vpop.f32.mrf.mxu0
  %v1745 = vadd.f32 0.0, %v1744
  %1746 = vmatmul.f32.gmra.mxu0 %v96
  %v1747 = vpop.f32.mrf.mxu0
  %v1748 = vadd.f32 0.0, %v1747
  %1749 = vmatmul.f32.gmra.mxu0 %v99
  %v1750 = vpop.f32.mrf.mxu0
  %v1751 = vadd.f32 0.0, %v1750
  %1752 = vmatmul.f32.gmra.mxu0 %v102
  %v1753 = vpop.f32.mrf.mxu0
  %v1754 = vadd.f32 0.0, %v1753
  %1755 = vmatmul.f32.gmra.mxu0 %v105
  %v1756 = vpop.f32.mrf.mxu0
  %v1757 = vadd.f32 0.0, %v1756
  %1758 = vmatmul.f32.gmra.mxu0 %v108
  %v1759 = vpop.f32.mrf.mxu0
  %v1760 = vadd.f32 0.0, %v1759
  %1761 = vmatmul.f32.gmra.mxu0 %v111
  %v1762 = vpop.f32.mrf.mxu0
  %v1763 = vadd.f32 0.0, %v1762
  %1764 = vmatmul.f32.gmra.mxu0 %v114
  %v1765 = vpop.f32.mrf.mxu0
  %v1766 = vadd.f32 0.0, %v1765
  %1767 = vmatmul.f32.gmra.mxu0 %v117
  %v1768 = vpop.f32.mrf.mxu0
  %v1769 = vadd.f32 0.0, %v1768
  %1770 = vmatmul.f32.gmra.mxu0 %v120
  %v1771 = vpop.f32.mrf.mxu0
  %v1772 = vadd.f32 0.0, %v1771
  %1773 = vmatmul.f32.gmra.mxu0 %v123
  %v1774 = vpop.f32.mrf.mxu0
  %v1775 = vadd.f32 0.0, %v1774
  %1776 = vmatmul.f32.gmra.mxu0 %v126
  %v1777 = vpop.f32.mrf.mxu0
  %v1778 = vadd.f32 0.0, %v1777
  %1779 = vmatmul.f32.gmra.mxu0 %v129
  %v1780 = vpop.f32.mrf.mxu0
  %v1781 = vadd.f32 0.0, %v1780
  %1782 = vmatmul.f32.gmra.mxu0 %v132
  %v1783 = vpop.f32.mrf.mxu0
  %v1784 = vadd.f32 0.0, %v1783
  %1785 = vmatmul.f32.gmra.mxu0 %v135
  %v1786 = vpop.f32.mrf.mxu0
  %v1787 = vadd.f32 0.0, %v1786
  %1788 = vmatmul.f32.gmra.mxu0 %v138
  %v1789 = vpop.f32.mrf.mxu0
  %v1790 = vadd.f32 0.0, %v1789
  %1791 = vmatmul.f32.gmra.mxu0 %v141
  %v1792 = vpop.f32.mrf.mxu0
  %v1793 = vadd.f32 0.0, %v1792
  %1794 = vmatmul.f32.gmra.mxu0 %v144
  %v1795 = vpop.f32.mrf.mxu0
  %v1796 = vadd.f32 0.0, %v1795
  %1797 = vmatmul.f32.gmra.mxu0 %v147
  %v1798 = vpop.f32.mrf.mxu0
  %v1799 = vadd.f32 0.0, %v1798
  %1800 = vmatmul.f32.gmra.mxu0 %v150
  %v1801 = vpop.f32.mrf.mxu0
  %v1802 = vadd.f32 0.0, %v1801
  %1803 = vmatmul.f32.gmra.mxu0 %v153
  %v1804 = vpop.f32.mrf.mxu0
  %v1805 = vadd.f32 0.0, %v1804
  %1806 = vmatmul.f32.gmra.mxu0 %v156
  %v1807 = vpop.f32.mrf.mxu0
  %v1808 = vadd.f32 0.0, %v1807
  %1809 = vmatmul.f32.gmra.mxu0 %v159
  %v1810 = vpop.f32.mrf.mxu0
  %v1811 = vadd.f32 0.0, %v1810
  %1812 = vmatmul.f32.gmra.mxu0 %v162
  %v1813 = vpop.f32.mrf.mxu0
  %v1814 = vadd.f32 0.0, %v1813
  %1815 = vmatmul.f32.gmra.mxu0 %v165
  %v1816 = vpop.f32.mrf.mxu0
  %v1817 = vadd.f32 0.0, %v1816
  %1818 = vmatmul.f32.gmra.mxu0 %v168
  %v1819 = vpop.f32.mrf.mxu0
  %v1820 = vadd.f32 0.0, %v1819
  %1821 = vmatmul.f32.gmra.mxu0 %v171
  %v1822 = vpop.f32.mrf.mxu0
  %v1823 = vadd.f32 0.0, %v1822
  %1824 = vmatmul.f32.gmra.mxu0 %v174
  %v1825 = vpop.f32.mrf.mxu0
  %v1826 = vadd.f32 0.0, %v1825
  %1827 = vmatmul.f32.gmra.mxu0 %v177
  %v1828 = vpop.f32.mrf.mxu0
  %v1829 = vadd.f32 0.0, %v1828
  %1830 = vmatmul.f32.gmra.mxu0 %v180
  %v1831 = vpop.f32.mrf.mxu0
  %v1832 = vadd.f32 0.0, %v1831
  %1833 = vmatmul.f32.gmra.mxu0 %v183
  %v1834 = vpop.f32.mrf.mxu0
  %v1835 = vadd.f32 0.0, %v1834
  %1836 = vmatmul.f32.gmra.mxu0 %v186
  %v1837 = vpop.f32.mrf.mxu0
  %v1838 = vadd.f32 0.0, %v1837
  %1839 = vmatmul.f32.gmra.mxu0 %v189
  %v1840 = vpop.f32.mrf.mxu0
  %v1841 = vadd.f32 0.0, %v1840
  %1842 = vmatmul.f32.gmra.mxu0 %v192
  %v1843 = vpop.f32.mrf.mxu0
  %v1844 = vadd.f32 0.0, %v1843
  %1845 = vmatmul.f32.gmra.mxu0 %v195
  %v1846 = vpop.f32.mrf.mxu0
  %v1847 = vadd.f32 0.0, %v1846
  %1848 = vmatmul.f32.gmra.mxu0 %v198
  %v1849 = vpop.f32.mrf.mxu0
  %v1850 = vadd.f32 0.0, %v1849
  %1851 = vmatmul.f32.gmra.mxu0 %v201
  %v1852 = vpop.f32.mrf.mxu0
  %v1853 = vadd.f32 0.0, %v1852
  %1854 = vmatmul.f32.gmra.mxu0 %v204
  %v1855 = vpop.f32.mrf.mxu0
  %v1856 = vadd.f32 0.0, %v1855
  %1857 = vmatmul.f32.gmra.mxu0 %v207
  %v1858 = vpop.f32.mrf.mxu0
  %v1859 = vadd.f32 0.0, %v1858
  %1860 = vmatmul.f32.gmra.mxu0 %v210
  %v1861 = vpop.f32.mrf.mxu0
  %v1862 = vadd.f32 0.0, %v1861
  %1863 = vmatmul.f32.gmra.mxu0 %v213
  %v1864 = vpop.f32.mrf.mxu0
  %v1865 = vadd.f32 0.0, %v1864
  %1866 = vmatmul.f32.gmra.mxu0 %v216
  %v1867 = vpop.f32.mrf.mxu0
  %v1868 = vadd.f32 0.0, %v1867
  %1869 = vmatmul.f32.gmra.mxu0 %v219
  %v1870 = vpop.f32.mrf.mxu0
  %v1871 = vadd.f32 0.0, %v1870
  %1872 = vmatmul.f32.gmra.mxu0 %v222
  %v1873 = vpop.f32.mrf.mxu0
  %v1874 = vadd.f32 0.0, %v1873
  %1875 = vmatmul.f32.gmra.mxu0 %v225
  %v1876 = vpop.f32.mrf.mxu0
  %v1877 = vadd.f32 0.0, %v1876
  %1878 = vmatmul.f32.gmra.mxu0 %v228
  %v1879 = vpop.f32.mrf.mxu0
  %v1880 = vadd.f32 0.0, %v1879
  %1881 = vmatmul.f32.gmra.mxu0 %v231
  %v1882 = vpop.f32.mrf.mxu0
  %v1883 = vadd.f32 0.0, %v1882
  %1884 = vmatmul.f32.gmra.mxu0 %v234
  %v1885 = vpop.f32.mrf.mxu0
  %v1886 = vadd.f32 0.0, %v1885
  %1887 = vmatmul.f32.gmra.mxu0 %v237
  %v1888 = vpop.f32.mrf.mxu0
  %v1889 = vadd.f32 0.0, %v1888
  %1890 = vmatmul.f32.gmra.mxu0 %v240
  %v1891 = vpop.f32.mrf.mxu0
  %v1892 = vadd.f32 0.0, %v1891
  %1893 = vmatmul.f32.gmra.mxu0 %v243
  %v1894 = vpop.f32.mrf.mxu0
  %v1895 = vadd.f32 0.0, %v1894
  %1896 = vmatmul.f32.gmra.mxu0 %v246
  %v1897 = vpop.f32.mrf.mxu0
  %v1898 = vadd.f32 0.0, %v1897
  %1899 = vmatmul.f32.gmra.mxu0 %v249
  %v1900 = vpop.f32.mrf.mxu0
  %v1901 = vadd.f32 0.0, %v1900
  %1902 = vmatmul.f32.gmra.mxu0 %v252
  %v1903 = vpop.f32.mrf.mxu0
  %v1904 = vadd.f32 0.0, %v1903
  %1905 = vmatmul.f32.gmra.mxu0 %v255
  %v1906 = vpop.f32.mrf.mxu0
  %v1907 = vadd.f32 0.0, %v1906
  %1908 = vmatmul.f32.gmra.mxu0 %v258
  %v1909 = vpop.f32.mrf.mxu0
  %v1910 = vadd.f32 0.0, %v1909
  %1911 = vmatmul.f32.gmra.mxu0 %v261
  %v1912 = vpop.f32.mrf.mxu0
  %v1913 = vadd.f32 0.0, %v1912
  %1914 = vmatmul.f32.gmra.mxu0 %v264
  %v1915 = vpop.f32.mrf.mxu0
  %v1916 = vadd.f32 0.0, %v1915
  %1917 = vmatmul.f32.gmra.mxu0 %v267
  %v1918 = vpop.f32.mrf.mxu0
  %v1919 = vadd.f32 0.0, %v1918
  %1920 = vmatmul.f32.gmra.mxu0 %v270
  %v1921 = vpop.f32.mrf.mxu0
  %v1922 = vadd.f32 0.0, %v1921
  %1923 = vdwg.mxu0
  %v1924 = vld [vmem:[%s2 + $0x4] sm:$0x1]
  %v1925 = vld [vmem:[%s2 + $0x5] sm:$0x1]
  %v1926 = vperm.slane %v1924, 0
  %v1927 = vmul.f32 %v1733, %v1926
  %v1928 = vmul.f32 %v1736, %v1926
  %v1929 = vmul.f32 %v1739, %v1926
  %v1930 = vmul.f32 %v1742, %v1926
  %v1931 = vmul.f32 %v1745, %v1926
  %v1932 = vmul.f32 %v1748, %v1926
  %v1933 = vmul.f32 %v1751, %v1926
  %v1934 = vmul.f32 %v1754, %v1926
  %v1935 = vmul.f32 %v1757, %v1926
  %v1936 = vmul.f32 %v1760, %v1926
  %v1937 = vmul.f32 %v1763, %v1926
  %v1938 = vmul.f32 %v1766, %v1926
  %v1939 = vmul.f32 %v1769, %v1926
  %v1940 = vmul.f32 %v1772, %v1926
  %v1941 = vmul.f32 %v1775, %v1926
  %v1942 = vmul.f32 %v1778, %v1926
  %v1943 = vmul.f32 %v1781, %v1926
  %v1944 = vmul.f32 %v1784, %v1926
  %v1945 = vmul.f32 %v1787, %v1926
  %v1946 = vmul.f32 %v1790, %v1926
  %v1947 = vmul.f32 %v1793, %v1926
  %v1948 = vmul.f32 %v1796, %v1926
  %v1949 = vmul.f32 %v1799, %v1926
  %v1950 = vmul.f32 %v1802, %v1926
  %v1951 = vmul.f32 %v1805, %v1926
  %v1952 = vmul.f32 %v1808, %v1926
  %v1953 = vmul.f32 %v1811, %v1926
  %v1954 = vmul.f32 %v1814, %v1926
  %v1955 = vmul.f32 %v1817, %v1926
  %v1956 = vmul.f32 %v1820, %v1926
  %v1957 = vmul.f32 %v1823, %v1926
  %v1958 = vmul.f32 %v1826, %v1926
  %v1959 = vmul.f32 %v1829, %v1926
  %v1960 = vmul.f32 %v1832, %v1926
  %v1961 = vmul.f32 %v1835, %v1926
  %v1962 = vmul.f32 %v1838, %v1926
  %v1963 = vmul.f32 %v1841, %v1926
  %v1964 = vmul.f32 %v1844, %v1926
  %v1965 = vmul.f32 %v1847, %v1926
  %v1966 = vmul.f32 %v1850, %v1926
  %v1967 = vmul.f32 %v1853, %v1926
  %v1968 = vmul.f32 %v1856, %v1926
  %v1969 = vmul.f32 %v1859, %v1926
  %v1970 = vmul.f32 %v1862, %v1926
  %v1971 = vmul.f32 %v1865, %v1926
  %v1972 = vmul.f32 %v1868, %v1926
  %v1973 = vmul.f32 %v1871, %v1926
  %v1974 = vmul.f32 %v1874, %v1926
  %v1975 = vmul.f32 %v1877, %v1926
  %v1976 = vmul.f32 %v1880, %v1926
  %v1977 = vmul.f32 %v1883, %v1926
  %v1978 = vmul.f32 %v1886, %v1926
  %v1979 = vmul.f32 %v1889, %v1926
  %v1980 = vmul.f32 %v1892, %v1926
  %v1981 = vmul.f32 %v1895, %v1926
  %v1982 = vmul.f32 %v1898, %v1926
  %v1983 = vmul.f32 %v1901, %v1926
  %v1984 = vmul.f32 %v1904, %v1926
  %v1985 = vmul.f32 %v1907, %v1926
  %v1986 = vmul.f32 %v1910, %v1926
  %v1987 = vmul.f32 %v1913, %v1926
  %v1988 = vmul.f32 %v1916, %v1926
  %v1989 = vmul.f32 %v1919, %v1926
  %v1990 = vmul.f32 %v1922, %v1926
  %v1991 = vperm.slane %v1925, 0
  %v1992 = vadd.f32 %v1927, %v1991
  %v1993 = vadd.f32 %v1928, %v1991
  %v1994 = vadd.f32 %v1929, %v1991
  %v1995 = vadd.f32 %v1930, %v1991
  %v1996 = vadd.f32 %v1931, %v1991
  %v1997 = vadd.f32 %v1932, %v1991
  %v1998 = vadd.f32 %v1933, %v1991
  %v1999 = vadd.f32 %v1934, %v1991
  %v2000 = vadd.f32 %v1935, %v1991
  %v2001 = vadd.f32 %v1936, %v1991
  %v2002 = vadd.f32 %v1937, %v1991
  %v2003 = vadd.f32 %v1938, %v1991
  %v2004 = vadd.f32 %v1939, %v1991
  %v2005 = vadd.f32 %v1940, %v1991
  %v2006 = vadd.f32 %v1941, %v1991
  %v2007 = vadd.f32 %v1942, %v1991
  %v2008 = vadd.f32 %v1943, %v1991
  %v2009 = vadd.f32 %v1944, %v1991
  %v2010 = vadd.f32 %v1945, %v1991
  %v2011 = vadd.f32 %v1946, %v1991
  %v2012 = vadd.f32 %v1947, %v1991
  %v2013 = vadd.f32 %v1948, %v1991
  %v2014 = vadd.f32 %v1949, %v1991
  %v2015 = vadd.f32 %v1950, %v1991
  %v2016 = vadd.f32 %v1951, %v1991
  %v2017 = vadd.f32 %v1952, %v1991
  %v2018 = vadd.f32 %v1953, %v1991
  %v2019 = vadd.f32 %v1954, %v1991
  %v2020 = vadd.f32 %v1955, %v1991
  %v2021 = vadd.f32 %v1956, %v1991
  %v2022 = vadd.f32 %v1957, %v1991
  %v2023 = vadd.f32 %v1958, %v1991
  %v2024 = vadd.f32 %v1959, %v1991
  %v2025 = vadd.f32 %v1960, %v1991
  %v2026 = vadd.f32 %v1961, %v1991
  %v2027 = vadd.f32 %v1962, %v1991
  %v2028 = vadd.f32 %v1963, %v1991
  %v2029 = vadd.f32 %v1964, %v1991
  %v2030 = vadd.f32 %v1965, %v1991
  %v2031 = vadd.f32 %v1966, %v1991
  %v2032 = vadd.f32 %v1967, %v1991
  %v2033 = vadd.f32 %v1968, %v1991
  %v2034 = vadd.f32 %v1969, %v1991
  %v2035 = vadd.f32 %v1970, %v1991
  %v2036 = vadd.f32 %v1971, %v1991
  %v2037 = vadd.f32 %v1972, %v1991
  %v2038 = vadd.f32 %v1973, %v1991
  %v2039 = vadd.f32 %v1974, %v1991
  %v2040 = vadd.f32 %v1975, %v1991
  %v2041 = vadd.f32 %v1976, %v1991
  %v2042 = vadd.f32 %v1977, %v1991
  %v2043 = vadd.f32 %v1978, %v1991
  %v2044 = vadd.f32 %v1979, %v1991
  %v2045 = vadd.f32 %v1980, %v1991
  %v2046 = vadd.f32 %v1981, %v1991
  %v2047 = vadd.f32 %v1982, %v1991
  %v2048 = vadd.f32 %v1983, %v1991
  %v2049 = vadd.f32 %v1984, %v1991
  %v2050 = vadd.f32 %v1985, %v1991
  %v2051 = vadd.f32 %v1986, %v1991
  %v2052 = vadd.f32 %v1987, %v1991
  %v2053 = vadd.f32 %v1988, %v1991
  %v2054 = vadd.f32 %v1989, %v1991
  %v2055 = vadd.f32 %v1990, %v1991
  %v2056 = vmax.f32 %v1992, 0.0
  %v2057 = vmax.f32 %v1993, 0.0
  %v2058 = vmax.f32 %v1994, 0.0
  %v2059 = vmax.f32 %v1995, 0.0
  %v2060 = vmax.f32 %v1996, 0.0
  %v2061 = vmax.f32 %v1997, 0.0
  %v2062 = vmax.f32 %v1998, 0.0
  %v2063 = vmax.f32 %v1999, 0.0
  %v2064 = vmax.f32 %v2000, 0.0
  %v2065 = vmax.f32 %v2001, 0.0
  %v2066 = vmax.f32 %v2002, 0.0
  %v2067 = vmax.f32 %v2003, 0.0
  %v2068 = vmax.f32 %v2004, 0.0
  %v2069 = vmax.f32 %v2005, 0.0
  %v2070 = vmax.f32 %v2006, 0.0
  %v2071 = vmax.f32 %v2007, 0.0
  %v2072 = vmax.f32 %v2008, 0.0
  %v2073 = vmax.f32 %v2009, 0.0
  %v2074 = vmax.f32 %v2010, 0.0
  %v2075 = vmax.f32 %v2011, 0.0
  %v2076 = vmax.f32 %v2012, 0.0
  %v2077 = vmax.f32 %v2013, 0.0
  %v2078 = vmax.f32 %v2014, 0.0
  %v2079 = vmax.f32 %v2015, 0.0
  %v2080 = vmax.f32 %v2016, 0.0
  %v2081 = vmax.f32 %v2017, 0.0
  %v2082 = vmax.f32 %v2018, 0.0
  %v2083 = vmax.f32 %v2019, 0.0
  %v2084 = vmax.f32 %v2020, 0.0
  %v2085 = vmax.f32 %v2021, 0.0
  %v2086 = vmax.f32 %v2022, 0.0
  %v2087 = vmax.f32 %v2023, 0.0
  %v2088 = vmax.f32 %v2024, 0.0
  %v2089 = vmax.f32 %v2025, 0.0
  %v2090 = vmax.f32 %v2026, 0.0
  %v2091 = vmax.f32 %v2027, 0.0
  %v2092 = vmax.f32 %v2028, 0.0
  %v2093 = vmax.f32 %v2029, 0.0
  %v2094 = vmax.f32 %v2030, 0.0
  %v2095 = vmax.f32 %v2031, 0.0
  %v2096 = vmax.f32 %v2032, 0.0
  %v2097 = vmax.f32 %v2033, 0.0
  %v2098 = vmax.f32 %v2034, 0.0
  %v2099 = vmax.f32 %v2035, 0.0
  %v2100 = vmax.f32 %v2036, 0.0
  %v2101 = vmax.f32 %v2037, 0.0
  %v2102 = vmax.f32 %v2038, 0.0
  %v2103 = vmax.f32 %v2039, 0.0
  %v2104 = vmax.f32 %v2040, 0.0
  %v2105 = vmax.f32 %v2041, 0.0
  %v2106 = vmax.f32 %v2042, 0.0
  %v2107 = vmax.f32 %v2043, 0.0
  %v2108 = vmax.f32 %v2044, 0.0
  %v2109 = vmax.f32 %v2045, 0.0
  %v2110 = vmax.f32 %v2046, 0.0
  %v2111 = vmax.f32 %v2047, 0.0
  %v2112 = vmax.f32 %v2048, 0.0
  %v2113 = vmax.f32 %v2049, 0.0
  %v2114 = vmax.f32 %v2050, 0.0
  %v2115 = vmax.f32 %v2051, 0.0
  %v2116 = vmax.f32 %v2052, 0.0
  %v2117 = vmax.f32 %v2053, 0.0
  %v2118 = vmax.f32 %v2054, 0.0
  %v2119 = vmax.f32 %v2055, 0.0
  %2120 = vst.msk [vmem:[#allocation3] sm:$0xff] %vm79, 0.0
  %2121 = vst.msk [vmem:[#allocation3 + $0x8] sm:$0xff] %vm79, 0.0
  %vm2122 = vcmask 62464
  %2123 = vst.msk [vmem:[#allocation3 + $0x10] sm:$0x3f] %vm2122, 0.0
  %2124 = vst.msk [vmem:[#allocation3 + $0x18] sm:$0xff] %vm79, 0.0
  %2125 = vst.msk [vmem:[#allocation3 + $0x20] sm:$0xff] %vm79, 0.0
  %2126 = vst.msk [vmem:[#allocation3 + $0x28] sm:$0x3f] %vm2122, 0.0
  %2127 = vst.msk [vmem:[#allocation3 + $0x30] sm:$0xff] %vm79, 0.0
  %2128 = vst.msk [vmem:[#allocation3 + $0x38] sm:$0xff] %vm79, 0.0
  %2129 = vst.msk [vmem:[#allocation3 + $0x40] sm:$0x3f] %vm2122, 0.0
  %2130 = vst.msk [vmem:[#allocation3 + $0x48] sm:$0xff] %vm79, 0.0
  %2131 = vst.msk [vmem:[#allocation3 + $0x50] sm:$0xff] %vm79, 0.0
  %2132 = vst.msk [vmem:[#allocation3 + $0x58] sm:$0x3f] %vm2122, 0.0
  %2133 = vst.msk [vmem:[#allocation3 + $0x60] sm:$0xff] %vm79, 0.0
  %2134 = vst.msk [vmem:[#allocation3 + $0x68] sm:$0xff] %vm79, 0.0
  %2135 = vst.msk [vmem:[#allocation3 + $0x70] sm:$0x3f] %vm2122, 0.0
  %2136 = vst.msk [vmem:[#allocation3 + $0x78] sm:$0xff] %vm79, 0.0
  %2137 = vst.msk [vmem:[#allocation3 + $0x80] sm:$0xff] %vm79, 0.0
  %2138 = vst.msk [vmem:[#allocation3 + $0x88] sm:$0x3f] %vm2122, 0.0
  %2139 = vst.msk [vmem:[#allocation3 + $0x90] sm:$0xff] %vm79, 0.0
  %2140 = vst.msk [vmem:[#allocation3 + $0x98] sm:$0xff] %vm79, 0.0
  %2141 = vst.msk [vmem:[#allocation3 + $0xa0] sm:$0x3f] %vm2122, 0.0
  %2142 = vst.msk [vmem:[#allocation3 + $0xa8] sm:$0xff] %vm79, 0.0
  %2143 = vst.msk [vmem:[#allocation3 + $0xb0] sm:$0xff] %vm79, 0.0
  %2144 = vst.msk [vmem:[#allocation3 + $0xb8] sm:$0x3f] %vm2122, 0.0
  %2145 = vst.msk [vmem:[#allocation3 + $0xc0] sm:$0xff] %vm79, 0.0
  %2146 = vst.msk [vmem:[#allocation3 + $0xc8] sm:$0xff] %vm79, 0.0
  %2147 = vst.msk [vmem:[#allocation3 + $0xd0] sm:$0x3f] %vm2122, 0.0
  %2148 = vst.msk [vmem:[#allocation3 + $0xd8] sm:$0xff] %vm79, 0.0
  %2149 = vst.msk [vmem:[#allocation3 + $0xe0] sm:$0xff] %vm79, 0.0
  %2150 = vst.msk [vmem:[#allocation3 + $0xe8] sm:$0x3f] %vm2122, 0.0
  %2151 = vst.msk [vmem:[#allocation3 + $0xf0] sm:$0xff] %vm79, 0.0
  %2152 = vst.msk [vmem:[#allocation3 + $0xf8] sm:$0xff] %vm79, 0.0
  %2153 = vst.msk [vmem:[#allocation3 + $0x100] sm:$0x3f] %vm2122, 0.0
  %2154 = vst.msk [vmem:[#allocation3 + $0x108] sm:$0xff] %vm79, 0.0
  %2155 = vst.msk [vmem:[#allocation3 + $0x110] sm:$0xff] %vm79, 0.0
  %2156 = vst.msk [vmem:[#allocation3 + $0x118] sm:$0x3f] %vm2122, 0.0
  %2157 = vst.msk [vmem:[#allocation3 + $0x120] sm:$0xff] %vm79, 0.0
  %2158 = vst.msk [vmem:[#allocation3 + $0x128] sm:$0xff] %vm79, 0.0
  %2159 = vst.msk [vmem:[#allocation3 + $0x130] sm:$0x3f] %vm2122, 0.0
  %2160 = vst.msk [vmem:[#allocation3 + $0x138] sm:$0xff] %vm79, 0.0
  %2161 = vst.msk [vmem:[#allocation3 + $0x140] sm:$0xff] %vm79, 0.0
  %2162 = vst.msk [vmem:[#allocation3 + $0x148] sm:$0x3f] %vm2122, 0.0
  %2163 = vst.msk [vmem:[#allocation3 + $0x150] sm:$0xff] %vm79, 0.0
  %2164 = vst.msk [vmem:[#allocation3 + $0x158] sm:$0xff] %vm79, 0.0
  %2165 = vst.msk [vmem:[#allocation3 + $0x160] sm:$0x3f] %vm2122, 0.0
  %2166 = vst.msk [vmem:[#allocation3 + $0x168] sm:$0xff] %vm79, 0.0
  %2167 = vst.msk [vmem:[#allocation3 + $0x170] sm:$0xff] %vm79, 0.0
  %2168 = vst.msk [vmem:[#allocation3 + $0x178] sm:$0x3f] %vm2122, 0.0
  %2169 = vst.msk [vmem:[#allocation3 + $0x180] sm:$0xff] %vm79, 0.0
  %2170 = vst.msk [vmem:[#allocation3 + $0x188] sm:$0xff] %vm79, 0.0
  %2171 = vst.msk [vmem:[#allocation3 + $0x190] sm:$0x3f] %vm2122, 0.0
  %2172 = vst.msk [vmem:[#allocation3 + $0x198] sm:$0xff] %vm79, 0.0
  %2173 = vst.msk [vmem:[#allocation3 + $0x1a0] sm:$0xff] %vm79, 0.0
  %2174 = vst.msk [vmem:[#allocation3 + $0x1a8] sm:$0x3f] %vm2122, 0.0
  %2175 = vst.msk [vmem:[#allocation3 + $0x1b0] sm:$0xff] %vm79, 0.0
  %2176 = vst.msk [vmem:[#allocation3 + $0x1b8] sm:$0xff] %vm79, 0.0
  %2177 = vst.msk [vmem:[#allocation3 + $0x1c0] sm:$0x3f] %vm2122, 0.0
  %2178 = vst.msk [vmem:[#allocation3 + $0x1c8] sm:$0xff] %vm79, 0.0
  %2179 = vst.msk [vmem:[#allocation3 + $0x1d0] sm:$0xff] %vm79, 0.0
  %2180 = vst.msk [vmem:[#allocation3 + $0x1d8] sm:$0x3f] %vm2122, 0.0
  %2181 = vst.msk [vmem:[#allocation3 + $0x1e0] sm:$0xff] %vm79, 0.0
  %2182 = vst.msk [vmem:[#allocation3 + $0x1e8] sm:$0xff] %vm79, 0.0
  %2183 = vst.msk [vmem:[#allocation3 + $0x1f0] sm:$0x3f] %vm2122, 0.0
  %2184 = vst.msk [vmem:[#allocation3 + $0x1f8] sm:$0xff] %vm79, 0.0
  %2185 = vst.msk [vmem:[#allocation3 + $0x200] sm:$0xff] %vm79, 0.0
  %2186 = vst.msk [vmem:[#allocation3 + $0x208] sm:$0x3f] %vm2122, 0.0
  %2187 = vst.msk [vmem:[#allocation3 + $0x210] sm:$0xff] %vm79, 0.0
  %2188 = vst.msk [vmem:[#allocation3 + $0x218] sm:$0xff] %vm79, 0.0
  %2189 = vst.msk [vmem:[#allocation3 + $0x220] sm:$0x3f] %vm2122, 0.0
  %2190 = vst.msk [vmem:[#allocation3 + $0x228] sm:$0xff] %vm79, 0.0
  %2191 = vst.msk [vmem:[#allocation3 + $0x230] sm:$0xff] %vm79, 0.0
  %2192 = vst.msk [vmem:[#allocation3 + $0x238] sm:$0x3f] %vm2122, 0.0
  %2193 = vst.msk [vmem:[#allocation3 + $0x240] sm:$0xff] %vm79, 0.0
  %2194 = vst.msk [vmem:[#allocation3 + $0x248] sm:$0xff] %vm79, 0.0
  %2195 = vst.msk [vmem:[#allocation3 + $0x250] sm:$0x3f] %vm2122, 0.0
  %2196 = vst.msk [vmem:[#allocation3 + $0x258] sm:$0xff] %vm79, 0.0
  %2197 = vst.msk [vmem:[#allocation3 + $0x260] sm:$0xff] %vm79, 0.0
  %2198 = vst.msk [vmem:[#allocation3 + $0x268] sm:$0x3f] %vm2122, 0.0
  %2199 = vst.msk [vmem:[#allocation3 + $0x270] sm:$0xff] %vm79, 0.0
  %2200 = vst.msk [vmem:[#allocation3 + $0x278] sm:$0xff] %vm79, 0.0
  %2201 = vst.msk [vmem:[#allocation3 + $0x280] sm:$0x3f] %vm2122, 0.0
  %2202 = vst.msk [vmem:[#allocation3 + $0x288] sm:$0xff] %vm79, 0.0
  %2203 = vst.msk [vmem:[#allocation3 + $0x290] sm:$0xff] %vm79, 0.0
  %2204 = vst.msk [vmem:[#allocation3 + $0x298] sm:$0x3f] %vm2122, 0.0
  %2205 = vst.msk [vmem:[#allocation3 + $0x2a0] sm:$0xff] %vm79, 0.0
  %2206 = vst.msk [vmem:[#allocation3 + $0x2a8] sm:$0xff] %vm79, 0.0
  %2207 = vst.msk [vmem:[#allocation3 + $0x2b0] sm:$0x3f] %vm2122, 0.0
  %2208 = vst.msk [vmem:[#allocation3 + $0x2b8] sm:$0xff] %vm79, 0.0
  %2209 = vst.msk [vmem:[#allocation3 + $0x2c0] sm:$0xff] %vm79, 0.0
  %2210 = vst.msk [vmem:[#allocation3 + $0x2c8] sm:$0x3f] %vm2122, 0.0
  %2211 = vst.msk [vmem:[#allocation3 + $0x2d0] sm:$0xff] %vm79, 0.0
  %2212 = vst.msk [vmem:[#allocation3 + $0x2d8] sm:$0xff] %vm79, 0.0
  %2213 = vst.msk [vmem:[#allocation3 + $0x2e0] sm:$0x3f] %vm2122, 0.0
  %2214 = vst.msk [vmem:[#allocation3 + $0x2e8] sm:$0xff] %vm79, 0.0
  %2215 = vst.msk [vmem:[#allocation3 + $0x2f0] sm:$0xff] %vm79, 0.0
  %2216 = vst.msk [vmem:[#allocation3 + $0x2f8] sm:$0x3f] %vm2122, 0.0
  %2217 = vst.msk [vmem:[#allocation3 + $0x3] sm:$0xff] %vm79, %v2056
  %2218 = vst.msk [vmem:[#allocation3 + $0xb] sm:$0xff] %vm79, %v2057
  %2219 = vst.msk [vmem:[#allocation3 + $0x1b] sm:$0xff] %vm79, %v2058
  %2220 = vst.msk [vmem:[#allocation3 + $0x23] sm:$0xff] %vm79, %v2059
  %2221 = vst.msk [vmem:[#allocation3 + $0x33] sm:$0xff] %vm79, %v2060
  %2222 = vst.msk [vmem:[#allocation3 + $0x3b] sm:$0xff] %vm79, %v2061
  %2223 = vst.msk [vmem:[#allocation3 + $0x4b] sm:$0xff] %vm79, %v2062
  %2224 = vst.msk [vmem:[#allocation3 + $0x53] sm:$0xff] %vm79, %v2063
  %2225 = vst.msk [vmem:[#allocation3 + $0x63] sm:$0xff] %vm79, %v2064
  %2226 = vst.msk [vmem:[#allocation3 + $0x6b] sm:$0xff] %vm79, %v2065
  %2227 = vst.msk [vmem:[#allocation3 + $0x7b] sm:$0xff] %vm79, %v2066
  %2228 = vst.msk [vmem:[#allocation3 + $0x83] sm:$0xff] %vm79, %v2067
  %2229 = vst.msk [vmem:[#allocation3 + $0x93] sm:$0xff] %vm79, %v2068
  %2230 = vst.msk [vmem:[#allocation3 + $0x9b] sm:$0xff] %vm79, %v2069
  %2231 = vst.msk [vmem:[#allocation3 + $0xab] sm:$0xff] %vm79, %v2070
  %2232 = vst.msk [vmem:[#allocation3 + $0xb3] sm:$0xff] %vm79, %v2071
  %2233 = vst.msk [vmem:[#allocation3 + $0xc3] sm:$0xff] %vm79, %v2072
  %2234 = vst.msk [vmem:[#allocation3 + $0xcb] sm:$0xff] %vm79, %v2073
  %2235 = vst.msk [vmem:[#allocation3 + $0xdb] sm:$0xff] %vm79, %v2074
  %2236 = vst.msk [vmem:[#allocation3 + $0xe3] sm:$0xff] %vm79, %v2075
  %2237 = vst.msk [vmem:[#allocation3 + $0xf3] sm:$0xff] %vm79, %v2076
  %2238 = vst.msk [vmem:[#allocation3 + $0xfb] sm:$0xff] %vm79, %v2077
  %2239 = vst.msk [vmem:[#allocation3 + $0x10b] sm:$0xff] %vm79, %v2078
  %2240 = vst.msk [vmem:[#allocation3 + $0x113] sm:$0xff] %vm79, %v2079
  %2241 = vst.msk [vmem:[#allocation3 + $0x123] sm:$0xff] %vm79, %v2080
  %2242 = vst.msk [vmem:[#allocation3 + $0x12b] sm:$0xff] %vm79, %v2081
  %2243 = vst.msk [vmem:[#allocation3 + $0x13b] sm:$0xff] %vm79, %v2082
  %2244 = vst.msk [vmem:[#allocation3 + $0x143] sm:$0xff] %vm79, %v2083
  %2245 = vst.msk [vmem:[#allocation3 + $0x153] sm:$0xff] %vm79, %v2084
  %2246 = vst.msk [vmem:[#allocation3 + $0x15b] sm:$0xff] %vm79, %v2085
  %2247 = vst.msk [vmem:[#allocation3 + $0x16b] sm:$0xff] %vm79, %v2086
  %2248 = vst.msk [vmem:[#allocation3 + $0x173] sm:$0xff] %vm79, %v2087
  %2249 = vst.msk [vmem:[#allocation3 + $0x183] sm:$0xff] %vm79, %v2088
  %2250 = vst.msk [vmem:[#allocation3 + $0x18b] sm:$0xff] %vm79, %v2089
  %2251 = vst.msk [vmem:[#allocation3 + $0x19b] sm:$0xff] %vm79, %v2090
  %2252 = vst.msk [vmem:[#allocation3 + $0x1a3] sm:$0xff] %vm79, %v2091
  %2253 = vst.msk [vmem:[#allocation3 + $0x1b3] sm:$0xff] %vm79, %v2092
  %2254 = vst.msk [vmem:[#allocation3 + $0x1bb] sm:$0xff] %vm79, %v2093
  %2255 = vst.msk [vmem:[#allocation3 + $0x1cb] sm:$0xff] %vm79, %v2094
  %2256 = vst.msk [vmem:[#allocation3 + $0x1d3] sm:$0xff] %vm79, %v2095
  %2257 = vst.msk [vmem:[#allocation3 + $0x1e3] sm:$0xff] %vm79, %v2096
  %2258 = vst.msk [vmem:[#allocation3 + $0x1eb] sm:$0xff] %vm79, %v2097
  %2259 = vst.msk [vmem:[#allocation3 + $0x1fb] sm:$0xff] %vm79, %v2098
  %2260 = vst.msk [vmem:[#allocation3 + $0x203] sm:$0xff] %vm79, %v2099
  %2261 = vst.msk [vmem:[#allocation3 + $0x213] sm:$0xff] %vm79, %v2100
  %2262 = vst.msk [vmem:[#allocation3 + $0x21b] sm:$0xff] %vm79, %v2101
  %2263 = vst.msk [vmem:[#allocation3 + $0x22b] sm:$0xff] %vm79, %v2102
  %2264 = vst.msk [vmem:[#allocation3 + $0x233] sm:$0xff] %vm79, %v2103
  %2265 = vst.msk [vmem:[#allocation3 + $0x243] sm:$0xff] %vm79, %v2104
  %2266 = vst.msk [vmem:[#allocation3 + $0x24b] sm:$0xff] %vm79, %v2105
  %2267 = vst.msk [vmem:[#allocation3 + $0x25b] sm:$0xff] %vm79, %v2106
  %2268 = vst.msk [vmem:[#allocation3 + $0x263] sm:$0xff] %vm79, %v2107
  %2269 = vst.msk [vmem:[#allocation3 + $0x273] sm:$0xff] %vm79, %v2108
  %2270 = vst.msk [vmem:[#allocation3 + $0x27b] sm:$0xff] %vm79, %v2109
  %2271 = vst.msk [vmem:[#allocation3 + $0x28b] sm:$0xff] %vm79, %v2110
  %2272 = vst.msk [vmem:[#allocation3 + $0x293] sm:$0xff] %vm79, %v2111
  %2273 = vst.msk [vmem:[#allocation3 + $0x2a3] sm:$0xff] %vm79, %v2112
  %2274 = vst.msk [vmem:[#allocation3 + $0x2ab] sm:$0xff] %vm79, %v2113
  %2275 = vst.msk [vmem:[#allocation3 + $0x2bb] sm:$0xff] %vm79, %v2114
  %2276 = vst.msk [vmem:[#allocation3 + $0x2c3] sm:$0xff] %vm79, %v2115
  %2277 = vst.msk [vmem:[#allocation3 + $0x2d3] sm:$0xff] %vm79, %v2116
  %2278 = vst.msk [vmem:[#allocation3 + $0x2db] sm:$0xff] %vm79, %v2117
  %2279 = vst.msk [vmem:[#allocation3 + $0x2eb] sm:$0xff] %vm79, %v2118
  %2280 = vst.msk [vmem:[#allocation3 + $0x2f3] sm:$0xff] %vm79, %v2119
  %v2281 = vld [vmem:[#allocation3] sm:$0xff]
  %v2282 = vld [vmem:[#allocation3 + $0x8] sm:$0xff]
  %v2283 = vld [vmem:[#allocation3 + $0x18] sm:$0xff]
  %v2284 = vld [vmem:[#allocation3 + $0x20] sm:$0xff]
  %v2285 = vld [vmem:[#allocation3 + $0x30] sm:$0xff]
  %v2286 = vld [vmem:[#allocation3 + $0x38] sm:$0xff]
  %v2287 = vld [vmem:[#allocation3 + $0x48] sm:$0xff]
  %v2288 = vld [vmem:[#allocation3 + $0x50] sm:$0xff]
  %v2289 = vld [vmem:[#allocation3 + $0x60] sm:$0xff]
  %v2290 = vld [vmem:[#allocation3 + $0x68] sm:$0xff]
  %v2291 = vld [vmem:[#allocation3 + $0x78] sm:$0xff]
  %v2292 = vld [vmem:[#allocation3 + $0x80] sm:$0xff]
  %v2293 = vld [vmem:[#allocation3 + $0x90] sm:$0xff]
  %v2294 = vld [vmem:[#allocation3 + $0x98] sm:$0xff]
  %v2295 = vld [vmem:[#allocation3 + $0xa8] sm:$0xff]
  %v2296 = vld [vmem:[#allocation3 + $0xb0] sm:$0xff]
  %v2297 = vld [vmem:[#allocation3 + $0xc0] sm:$0xff]
  %v2298 = vld [vmem:[#allocation3 + $0xc8] sm:$0xff]
  %v2299 = vld [vmem:[#allocation3 + $0xd8] sm:$0xff]
  %v2300 = vld [vmem:[#allocation3 + $0xe0] sm:$0xff]
  %v2301 = vld [vmem:[#allocation3 + $0xf0] sm:$0xff]
  %v2302 = vld [vmem:[#allocation3 + $0xf8] sm:$0xff]
  %v2303 = vld [vmem:[#allocation3 + $0x108] sm:$0xff]
  %v2304 = vld [vmem:[#allocation3 + $0x110] sm:$0xff]
  %v2305 = vld [vmem:[#allocation3 + $0x120] sm:$0xff]
  %v2306 = vld [vmem:[#allocation3 + $0x128] sm:$0xff]
  %v2307 = vld [vmem:[#allocation3 + $0x138] sm:$0xff]
  %v2308 = vld [vmem:[#allocation3 + $0x140] sm:$0xff]
  %v2309 = vld [vmem:[#allocation3 + $0x150] sm:$0xff]
  %v2310 = vld [vmem:[#allocation3 + $0x158] sm:$0xff]
  %v2311 = vld [vmem:[#allocation3 + $0x168] sm:$0xff]
  %v2312 = vld [vmem:[#allocation3 + $0x170] sm:$0xff]
  %v2313 = vld [vmem:[#allocation3 + $0x180] sm:$0xff]
  %v2314 = vld [vmem:[#allocation3 + $0x188] sm:$0xff]
  %v2315 = vld [vmem:[#allocation3 + $0x198] sm:$0xff]
  %v2316 = vld [vmem:[#allocation3 + $0x1a0] sm:$0xff]
  %v2317 = vld [vmem:[#allocation3 + $0x1b0] sm:$0xff]
  %v2318 = vld [vmem:[#allocation3 + $0x1b8] sm:$0xff]
  %v2319 = vld [vmem:[#allocation3 + $0x1c8] sm:$0xff]
  %v2320 = vld [vmem:[#allocation3 + $0x1d0] sm:$0xff]
  %v2321 = vld [vmem:[#allocation3 + $0x1e0] sm:$0xff]
  %v2322 = vld [vmem:[#allocation3 + $0x1e8] sm:$0xff]
  %v2323 = vld [vmem:[#allocation3 + $0x1f8] sm:$0xff]
  %v2324 = vld [vmem:[#allocation3 + $0x200] sm:$0xff]
  %v2325 = vld [vmem:[#allocation3 + $0x210] sm:$0xff]
  %v2326 = vld [vmem:[#allocation3 + $0x218] sm:$0xff]
  %v2327 = vld [vmem:[#allocation3 + $0x228] sm:$0xff]
  %v2328 = vld [vmem:[#allocation3 + $0x230] sm:$0xff]
  %v2329 = vld [vmem:[#allocation3 + $0x240] sm:$0xff]
  %v2330 = vld [vmem:[#allocation3 + $0x248] sm:$0xff]
  %v2331 = vld [vmem:[#allocation3 + $0x258] sm:$0xff]
  %v2332 = vld [vmem:[#allocation3 + $0x260] sm:$0xff]
  %v2333 = vld [vmem:[#allocation3 + $0x270] sm:$0xff]
  %v2334 = vld [vmem:[#allocation3 + $0x278] sm:$0xff]
  %v2335 = vld [vmem:[#allocation3 + $0x288] sm:$0xff]
  %v2336 = vld [vmem:[#allocation3 + $0x290] sm:$0xff]
  %v2337 = vld [vmem:[#allocation3 + $0x2a0] sm:$0xff]
  %v2338 = vld [vmem:[#allocation3 + $0x2a8] sm:$0xff]
  %v2339 = vld [vmem:[#allocation3 + $0x2b8] sm:$0xff]
  %v2340 = vld [vmem:[#allocation3 + $0x2c0] sm:$0xff]
  %v2341 = vld [vmem:[#allocation3 + $0x2d0] sm:$0xff]
  %v2342 = vld [vmem:[#allocation3 + $0x2d8] sm:$0xff]
  %v2343 = vld [vmem:[#allocation3 + $0x2e8] sm:$0xff]
  %v2344 = vld [vmem:[#allocation3 + $0x2f0] sm:$0xff]
  %v2345 = vld [vmem:[#allocation3 + $0x1] sm:$0xff]
  %v2346 = vld [vmem:[#allocation3 + $0x9] sm:$0xff]
  %v2347 = vld [vmem:[#allocation3 + $0x19] sm:$0xff]
  %v2348 = vld [vmem:[#allocation3 + $0x21] sm:$0xff]
  %v2349 = vld [vmem:[#allocation3 + $0x31] sm:$0xff]
  %v2350 = vld [vmem:[#allocation3 + $0x39] sm:$0xff]
  %v2351 = vld [vmem:[#allocation3 + $0x49] sm:$0xff]
  %v2352 = vld [vmem:[#allocation3 + $0x51] sm:$0xff]
  %v2353 = vld [vmem:[#allocation3 + $0x61] sm:$0xff]
  %v2354 = vld [vmem:[#allocation3 + $0x69] sm:$0xff]
  %v2355 = vld [vmem:[#allocation3 + $0x79] sm:$0xff]
  %v2356 = vld [vmem:[#allocation3 + $0x81] sm:$0xff]
  %v2357 = vld [vmem:[#allocation3 + $0x91] sm:$0xff]
  %v2358 = vld [vmem:[#allocation3 + $0x99] sm:$0xff]
  %v2359 = vld [vmem:[#allocation3 + $0xa9] sm:$0xff]
  %v2360 = vld [vmem:[#allocation3 + $0xb1] sm:$0xff]
  %v2361 = vld [vmem:[#allocation3 + $0xc1] sm:$0xff]
  %v2362 = vld [vmem:[#allocation3 + $0xc9] sm:$0xff]
  %v2363 = vld [vmem:[#allocation3 + $0xd9] sm:$0xff]
  %v2364 = vld [vmem:[#allocation3 + $0xe1] sm:$0xff]
  %v2365 = vld [vmem:[#allocation3 + $0xf1] sm:$0xff]
  %v2366 = vld [vmem:[#allocation3 + $0xf9] sm:$0xff]
  %v2367 = vld [vmem:[#allocation3 + $0x109] sm:$0xff]
  %v2368 = vld [vmem:[#allocation3 + $0x111] sm:$0xff]
  %v2369 = vld [vmem:[#allocation3 + $0x121] sm:$0xff]
  %v2370 = vld [vmem:[#allocation3 + $0x129] sm:$0xff]
  %v2371 = vld [vmem:[#allocation3 + $0x139] sm:$0xff]
  %v2372 = vld [vmem:[#allocation3 + $0x141] sm:$0xff]
  %v2373 = vld [vmem:[#allocation3 + $0x151] sm:$0xff]
  %v2374 = vld [vmem:[#allocation3 + $0x159] sm:$0xff]
  %v2375 = vld [vmem:[#allocation3 + $0x169] sm:$0xff]
  %v2376 = vld [vmem:[#allocation3 + $0x171] sm:$0xff]
  %v2377 = vld [vmem:[#allocation3 + $0x181] sm:$0xff]
  %v2378 = vld [vmem:[#allocation3 + $0x189] sm:$0xff]
  %v2379 = vld [vmem:[#allocation3 + $0x199] sm:$0xff]
  %v2380 = vld [vmem:[#allocation3 + $0x1a1] sm:$0xff]
  %v2381 = vld [vmem:[#allocation3 + $0x1b1] sm:$0xff]
  %v2382 = vld [vmem:[#allocation3 + $0x1b9] sm:$0xff]
  %v2383 = vld [vmem:[#allocation3 + $0x1c9] sm:$0xff]
  %v2384 = vld [vmem:[#allocation3 + $0x1d1] sm:$0xff]
  %v2385 = vld [vmem:[#allocation3 + $0x1e1] sm:$0xff]
  %v2386 = vld [vmem:[#allocation3 + $0x1e9] sm:$0xff]
  %v2387 = vld [vmem:[#allocation3 + $0x1f9] sm:$0xff]
  %v2388 = vld [vmem:[#allocation3 + $0x201] sm:$0xff]
  %v2389 = vld [vmem:[#allocation3 + $0x211] sm:$0xff]
  %v2390 = vld [vmem:[#allocation3 + $0x219] sm:$0xff]
  %v2391 = vld [vmem:[#allocation3 + $0x229] sm:$0xff]
  %v2392 = vld [vmem:[#allocation3 + $0x231] sm:$0xff]
  %v2393 = vld [vmem:[#allocation3 + $0x241] sm:$0xff]
  %v2394 = vld [vmem:[#allocation3 + $0x249] sm:$0xff]
  %v2395 = vld [vmem:[#allocation3 + $0x259] sm:$0xff]
  %v2396 = vld [vmem:[#allocation3 + $0x261] sm:$0xff]
  %v2397 = vld [vmem:[#allocation3 + $0x271] sm:$0xff]
  %v2398 = vld [vmem:[#allocation3 + $0x279] sm:$0xff]
  %v2399 = vld [vmem:[#allocation3 + $0x289] sm:$0xff]
  %v2400 = vld [vmem:[#allocation3 + $0x291] sm:$0xff]
  %v2401 = vld [vmem:[#allocation3 + $0x2a1] sm:$0xff]
  %v2402 = vld [vmem:[#allocation3 + $0x2a9] sm:$0xff]
  %v2403 = vld [vmem:[#allocation3 + $0x2b9] sm:$0xff]
  %v2404 = vld [vmem:[#allocation3 + $0x2c1] sm:$0xff]
  %v2405 = vld [vmem:[#allocation3 + $0x2d1] sm:$0xff]
  %v2406 = vld [vmem:[#allocation3 + $0x2d9] sm:$0xff]
  %v2407 = vld [vmem:[#allocation3 + $0x2e9] sm:$0xff]
  %v2408 = vld [vmem:[#allocation3 + $0x2f1] sm:$0xff]
  %v2409 = vld [vmem:[#allocation3 + $0x2] sm:$0xff]
  %v2410 = vld [vmem:[#allocation3 + $0xa] sm:$0xff]
  %v2411 = vld [vmem:[#allocation3 + $0x1a] sm:$0xff]
  %v2412 = vld [vmem:[#allocation3 + $0x22] sm:$0xff]
  %v2413 = vld [vmem:[#allocation3 + $0x32] sm:$0xff]
  %v2414 = vld [vmem:[#allocation3 + $0x3a] sm:$0xff]
  %v2415 = vld [vmem:[#allocation3 + $0x4a] sm:$0xff]
  %v2416 = vld [vmem:[#allocation3 + $0x52] sm:$0xff]
  %v2417 = vld [vmem:[#allocation3 + $0x62] sm:$0xff]
  %v2418 = vld [vmem:[#allocation3 + $0x6a] sm:$0xff]
  %v2419 = vld [vmem:[#allocation3 + $0x7a] sm:$0xff]
  %v2420 = vld [vmem:[#allocation3 + $0x82] sm:$0xff]
  %v2421 = vld [vmem:[#allocation3 + $0x92] sm:$0xff]
  %v2422 = vld [vmem:[#allocation3 + $0x9a] sm:$0xff]
  %v2423 = vld [vmem:[#allocation3 + $0xaa] sm:$0xff]
  %v2424 = vld [vmem:[#allocation3 + $0xb2] sm:$0xff]
  %v2425 = vld [vmem:[#allocation3 + $0xc2] sm:$0xff]
  %v2426 = vld [vmem:[#allocation3 + $0xca] sm:$0xff]
  %v2427 = vld [vmem:[#allocation3 + $0xda] sm:$0xff]
  %v2428 = vld [vmem:[#allocation3 + $0xe2] sm:$0xff]
  %v2429 = vld [vmem:[#allocation3 + $0xf2] sm:$0xff]
  %v2430 = vld [vmem:[#allocation3 + $0xfa] sm:$0xff]
  %v2431 = vld [vmem:[#allocation3 + $0x10a] sm:$0xff]
  %v2432 = vld [vmem:[#allocation3 + $0x112] sm:$0xff]
  %v2433 = vld [vmem:[#allocation3 + $0x122] sm:$0xff]
  %v2434 = vld [vmem:[#allocation3 + $0x12a] sm:$0xff]
  %v2435 = vld [vmem:[#allocation3 + $0x13a] sm:$0xff]
  %v2436 = vld [vmem:[#allocation3 + $0x142] sm:$0xff]
  %v2437 = vld [vmem:[#allocation3 + $0x152] sm:$0xff]
  %v2438 = vld [vmem:[#allocation3 + $0x15a] sm:$0xff]
  %v2439 = vld [vmem:[#allocation3 + $0x16a] sm:$0xff]
  %v2440 = vld [vmem:[#allocation3 + $0x172] sm:$0xff]
  %v2441 = vld [vmem:[#allocation3 + $0x182] sm:$0xff]
  %v2442 = vld [vmem:[#allocation3 + $0x18a] sm:$0xff]
  %v2443 = vld [vmem:[#allocation3 + $0x19a] sm:$0xff]
  %v2444 = vld [vmem:[#allocation3 + $0x1a2] sm:$0xff]
  %v2445 = vld [vmem:[#allocation3 + $0x1b2] sm:$0xff]
  %v2446 = vld [vmem:[#allocation3 + $0x1ba] sm:$0xff]
  %v2447 = vld [vmem:[#allocation3 + $0x1ca] sm:$0xff]
  %v2448 = vld [vmem:[#allocation3 + $0x1d2] sm:$0xff]
  %v2449 = vld [vmem:[#allocation3 + $0x1e2] sm:$0xff]
  %v2450 = vld [vmem:[#allocation3 + $0x1ea] sm:$0xff]
  %v2451 = vld [vmem:[#allocation3 + $0x1fa] sm:$0xff]
  %v2452 = vld [vmem:[#allocation3 + $0x202] sm:$0xff]
  %v2453 = vld [vmem:[#allocation3 + $0x212] sm:$0xff]
  %v2454 = vld [vmem:[#allocation3 + $0x21a] sm:$0xff]
  %v2455 = vld [vmem:[#allocation3 + $0x22a] sm:$0xff]
  %v2456 = vld [vmem:[#allocation3 + $0x232] sm:$0xff]
  %v2457 = vld [vmem:[#allocation3 + $0x242] sm:$0xff]
  %v2458 = vld [vmem:[#allocation3 + $0x24a] sm:$0xff]
  %v2459 = vld [vmem:[#allocation3 + $0x25a] sm:$0xff]
  %v2460 = vld [vmem:[#allocation3 + $0x262] sm:$0xff]
  %v2461 = vld [vmem:[#allocation3 + $0x272] sm:$0xff]
  %v2462 = vld [vmem:[#allocation3 + $0x27a] sm:$0xff]
  %v2463 = vld [vmem:[#allocation3 + $0x28a] sm:$0xff]
  %v2464 = vld [vmem:[#allocation3 + $0x292] sm:$0xff]
  %v2465 = vld [vmem:[#allocation3 + $0x2a2] sm:$0xff]
  %v2466 = vld [vmem:[#allocation3 + $0x2aa] sm:$0xff]
  %v2467 = vld [vmem:[#allocation3 + $0x2ba] sm:$0xff]
  %v2468 = vld [vmem:[#allocation3 + $0x2c2] sm:$0xff]
  %v2469 = vld [vmem:[#allocation3 + $0x2d2] sm:$0xff]
  %v2470 = vld [vmem:[#allocation3 + $0x2da] sm:$0xff]
  %v2471 = vld [vmem:[#allocation3 + $0x2ea] sm:$0xff]
  %v2472 = vld [vmem:[#allocation3 + $0x2f2] sm:$0xff]
  %v2473 = vld [vmem:[#allocation3 + $0x3] sm:$0xff]
  %v2474 = vld [vmem:[#allocation3 + $0xb] sm:$0xff]
  %v2475 = vld [vmem:[#allocation3 + $0x1b] sm:$0xff]
  %v2476 = vld [vmem:[#allocation3 + $0x23] sm:$0xff]
  %v2477 = vld [vmem:[#allocation3 + $0x33] sm:$0xff]
  %v2478 = vld [vmem:[#allocation3 + $0x3b] sm:$0xff]
  %v2479 = vld [vmem:[#allocation3 + $0x4b] sm:$0xff]
  %v2480 = vld [vmem:[#allocation3 + $0x53] sm:$0xff]
  %v2481 = vld [vmem:[#allocation3 + $0x63] sm:$0xff]
  %v2482 = vld [vmem:[#allocation3 + $0x6b] sm:$0xff]
  %v2483 = vld [vmem:[#allocation3 + $0x7b] sm:$0xff]
  %v2484 = vld [vmem:[#allocation3 + $0x83] sm:$0xff]
  %v2485 = vld [vmem:[#allocation3 + $0x93] sm:$0xff]
  %v2486 = vld [vmem:[#allocation3 + $0x9b] sm:$0xff]
  %v2487 = vld [vmem:[#allocation3 + $0xab] sm:$0xff]
  %v2488 = vld [vmem:[#allocation3 + $0xb3] sm:$0xff]
  %v2489 = vld [vmem:[#allocation3 + $0xc3] sm:$0xff]
  %v2490 = vld [vmem:[#allocation3 + $0xcb] sm:$0xff]
  %v2491 = vld [vmem:[#allocation3 + $0xdb] sm:$0xff]
  %v2492 = vld [vmem:[#allocation3 + $0xe3] sm:$0xff]
  %v2493 = vld [vmem:[#allocation3 + $0xf3] sm:$0xff]
  %v2494 = vld [vmem:[#allocation3 + $0xfb] sm:$0xff]
  %v2495 = vld [vmem:[#allocation3 + $0x10b] sm:$0xff]
  %v2496 = vld [vmem:[#allocation3 + $0x113] sm:$0xff]
  %v2497 = vld [vmem:[#allocation3 + $0x123] sm:$0xff]
  %v2498 = vld [vmem:[#allocation3 + $0x12b] sm:$0xff]
  %v2499 = vld [vmem:[#allocation3 + $0x13b] sm:$0xff]
  %v2500 = vld [vmem:[#allocation3 + $0x143] sm:$0xff]
  %v2501 = vld [vmem:[#allocation3 + $0x153] sm:$0xff]
  %v2502 = vld [vmem:[#allocation3 + $0x15b] sm:$0xff]
  %v2503 = vld [vmem:[#allocation3 + $0x16b] sm:$0xff]
  %v2504 = vld [vmem:[#allocation3 + $0x173] sm:$0xff]
  %v2505 = vld [vmem:[#allocation3 + $0x183] sm:$0xff]
  %v2506 = vld [vmem:[#allocation3 + $0x18b] sm:$0xff]
  %v2507 = vld [vmem:[#allocation3 + $0x19b] sm:$0xff]
  %v2508 = vld [vmem:[#allocation3 + $0x1a3] sm:$0xff]
  %v2509 = vld [vmem:[#allocation3 + $0x1b3] sm:$0xff]
  %v2510 = vld [vmem:[#allocation3 + $0x1bb] sm:$0xff]
  %v2511 = vld [vmem:[#allocation3 + $0x1cb] sm:$0xff]
  %v2512 = vld [vmem:[#allocation3 + $0x1d3] sm:$0xff]
  %v2513 = vld [vmem:[#allocation3 + $0x1e3] sm:$0xff]
  %v2514 = vld [vmem:[#allocation3 + $0x1eb] sm:$0xff]
  %v2515 = vld [vmem:[#allocation3 + $0x1fb] sm:$0xff]
  %v2516 = vld [vmem:[#allocation3 + $0x203] sm:$0xff]
  %v2517 = vld [vmem:[#allocation3 + $0x213] sm:$0xff]
  %v2518 = vld [vmem:[#allocation3 + $0x21b] sm:$0xff]
  %v2519 = vld [vmem:[#allocation3 + $0x22b] sm:$0xff]
  %v2520 = vld [vmem:[#allocation3 + $0x233] sm:$0xff]
  %v2521 = vld [vmem:[#allocation3 + $0x243] sm:$0xff]
  %v2522 = vld [vmem:[#allocation3 + $0x24b] sm:$0xff]
  %v2523 = vld [vmem:[#allocation3 + $0x25b] sm:$0xff]
  %v2524 = vld [vmem:[#allocation3 + $0x263] sm:$0xff]
  %v2525 = vld [vmem:[#allocation3 + $0x273] sm:$0xff]
  %v2526 = vld [vmem:[#allocation3 + $0x27b] sm:$0xff]
  %v2527 = vld [vmem:[#allocation3 + $0x28b] sm:$0xff]
  %v2528 = vld [vmem:[#allocation3 + $0x293] sm:$0xff]
  %v2529 = vld [vmem:[#allocation3 + $0x2a3] sm:$0xff]
  %v2530 = vld [vmem:[#allocation3 + $0x2ab] sm:$0xff]
  %v2531 = vld [vmem:[#allocation3 + $0x2bb] sm:$0xff]
  %v2532 = vld [vmem:[#allocation3 + $0x2c3] sm:$0xff]
  %v2533 = vld [vmem:[#allocation3 + $0x2d3] sm:$0xff]
  %v2534 = vld [vmem:[#allocation3 + $0x2db] sm:$0xff]
  %v2535 = vld [vmem:[#allocation3 + $0x2eb] sm:$0xff]
  %v2536 = vld [vmem:[#allocation3 + $0x2f3] sm:$0xff]
  %v2537 = vld [vmem:[#allocation3 + $0x4] sm:$0xff]
  %v2538 = vld [vmem:[#allocation3 + $0xc] sm:$0xff]
  %v2539 = vld [vmem:[#allocation3 + $0x1c] sm:$0xff]
  %v2540 = vld [vmem:[#allocation3 + $0x24] sm:$0xff]
  %v2541 = vld [vmem:[#allocation3 + $0x34] sm:$0xff]
  %v2542 = vld [vmem:[#allocation3 + $0x3c] sm:$0xff]
  %v2543 = vld [vmem:[#allocation3 + $0x4c] sm:$0xff]
  %v2544 = vld [vmem:[#allocation3 + $0x54] sm:$0xff]
  %v2545 = vld [vmem:[#allocation3 + $0x64] sm:$0xff]
  %v2546 = vld [vmem:[#allocation3 + $0x6c] sm:$0xff]
  %v2547 = vld [vmem:[#allocation3 + $0x7c] sm:$0xff]
  %v2548 = vld [vmem:[#allocation3 + $0x84] sm:$0xff]
  %v2549 = vld [vmem:[#allocation3 + $0x94] sm:$0xff]
  %v2550 = vld [vmem:[#allocation3 + $0x9c] sm:$0xff]
  %v2551 = vld [vmem:[#allocation3 + $0xac] sm:$0xff]
  %v2552 = vld [vmem:[#allocation3 + $0xb4] sm:$0xff]
  %v2553 = vld [vmem:[#allocation3 + $0xc4] sm:$0xff]
  %v2554 = vld [vmem:[#allocation3 + $0xcc] sm:$0xff]
  %v2555 = vld [vmem:[#allocation3 + $0xdc] sm:$0xff]
  %v2556 = vld [vmem:[#allocation3 + $0xe4] sm:$0xff]
  %v2557 = vld [vmem:[#allocation3 + $0xf4] sm:$0xff]
  %v2558 = vld [vmem:[#allocation3 + $0xfc] sm:$0xff]
  %v2559 = vld [vmem:[#allocation3 + $0x10c] sm:$0xff]
  %v2560 = vld [vmem:[#allocation3 + $0x114] sm:$0xff]
  %v2561 = vld [vmem:[#allocation3 + $0x124] sm:$0xff]
  %v2562 = vld [vmem:[#allocation3 + $0x12c] sm:$0xff]
  %v2563 = vld [vmem:[#allocation3 + $0x13c] sm:$0xff]
  %v2564 = vld [vmem:[#allocation3 + $0x144] sm:$0xff]
  %v2565 = vld [vmem:[#allocation3 + $0x154] sm:$0xff]
  %v2566 = vld [vmem:[#allocation3 + $0x15c] sm:$0xff]
  %v2567 = vld [vmem:[#allocation3 + $0x16c] sm:$0xff]
  %v2568 = vld [vmem:[#allocation3 + $0x174] sm:$0xff]
  %v2569 = vld [vmem:[#allocation3 + $0x184] sm:$0xff]
  %v2570 = vld [vmem:[#allocation3 + $0x18c] sm:$0xff]
  %v2571 = vld [vmem:[#allocation3 + $0x19c] sm:$0xff]
  %v2572 = vld [vmem:[#allocation3 + $0x1a4] sm:$0xff]
  %v2573 = vld [vmem:[#allocation3 + $0x1b4] sm:$0xff]
  %v2574 = vld [vmem:[#allocation3 + $0x1bc] sm:$0xff]
  %v2575 = vld [vmem:[#allocation3 + $0x1cc] sm:$0xff]
  %v2576 = vld [vmem:[#allocation3 + $0x1d4] sm:$0xff]
  %v2577 = vld [vmem:[#allocation3 + $0x1e4] sm:$0xff]
  %v2578 = vld [vmem:[#allocation3 + $0x1ec] sm:$0xff]
  %v2579 = vld [vmem:[#allocation3 + $0x1fc] sm:$0xff]
  %v2580 = vld [vmem:[#allocation3 + $0x204] sm:$0xff]
  %v2581 = vld [vmem:[#allocation3 + $0x214] sm:$0xff]
  %v2582 = vld [vmem:[#allocation3 + $0x21c] sm:$0xff]
  %v2583 = vld [vmem:[#allocation3 + $0x22c] sm:$0xff]
  %v2584 = vld [vmem:[#allocation3 + $0x234] sm:$0xff]
  %v2585 = vld [vmem:[#allocation3 + $0x244] sm:$0xff]
  %v2586 = vld [vmem:[#allocation3 + $0x24c] sm:$0xff]
  %v2587 = vld [vmem:[#allocation3 + $0x25c] sm:$0xff]
  %v2588 = vld [vmem:[#allocation3 + $0x264] sm:$0xff]
  %v2589 = vld [vmem:[#allocation3 + $0x274] sm:$0xff]
  %v2590 = vld [vmem:[#allocation3 + $0x27c] sm:$0xff]
  %v2591 = vld [vmem:[#allocation3 + $0x28c] sm:$0xff]
  %v2592 = vld [vmem:[#allocation3 + $0x294] sm:$0xff]
  %v2593 = vld [vmem:[#allocation3 + $0x2a4] sm:$0xff]
  %v2594 = vld [vmem:[#allocation3 + $0x2ac] sm:$0xff]
  %v2595 = vld [vmem:[#allocation3 + $0x2bc] sm:$0xff]
  %v2596 = vld [vmem:[#allocation3 + $0x2c4] sm:$0xff]
  %v2597 = vld [vmem:[#allocation3 + $0x2d4] sm:$0xff]
  %v2598 = vld [vmem:[#allocation3 + $0x2dc] sm:$0xff]
  %v2599 = vld [vmem:[#allocation3 + $0x2ec] sm:$0xff]
  %v2600 = vld [vmem:[#allocation3 + $0x2f4] sm:$0xff]
  %v2601 = vld [vmem:[#allocation3 + $0x5] sm:$0xff]
  %v2602 = vld [vmem:[#allocation3 + $0xd] sm:$0xff]
  %v2603 = vld [vmem:[#allocation3 + $0x1d] sm:$0xff]
  %v2604 = vld [vmem:[#allocation3 + $0x25] sm:$0xff]
  %v2605 = vld [vmem:[#allocation3 + $0x35] sm:$0xff]
  %v2606 = vld [vmem:[#allocation3 + $0x3d] sm:$0xff]
  %v2607 = vld [vmem:[#allocation3 + $0x4d] sm:$0xff]
  %v2608 = vld [vmem:[#allocation3 + $0x55] sm:$0xff]
  %v2609 = vld [vmem:[#allocation3 + $0x65] sm:$0xff]
  %v2610 = vld [vmem:[#allocation3 + $0x6d] sm:$0xff]
  %v2611 = vld [vmem:[#allocation3 + $0x7d] sm:$0xff]
  %v2612 = vld [vmem:[#allocation3 + $0x85] sm:$0xff]
  %v2613 = vld [vmem:[#allocation3 + $0x95] sm:$0xff]
  %v2614 = vld [vmem:[#allocation3 + $0x9d] sm:$0xff]
  %v2615 = vld [vmem:[#allocation3 + $0xad] sm:$0xff]
  %v2616 = vld [vmem:[#allocation3 + $0xb5] sm:$0xff]
  %v2617 = vld [vmem:[#allocation3 + $0xc5] sm:$0xff]
  %v2618 = vld [vmem:[#allocation3 + $0xcd] sm:$0xff]
  %v2619 = vld [vmem:[#allocation3 + $0xdd] sm:$0xff]
  %v2620 = vld [vmem:[#allocation3 + $0xe5] sm:$0xff]
  %v2621 = vld [vmem:[#allocation3 + $0xf5] sm:$0xff]
  %v2622 = vld [vmem:[#allocation3 + $0xfd] sm:$0xff]
  %v2623 = vld [vmem:[#allocation3 + $0x10d] sm:$0xff]
  %v2624 = vld [vmem:[#allocation3 + $0x115] sm:$0xff]
  %v2625 = vld [vmem:[#allocation3 + $0x125] sm:$0xff]
  %v2626 = vld [vmem:[#allocation3 + $0x12d] sm:$0xff]
  %v2627 = vld [vmem:[#allocation3 + $0x13d] sm:$0xff]
  %v2628 = vld [vmem:[#allocation3 + $0x145] sm:$0xff]
  %v2629 = vld [vmem:[#allocation3 + $0x155] sm:$0xff]
  %v2630 = vld [vmem:[#allocation3 + $0x15d] sm:$0xff]
  %v2631 = vld [vmem:[#allocation3 + $0x16d] sm:$0xff]
  %v2632 = vld [vmem:[#allocation3 + $0x175] sm:$0xff]
  %v2633 = vld [vmem:[#allocation3 + $0x185] sm:$0xff]
  %v2634 = vld [vmem:[#allocation3 + $0x18d] sm:$0xff]
  %v2635 = vld [vmem:[#allocation3 + $0x19d] sm:$0xff]
  %v2636 = vld [vmem:[#allocation3 + $0x1a5] sm:$0xff]
  %v2637 = vld [vmem:[#allocation3 + $0x1b5] sm:$0xff]
  %v2638 = vld [vmem:[#allocation3 + $0x1bd] sm:$0xff]
  %v2639 = vld [vmem:[#allocation3 + $0x1cd] sm:$0xff]
  %v2640 = vld [vmem:[#allocation3 + $0x1d5] sm:$0xff]
  %v2641 = vld [vmem:[#allocation3 + $0x1e5] sm:$0xff]
  %v2642 = vld [vmem:[#allocation3 + $0x1ed] sm:$0xff]
  %v2643 = vld [vmem:[#allocation3 + $0x1fd] sm:$0xff]
  %v2644 = vld [vmem:[#allocation3 + $0x205] sm:$0xff]
  %v2645 = vld [vmem:[#allocation3 + $0x215] sm:$0xff]
  %v2646 = vld [vmem:[#allocation3 + $0x21d] sm:$0xff]
  %v2647 = vld [vmem:[#allocation3 + $0x22d] sm:$0xff]
  %v2648 = vld [vmem:[#allocation3 + $0x235] sm:$0xff]
  %v2649 = vld [vmem:[#allocation3 + $0x245] sm:$0xff]
  %v2650 = vld [vmem:[#allocation3 + $0x24d] sm:$0xff]
  %v2651 = vld [vmem:[#allocation3 + $0x25d] sm:$0xff]
  %v2652 = vld [vmem:[#allocation3 + $0x265] sm:$0xff]
  %v2653 = vld [vmem:[#allocation3 + $0x275] sm:$0xff]
  %v2654 = vld [vmem:[#allocation3 + $0x27d] sm:$0xff]
  %v2655 = vld [vmem:[#allocation3 + $0x28d] sm:$0xff]
  %v2656 = vld [vmem:[#allocation3 + $0x295] sm:$0xff]
  %v2657 = vld [vmem:[#allocation3 + $0x2a5] sm:$0xff]
  %v2658 = vld [vmem:[#allocation3 + $0x2ad] sm:$0xff]
  %v2659 = vld [vmem:[#allocation3 + $0x2bd] sm:$0xff]
  %v2660 = vld [vmem:[#allocation3 + $0x2c5] sm:$0xff]
  %v2661 = vld [vmem:[#allocation3 + $0x2d5] sm:$0xff]
  %v2662 = vld [vmem:[#allocation3 + $0x2dd] sm:$0xff]
  %v2663 = vld [vmem:[#allocation3 + $0x2ed] sm:$0xff]
  %v2664 = vld [vmem:[#allocation3 + $0x2f5] sm:$0xff]
  %v2665 = vld [vmem:[#allocation3 + $0x6] sm:$0xff]
  %v2666 = vld [vmem:[#allocation3 + $0xe] sm:$0xff]
  %v2667 = vld [vmem:[#allocation3 + $0x1e] sm:$0xff]
  %v2668 = vld [vmem:[#allocation3 + $0x26] sm:$0xff]
  %v2669 = vld [vmem:[#allocation3 + $0x36] sm:$0xff]
  %v2670 = vld [vmem:[#allocation3 + $0x3e] sm:$0xff]
  %v2671 = vld [vmem:[#allocation3 + $0x4e] sm:$0xff]
  %v2672 = vld [vmem:[#allocation3 + $0x56] sm:$0xff]
  %v2673 = vld [vmem:[#allocation3 + $0x66] sm:$0xff]
  %v2674 = vld [vmem:[#allocation3 + $0x6e] sm:$0xff]
  %v2675 = vld [vmem:[#allocation3 + $0x7e] sm:$0xff]
  %v2676 = vld [vmem:[#allocation3 + $0x86] sm:$0xff]
  %v2677 = vld [vmem:[#allocation3 + $0x96] sm:$0xff]
  %v2678 = vld [vmem:[#allocation3 + $0x9e] sm:$0xff]
  %v2679 = vld [vmem:[#allocation3 + $0xae] sm:$0xff]
  %v2680 = vld [vmem:[#allocation3 + $0xb6] sm:$0xff]
  %v2681 = vld [vmem:[#allocation3 + $0xc6] sm:$0xff]
  %v2682 = vld [vmem:[#allocation3 + $0xce] sm:$0xff]
  %v2683 = vld [vmem:[#allocation3 + $0xde] sm:$0xff]
  %v2684 = vld [vmem:[#allocation3 + $0xe6] sm:$0xff]
  %v2685 = vld [vmem:[#allocation3 + $0xf6] sm:$0xff]
  %v2686 = vld [vmem:[#allocation3 + $0xfe] sm:$0xff]
  %v2687 = vld [vmem:[#allocation3 + $0x10e] sm:$0xff]
  %v2688 = vld [vmem:[#allocation3 + $0x116] sm:$0xff]
  %v2689 = vld [vmem:[#allocation3 + $0x126] sm:$0xff]
  %v2690 = vld [vmem:[#allocation3 + $0x12e] sm:$0xff]
  %v2691 = vld [vmem:[#allocation3 + $0x13e] sm:$0xff]
  %v2692 = vld [vmem:[#allocation3 + $0x146] sm:$0xff]
  %v2693 = vld [vmem:[#allocation3 + $0x156] sm:$0xff]
  %v2694 = vld [vmem:[#allocation3 + $0x15e] sm:$0xff]
  %v2695 = vld [vmem:[#allocation3 + $0x16e] sm:$0xff]
  %v2696 = vld [vmem:[#allocation3 + $0x176] sm:$0xff]
  %v2697 = vld [vmem:[#allocation3 + $0x186] sm:$0xff]
  %v2698 = vld [vmem:[#allocation3 + $0x18e] sm:$0xff]
  %v2699 = vld [vmem:[#allocation3 + $0x19e] sm:$0xff]
  %v2700 = vld [vmem:[#allocation3 + $0x1a6] sm:$0xff]
  %v2701 = vld [vmem:[#allocation3 + $0x1b6] sm:$0xff]
  %v2702 = vld [vmem:[#allocation3 + $0x1be] sm:$0xff]
  %v2703 = vld [vmem:[#allocation3 + $0x1ce] sm:$0xff]
  %v2704 = vld [vmem:[#allocation3 + $0x1d6] sm:$0xff]
  %v2705 = vld [vmem:[#allocation3 + $0x1e6] sm:$0xff]
  %v2706 = vld [vmem:[#allocation3 + $0x1ee] sm:$0xff]
  %v2707 = vld [vmem:[#allocation3 + $0x1fe] sm:$0xff]
  %v2708 = vld [vmem:[#allocation3 + $0x206] sm:$0xff]
  %v2709 = vld [vmem:[#allocation3 + $0x216] sm:$0xff]
  %v2710 = vld [vmem:[#allocation3 + $0x21e] sm:$0xff]
  %v2711 = vld [vmem:[#allocation3 + $0x22e] sm:$0xff]
  %v2712 = vld [vmem:[#allocation3 + $0x236] sm:$0xff]
  %v2713 = vld [vmem:[#allocation3 + $0x246] sm:$0xff]
  %v2714 = vld [vmem:[#allocation3 + $0x24e] sm:$0xff]
  %v2715 = vld [vmem:[#allocation3 + $0x25e] sm:$0xff]
  %v2716 = vld [vmem:[#allocation3 + $0x266] sm:$0xff]
  %v2717 = vld [vmem:[#allocation3 + $0x276] sm:$0xff]
  %v2718 = vld [vmem:[#allocation3 + $0x27e] sm:$0xff]
  %v2719 = vld [vmem:[#allocation3 + $0x28e] sm:$0xff]
  %v2720 = vld [vmem:[#allocation3 + $0x296] sm:$0xff]
  %v2721 = vld [vmem:[#allocation3 + $0x2a6] sm:$0xff]
  %v2722 = vld [vmem:[#allocation3 + $0x2ae] sm:$0xff]
  %v2723 = vld [vmem:[#allocation3 + $0x2be] sm:$0xff]
  %v2724 = vld [vmem:[#allocation3 + $0x2c6] sm:$0xff]
  %v2725 = vld [vmem:[#allocation3 + $0x2d6] sm:$0xff]
  %v2726 = vld [vmem:[#allocation3 + $0x2de] sm:$0xff]
  %v2727 = vld [vmem:[#allocation3 + $0x2ee] sm:$0xff]
  %v2728 = vld [vmem:[#allocation3 + $0x2f6] sm:$0xff]
  %2793 = vrot.lane.b32.xlu0 %v2345, 8
  %v2794 = vpop.permute.xlu0 %2793
  %2795 = vrot.lane.b32.xlu0 %v2346, 8
  %v2796 = vpop.permute.xlu0 %2795
  %2797 = vrot.lane.b32.xlu0 %v2347, 8
  %v2798 = vpop.permute.xlu0 %2797
  %2799 = vrot.lane.b32.xlu0 %v2348, 8
  %v2800 = vpop.permute.xlu0 %2799
  %2801 = vrot.lane.b32.xlu0 %v2349, 8
  %v2802 = vpop.permute.xlu0 %2801
  %2803 = vrot.lane.b32.xlu0 %v2350, 8
  %v2804 = vpop.permute.xlu0 %2803
  %2805 = vrot.lane.b32.xlu0 %v2351, 8
  %v2806 = vpop.permute.xlu0 %2805
  %2807 = vrot.lane.b32.xlu0 %v2352, 8
  %v2808 = vpop.permute.xlu0 %2807
  %2809 = vrot.lane.b32.xlu0 %v2353, 8
  %v2810 = vpop.permute.xlu0 %2809
  %2811 = vrot.lane.b32.xlu0 %v2354, 8
  %v2812 = vpop.permute.xlu0 %2811
  %2813 = vrot.lane.b32.xlu0 %v2355, 8
  %v2814 = vpop.permute.xlu0 %2813
  %2815 = vrot.lane.b32.xlu0 %v2356, 8
  %v2816 = vpop.permute.xlu0 %2815
  %2817 = vrot.lane.b32.xlu0 %v2357, 8
  %v2818 = vpop.permute.xlu0 %2817
  %2819 = vrot.lane.b32.xlu0 %v2358, 8
  %v2820 = vpop.permute.xlu0 %2819
  %2821 = vrot.lane.b32.xlu0 %v2359, 8
  %v2822 = vpop.permute.xlu0 %2821
  %2823 = vrot.lane.b32.xlu0 %v2360, 8
  %v2824 = vpop.permute.xlu0 %2823
  %2825 = vrot.lane.b32.xlu0 %v2361, 8
  %v2826 = vpop.permute.xlu0 %2825
  %2827 = vrot.lane.b32.xlu0 %v2362, 8
  %v2828 = vpop.permute.xlu0 %2827
  %2829 = vrot.lane.b32.xlu0 %v2363, 8
  %v2830 = vpop.permute.xlu0 %2829
  %2831 = vrot.lane.b32.xlu0 %v2364, 8
  %v2832 = vpop.permute.xlu0 %2831
  %2833 = vrot.lane.b32.xlu0 %v2365, 8
  %v2834 = vpop.permute.xlu0 %2833
  %2835 = vrot.lane.b32.xlu0 %v2366, 8
  %v2836 = vpop.permute.xlu0 %2835
  %2837 = vrot.lane.b32.xlu0 %v2367, 8
  %v2838 = vpop.permute.xlu0 %2837
  %2839 = vrot.lane.b32.xlu0 %v2368, 8
  %v2840 = vpop.permute.xlu0 %2839
  %2841 = vrot.lane.b32.xlu0 %v2369, 8
  %v2842 = vpop.permute.xlu0 %2841
  %2843 = vrot.lane.b32.xlu0 %v2370, 8
  %v2844 = vpop.permute.xlu0 %2843
  %2845 = vrot.lane.b32.xlu0 %v2371, 8
  %v2846 = vpop.permute.xlu0 %2845
  %2847 = vrot.lane.b32.xlu0 %v2372, 8
  %v2848 = vpop.permute.xlu0 %2847
  %2849 = vrot.lane.b32.xlu0 %v2373, 8
  %v2850 = vpop.permute.xlu0 %2849
  %2851 = vrot.lane.b32.xlu0 %v2374, 8
  %v2852 = vpop.permute.xlu0 %2851
  %2853 = vrot.lane.b32.xlu0 %v2375, 8
  %v2854 = vpop.permute.xlu0 %2853
  %2855 = vrot.lane.b32.xlu0 %v2376, 8
  %v2856 = vpop.permute.xlu0 %2855
  %2857 = vrot.lane.b32.xlu0 %v2377, 8
  %v2858 = vpop.permute.xlu0 %2857
  %2859 = vrot.lane.b32.xlu0 %v2378, 8
  %v2860 = vpop.permute.xlu0 %2859
  %2861 = vrot.lane.b32.xlu0 %v2379, 8
  %v2862 = vpop.permute.xlu0 %2861
  %2863 = vrot.lane.b32.xlu0 %v2380, 8
  %v2864 = vpop.permute.xlu0 %2863
  %2865 = vrot.lane.b32.xlu0 %v2381, 8
  %v2866 = vpop.permute.xlu0 %2865
  %2867 = vrot.lane.b32.xlu0 %v2382, 8
  %v2868 = vpop.permute.xlu0 %2867
  %2869 = vrot.lane.b32.xlu0 %v2383, 8
  %v2870 = vpop.permute.xlu0 %2869
  %2871 = vrot.lane.b32.xlu0 %v2384, 8
  %v2872 = vpop.permute.xlu0 %2871
  %2873 = vrot.lane.b32.xlu0 %v2385, 8
  %v2874 = vpop.permute.xlu0 %2873
  %2875 = vrot.lane.b32.xlu0 %v2386, 8
  %v2876 = vpop.permute.xlu0 %2875
  %2877 = vrot.lane.b32.xlu0 %v2387, 8
  %v2878 = vpop.permute.xlu0 %2877
  %2879 = vrot.lane.b32.xlu0 %v2388, 8
  %v2880 = vpop.permute.xlu0 %2879
  %2881 = vrot.lane.b32.xlu0 %v2389, 8
  %v2882 = vpop.permute.xlu0 %2881
  %2883 = vrot.lane.b32.xlu0 %v2390, 8
  %v2884 = vpop.permute.xlu0 %2883
  %2885 = vrot.lane.b32.xlu0 %v2391, 8
  %v2886 = vpop.permute.xlu0 %2885
  %2887 = vrot.lane.b32.xlu0 %v2392, 8
  %v2888 = vpop.permute.xlu0 %2887
  %2889 = vrot.lane.b32.xlu0 %v2393, 8
  %v2890 = vpop.permute.xlu0 %2889
  %2891 = vrot.lane.b32.xlu0 %v2394, 8
  %v2892 = vpop.permute.xlu0 %2891
  %2893 = vrot.lane.b32.xlu0 %v2395, 8
  %v2894 = vpop.permute.xlu0 %2893
  %2895 = vrot.lane.b32.xlu0 %v2396, 8
  %v2896 = vpop.permute.xlu0 %2895
  %2897 = vrot.lane.b32.xlu0 %v2397, 8
  %v2898 = vpop.permute.xlu0 %2897
  %2899 = vrot.lane.b32.xlu0 %v2398, 8
  %v2900 = vpop.permute.xlu0 %2899
  %2901 = vrot.lane.b32.xlu0 %v2399, 8
  %v2902 = vpop.permute.xlu0 %2901
  %2903 = vrot.lane.b32.xlu0 %v2400, 8
  %v2904 = vpop.permute.xlu0 %2903
  %2905 = vrot.lane.b32.xlu0 %v2401, 8
  %v2906 = vpop.permute.xlu0 %2905
  %2907 = vrot.lane.b32.xlu0 %v2402, 8
  %v2908 = vpop.permute.xlu0 %2907
  %2909 = vrot.lane.b32.xlu0 %v2403, 8
  %v2910 = vpop.permute.xlu0 %2909
  %2911 = vrot.lane.b32.xlu0 %v2404, 8
  %v2912 = vpop.permute.xlu0 %2911
  %2913 = vrot.lane.b32.xlu0 %v2405, 8
  %v2914 = vpop.permute.xlu0 %2913
  %2915 = vrot.lane.b32.xlu0 %v2406, 8
  %v2916 = vpop.permute.xlu0 %2915
  %2917 = vrot.lane.b32.xlu0 %v2407, 8
  %v2918 = vpop.permute.xlu0 %2917
  %2919 = vrot.lane.b32.xlu0 %v2408, 8
  %v2920 = vpop.permute.xlu0 %2919
  %3049 = vrot.lane.b32.xlu0 %v2409, 16
  %v3050 = vpop.permute.xlu0 %3049
  %3051 = vrot.lane.b32.xlu0 %v2410, 16
  %v3052 = vpop.permute.xlu0 %3051
  %3053 = vrot.lane.b32.xlu0 %v2411, 16
  %v3054 = vpop.permute.xlu0 %3053
  %3055 = vrot.lane.b32.xlu0 %v2412, 16
  %v3056 = vpop.permute.xlu0 %3055
  %3057 = vrot.lane.b32.xlu0 %v2413, 16
  %v3058 = vpop.permute.xlu0 %3057
  %3059 = vrot.lane.b32.xlu0 %v2414, 16
  %v3060 = vpop.permute.xlu0 %3059
  %3061 = vrot.lane.b32.xlu0 %v2415, 16
  %v3062 = vpop.permute.xlu0 %3061
  %3063 = vrot.lane.b32.xlu0 %v2416, 16
  %v3064 = vpop.permute.xlu0 %3063
  %3065 = vrot.lane.b32.xlu0 %v2417, 16
  %v3066 = vpop.permute.xlu0 %3065
  %3067 = vrot.lane.b32.xlu0 %v2418, 16
  %v3068 = vpop.permute.xlu0 %3067
  %3069 = vrot.lane.b32.xlu0 %v2419, 16
  %v3070 = vpop.permute.xlu0 %3069
  %3071 = vrot.lane.b32.xlu0 %v2420, 16
  %v3072 = vpop.permute.xlu0 %3071
  %3073 = vrot.lane.b32.xlu0 %v2421, 16
  %v3074 = vpop.permute.xlu0 %3073
  %3075 = vrot.lane.b32.xlu0 %v2422, 16
  %v3076 = vpop.permute.xlu0 %3075
  %3077 = vrot.lane.b32.xlu0 %v2423, 16
  %v3078 = vpop.permute.xlu0 %3077
  %3079 = vrot.lane.b32.xlu0 %v2424, 16
  %v3080 = vpop.permute.xlu0 %3079
  %3081 = vrot.lane.b32.xlu0 %v2425, 16
  %v3082 = vpop.permute.xlu0 %3081
  %3083 = vrot.lane.b32.xlu0 %v2426, 16
  %v3084 = vpop.permute.xlu0 %3083
  %3085 = vrot.lane.b32.xlu0 %v2427, 16
  %v3086 = vpop.permute.xlu0 %3085
  %3087 = vrot.lane.b32.xlu0 %v2428, 16
  %v3088 = vpop.permute.xlu0 %3087
  %3089 = vrot.lane.b32.xlu0 %v2429, 16
  %v3090 = vpop.permute.xlu0 %3089
  %3091 = vrot.lane.b32.xlu0 %v2430, 16
  %v3092 = vpop.permute.xlu0 %3091
  %3093 = vrot.lane.b32.xlu0 %v2431, 16
  %v3094 = vpop.permute.xlu0 %3093
  %3095 = vrot.lane.b32.xlu0 %v2432, 16
  %v3096 = vpop.permute.xlu0 %3095
  %3097 = vrot.lane.b32.xlu0 %v2433, 16
  %v3098 = vpop.permute.xlu0 %3097
  %3099 = vrot.lane.b32.xlu0 %v2434, 16
  %v3100 = vpop.permute.xlu0 %3099
  %3101 = vrot.lane.b32.xlu0 %v2435, 16
  %v3102 = vpop.permute.xlu0 %3101
  %3103 = vrot.lane.b32.xlu0 %v2436, 16
  %v3104 = vpop.permute.xlu0 %3103
  %3105 = vrot.lane.b32.xlu0 %v2437, 16
  %v3106 = vpop.permute.xlu0 %3105
  %3107 = vrot.lane.b32.xlu0 %v2438, 16
  %v3108 = vpop.permute.xlu0 %3107
  %3109 = vrot.lane.b32.xlu0 %v2439, 16
  %v3110 = vpop.permute.xlu0 %3109
  %3111 = vrot.lane.b32.xlu0 %v2440, 16
  %v3112 = vpop.permute.xlu0 %3111
  %3113 = vrot.lane.b32.xlu0 %v2441, 16
  %v3114 = vpop.permute.xlu0 %3113
  %3115 = vrot.lane.b32.xlu0 %v2442, 16
  %v3116 = vpop.permute.xlu0 %3115
  %3117 = vrot.lane.b32.xlu0 %v2443, 16
  %v3118 = vpop.permute.xlu0 %3117
  %3119 = vrot.lane.b32.xlu0 %v2444, 16
  %v3120 = vpop.permute.xlu0 %3119
  %3121 = vrot.lane.b32.xlu0 %v2445, 16
  %v3122 = vpop.permute.xlu0 %3121
  %3123 = vrot.lane.b32.xlu0 %v2446, 16
  %v3124 = vpop.permute.xlu0 %3123
  %3125 = vrot.lane.b32.xlu0 %v2447, 16
  %v3126 = vpop.permute.xlu0 %3125
  %3127 = vrot.lane.b32.xlu0 %v2448, 16
  %v3128 = vpop.permute.xlu0 %3127
  %3129 = vrot.lane.b32.xlu0 %v2449, 16
  %v3130 = vpop.permute.xlu0 %3129
  %3131 = vrot.lane.b32.xlu0 %v2450, 16
  %v3132 = vpop.permute.xlu0 %3131
  %3133 = vrot.lane.b32.xlu0 %v2451, 16
  %v3134 = vpop.permute.xlu0 %3133
  %3135 = vrot.lane.b32.xlu0 %v2452, 16
  %v3136 = vpop.permute.xlu0 %3135
  %3137 = vrot.lane.b32.xlu0 %v2453, 16
  %v3138 = vpop.permute.xlu0 %3137
  %3139 = vrot.lane.b32.xlu0 %v2454, 16
  %v3140 = vpop.permute.xlu0 %3139
  %3141 = vrot.lane.b32.xlu0 %v2455, 16
  %v3142 = vpop.permute.xlu0 %3141
  %3143 = vrot.lane.b32.xlu0 %v2456, 16
  %v3144 = vpop.permute.xlu0 %3143
  %3145 = vrot.lane.b32.xlu0 %v2457, 16
  %v3146 = vpop.permute.xlu0 %3145
  %3147 = vrot.lane.b32.xlu0 %v2458, 16
  %v3148 = vpop.permute.xlu0 %3147
  %3149 = vrot.lane.b32.xlu0 %v2459, 16
  %v3150 = vpop.permute.xlu0 %3149
  %3151 = vrot.lane.b32.xlu0 %v2460, 16
  %v3152 = vpop.permute.xlu0 %3151
  %3153 = vrot.lane.b32.xlu0 %v2461, 16
  %v3154 = vpop.permute.xlu0 %3153
  %3155 = vrot.lane.b32.xlu0 %v2462, 16
  %v3156 = vpop.permute.xlu0 %3155
  %3157 = vrot.lane.b32.xlu0 %v2463, 16
  %v3158 = vpop.permute.xlu0 %3157
  %3159 = vrot.lane.b32.xlu0 %v2464, 16
  %v3160 = vpop.permute.xlu0 %3159
  %3161 = vrot.lane.b32.xlu0 %v2465, 16
  %v3162 = vpop.permute.xlu0 %3161
  %3163 = vrot.lane.b32.xlu0 %v2466, 16
  %v3164 = vpop.permute.xlu0 %3163
  %3165 = vrot.lane.b32.xlu0 %v2467, 16
  %v3166 = vpop.permute.xlu0 %3165
  %3167 = vrot.lane.b32.xlu0 %v2468, 16
  %v3168 = vpop.permute.xlu0 %3167
  %3169 = vrot.lane.b32.xlu0 %v2469, 16
  %v3170 = vpop.permute.xlu0 %3169
  %3171 = vrot.lane.b32.xlu0 %v2470, 16
  %v3172 = vpop.permute.xlu0 %3171
  %3173 = vrot.lane.b32.xlu0 %v2471, 16
  %v3174 = vpop.permute.xlu0 %3173
  %3175 = vrot.lane.b32.xlu0 %v2472, 16
  %v3176 = vpop.permute.xlu0 %3175
  %3305 = vrot.lane.b32.xlu0 %v2473, 24
  %v3306 = vpop.permute.xlu0 %3305
  %3307 = vrot.lane.b32.xlu0 %v2474, 24
  %v3308 = vpop.permute.xlu0 %3307
  %3309 = vrot.lane.b32.xlu0 %v2475, 24
  %v3310 = vpop.permute.xlu0 %3309
  %3311 = vrot.lane.b32.xlu0 %v2476, 24
  %v3312 = vpop.permute.xlu0 %3311
  %3313 = vrot.lane.b32.xlu0 %v2477, 24
  %v3314 = vpop.permute.xlu0 %3313
  %3315 = vrot.lane.b32.xlu0 %v2478, 24
  %v3316 = vpop.permute.xlu0 %3315
  %3317 = vrot.lane.b32.xlu0 %v2479, 24
  %v3318 = vpop.permute.xlu0 %3317
  %3319 = vrot.lane.b32.xlu0 %v2480, 24
  %v3320 = vpop.permute.xlu0 %3319
  %3321 = vrot.lane.b32.xlu0 %v2481, 24
  %v3322 = vpop.permute.xlu0 %3321
  %3323 = vrot.lane.b32.xlu0 %v2482, 24
  %v3324 = vpop.permute.xlu0 %3323
  %3325 = vrot.lane.b32.xlu0 %v2483, 24
  %v3326 = vpop.permute.xlu0 %3325
  %3327 = vrot.lane.b32.xlu0 %v2484, 24
  %v3328 = vpop.permute.xlu0 %3327
  %3329 = vrot.lane.b32.xlu0 %v2485, 24
  %v3330 = vpop.permute.xlu0 %3329
  %3331 = vrot.lane.b32.xlu0 %v2486, 24
  %v3332 = vpop.permute.xlu0 %3331
  %3333 = vrot.lane.b32.xlu0 %v2487, 24
  %v3334 = vpop.permute.xlu0 %3333
  %3335 = vrot.lane.b32.xlu0 %v2488, 24
  %v3336 = vpop.permute.xlu0 %3335
  %3337 = vrot.lane.b32.xlu0 %v2489, 24
  %v3338 = vpop.permute.xlu0 %3337
  %3339 = vrot.lane.b32.xlu0 %v2490, 24
  %v3340 = vpop.permute.xlu0 %3339
  %3341 = vrot.lane.b32.xlu0 %v2491, 24
  %v3342 = vpop.permute.xlu0 %3341
  %3343 = vrot.lane.b32.xlu0 %v2492, 24
  %v3344 = vpop.permute.xlu0 %3343
  %3345 = vrot.lane.b32.xlu0 %v2493, 24
  %v3346 = vpop.permute.xlu0 %3345
  %3347 = vrot.lane.b32.xlu0 %v2494, 24
  %v3348 = vpop.permute.xlu0 %3347
  %3349 = vrot.lane.b32.xlu0 %v2495, 24
  %v3350 = vpop.permute.xlu0 %3349
  %3351 = vrot.lane.b32.xlu0 %v2496, 24
  %v3352 = vpop.permute.xlu0 %3351
  %3353 = vrot.lane.b32.xlu0 %v2497, 24
  %v3354 = vpop.permute.xlu0 %3353
  %3355 = vrot.lane.b32.xlu0 %v2498, 24
  %v3356 = vpop.permute.xlu0 %3355
  %3357 = vrot.lane.b32.xlu0 %v2499, 24
  %v3358 = vpop.permute.xlu0 %3357
  %3359 = vrot.lane.b32.xlu0 %v2500, 24
  %v3360 = vpop.permute.xlu0 %3359
  %3361 = vrot.lane.b32.xlu0 %v2501, 24
  %v3362 = vpop.permute.xlu0 %3361
  %3363 = vrot.lane.b32.xlu0 %v2502, 24
  %v3364 = vpop.permute.xlu0 %3363
  %3365 = vrot.lane.b32.xlu0 %v2503, 24
  %v3366 = vpop.permute.xlu0 %3365
  %3367 = vrot.lane.b32.xlu0 %v2504, 24
  %v3368 = vpop.permute.xlu0 %3367
  %3369 = vrot.lane.b32.xlu0 %v2505, 24
  %v3370 = vpop.permute.xlu0 %3369
  %3371 = vrot.lane.b32.xlu0 %v2506, 24
  %v3372 = vpop.permute.xlu0 %3371
  %3373 = vrot.lane.b32.xlu0 %v2507, 24
  %v3374 = vpop.permute.xlu0 %3373
  %3375 = vrot.lane.b32.xlu0 %v2508, 24
  %v3376 = vpop.permute.xlu0 %3375
  %3377 = vrot.lane.b32.xlu0 %v2509, 24
  %v3378 = vpop.permute.xlu0 %3377
  %3379 = vrot.lane.b32.xlu0 %v2510, 24
  %v3380 = vpop.permute.xlu0 %3379
  %3381 = vrot.lane.b32.xlu0 %v2511, 24
  %v3382 = vpop.permute.xlu0 %3381
  %3383 = vrot.lane.b32.xlu0 %v2512, 24
  %v3384 = vpop.permute.xlu0 %3383
  %3385 = vrot.lane.b32.xlu0 %v2513, 24
  %v3386 = vpop.permute.xlu0 %3385
  %3387 = vrot.lane.b32.xlu0 %v2514, 24
  %v3388 = vpop.permute.xlu0 %3387
  %3389 = vrot.lane.b32.xlu0 %v2515, 24
  %v3390 = vpop.permute.xlu0 %3389
  %3391 = vrot.lane.b32.xlu0 %v2516, 24
  %v3392 = vpop.permute.xlu0 %3391
  %3393 = vrot.lane.b32.xlu0 %v2517, 24
  %v3394 = vpop.permute.xlu0 %3393
  %3395 = vrot.lane.b32.xlu0 %v2518, 24
  %v3396 = vpop.permute.xlu0 %3395
  %3397 = vrot.lane.b32.xlu0 %v2519, 24
  %v3398 = vpop.permute.xlu0 %3397
  %3399 = vrot.lane.b32.xlu0 %v2520, 24
  %v3400 = vpop.permute.xlu0 %3399
  %3401 = vrot.lane.b32.xlu0 %v2521, 24
  %v3402 = vpop.permute.xlu0 %3401
  %3403 = vrot.lane.b32.xlu0 %v2522, 24
  %v3404 = vpop.permute.xlu0 %3403
  %3405 = vrot.lane.b32.xlu0 %v2523, 24
  %v3406 = vpop.permute.xlu0 %3405
  %3407 = vrot.lane.b32.xlu0 %v2524, 24
  %v3408 = vpop.permute.xlu0 %3407
  %3409 = vrot.lane.b32.xlu0 %v2525, 24
  %v3410 = vpop.permute.xlu0 %3409
  %3411 = vrot.lane.b32.xlu0 %v2526, 24
  %v3412 = vpop.permute.xlu0 %3411
  %3413 = vrot.lane.b32.xlu0 %v2527, 24
  %v3414 = vpop.permute.xlu0 %3413
  %3415 = vrot.lane.b32.xlu0 %v2528, 24
  %v3416 = vpop.permute.xlu0 %3415
  %3417 = vrot.lane.b32.xlu0 %v2529, 24
  %v3418 = vpop.permute.xlu0 %3417
  %3419 = vrot.lane.b32.xlu0 %v2530, 24
  %v3420 = vpop.permute.xlu0 %3419
  %3421 = vrot.lane.b32.xlu0 %v2531, 24
  %v3422 = vpop.permute.xlu0 %3421
  %3423 = vrot.lane.b32.xlu0 %v2532, 24
  %v3424 = vpop.permute.xlu0 %3423
  %3425 = vrot.lane.b32.xlu0 %v2533, 24
  %v3426 = vpop.permute.xlu0 %3425
  %3427 = vrot.lane.b32.xlu0 %v2534, 24
  %v3428 = vpop.permute.xlu0 %3427
  %3429 = vrot.lane.b32.xlu0 %v2535, 24
  %v3430 = vpop.permute.xlu0 %3429
  %3431 = vrot.lane.b32.xlu0 %v2536, 24
  %v3432 = vpop.permute.xlu0 %3431
  %3561 = vrot.lane.b32.xlu0 %v2537, 32
  %v3562 = vpop.permute.xlu0 %3561
  %3563 = vrot.lane.b32.xlu0 %v2538, 32
  %v3564 = vpop.permute.xlu0 %3563
  %3565 = vrot.lane.b32.xlu0 %v2539, 32
  %v3566 = vpop.permute.xlu0 %3565
  %3567 = vrot.lane.b32.xlu0 %v2540, 32
  %v3568 = vpop.permute.xlu0 %3567
  %3569 = vrot.lane.b32.xlu0 %v2541, 32
  %v3570 = vpop.permute.xlu0 %3569
  %3571 = vrot.lane.b32.xlu0 %v2542, 32
  %v3572 = vpop.permute.xlu0 %3571
  %3573 = vrot.lane.b32.xlu0 %v2543, 32
  %v3574 = vpop.permute.xlu0 %3573
  %3575 = vrot.lane.b32.xlu0 %v2544, 32
  %v3576 = vpop.permute.xlu0 %3575
  %3577 = vrot.lane.b32.xlu0 %v2545, 32
  %v3578 = vpop.permute.xlu0 %3577
  %3579 = vrot.lane.b32.xlu0 %v2546, 32
  %v3580 = vpop.permute.xlu0 %3579
  %3581 = vrot.lane.b32.xlu0 %v2547, 32
  %v3582 = vpop.permute.xlu0 %3581
  %3583 = vrot.lane.b32.xlu0 %v2548, 32
  %v3584 = vpop.permute.xlu0 %3583
  %3585 = vrot.lane.b32.xlu0 %v2549, 32
  %v3586 = vpop.permute.xlu0 %3585
  %3587 = vrot.lane.b32.xlu0 %v2550, 32
  %v3588 = vpop.permute.xlu0 %3587
  %3589 = vrot.lane.b32.xlu0 %v2551, 32
  %v3590 = vpop.permute.xlu0 %3589
  %3591 = vrot.lane.b32.xlu0 %v2552, 32
  %v3592 = vpop.permute.xlu0 %3591
  %3593 = vrot.lane.b32.xlu0 %v2553, 32
  %v3594 = vpop.permute.xlu0 %3593
  %3595 = vrot.lane.b32.xlu0 %v2554, 32
  %v3596 = vpop.permute.xlu0 %3595
  %3597 = vrot.lane.b32.xlu0 %v2555, 32
  %v3598 = vpop.permute.xlu0 %3597
  %3599 = vrot.lane.b32.xlu0 %v2556, 32
  %v3600 = vpop.permute.xlu0 %3599
  %3601 = vrot.lane.b32.xlu0 %v2557, 32
  %v3602 = vpop.permute.xlu0 %3601
  %3603 = vrot.lane.b32.xlu0 %v2558, 32
  %v3604 = vpop.permute.xlu0 %3603
  %3605 = vrot.lane.b32.xlu0 %v2559, 32
  %v3606 = vpop.permute.xlu0 %3605
  %3607 = vrot.lane.b32.xlu0 %v2560, 32
  %v3608 = vpop.permute.xlu0 %3607
  %3609 = vrot.lane.b32.xlu0 %v2561, 32
  %v3610 = vpop.permute.xlu0 %3609
  %3611 = vrot.lane.b32.xlu0 %v2562, 32
  %v3612 = vpop.permute.xlu0 %3611
  %3613 = vrot.lane.b32.xlu0 %v2563, 32
  %v3614 = vpop.permute.xlu0 %3613
  %3615 = vrot.lane.b32.xlu0 %v2564, 32
  %v3616 = vpop.permute.xlu0 %3615
  %3617 = vrot.lane.b32.xlu0 %v2565, 32
  %v3618 = vpop.permute.xlu0 %3617
  %3619 = vrot.lane.b32.xlu0 %v2566, 32
  %v3620 = vpop.permute.xlu0 %3619
  %3621 = vrot.lane.b32.xlu0 %v2567, 32
  %v3622 = vpop.permute.xlu0 %3621
  %3623 = vrot.lane.b32.xlu0 %v2568, 32
  %v3624 = vpop.permute.xlu0 %3623
  %3625 = vrot.lane.b32.xlu0 %v2569, 32
  %v3626 = vpop.permute.xlu0 %3625
  %3627 = vrot.lane.b32.xlu0 %v2570, 32
  %v3628 = vpop.permute.xlu0 %3627
  %3629 = vrot.lane.b32.xlu0 %v2571, 32
  %v3630 = vpop.permute.xlu0 %3629
  %3631 = vrot.lane.b32.xlu0 %v2572, 32
  %v3632 = vpop.permute.xlu0 %3631
  %3633 = vrot.lane.b32.xlu0 %v2573, 32
  %v3634 = vpop.permute.xlu0 %3633
  %3635 = vrot.lane.b32.xlu0 %v2574, 32
  %v3636 = vpop.permute.xlu0 %3635
  %3637 = vrot.lane.b32.xlu0 %v2575, 32
  %v3638 = vpop.permute.xlu0 %3637
  %3639 = vrot.lane.b32.xlu0 %v2576, 32
  %v3640 = vpop.permute.xlu0 %3639
  %3641 = vrot.lane.b32.xlu0 %v2577, 32
  %v3642 = vpop.permute.xlu0 %3641
  %3643 = vrot.lane.b32.xlu0 %v2578, 32
  %v3644 = vpop.permute.xlu0 %3643
  %3645 = vrot.lane.b32.xlu0 %v2579, 32
  %v3646 = vpop.permute.xlu0 %3645
  %3647 = vrot.lane.b32.xlu0 %v2580, 32
  %v3648 = vpop.permute.xlu0 %3647
  %3649 = vrot.lane.b32.xlu0 %v2581, 32
  %v3650 = vpop.permute.xlu0 %3649
  %3651 = vrot.lane.b32.xlu0 %v2582, 32
  %v3652 = vpop.permute.xlu0 %3651
  %3653 = vrot.lane.b32.xlu0 %v2583, 32
  %v3654 = vpop.permute.xlu0 %3653
  %3655 = vrot.lane.b32.xlu0 %v2584, 32
  %v3656 = vpop.permute.xlu0 %3655
  %3657 = vrot.lane.b32.xlu0 %v2585, 32
  %v3658 = vpop.permute.xlu0 %3657
  %3659 = vrot.lane.b32.xlu0 %v2586, 32
  %v3660 = vpop.permute.xlu0 %3659
  %3661 = vrot.lane.b32.xlu0 %v2587, 32
  %v3662 = vpop.permute.xlu0 %3661
  %3663 = vrot.lane.b32.xlu0 %v2588, 32
  %v3664 = vpop.permute.xlu0 %3663
  %3665 = vrot.lane.b32.xlu0 %v2589, 32
  %v3666 = vpop.permute.xlu0 %3665
  %3667 = vrot.lane.b32.xlu0 %v2590, 32
  %v3668 = vpop.permute.xlu0 %3667
  %3669 = vrot.lane.b32.xlu0 %v2591, 32
  %v3670 = vpop.permute.xlu0 %3669
  %3671 = vrot.lane.b32.xlu0 %v2592, 32
  %v3672 = vpop.permute.xlu0 %3671
  %3673 = vrot.lane.b32.xlu0 %v2593, 32
  %v3674 = vpop.permute.xlu0 %3673
  %3675 = vrot.lane.b32.xlu0 %v2594, 32
  %v3676 = vpop.permute.xlu0 %3675
  %3677 = vrot.lane.b32.xlu0 %v2595, 32
  %v3678 = vpop.permute.xlu0 %3677
  %3679 = vrot.lane.b32.xlu0 %v2596, 32
  %v3680 = vpop.permute.xlu0 %3679
  %3681 = vrot.lane.b32.xlu0 %v2597, 32
  %v3682 = vpop.permute.xlu0 %3681
  %3683 = vrot.lane.b32.xlu0 %v2598, 32
  %v3684 = vpop.permute.xlu0 %3683
  %3685 = vrot.lane.b32.xlu0 %v2599, 32
  %v3686 = vpop.permute.xlu0 %3685
  %3687 = vrot.lane.b32.xlu0 %v2600, 32
  %v3688 = vpop.permute.xlu0 %3687
  %3817 = vrot.lane.b32.xlu0 %v2601, 40
  %v3818 = vpop.permute.xlu0 %3817
  %3819 = vrot.lane.b32.xlu0 %v2602, 40
  %v3820 = vpop.permute.xlu0 %3819
  %3821 = vrot.lane.b32.xlu0 %v2603, 40
  %v3822 = vpop.permute.xlu0 %3821
  %3823 = vrot.lane.b32.xlu0 %v2604, 40
  %v3824 = vpop.permute.xlu0 %3823
  %3825 = vrot.lane.b32.xlu0 %v2605, 40
  %v3826 = vpop.permute.xlu0 %3825
  %3827 = vrot.lane.b32.xlu0 %v2606, 40
  %v3828 = vpop.permute.xlu0 %3827
  %3829 = vrot.lane.b32.xlu0 %v2607, 40
  %v3830 = vpop.permute.xlu0 %3829
  %3831 = vrot.lane.b32.xlu0 %v2608, 40
  %v3832 = vpop.permute.xlu0 %3831
  %3833 = vrot.lane.b32.xlu0 %v2609, 40
  %v3834 = vpop.permute.xlu0 %3833
  %3835 = vrot.lane.b32.xlu0 %v2610, 40
  %v3836 = vpop.permute.xlu0 %3835
  %3837 = vrot.lane.b32.xlu0 %v2611, 40
  %v3838 = vpop.permute.xlu0 %3837
  %3839 = vrot.lane.b32.xlu0 %v2612, 40
  %v3840 = vpop.permute.xlu0 %3839
  %3841 = vrot.lane.b32.xlu0 %v2613, 40
  %v3842 = vpop.permute.xlu0 %3841
  %3843 = vrot.lane.b32.xlu0 %v2614, 40
  %v3844 = vpop.permute.xlu0 %3843
  %3845 = vrot.lane.b32.xlu0 %v2615, 40
  %v3846 = vpop.permute.xlu0 %3845
  %3847 = vrot.lane.b32.xlu0 %v2616, 40
  %v3848 = vpop.permute.xlu0 %3847
  %3849 = vrot.lane.b32.xlu0 %v2617, 40
  %v3850 = vpop.permute.xlu0 %3849
  %3851 = vrot.lane.b32.xlu0 %v2618, 40
  %v3852 = vpop.permute.xlu0 %3851
  %3853 = vrot.lane.b32.xlu0 %v2619, 40
  %v3854 = vpop.permute.xlu0 %3853
  %3855 = vrot.lane.b32.xlu0 %v2620, 40
  %v3856 = vpop.permute.xlu0 %3855
  %3857 = vrot.lane.b32.xlu0 %v2621, 40
  %v3858 = vpop.permute.xlu0 %3857
  %3859 = vrot.lane.b32.xlu0 %v2622, 40
  %v3860 = vpop.permute.xlu0 %3859
  %3861 = vrot.lane.b32.xlu0 %v2623, 40
  %v3862 = vpop.permute.xlu0 %3861
  %3863 = vrot.lane.b32.xlu0 %v2624, 40
  %v3864 = vpop.permute.xlu0 %3863
  %3865 = vrot.lane.b32.xlu0 %v2625, 40
  %v3866 = vpop.permute.xlu0 %3865
  %3867 = vrot.lane.b32.xlu0 %v2626, 40
  %v3868 = vpop.permute.xlu0 %3867
  %3869 = vrot.lane.b32.xlu0 %v2627, 40
  %v3870 = vpop.permute.xlu0 %3869
  %3871 = vrot.lane.b32.xlu0 %v2628, 40
  %v3872 = vpop.permute.xlu0 %3871
  %3873 = vrot.lane.b32.xlu0 %v2629, 40
  %v3874 = vpop.permute.xlu0 %3873
  %3875 = vrot.lane.b32.xlu0 %v2630, 40
  %v3876 = vpop.permute.xlu0 %3875
  %3877 = vrot.lane.b32.xlu0 %v2631, 40
  %v3878 = vpop.permute.xlu0 %3877
  %3879 = vrot.lane.b32.xlu0 %v2632, 40
  %v3880 = vpop.permute.xlu0 %3879
  %3881 = vrot.lane.b32.xlu0 %v2633, 40
  %v3882 = vpop.permute.xlu0 %3881
  %3883 = vrot.lane.b32.xlu0 %v2634, 40
  %v3884 = vpop.permute.xlu0 %3883
  %3885 = vrot.lane.b32.xlu0 %v2635, 40
  %v3886 = vpop.permute.xlu0 %3885
  %3887 = vrot.lane.b32.xlu0 %v2636, 40
  %v3888 = vpop.permute.xlu0 %3887
  %3889 = vrot.lane.b32.xlu0 %v2637, 40
  %v3890 = vpop.permute.xlu0 %3889
  %3891 = vrot.lane.b32.xlu0 %v2638, 40
  %v3892 = vpop.permute.xlu0 %3891
  %3893 = vrot.lane.b32.xlu0 %v2639, 40
  %v3894 = vpop.permute.xlu0 %3893
  %3895 = vrot.lane.b32.xlu0 %v2640, 40
  %v3896 = vpop.permute.xlu0 %3895
  %3897 = vrot.lane.b32.xlu0 %v2641, 40
  %v3898 = vpop.permute.xlu0 %3897
  %3899 = vrot.lane.b32.xlu0 %v2642, 40
  %v3900 = vpop.permute.xlu0 %3899
  %3901 = vrot.lane.b32.xlu0 %v2643, 40
  %v3902 = vpop.permute.xlu0 %3901
  %3903 = vrot.lane.b32.xlu0 %v2644, 40
  %v3904 = vpop.permute.xlu0 %3903
  %3905 = vrot.lane.b32.xlu0 %v2645, 40
  %v3906 = vpop.permute.xlu0 %3905
  %3907 = vrot.lane.b32.xlu0 %v2646, 40
  %v3908 = vpop.permute.xlu0 %3907
  %3909 = vrot.lane.b32.xlu0 %v2647, 40
  %v3910 = vpop.permute.xlu0 %3909
  %3911 = vrot.lane.b32.xlu0 %v2648, 40
  %v3912 = vpop.permute.xlu0 %3911
  %3913 = vrot.lane.b32.xlu0 %v2649, 40
  %v3914 = vpop.permute.xlu0 %3913
  %3915 = vrot.lane.b32.xlu0 %v2650, 40
  %v3916 = vpop.permute.xlu0 %3915
  %3917 = vrot.lane.b32.xlu0 %v2651, 40
  %v3918 = vpop.permute.xlu0 %3917
  %3919 = vrot.lane.b32.xlu0 %v2652, 40
  %v3920 = vpop.permute.xlu0 %3919
  %3921 = vrot.lane.b32.xlu0 %v2653, 40
  %v3922 = vpop.permute.xlu0 %3921
  %3923 = vrot.lane.b32.xlu0 %v2654, 40
  %v3924 = vpop.permute.xlu0 %3923
  %3925 = vrot.lane.b32.xlu0 %v2655, 40
  %v3926 = vpop.permute.xlu0 %3925
  %3927 = vrot.lane.b32.xlu0 %v2656, 40
  %v3928 = vpop.permute.xlu0 %3927
  %3929 = vrot.lane.b32.xlu0 %v2657, 40
  %v3930 = vpop.permute.xlu0 %3929
  %3931 = vrot.lane.b32.xlu0 %v2658, 40
  %v3932 = vpop.permute.xlu0 %3931
  %3933 = vrot.lane.b32.xlu0 %v2659, 40
  %v3934 = vpop.permute.xlu0 %3933
  %3935 = vrot.lane.b32.xlu0 %v2660, 40
  %v3936 = vpop.permute.xlu0 %3935
  %3937 = vrot.lane.b32.xlu0 %v2661, 40
  %v3938 = vpop.permute.xlu0 %3937
  %3939 = vrot.lane.b32.xlu0 %v2662, 40
  %v3940 = vpop.permute.xlu0 %3939
  %3941 = vrot.lane.b32.xlu0 %v2663, 40
  %v3942 = vpop.permute.xlu0 %3941
  %3943 = vrot.lane.b32.xlu0 %v2664, 40
  %v3944 = vpop.permute.xlu0 %3943
  %4073 = vrot.lane.b32.xlu0 %v2665, 48
  %v4074 = vpop.permute.xlu0 %4073
  %4075 = vrot.lane.b32.xlu0 %v2666, 48
  %v4076 = vpop.permute.xlu0 %4075
  %4077 = vrot.lane.b32.xlu0 %v2667, 48
  %v4078 = vpop.permute.xlu0 %4077
  %4079 = vrot.lane.b32.xlu0 %v2668, 48
  %v4080 = vpop.permute.xlu0 %4079
  %4081 = vrot.lane.b32.xlu0 %v2669, 48
  %v4082 = vpop.permute.xlu0 %4081
  %4083 = vrot.lane.b32.xlu0 %v2670, 48
  %v4084 = vpop.permute.xlu0 %4083
  %4085 = vrot.lane.b32.xlu0 %v2671, 48
  %v4086 = vpop.permute.xlu0 %4085
  %4087 = vrot.lane.b32.xlu0 %v2672, 48
  %v4088 = vpop.permute.xlu0 %4087
  %4089 = vrot.lane.b32.xlu0 %v2673, 48
  %v4090 = vpop.permute.xlu0 %4089
  %4091 = vrot.lane.b32.xlu0 %v2674, 48
  %v4092 = vpop.permute.xlu0 %4091
  %4093 = vrot.lane.b32.xlu0 %v2675, 48
  %v4094 = vpop.permute.xlu0 %4093
  %4095 = vrot.lane.b32.xlu0 %v2676, 48
  %v4096 = vpop.permute.xlu0 %4095
  %4097 = vrot.lane.b32.xlu0 %v2677, 48
  %v4098 = vpop.permute.xlu0 %4097
  %4099 = vrot.lane.b32.xlu0 %v2678, 48
  %v4100 = vpop.permute.xlu0 %4099
  %4101 = vrot.lane.b32.xlu0 %v2679, 48
  %v4102 = vpop.permute.xlu0 %4101
  %4103 = vrot.lane.b32.xlu0 %v2680, 48
  %v4104 = vpop.permute.xlu0 %4103
  %4105 = vrot.lane.b32.xlu0 %v2681, 48
  %v4106 = vpop.permute.xlu0 %4105
  %4107 = vrot.lane.b32.xlu0 %v2682, 48
  %v4108 = vpop.permute.xlu0 %4107
  %4109 = vrot.lane.b32.xlu0 %v2683, 48
  %v4110 = vpop.permute.xlu0 %4109
  %4111 = vrot.lane.b32.xlu0 %v2684, 48
  %v4112 = vpop.permute.xlu0 %4111
  %4113 = vrot.lane.b32.xlu0 %v2685, 48
  %v4114 = vpop.permute.xlu0 %4113
  %4115 = vrot.lane.b32.xlu0 %v2686, 48
  %v4116 = vpop.permute.xlu0 %4115
  %4117 = vrot.lane.b32.xlu0 %v2687, 48
  %v4118 = vpop.permute.xlu0 %4117
  %4119 = vrot.lane.b32.xlu0 %v2688, 48
  %v4120 = vpop.permute.xlu0 %4119
  %4121 = vrot.lane.b32.xlu0 %v2689, 48
  %v4122 = vpop.permute.xlu0 %4121
  %4123 = vrot.lane.b32.xlu0 %v2690, 48
  %v4124 = vpop.permute.xlu0 %4123
  %4125 = vrot.lane.b32.xlu0 %v2691, 48
  %v4126 = vpop.permute.xlu0 %4125
  %4127 = vrot.lane.b32.xlu0 %v2692, 48
  %v4128 = vpop.permute.xlu0 %4127
  %4129 = vrot.lane.b32.xlu0 %v2693, 48
  %v4130 = vpop.permute.xlu0 %4129
  %4131 = vrot.lane.b32.xlu0 %v2694, 48
  %v4132 = vpop.permute.xlu0 %4131
  %4133 = vrot.lane.b32.xlu0 %v2695, 48
  %v4134 = vpop.permute.xlu0 %4133
  %4135 = vrot.lane.b32.xlu0 %v2696, 48
  %v4136 = vpop.permute.xlu0 %4135
  %4137 = vrot.lane.b32.xlu0 %v2697, 48
  %v4138 = vpop.permute.xlu0 %4137
  %4139 = vrot.lane.b32.xlu0 %v2698, 48
  %v4140 = vpop.permute.xlu0 %4139
  %4141 = vrot.lane.b32.xlu0 %v2699, 48
  %v4142 = vpop.permute.xlu0 %4141
  %4143 = vrot.lane.b32.xlu0 %v2700, 48
  %v4144 = vpop.permute.xlu0 %4143
  %4145 = vrot.lane.b32.xlu0 %v2701, 48
  %v4146 = vpop.permute.xlu0 %4145
  %4147 = vrot.lane.b32.xlu0 %v2702, 48
  %v4148 = vpop.permute.xlu0 %4147
  %4149 = vrot.lane.b32.xlu0 %v2703, 48
  %v4150 = vpop.permute.xlu0 %4149
  %4151 = vrot.lane.b32.xlu0 %v2704, 48
  %v4152 = vpop.permute.xlu0 %4151
  %4153 = vrot.lane.b32.xlu0 %v2705, 48
  %v4154 = vpop.permute.xlu0 %4153
  %4155 = vrot.lane.b32.xlu0 %v2706, 48
  %v4156 = vpop.permute.xlu0 %4155
  %4157 = vrot.lane.b32.xlu0 %v2707, 48
  %v4158 = vpop.permute.xlu0 %4157
  %4159 = vrot.lane.b32.xlu0 %v2708, 48
  %v4160 = vpop.permute.xlu0 %4159
  %4161 = vrot.lane.b32.xlu0 %v2709, 48
  %v4162 = vpop.permute.xlu0 %4161
  %4163 = vrot.lane.b32.xlu0 %v2710, 48
  %v4164 = vpop.permute.xlu0 %4163
  %4165 = vrot.lane.b32.xlu0 %v2711, 48
  %v4166 = vpop.permute.xlu0 %4165
  %4167 = vrot.lane.b32.xlu0 %v2712, 48
  %v4168 = vpop.permute.xlu0 %4167
  %4169 = vrot.lane.b32.xlu0 %v2713, 48
  %v4170 = vpop.permute.xlu0 %4169
  %4171 = vrot.lane.b32.xlu0 %v2714, 48
  %v4172 = vpop.permute.xlu0 %4171
  %4173 = vrot.lane.b32.xlu0 %v2715, 48
  %v4174 = vpop.permute.xlu0 %4173
  %4175 = vrot.lane.b32.xlu0 %v2716, 48
  %v4176 = vpop.permute.xlu0 %4175
  %4177 = vrot.lane.b32.xlu0 %v2717, 48
  %v4178 = vpop.permute.xlu0 %4177
  %4179 = vrot.lane.b32.xlu0 %v2718, 48
  %v4180 = vpop.permute.xlu0 %4179
  %4181 = vrot.lane.b32.xlu0 %v2719, 48
  %v4182 = vpop.permute.xlu0 %4181
  %4183 = vrot.lane.b32.xlu0 %v2720, 48
  %v4184 = vpop.permute.xlu0 %4183
  %4185 = vrot.lane.b32.xlu0 %v2721, 48
  %v4186 = vpop.permute.xlu0 %4185
  %4187 = vrot.lane.b32.xlu0 %v2722, 48
  %v4188 = vpop.permute.xlu0 %4187
  %4189 = vrot.lane.b32.xlu0 %v2723, 48
  %v4190 = vpop.permute.xlu0 %4189
  %4191 = vrot.lane.b32.xlu0 %v2724, 48
  %v4192 = vpop.permute.xlu0 %4191
  %4193 = vrot.lane.b32.xlu0 %v2725, 48
  %v4194 = vpop.permute.xlu0 %4193
  %4195 = vrot.lane.b32.xlu0 %v2726, 48
  %v4196 = vpop.permute.xlu0 %4195
  %4197 = vrot.lane.b32.xlu0 %v2727, 48
  %v4198 = vpop.permute.xlu0 %4197
  %4199 = vrot.lane.b32.xlu0 %v2728, 48
  %v4200 = vpop.permute.xlu0 %4199
  %v4265 = vsel %vm79, %v2281, %v2794
  %v4266 = vsel %vm79, %v2282, %v2796
  %v4267 = vsel %vm79, %v2283, %v2798
  %v4268 = vsel %vm79, %v2284, %v2800
  %v4269 = vsel %vm79, %v2285, %v2802
  %v4270 = vsel %vm79, %v2286, %v2804
  %v4271 = vsel %vm79, %v2287, %v2806
  %v4272 = vsel %vm79, %v2288, %v2808
  %v4273 = vsel %vm79, %v2289, %v2810
  %v4274 = vsel %vm79, %v2290, %v2812
  %v4275 = vsel %vm79, %v2291, %v2814
  %v4276 = vsel %vm79, %v2292, %v2816
  %v4277 = vsel %vm79, %v2293, %v2818
  %v4278 = vsel %vm79, %v2294, %v2820
  %v4279 = vsel %vm79, %v2295, %v2822
  %v4280 = vsel %vm79, %v2296, %v2824
  %v4281 = vsel %vm79, %v2297, %v2826
  %v4282 = vsel %vm79, %v2298, %v2828
  %v4283 = vsel %vm79, %v2299, %v2830
  %v4284 = vsel %vm79, %v2300, %v2832
  %v4285 = vsel %vm79, %v2301, %v2834
  %v4286 = vsel %vm79, %v2302, %v2836
  %v4287 = vsel %vm79, %v2303, %v2838
  %v4288 = vsel %vm79, %v2304, %v2840
  %v4289 = vsel %vm79, %v2305, %v2842
  %v4290 = vsel %vm79, %v2306, %v2844
  %v4291 = vsel %vm79, %v2307, %v2846
  %v4292 = vsel %vm79, %v2308, %v2848
  %v4293 = vsel %vm79, %v2309, %v2850
  %v4294 = vsel %vm79, %v2310, %v2852
  %v4295 = vsel %vm79, %v2311, %v2854
  %v4296 = vsel %vm79, %v2312, %v2856
  %v4297 = vsel %vm79, %v2313, %v2858
  %v4298 = vsel %vm79, %v2314, %v2860
  %v4299 = vsel %vm79, %v2315, %v2862
  %v4300 = vsel %vm79, %v2316, %v2864
  %v4301 = vsel %vm79, %v2317, %v2866
  %v4302 = vsel %vm79, %v2318, %v2868
  %v4303 = vsel %vm79, %v2319, %v2870
  %v4304 = vsel %vm79, %v2320, %v2872
  %v4305 = vsel %vm79, %v2321, %v2874
  %v4306 = vsel %vm79, %v2322, %v2876
  %v4307 = vsel %vm79, %v2323, %v2878
  %v4308 = vsel %vm79, %v2324, %v2880
  %v4309 = vsel %vm79, %v2325, %v2882
  %v4310 = vsel %vm79, %v2326, %v2884
  %v4311 = vsel %vm79, %v2327, %v2886
  %v4312 = vsel %vm79, %v2328, %v2888
  %v4313 = vsel %vm79, %v2329, %v2890
  %v4314 = vsel %vm79, %v2330, %v2892
  %v4315 = vsel %vm79, %v2331, %v2894
  %v4316 = vsel %vm79, %v2332, %v2896
  %v4317 = vsel %vm79, %v2333, %v2898
  %v4318 = vsel %vm79, %v2334, %v2900
  %v4319 = vsel %vm79, %v2335, %v2902
  %v4320 = vsel %vm79, %v2336, %v2904
  %v4321 = vsel %vm79, %v2337, %v2906
  %v4322 = vsel %vm79, %v2338, %v2908
  %v4323 = vsel %vm79, %v2339, %v2910
  %v4324 = vsel %vm79, %v2340, %v2912
  %v4325 = vsel %vm79, %v2341, %v2914
  %v4326 = vsel %vm79, %v2342, %v2916
  %v4327 = vsel %vm79, %v2343, %v2918
  %v4328 = vsel %vm79, %v2344, %v2920
  %v4329 = vsel %vm1190, %v4265, %v3050
  %v4330 = vsel %vm1190, %v4266, %v3052
  %v4331 = vsel %vm1190, %v4267, %v3054
  %v4332 = vsel %vm1190, %v4268, %v3056
  %v4333 = vsel %vm1190, %v4269, %v3058
  %v4334 = vsel %vm1190, %v4270, %v3060
  %v4335 = vsel %vm1190, %v4271, %v3062
  %v4336 = vsel %vm1190, %v4272, %v3064
  %v4337 = vsel %vm1190, %v4273, %v3066
  %v4338 = vsel %vm1190, %v4274, %v3068
  %v4339 = vsel %vm1190, %v4275, %v3070
  %v4340 = vsel %vm1190, %v4276, %v3072
  %v4341 = vsel %vm1190, %v4277, %v3074
  %v4342 = vsel %vm1190, %v4278, %v3076
  %v4343 = vsel %vm1190, %v4279, %v3078
  %v4344 = vsel %vm1190, %v4280, %v3080
  %v4345 = vsel %vm1190, %v4281, %v3082
  %v4346 = vsel %vm1190, %v4282, %v3084
  %v4347 = vsel %vm1190, %v4283, %v3086
  %v4348 = vsel %vm1190, %v4284, %v3088
  %v4349 = vsel %vm1190, %v4285, %v3090
  %v4350 = vsel %vm1190, %v4286, %v3092
  %v4351 = vsel %vm1190, %v4287, %v3094
  %v4352 = vsel %vm1190, %v4288, %v3096
  %v4353 = vsel %vm1190, %v4289, %v3098
  %v4354 = vsel %vm1190, %v4290, %v3100
  %v4355 = vsel %vm1190, %v4291, %v3102
  %v4356 = vsel %vm1190, %v4292, %v3104
  %v4357 = vsel %vm1190, %v4293, %v3106
  %v4358 = vsel %vm1190, %v4294, %v3108
  %v4359 = vsel %vm1190, %v4295, %v3110
  %v4360 = vsel %vm1190, %v4296, %v3112
  %v4361 = vsel %vm1190, %v4297, %v3114
  %v4362 = vsel %vm1190, %v4298, %v3116
  %v4363 = vsel %vm1190, %v4299, %v3118
  %v4364 = vsel %vm1190, %v4300, %v3120
  %v4365 = vsel %vm1190, %v4301, %v3122
  %v4366 = vsel %vm1190, %v4302, %v3124
  %v4367 = vsel %vm1190, %v4303, %v3126
  %v4368 = vsel %vm1190, %v4304, %v3128
  %v4369 = vsel %vm1190, %v4305, %v3130
  %v4370 = vsel %vm1190, %v4306, %v3132
  %v4371 = vsel %vm1190, %v4307, %v3134
  %v4372 = vsel %vm1190, %v4308, %v3136
  %v4373 = vsel %vm1190, %v4309, %v3138
  %v4374 = vsel %vm1190, %v4310, %v3140
  %v4375 = vsel %vm1190, %v4311, %v3142
  %v4376 = vsel %vm1190, %v4312, %v3144
  %v4377 = vsel %vm1190, %v4313, %v3146
  %v4378 = vsel %vm1190, %v4314, %v3148
  %v4379 = vsel %vm1190, %v4315, %v3150
  %v4380 = vsel %vm1190, %v4316, %v3152
  %v4381 = vsel %vm1190, %v4317, %v3154
  %v4382 = vsel %vm1190, %v4318, %v3156
  %v4383 = vsel %vm1190, %v4319, %v3158
  %v4384 = vsel %vm1190, %v4320, %v3160
  %v4385 = vsel %vm1190, %v4321, %v3162
  %v4386 = vsel %vm1190, %v4322, %v3164
  %v4387 = vsel %vm1190, %v4323, %v3166
  %v4388 = vsel %vm1190, %v4324, %v3168
  %v4389 = vsel %vm1190, %v4325, %v3170
  %v4390 = vsel %vm1190, %v4326, %v3172
  %v4391 = vsel %vm1190, %v4327, %v3174
  %v4392 = vsel %vm1190, %v4328, %v3176
  %v4393 = vsel %vm1333, %v4329, %v3306
  %v4394 = vsel %vm1333, %v4330, %v3308
  %v4395 = vsel %vm1333, %v4331, %v3310
  %v4396 = vsel %vm1333, %v4332, %v3312
  %v4397 = vsel %vm1333, %v4333, %v3314
  %v4398 = vsel %vm1333, %v4334, %v3316
  %v4399 = vsel %vm1333, %v4335, %v3318
  %v4400 = vsel %vm1333, %v4336, %v3320
  %v4401 = vsel %vm1333, %v4337, %v3322
  %v4402 = vsel %vm1333, %v4338, %v3324
  %v4403 = vsel %vm1333, %v4339, %v3326
  %v4404 = vsel %vm1333, %v4340, %v3328
  %v4405 = vsel %vm1333, %v4341, %v3330
  %v4406 = vsel %vm1333, %v4342, %v3332
  %v4407 = vsel %vm1333, %v4343, %v3334
  %v4408 = vsel %vm1333, %v4344, %v3336
  %v4409 = vsel %vm1333, %v4345, %v3338
  %v4410 = vsel %vm1333, %v4346, %v3340
  %v4411 = vsel %vm1333, %v4347, %v3342
  %v4412 = vsel %vm1333, %v4348, %v3344
  %v4413 = vsel %vm1333, %v4349, %v3346
  %v4414 = vsel %vm1333, %v4350, %v3348
  %v4415 = vsel %vm1333, %v4351, %v3350
  %v4416 = vsel %vm1333, %v4352, %v3352
  %v4417 = vsel %vm1333, %v4353, %v3354
  %v4418 = vsel %vm1333, %v4354, %v3356
  %v4419 = vsel %vm1333, %v4355, %v3358
  %v4420 = vsel %vm1333, %v4356, %v3360
  %v4421 = vsel %vm1333, %v4357, %v3362
  %v4422 = vsel %vm1333, %v4358, %v3364
  %v4423 = vsel %vm1333, %v4359, %v3366
  %v4424 = vsel %vm1333, %v4360, %v3368
  %v4425 = vsel %vm1333, %v4361, %v3370
  %v4426 = vsel %vm1333, %v4362, %v3372
  %v4427 = vsel %vm1333, %v4363, %v3374
  %v4428 = vsel %vm1333, %v4364, %v3376
  %v4429 = vsel %vm1333, %v4365, %v3378
  %v4430 = vsel %vm1333, %v4366, %v3380
  %v4431 = vsel %vm1333, %v4367, %v3382
  %v4432 = vsel %vm1333, %v4368, %v3384
  %v4433 = vsel %vm1333, %v4369, %v3386
  %v4434 = vsel %vm1333, %v4370, %v3388
  %v4435 = vsel %vm1333, %v4371, %v3390
  %v4436 = vsel %vm1333, %v4372, %v3392
  %v4437 = vsel %vm1333, %v4373, %v3394
  %v4438 = vsel %vm1333, %v4374, %v3396
  %v4439 = vsel %vm1333, %v4375, %v3398
  %v4440 = vsel %vm1333, %v4376, %v3400
  %v4441 = vsel %vm1333, %v4377, %v3402
  %v4442 = vsel %vm1333, %v4378, %v3404
  %v4443 = vsel %vm1333, %v4379, %v3406
  %v4444 = vsel %vm1333, %v4380, %v3408
  %v4445 = vsel %vm1333, %v4381, %v3410
  %v4446 = vsel %vm1333, %v4382, %v3412
  %v4447 = vsel %vm1333, %v4383, %v3414
  %v4448 = vsel %vm1333, %v4384, %v3416
  %v4449 = vsel %vm1333, %v4385, %v3418
  %v4450 = vsel %vm1333, %v4386, %v3420
  %v4451 = vsel %vm1333, %v4387, %v3422
  %v4452 = vsel %vm1333, %v4388, %v3424
  %v4453 = vsel %vm1333, %v4389, %v3426
  %v4454 = vsel %vm1333, %v4390, %v3428
  %v4455 = vsel %vm1333, %v4391, %v3430
  %v4456 = vsel %vm1333, %v4392, %v3432
  %vm4457 = vcmask 261120
  %v4458 = vsel %vm4457, %v4393, %v3562
  %v4459 = vsel %vm4457, %v4394, %v3564
  %v4460 = vsel %vm4457, %v4395, %v3566
  %v4461 = vsel %vm4457, %v4396, %v3568
  %v4462 = vsel %vm4457, %v4397, %v3570
  %v4463 = vsel %vm4457, %v4398, %v3572
  %v4464 = vsel %vm4457, %v4399, %v3574
  %v4465 = vsel %vm4457, %v4400, %v3576
  %v4466 = vsel %vm4457, %v4401, %v3578
  %v4467 = vsel %vm4457, %v4402, %v3580
  %v4468 = vsel %vm4457, %v4403, %v3582
  %v4469 = vsel %vm4457, %v4404, %v3584
  %v4470 = vsel %vm4457, %v4405, %v3586
  %v4471 = vsel %vm4457, %v4406, %v3588
  %v4472 = vsel %vm4457, %v4407, %v3590
  %v4473 = vsel %vm4457, %v4408, %v3592
  %v4474 = vsel %vm4457, %v4409, %v3594
  %v4475 = vsel %vm4457, %v4410, %v3596
  %v4476 = vsel %vm4457, %v4411, %v3598
  %v4477 = vsel %vm4457, %v4412, %v3600
  %v4478 = vsel %vm4457, %v4413, %v3602
  %v4479 = vsel %vm4457, %v4414, %v3604
  %v4480 = vsel %vm4457, %v4415, %v3606
  %v4481 = vsel %vm4457, %v4416, %v3608
  %v4482 = vsel %vm4457, %v4417, %v3610
  %v4483 = vsel %vm4457, %v4418, %v3612
  %v4484 = vsel %vm4457, %v4419, %v3614
  %v4485 = vsel %vm4457, %v4420, %v3616
  %v4486 = vsel %vm4457, %v4421, %v3618
  %v4487 = vsel %vm4457, %v4422, %v3620
  %v4488 = vsel %vm4457, %v4423, %v3622
  %v4489 = vsel %vm4457, %v4424, %v3624
  %v4490 = vsel %vm4457, %v4425, %v3626
  %v4491 = vsel %vm4457, %v4426, %v3628
  %v4492 = vsel %vm4457, %v4427, %v3630
  %v4493 = vsel %vm4457, %v4428, %v3632
  %v4494 = vsel %vm4457, %v4429, %v3634
  %v4495 = vsel %vm4457, %v4430, %v3636
  %v4496 = vsel %vm4457, %v4431, %v3638
  %v4497 = vsel %vm4457, %v4432, %v3640
  %v4498 = vsel %vm4457, %v4433, %v3642
  %v4499 = vsel %vm4457, %v4434, %v3644
  %v4500 = vsel %vm4457, %v4435, %v3646
  %v4501 = vsel %vm4457, %v4436, %v3648
  %v4502 = vsel %vm4457, %v4437, %v3650
  %v4503 = vsel %vm4457, %v4438, %v3652
  %v4504 = vsel %vm4457, %v4439, %v3654
  %v4505 = vsel %vm4457, %v4440, %v3656
  %v4506 = vsel %vm4457, %v4441, %v3658
  %v4507 = vsel %vm4457, %v4442, %v3660
  %v4508 = vsel %vm4457, %v4443, %v3662
  %v4509 = vsel %vm4457, %v4444, %v3664
  %v4510 = vsel %vm4457, %v4445, %v3666
  %v4511 = vsel %vm4457, %v4446, %v3668
  %v4512 = vsel %vm4457, %v4447, %v3670
  %v4513 = vsel %vm4457, %v4448, %v3672
  %v4514 = vsel %vm4457, %v4449, %v3674
  %v4515 = vsel %vm4457, %v4450, %v3676
  %v4516 = vsel %vm4457, %v4451, %v3678
  %v4517 = vsel %vm4457, %v4452, %v3680
  %v4518 = vsel %vm4457, %v4453, %v3682
  %v4519 = vsel %vm4457, %v4454, %v3684
  %v4520 = vsel %vm4457, %v4455, %v3686
  %v4521 = vsel %vm4457, %v4456, %v3688
  %vm4522 = vcmask 326656
  %v4523 = vsel %vm4522, %v4458, %v3818
  %v4524 = vsel %vm4522, %v4459, %v3820
  %v4525 = vsel %vm4522, %v4460, %v3822
  %v4526 = vsel %vm4522, %v4461, %v3824
  %v4527 = vsel %vm4522, %v4462, %v3826
  %v4528 = vsel %vm4522, %v4463, %v3828
  %v4529 = vsel %vm4522, %v4464, %v3830
  %v4530 = vsel %vm4522, %v4465, %v3832
  %v4531 = vsel %vm4522, %v4466, %v3834
  %v4532 = vsel %vm4522, %v4467, %v3836
  %v4533 = vsel %vm4522, %v4468, %v3838
  %v4534 = vsel %vm4522, %v4469, %v3840
  %v4535 = vsel %vm4522, %v4470, %v3842
  %v4536 = vsel %vm4522, %v4471, %v3844
  %v4537 = vsel %vm4522, %v4472, %v3846
  %v4538 = vsel %vm4522, %v4473, %v3848
  %v4539 = vsel %vm4522, %v4474, %v3850
  %v4540 = vsel %vm4522, %v4475, %v3852
  %v4541 = vsel %vm4522, %v4476, %v3854
  %v4542 = vsel %vm4522, %v4477, %v3856
  %v4543 = vsel %vm4522, %v4478, %v3858
  %v4544 = vsel %vm4522, %v4479, %v3860
  %v4545 = vsel %vm4522, %v4480, %v3862
  %v4546 = vsel %vm4522, %v4481, %v3864
  %v4547 = vsel %vm4522, %v4482, %v3866
  %v4548 = vsel %vm4522, %v4483, %v3868
  %v4549 = vsel %vm4522, %v4484, %v3870
  %v4550 = vsel %vm4522, %v4485, %v3872
  %v4551 = vsel %vm4522, %v4486, %v3874
  %v4552 = vsel %vm4522, %v4487, %v3876
  %v4553 = vsel %vm4522, %v4488, %v3878
  %v4554 = vsel %vm4522, %v4489, %v3880
  %v4555 = vsel %vm4522, %v4490, %v3882
  %v4556 = vsel %vm4522, %v4491, %v3884
  %v4557 = vsel %vm4522, %v4492, %v3886
  %v4558 = vsel %vm4522, %v4493, %v3888
  %v4559 = vsel %vm4522, %v4494, %v3890
  %v4560 = vsel %vm4522, %v4495, %v3892
  %v4561 = vsel %vm4522, %v4496, %v3894
  %v4562 = vsel %vm4522, %v4497, %v3896
  %v4563 = vsel %vm4522, %v4498, %v3898
  %v4564 = vsel %vm4522, %v4499, %v3900
  %v4565 = vsel %vm4522, %v4500, %v3902
  %v4566 = vsel %vm4522, %v4501, %v3904
  %v4567 = vsel %vm4522, %v4502, %v3906
  %v4568 = vsel %vm4522, %v4503, %v3908
  %v4569 = vsel %vm4522, %v4504, %v3910
  %v4570 = vsel %vm4522, %v4505, %v3912
  %v4571 = vsel %vm4522, %v4506, %v3914
  %v4572 = vsel %vm4522, %v4507, %v3916
  %v4573 = vsel %vm4522, %v4508, %v3918
  %v4574 = vsel %vm4522, %v4509, %v3920
  %v4575 = vsel %vm4522, %v4510, %v3922
  %v4576 = vsel %vm4522, %v4511, %v3924
  %v4577 = vsel %vm4522, %v4512, %v3926
  %v4578 = vsel %vm4522, %v4513, %v3928
  %v4579 = vsel %vm4522, %v4514, %v3930
  %v4580 = vsel %vm4522, %v4515, %v3932
  %v4581 = vsel %vm4522, %v4516, %v3934
  %v4582 = vsel %vm4522, %v4517, %v3936
  %v4583 = vsel %vm4522, %v4518, %v3938
  %v4584 = vsel %vm4522, %v4519, %v3940
  %v4585 = vsel %vm4522, %v4520, %v3942
  %v4586 = vsel %vm4522, %v4521, %v3944
  %v4587 = vsel %vm1348, %v4523, %v4074
  %v4588 = vsel %vm1348, %v4524, %v4076
  %v4589 = vsel %vm1348, %v4525, %v4078
  %v4590 = vsel %vm1348, %v4526, %v4080
  %v4591 = vsel %vm1348, %v4527, %v4082
  %v4592 = vsel %vm1348, %v4528, %v4084
  %v4593 = vsel %vm1348, %v4529, %v4086
  %v4594 = vsel %vm1348, %v4530, %v4088
  %v4595 = vsel %vm1348, %v4531, %v4090
  %v4596 = vsel %vm1348, %v4532, %v4092
  %v4597 = vsel %vm1348, %v4533, %v4094
  %v4598 = vsel %vm1348, %v4534, %v4096
  %v4599 = vsel %vm1348, %v4535, %v4098
  %v4600 = vsel %vm1348, %v4536, %v4100
  %v4601 = vsel %vm1348, %v4537, %v4102
  %v4602 = vsel %vm1348, %v4538, %v4104
  %v4603 = vsel %vm1348, %v4539, %v4106
  %v4604 = vsel %vm1348, %v4540, %v4108
  %v4605 = vsel %vm1348, %v4541, %v4110
  %v4606 = vsel %vm1348, %v4542, %v4112
  %v4607 = vsel %vm1348, %v4543, %v4114
  %v4608 = vsel %vm1348, %v4544, %v4116
  %v4609 = vsel %vm1348, %v4545, %v4118
  %v4610 = vsel %vm1348, %v4546, %v4120
  %v4611 = vsel %vm1348, %v4547, %v4122
  %v4612 = vsel %vm1348, %v4548, %v4124
  %v4613 = vsel %vm1348, %v4549, %v4126
  %v4614 = vsel %vm1348, %v4550, %v4128
  %v4615 = vsel %vm1348, %v4551, %v4130
  %v4616 = vsel %vm1348, %v4552, %v4132
  %v4617 = vsel %vm1348, %v4553, %v4134
  %v4618 = vsel %vm1348, %v4554, %v4136
  %v4619 = vsel %vm1348, %v4555, %v4138
  %v4620 = vsel %vm1348, %v4556, %v4140
  %v4621 = vsel %vm1348, %v4557, %v4142
  %v4622 = vsel %vm1348, %v4558, %v4144
  %v4623 = vsel %vm1348, %v4559, %v4146
  %v4624 = vsel %vm1348, %v4560, %v4148
  %v4625 = vsel %vm1348, %v4561, %v4150
  %v4626 = vsel %vm1348, %v4562, %v4152
  %v4627 = vsel %vm1348, %v4563, %v4154
  %v4628 = vsel %vm1348, %v4564, %v4156
  %v4629 = vsel %vm1348, %v4565, %v4158
  %v4630 = vsel %vm1348, %v4566, %v4160
  %v4631 = vsel %vm1348, %v4567, %v4162
  %v4632 = vsel %vm1348, %v4568, %v4164
  %v4633 = vsel %vm1348, %v4569, %v4166
  %v4634 = vsel %vm1348, %v4570, %v4168
  %v4635 = vsel %vm1348, %v4571, %v4170
  %v4636 = vsel %vm1348, %v4572, %v4172
  %v4637 = vsel %vm1348, %v4573, %v4174
  %v4638 = vsel %vm1348, %v4574, %v4176
  %v4639 = vsel %vm1348, %v4575, %v4178
  %v4640 = vsel %vm1348, %v4576, %v4180
  %v4641 = vsel %vm1348, %v4577, %v4182
  %v4642 = vsel %vm1348, %v4578, %v4184
  %v4643 = vsel %vm1348, %v4579, %v4186
  %v4644 = vsel %vm1348, %v4580, %v4188
  %v4645 = vsel %vm1348, %v4581, %v4190
  %v4646 = vsel %vm1348, %v4582, %v4192
  %v4647 = vsel %vm1348, %v4583, %v4194
  %v4648 = vsel %vm1348, %v4584, %v4196
  %v4649 = vsel %vm1348, %v4585, %v4198
  %v4650 = vsel %vm1348, %v4586, %v4200
  %v4651 = vld [vmem:[%s1 + $0x58] sm:$0xff]
  %v4652 = vld [vmem:[%s1 + $0x60] sm:$0xff]
  %v4653 = vld [vmem:[%s1 + $0x68] sm:$0xff]
  %v4654 = vld [vmem:[%s1 + $0x70] sm:$0xff]
  %v4655 = vld [vmem:[%s1 + $0x78] sm:$0xff]
  %v4656 = vld [vmem:[%s1 + $0x80] sm:$0xff]
  %v4657 = vld [vmem:[%s1 + $0x88] sm:$0xff]
  %vm4658 = vcmask 457728
  %v4660 = vsel %vm4658, %v4587, 0
  %v4663 = vsel %vm4658, %v4588, 0
  %v4666 = vsel %vm4658, %v4589, 0
  %v4669 = vsel %vm4658, %v4590, 0
  %v4672 = vsel %vm4658, %v4591, 0
  %v4675 = vsel %vm4658, %v4592, 0
  %v4678 = vsel %vm4658, %v4593, 0
  %v4681 = vsel %vm4658, %v4594, 0
  %v4684 = vsel %vm4658, %v4595, 0
  %v4687 = vsel %vm4658, %v4596, 0
  %v4690 = vsel %vm4658, %v4597, 0
  %v4693 = vsel %vm4658, %v4598, 0
  %v4696 = vsel %vm4658, %v4599, 0
  %v4699 = vsel %vm4658, %v4600, 0
  %v4702 = vsel %vm4658, %v4601, 0
  %v4705 = vsel %vm4658, %v4602, 0
  %v4708 = vsel %vm4658, %v4603, 0
  %v4711 = vsel %vm4658, %v4604, 0
  %v4714 = vsel %vm4658, %v4605, 0
  %v4717 = vsel %vm4658, %v4606, 0
  %v4720 = vsel %vm4658, %v4607, 0
  %v4723 = vsel %vm4658, %v4608, 0
  %v4726 = vsel %vm4658, %v4609, 0
  %v4729 = vsel %vm4658, %v4610, 0
  %v4732 = vsel %vm4658, %v4611, 0
  %v4735 = vsel %vm4658, %v4612, 0
  %v4738 = vsel %vm4658, %v4613, 0
  %v4741 = vsel %vm4658, %v4614, 0
  %v4744 = vsel %vm4658, %v4615, 0
  %v4747 = vsel %vm4658, %v4616, 0
  %v4750 = vsel %vm4658, %v4617, 0
  %v4753 = vsel %vm4658, %v4618, 0
  %v4756 = vsel %vm4658, %v4619, 0
  %v4759 = vsel %vm4658, %v4620, 0
  %v4762 = vsel %vm4658, %v4621, 0
  %v4765 = vsel %vm4658, %v4622, 0
  %v4768 = vsel %vm4658, %v4623, 0
  %v4771 = vsel %vm4658, %v4624, 0
  %v4774 = vsel %vm4658, %v4625, 0
  %v4777 = vsel %vm4658, %v4626, 0
  %v4780 = vsel %vm4658, %v4627, 0
  %v4783 = vsel %vm4658, %v4628, 0
  %v4786 = vsel %vm4658, %v4629, 0
  %v4789 = vsel %vm4658, %v4630, 0
  %v4792 = vsel %vm4658, %v4631, 0
  %v4795 = vsel %vm4658, %v4632, 0
  %v4798 = vsel %vm4658, %v4633, 0
  %v4801 = vsel %vm4658, %v4634, 0
  %v4804 = vsel %vm4658, %v4635, 0
  %v4807 = vsel %vm4658, %v4636, 0
  %v4810 = vsel %vm4658, %v4637, 0
  %v4813 = vsel %vm4658, %v4638, 0
  %v4816 = vsel %vm4658, %v4639, 0
  %v4819 = vsel %vm4658, %v4640, 0
  %v4822 = vsel %vm4658, %v4641, 0
  %v4825 = vsel %vm4658, %v4642, 0
  %v4828 = vsel %vm4658, %v4643, 0
  %v4831 = vsel %vm4658, %v4644, 0
  %v4834 = vsel %vm4658, %v4645, 0
  %v4837 = vsel %vm4658, %v4646, 0
  %v4840 = vsel %vm4658, %v4647, 0
  %v4843 = vsel %vm4658, %v4648, 0
  %v4846 = vsel %vm4658, %v4649, 0
  %v4849 = vsel %vm4658, %v4650, 0
  %4851 = vmatpush.msra.mxu0 0.0
  %4852 = vmatpush.msra.mxu0 0.0
  %4853 = vmatpush.msra.mxu0 0.0
  %4854 = vmatpush.msra.mxu0 0.0
  %4855 = vmatpush.msra.mxu0 0.0
  %4856 = vmatpush.msra.mxu0 0.0
  %4857 = vmatpush.msra.mxu0 0.0
  %4858 = vmatpush.msra.mxu0 0.0
  %4859 = vmatpush.msra.mxu0 0.0
  %4860 = vmatpush.msra.mxu0 %v4657
  %4861 = vmatpush.msra.mxu0 %v4656
  %4862 = vmatpush.msra.mxu0 %v4655
  %4863 = vmatpush.msra.mxu0 %v4654
  %4864 = vmatpush.msra.mxu0 %v4653
  %4865 = vmatpush.msra.mxu0 %v4652
  %4866 = vmatpush.msra.mxu0 %v4651
  %4867 = vmatmul.f32.gmra.mxu0 %v4660
  %v4868 = vpop.f32.mrf.mxu0
  %v4869 = vadd.f32 0.0, %v4868
  %4870 = vmatmul.f32.gmra.mxu0 %v4663
  %v4871 = vpop.f32.mrf.mxu0
  %v4872 = vadd.f32 0.0, %v4871
  %4873 = vmatmul.f32.gmra.mxu0 %v4666
  %v4874 = vpop.f32.mrf.mxu0
  %v4875 = vadd.f32 0.0, %v4874
  %4876 = vmatmul.f32.gmra.mxu0 %v4669
  %v4877 = vpop.f32.mrf.mxu0
  %v4878 = vadd.f32 0.0, %v4877
  %4879 = vmatmul.f32.gmra.mxu0 %v4672
  %v4880 = vpop.f32.mrf.mxu0
  %v4881 = vadd.f32 0.0, %v4880
  %4882 = vmatmul.f32.gmra.mxu0 %v4675
  %v4883 = vpop.f32.mrf.mxu0
  %v4884 = vadd.f32 0.0, %v4883
  %4885 = vmatmul.f32.gmra.mxu0 %v4678
  %v4886 = vpop.f32.mrf.mxu0
  %v4887 = vadd.f32 0.0, %v4886
  %4888 = vmatmul.f32.gmra.mxu0 %v4681
  %v4889 = vpop.f32.mrf.mxu0
  %v4890 = vadd.f32 0.0, %v4889
  %4891 = vmatmul.f32.gmra.mxu0 %v4684
  %v4892 = vpop.f32.mrf.mxu0
  %v4893 = vadd.f32 0.0, %v4892
  %4894 = vmatmul.f32.gmra.mxu0 %v4687
  %v4895 = vpop.f32.mrf.mxu0
  %v4896 = vadd.f32 0.0, %v4895
  %4897 = vmatmul.f32.gmra.mxu0 %v4690
  %v4898 = vpop.f32.mrf.mxu0
  %v4899 = vadd.f32 0.0, %v4898
  %4900 = vmatmul.f32.gmra.mxu0 %v4693
  %v4901 = vpop.f32.mrf.mxu0
  %v4902 = vadd.f32 0.0, %v4901
  %4903 = vmatmul.f32.gmra.mxu0 %v4696
  %v4904 = vpop.f32.mrf.mxu0
  %v4905 = vadd.f32 0.0, %v4904
  %4906 = vmatmul.f32.gmra.mxu0 %v4699
  %v4907 = vpop.f32.mrf.mxu0
  %v4908 = vadd.f32 0.0, %v4907
  %4909 = vmatmul.f32.gmra.mxu0 %v4702
  %v4910 = vpop.f32.mrf.mxu0
  %v4911 = vadd.f32 0.0, %v4910
  %4912 = vmatmul.f32.gmra.mxu0 %v4705
  %v4913 = vpop.f32.mrf.mxu0
  %v4914 = vadd.f32 0.0, %v4913
  %4915 = vmatmul.f32.gmra.mxu0 %v4708
  %v4916 = vpop.f32.mrf.mxu0
  %v4917 = vadd.f32 0.0, %v4916
  %4918 = vmatmul.f32.gmra.mxu0 %v4711
  %v4919 = vpop.f32.mrf.mxu0
  %v4920 = vadd.f32 0.0, %v4919
  %4921 = vmatmul.f32.gmra.mxu0 %v4714
  %v4922 = vpop.f32.mrf.mxu0
  %v4923 = vadd.f32 0.0, %v4922
  %4924 = vmatmul.f32.gmra.mxu0 %v4717
  %v4925 = vpop.f32.mrf.mxu0
  %v4926 = vadd.f32 0.0, %v4925
  %4927 = vmatmul.f32.gmra.mxu0 %v4720
  %v4928 = vpop.f32.mrf.mxu0
  %v4929 = vadd.f32 0.0, %v4928
  %4930 = vmatmul.f32.gmra.mxu0 %v4723
  %v4931 = vpop.f32.mrf.mxu0
  %v4932 = vadd.f32 0.0, %v4931
  %4933 = vmatmul.f32.gmra.mxu0 %v4726
  %v4934 = vpop.f32.mrf.mxu0
  %v4935 = vadd.f32 0.0, %v4934
  %4936 = vmatmul.f32.gmra.mxu0 %v4729
  %v4937 = vpop.f32.mrf.mxu0
  %v4938 = vadd.f32 0.0, %v4937
  %4939 = vmatmul.f32.gmra.mxu0 %v4732
  %v4940 = vpop.f32.mrf.mxu0
  %v4941 = vadd.f32 0.0, %v4940
  %4942 = vmatmul.f32.gmra.mxu0 %v4735
  %v4943 = vpop.f32.mrf.mxu0
  %v4944 = vadd.f32 0.0, %v4943
  %4945 = vmatmul.f32.gmra.mxu0 %v4738
  %v4946 = vpop.f32.mrf.mxu0
  %v4947 = vadd.f32 0.0, %v4946
  %4948 = vmatmul.f32.gmra.mxu0 %v4741
  %v4949 = vpop.f32.mrf.mxu0
  %v4950 = vadd.f32 0.0, %v4949
  %4951 = vmatmul.f32.gmra.mxu0 %v4744
  %v4952 = vpop.f32.mrf.mxu0
  %v4953 = vadd.f32 0.0, %v4952
  %4954 = vmatmul.f32.gmra.mxu0 %v4747
  %v4955 = vpop.f32.mrf.mxu0
  %v4956 = vadd.f32 0.0, %v4955
  %4957 = vmatmul.f32.gmra.mxu0 %v4750
  %v4958 = vpop.f32.mrf.mxu0
  %v4959 = vadd.f32 0.0, %v4958
  %4960 = vmatmul.f32.gmra.mxu0 %v4753
  %v4961 = vpop.f32.mrf.mxu0
  %v4962 = vadd.f32 0.0, %v4961
  %4963 = vmatmul.f32.gmra.mxu0 %v4756
  %v4964 = vpop.f32.mrf.mxu0
  %v4965 = vadd.f32 0.0, %v4964
  %4966 = vmatmul.f32.gmra.mxu0 %v4759
  %v4967 = vpop.f32.mrf.mxu0
  %v4968 = vadd.f32 0.0, %v4967
  %4969 = vmatmul.f32.gmra.mxu0 %v4762
  %v4970 = vpop.f32.mrf.mxu0
  %v4971 = vadd.f32 0.0, %v4970
  %4972 = vmatmul.f32.gmra.mxu0 %v4765
  %v4973 = vpop.f32.mrf.mxu0
  %v4974 = vadd.f32 0.0, %v4973
  %4975 = vmatmul.f32.gmra.mxu0 %v4768
  %v4976 = vpop.f32.mrf.mxu0
  %v4977 = vadd.f32 0.0, %v4976
  %4978 = vmatmul.f32.gmra.mxu0 %v4771
  %v4979 = vpop.f32.mrf.mxu0
  %v4980 = vadd.f32 0.0, %v4979
  %4981 = vmatmul.f32.gmra.mxu0 %v4774
  %v4982 = vpop.f32.mrf.mxu0
  %v4983 = vadd.f32 0.0, %v4982
  %4984 = vmatmul.f32.gmra.mxu0 %v4777
  %v4985 = vpop.f32.mrf.mxu0
  %v4986 = vadd.f32 0.0, %v4985
  %4987 = vmatmul.f32.gmra.mxu0 %v4780
  %v4988 = vpop.f32.mrf.mxu0
  %v4989 = vadd.f32 0.0, %v4988
  %4990 = vmatmul.f32.gmra.mxu0 %v4783
  %v4991 = vpop.f32.mrf.mxu0
  %v4992 = vadd.f32 0.0, %v4991
  %4993 = vmatmul.f32.gmra.mxu0 %v4786
  %v4994 = vpop.f32.mrf.mxu0
  %v4995 = vadd.f32 0.0, %v4994
  %4996 = vmatmul.f32.gmra.mxu0 %v4789
  %v4997 = vpop.f32.mrf.mxu0
  %v4998 = vadd.f32 0.0, %v4997
  %4999 = vmatmul.f32.gmra.mxu0 %v4792
  %v5000 = vpop.f32.mrf.mxu0
  %v5001 = vadd.f32 0.0, %v5000
  %5002 = vmatmul.f32.gmra.mxu0 %v4795
  %v5003 = vpop.f32.mrf.mxu0
  %v5004 = vadd.f32 0.0, %v5003
  %5005 = vmatmul.f32.gmra.mxu0 %v4798
  %v5006 = vpop.f32.mrf.mxu0
  %v5007 = vadd.f32 0.0, %v5006
  %5008 = vmatmul.f32.gmra.mxu0 %v4801
  %v5009 = vpop.f32.mrf.mxu0
  %v5010 = vadd.f32 0.0, %v5009
  %5011 = vmatmul.f32.gmra.mxu0 %v4804
  %v5012 = vpop.f32.mrf.mxu0
  %v5013 = vadd.f32 0.0, %v5012
  %5014 = vmatmul.f32.gmra.mxu0 %v4807
  %v5015 = vpop.f32.mrf.mxu0
  %v5016 = vadd.f32 0.0, %v5015
  %5017 = vmatmul.f32.gmra.mxu0 %v4810
  %v5018 = vpop.f32.mrf.mxu0
  %v5019 = vadd.f32 0.0, %v5018
  %5020 = vmatmul.f32.gmra.mxu0 %v4813
  %v5021 = vpop.f32.mrf.mxu0
  %v5022 = vadd.f32 0.0, %v5021
  %5023 = vmatmul.f32.gmra.mxu0 %v4816
  %v5024 = vpop.f32.mrf.mxu0
  %v5025 = vadd.f32 0.0, %v5024
  %5026 = vmatmul.f32.gmra.mxu0 %v4819
  %v5027 = vpop.f32.mrf.mxu0
  %v5028 = vadd.f32 0.0, %v5027
  %5029 = vmatmul.f32.gmra.mxu0 %v4822
  %v5030 = vpop.f32.mrf.mxu0
  %v5031 = vadd.f32 0.0, %v5030
  %5032 = vmatmul.f32.gmra.mxu0 %v4825
  %v5033 = vpop.f32.mrf.mxu0
  %v5034 = vadd.f32 0.0, %v5033
  %5035 = vmatmul.f32.gmra.mxu0 %v4828
  %v5036 = vpop.f32.mrf.mxu0
  %v5037 = vadd.f32 0.0, %v5036
  %5038 = vmatmul.f32.gmra.mxu0 %v4831
  %v5039 = vpop.f32.mrf.mxu0
  %v5040 = vadd.f32 0.0, %v5039
  %5041 = vmatmul.f32.gmra.mxu0 %v4834
  %v5042 = vpop.f32.mrf.mxu0
  %v5043 = vadd.f32 0.0, %v5042
  %5044 = vmatmul.f32.gmra.mxu0 %v4837
  %v5045 = vpop.f32.mrf.mxu0
  %v5046 = vadd.f32 0.0, %v5045
  %5047 = vmatmul.f32.gmra.mxu0 %v4840
  %v5048 = vpop.f32.mrf.mxu0
  %v5049 = vadd.f32 0.0, %v5048
  %5050 = vmatmul.f32.gmra.mxu0 %v4843
  %v5051 = vpop.f32.mrf.mxu0
  %v5052 = vadd.f32 0.0, %v5051
  %5053 = vmatmul.f32.gmra.mxu0 %v4846
  %v5054 = vpop.f32.mrf.mxu0
  %v5055 = vadd.f32 0.0, %v5054
  %5056 = vmatmul.f32.gmra.mxu0 %v4849
  %v5057 = vpop.f32.mrf.mxu0
  %v5058 = vadd.f32 0.0, %v5057
  %5059 = vdwg.mxu0
  %v5060 = vld [vmem:[%s2 + $0x6] sm:$0x1]
  %v5061 = vld [vmem:[%s2 + $0x7] sm:$0x1]
  %v5062 = vperm.slane %v5060, 0
  %v5063 = vmul.f32 %v4869, %v5062
  %v5064 = vmul.f32 %v4872, %v5062
  %v5065 = vmul.f32 %v4875, %v5062
  %v5066 = vmul.f32 %v4878, %v5062
  %v5067 = vmul.f32 %v4881, %v5062
  %v5068 = vmul.f32 %v4884, %v5062
  %v5069 = vmul.f32 %v4887, %v5062
  %v5070 = vmul.f32 %v4890, %v5062
  %v5071 = vmul.f32 %v4893, %v5062
  %v5072 = vmul.f32 %v4896, %v5062
  %v5073 = vmul.f32 %v4899, %v5062
  %v5074 = vmul.f32 %v4902, %v5062
  %v5075 = vmul.f32 %v4905, %v5062
  %v5076 = vmul.f32 %v4908, %v5062
  %v5077 = vmul.f32 %v4911, %v5062
  %v5078 = vmul.f32 %v4914, %v5062
  %v5079 = vmul.f32 %v4917, %v5062
  %v5080 = vmul.f32 %v4920, %v5062
  %v5081 = vmul.f32 %v4923, %v5062
  %v5082 = vmul.f32 %v4926, %v5062
  %v5083 = vmul.f32 %v4929, %v5062
  %v5084 = vmul.f32 %v4932, %v5062
  %v5085 = vmul.f32 %v4935, %v5062
  %v5086 = vmul.f32 %v4938, %v5062
  %v5087 = vmul.f32 %v4941, %v5062
  %v5088 = vmul.f32 %v4944, %v5062
  %v5089 = vmul.f32 %v4947, %v5062
  %v5090 = vmul.f32 %v4950, %v5062
  %v5091 = vmul.f32 %v4953, %v5062
  %v5092 = vmul.f32 %v4956, %v5062
  %v5093 = vmul.f32 %v4959, %v5062
  %v5094 = vmul.f32 %v4962, %v5062
  %v5095 = vmul.f32 %v4965, %v5062
  %v5096 = vmul.f32 %v4968, %v5062
  %v5097 = vmul.f32 %v4971, %v5062
  %v5098 = vmul.f32 %v4974, %v5062
  %v5099 = vmul.f32 %v4977, %v5062
  %v5100 = vmul.f32 %v4980, %v5062
  %v5101 = vmul.f32 %v4983, %v5062
  %v5102 = vmul.f32 %v4986, %v5062
  %v5103 = vmul.f32 %v4989, %v5062
  %v5104 = vmul.f32 %v4992, %v5062
  %v5105 = vmul.f32 %v4995, %v5062
  %v5106 = vmul.f32 %v4998, %v5062
  %v5107 = vmul.f32 %v5001, %v5062
  %v5108 = vmul.f32 %v5004, %v5062
  %v5109 = vmul.f32 %v5007, %v5062
  %v5110 = vmul.f32 %v5010, %v5062
  %v5111 = vmul.f32 %v5013, %v5062
  %v5112 = vmul.f32 %v5016, %v5062
  %v5113 = vmul.f32 %v5019, %v5062
  %v5114 = vmul.f32 %v5022, %v5062
  %v5115 = vmul.f32 %v5025, %v5062
  %v5116 = vmul.f32 %v5028, %v5062
  %v5117 = vmul.f32 %v5031, %v5062
  %v5118 = vmul.f32 %v5034, %v5062
  %v5119 = vmul.f32 %v5037, %v5062
  %v5120 = vmul.f32 %v5040, %v5062
  %v5121 = vmul.f32 %v5043, %v5062
  %v5122 = vmul.f32 %v5046, %v5062
  %v5123 = vmul.f32 %v5049, %v5062
  %v5124 = vmul.f32 %v5052, %v5062
  %v5125 = vmul.f32 %v5055, %v5062
  %v5126 = vmul.f32 %v5058, %v5062
  %v5127 = vperm.slane %v5061, 0
  %v5128 = vadd.f32 %v5063, %v5127
  %v5129 = vadd.f32 %v5064, %v5127
  %v5130 = vadd.f32 %v5065, %v5127
  %v5131 = vadd.f32 %v5066, %v5127
  %v5132 = vadd.f32 %v5067, %v5127
  %v5133 = vadd.f32 %v5068, %v5127
  %v5134 = vadd.f32 %v5069, %v5127
  %v5135 = vadd.f32 %v5070, %v5127
  %v5136 = vadd.f32 %v5071, %v5127
  %v5137 = vadd.f32 %v5072, %v5127
  %v5138 = vadd.f32 %v5073, %v5127
  %v5139 = vadd.f32 %v5074, %v5127
  %v5140 = vadd.f32 %v5075, %v5127
  %v5141 = vadd.f32 %v5076, %v5127
  %v5142 = vadd.f32 %v5077, %v5127
  %v5143 = vadd.f32 %v5078, %v5127
  %v5144 = vadd.f32 %v5079, %v5127
  %v5145 = vadd.f32 %v5080, %v5127
  %v5146 = vadd.f32 %v5081, %v5127
  %v5147 = vadd.f32 %v5082, %v5127
  %v5148 = vadd.f32 %v5083, %v5127
  %v5149 = vadd.f32 %v5084, %v5127
  %v5150 = vadd.f32 %v5085, %v5127
  %v5151 = vadd.f32 %v5086, %v5127
  %v5152 = vadd.f32 %v5087, %v5127
  %v5153 = vadd.f32 %v5088, %v5127
  %v5154 = vadd.f32 %v5089, %v5127
  %v5155 = vadd.f32 %v5090, %v5127
  %v5156 = vadd.f32 %v5091, %v5127
  %v5157 = vadd.f32 %v5092, %v5127
  %v5158 = vadd.f32 %v5093, %v5127
  %v5159 = vadd.f32 %v5094, %v5127
  %v5160 = vadd.f32 %v5095, %v5127
  %v5161 = vadd.f32 %v5096, %v5127
  %v5162 = vadd.f32 %v5097, %v5127
  %v5163 = vadd.f32 %v5098, %v5127
  %v5164 = vadd.f32 %v5099, %v5127
  %v5165 = vadd.f32 %v5100, %v5127
  %v5166 = vadd.f32 %v5101, %v5127
  %v5167 = vadd.f32 %v5102, %v5127
  %v5168 = vadd.f32 %v5103, %v5127
  %v5169 = vadd.f32 %v5104, %v5127
  %v5170 = vadd.f32 %v5105, %v5127
  %v5171 = vadd.f32 %v5106, %v5127
  %v5172 = vadd.f32 %v5107, %v5127
  %v5173 = vadd.f32 %v5108, %v5127
  %v5174 = vadd.f32 %v5109, %v5127
  %v5175 = vadd.f32 %v5110, %v5127
  %v5176 = vadd.f32 %v5111, %v5127
  %v5177 = vadd.f32 %v5112, %v5127
  %v5178 = vadd.f32 %v5113, %v5127
  %v5179 = vadd.f32 %v5114, %v5127
  %v5180 = vadd.f32 %v5115, %v5127
  %v5181 = vadd.f32 %v5116, %v5127
  %v5182 = vadd.f32 %v5117, %v5127
  %v5183 = vadd.f32 %v5118, %v5127
  %v5184 = vadd.f32 %v5119, %v5127
  %v5185 = vadd.f32 %v5120, %v5127
  %v5186 = vadd.f32 %v5121, %v5127
  %v5187 = vadd.f32 %v5122, %v5127
  %v5188 = vadd.f32 %v5123, %v5127
  %v5189 = vadd.f32 %v5124, %v5127
  %v5190 = vadd.f32 %v5125, %v5127
  %v5191 = vadd.f32 %v5126, %v5127
  %v5192 = vmax.f32 %v5128, 0.0
  %v5193 = vmax.f32 %v5129, 0.0
  %v5194 = vmax.f32 %v5130, 0.0
  %v5195 = vmax.f32 %v5131, 0.0
  %v5196 = vmax.f32 %v5132, 0.0
  %v5197 = vmax.f32 %v5133, 0.0
  %v5198 = vmax.f32 %v5134, 0.0
  %v5199 = vmax.f32 %v5135, 0.0
  %v5200 = vmax.f32 %v5136, 0.0
  %v5201 = vmax.f32 %v5137, 0.0
  %v5202 = vmax.f32 %v5138, 0.0
  %v5203 = vmax.f32 %v5139, 0.0
  %v5204 = vmax.f32 %v5140, 0.0
  %v5205 = vmax.f32 %v5141, 0.0
  %v5206 = vmax.f32 %v5142, 0.0
  %v5207 = vmax.f32 %v5143, 0.0
  %v5208 = vmax.f32 %v5144, 0.0
  %v5209 = vmax.f32 %v5145, 0.0
  %v5210 = vmax.f32 %v5146, 0.0
  %v5211 = vmax.f32 %v5147, 0.0
  %v5212 = vmax.f32 %v5148, 0.0
  %v5213 = vmax.f32 %v5149, 0.0
  %v5214 = vmax.f32 %v5150, 0.0
  %v5215 = vmax.f32 %v5151, 0.0
  %v5216 = vmax.f32 %v5152, 0.0
  %v5217 = vmax.f32 %v5153, 0.0
  %v5218 = vmax.f32 %v5154, 0.0
  %v5219 = vmax.f32 %v5155, 0.0
  %v5220 = vmax.f32 %v5156, 0.0
  %v5221 = vmax.f32 %v5157, 0.0
  %v5222 = vmax.f32 %v5158, 0.0
  %v5223 = vmax.f32 %v5159, 0.0
  %v5224 = vmax.f32 %v5160, 0.0
  %v5225 = vmax.f32 %v5161, 0.0
  %v5226 = vmax.f32 %v5162, 0.0
  %v5227 = vmax.f32 %v5163, 0.0
  %v5228 = vmax.f32 %v5164, 0.0
  %v5229 = vmax.f32 %v5165, 0.0
  %v5230 = vmax.f32 %v5166, 0.0
  %v5231 = vmax.f32 %v5167, 0.0
  %v5232 = vmax.f32 %v5168, 0.0
  %v5233 = vmax.f32 %v5169, 0.0
  %v5234 = vmax.f32 %v5170, 0.0
  %v5235 = vmax.f32 %v5171, 0.0
  %v5236 = vmax.f32 %v5172, 0.0
  %v5237 = vmax.f32 %v5173, 0.0
  %v5238 = vmax.f32 %v5174, 0.0
  %v5239 = vmax.f32 %v5175, 0.0
  %v5240 = vmax.f32 %v5176, 0.0
  %v5241 = vmax.f32 %v5177, 0.0
  %v5242 = vmax.f32 %v5178, 0.0
  %v5243 = vmax.f32 %v5179, 0.0
  %v5244 = vmax.f32 %v5180, 0.0
  %v5245 = vmax.f32 %v5181, 0.0
  %v5246 = vmax.f32 %v5182, 0.0
  %v5247 = vmax.f32 %v5183, 0.0
  %v5248 = vmax.f32 %v5184, 0.0
  %v5249 = vmax.f32 %v5185, 0.0
  %v5250 = vmax.f32 %v5186, 0.0
  %v5251 = vmax.f32 %v5187, 0.0
  %v5252 = vmax.f32 %v5188, 0.0
  %v5253 = vmax.f32 %v5189, 0.0
  %v5254 = vmax.f32 %v5190, 0.0
  %v5255 = vmax.f32 %v5191, 0.0
  %5256 = vst.msk [vmem:[#allocation4] sm:$0xff] %vm79, 0.0
  %5257 = vst.msk [vmem:[#allocation4 + $0x8] sm:$0xff] %vm79, 0.0
  %5258 = vst.msk [vmem:[#allocation4 + $0x10] sm:$0xff] %vm79, 0.0
  %5259 = vst.msk [vmem:[#allocation4 + $0x18] sm:$0xff] %vm79, 0.0
  %5260 = vst.msk [vmem:[#allocation4 + $0x20] sm:$0xff] %vm79, 0.0
  %5261 = vst.msk [vmem:[#allocation4 + $0x28] sm:$0xff] %vm79, 0.0
  %5262 = vst.msk [vmem:[#allocation4 + $0x30] sm:$0xff] %vm79, 0.0
  %5263 = vst.msk [vmem:[#allocation4 + $0x38] sm:$0xff] %vm79, 0.0
  %5264 = vst.msk [vmem:[#allocation4 + $0x40] sm:$0xff] %vm79, 0.0
  %5265 = vst.msk [vmem:[#allocation4 + $0x48] sm:$0xff] %vm79, 0.0
  %5266 = vst.msk [vmem:[#allocation4 + $0x50] sm:$0xff] %vm79, 0.0
  %5267 = vst.msk [vmem:[#allocation4 + $0x58] sm:$0xff] %vm79, 0.0
  %5268 = vst.msk [vmem:[#allocation4 + $0x60] sm:$0xff] %vm79, 0.0
  %5269 = vst.msk [vmem:[#allocation4 + $0x68] sm:$0xff] %vm79, 0.0
  %5270 = vst.msk [vmem:[#allocation4 + $0x70] sm:$0xff] %vm79, 0.0
  %5271 = vst.msk [vmem:[#allocation4 + $0x78] sm:$0xff] %vm79, 0.0
  %5272 = vst.msk [vmem:[#allocation4 + $0x80] sm:$0xff] %vm79, 0.0
  %5273 = vst.msk [vmem:[#allocation4 + $0x88] sm:$0xff] %vm79, 0.0
  %5274 = vst.msk [vmem:[#allocation4 + $0x90] sm:$0xff] %vm79, 0.0
  %5275 = vst.msk [vmem:[#allocation4 + $0x98] sm:$0xff] %vm79, 0.0
  %5276 = vst.msk [vmem:[#allocation4 + $0xa0] sm:$0xff] %vm79, 0.0
  %5277 = vst.msk [vmem:[#allocation4 + $0xa8] sm:$0xff] %vm79, 0.0
  %5278 = vst.msk [vmem:[#allocation4 + $0xb0] sm:$0xff] %vm79, 0.0
  %5279 = vst.msk [vmem:[#allocation4 + $0xb8] sm:$0xff] %vm79, 0.0
  %5280 = vst.msk [vmem:[#allocation4 + $0xc0] sm:$0xff] %vm79, 0.0
  %5281 = vst.msk [vmem:[#allocation4 + $0xc8] sm:$0xff] %vm79, 0.0
  %5282 = vst.msk [vmem:[#allocation4 + $0xd0] sm:$0xff] %vm79, 0.0
  %5283 = vst.msk [vmem:[#allocation4 + $0xd8] sm:$0xff] %vm79, 0.0
  %5284 = vst.msk [vmem:[#allocation4 + $0xe0] sm:$0xff] %vm79, 0.0
  %5285 = vst.msk [vmem:[#allocation4 + $0xe8] sm:$0xff] %vm79, 0.0
  %5286 = vst.msk [vmem:[#allocation4 + $0xf0] sm:$0xff] %vm79, 0.0
  %5287 = vst.msk [vmem:[#allocation4 + $0xf8] sm:$0xff] %vm79, 0.0
  %5288 = vst.msk [vmem:[#allocation4 + $0x100] sm:$0xff] %vm79, 0.0
  %5289 = vst.msk [vmem:[#allocation4 + $0x108] sm:$0xff] %vm79, 0.0
  %5290 = vst.msk [vmem:[#allocation4 + $0x110] sm:$0xff] %vm79, 0.0
  %5291 = vst.msk [vmem:[#allocation4 + $0x118] sm:$0xff] %vm79, 0.0
  %5292 = vst.msk [vmem:[#allocation4 + $0x120] sm:$0xff] %vm79, 0.0
  %5293 = vst.msk [vmem:[#allocation4 + $0x128] sm:$0xff] %vm79, 0.0
  %5294 = vst.msk [vmem:[#allocation4 + $0x130] sm:$0xff] %vm79, 0.0
  %5295 = vst.msk [vmem:[#allocation4 + $0x138] sm:$0xff] %vm79, 0.0
  %5296 = vst.msk [vmem:[#allocation4 + $0x140] sm:$0xff] %vm79, 0.0
  %5297 = vst.msk [vmem:[#allocation4 + $0x148] sm:$0xff] %vm79, 0.0
  %5298 = vst.msk [vmem:[#allocation4 + $0x150] sm:$0xff] %vm79, 0.0
  %5299 = vst.msk [vmem:[#allocation4 + $0x158] sm:$0xff] %vm79, 0.0
  %5300 = vst.msk [vmem:[#allocation4 + $0x160] sm:$0xff] %vm79, 0.0
  %5301 = vst.msk [vmem:[#allocation4 + $0x168] sm:$0xff] %vm79, 0.0
  %5302 = vst.msk [vmem:[#allocation4 + $0x170] sm:$0xff] %vm79, 0.0
  %5303 = vst.msk [vmem:[#allocation4 + $0x178] sm:$0xff] %vm79, 0.0
  %5304 = vst.msk [vmem:[#allocation4 + $0x180] sm:$0xff] %vm79, 0.0
  %5305 = vst.msk [vmem:[#allocation4 + $0x188] sm:$0xff] %vm79, 0.0
  %5306 = vst.msk [vmem:[#allocation4 + $0x190] sm:$0xff] %vm79, 0.0
  %5307 = vst.msk [vmem:[#allocation4 + $0x198] sm:$0xff] %vm79, 0.0
  %5308 = vst.msk [vmem:[#allocation4 + $0x1a0] sm:$0xff] %vm79, 0.0
  %5309 = vst.msk [vmem:[#allocation4 + $0x1a8] sm:$0xff] %vm79, 0.0
  %5310 = vst.msk [vmem:[#allocation4 + $0x1b0] sm:$0xff] %vm79, 0.0
  %5311 = vst.msk [vmem:[#allocation4 + $0x1b8] sm:$0xff] %vm79, 0.0
  %5312 = vst.msk [vmem:[#allocation4 + $0x1c0] sm:$0xff] %vm79, 0.0
  %5313 = vst.msk [vmem:[#allocation4 + $0x1c8] sm:$0xff] %vm79, 0.0
  %5314 = vst.msk [vmem:[#allocation4 + $0x1d0] sm:$0xff] %vm79, 0.0
  %5315 = vst.msk [vmem:[#allocation4 + $0x1d8] sm:$0xff] %vm79, 0.0
  %5316 = vst.msk [vmem:[#allocation4 + $0x1e0] sm:$0xff] %vm79, 0.0
  %5317 = vst.msk [vmem:[#allocation4 + $0x1e8] sm:$0xff] %vm79, 0.0
  %5318 = vst.msk [vmem:[#allocation4 + $0x1f0] sm:$0xff] %vm79, 0.0
  %5319 = vst.msk [vmem:[#allocation4 + $0x1f8] sm:$0xff] %vm79, 0.0
  %5320 = vst.msk [vmem:[#allocation4 + $0x200] sm:$0xff] %vm79, 0.0
  %5321 = vst.msk [vmem:[#allocation4 + $0x208] sm:$0xff] %vm79, 0.0
  %5322 = vst.msk [vmem:[#allocation4 + $0x210] sm:$0xff] %vm79, 0.0
  %5323 = vst.msk [vmem:[#allocation4 + $0x218] sm:$0xff] %vm79, 0.0
  %5324 = vst.msk [vmem:[#allocation4 + $0x220] sm:$0xff] %vm79, 0.0
  %5325 = vst.msk [vmem:[#allocation4 + $0x228] sm:$0xff] %vm79, 0.0
  %5326 = vst.msk [vmem:[#allocation4 + $0x230] sm:$0xff] %vm79, 0.0
  %5327 = vst.msk [vmem:[#allocation4 + $0x238] sm:$0xff] %vm79, 0.0
  %5328 = vst.msk [vmem:[#allocation4 + $0x240] sm:$0xff] %vm79, 0.0
  %5329 = vst.msk [vmem:[#allocation4 + $0x248] sm:$0xff] %vm79, 0.0
  %5330 = vst.msk [vmem:[#allocation4 + $0x250] sm:$0xff] %vm79, 0.0
  %5331 = vst.msk [vmem:[#allocation4 + $0x258] sm:$0xff] %vm79, 0.0
  %5332 = vst.msk [vmem:[#allocation4 + $0x260] sm:$0xff] %vm79, 0.0
  %5333 = vst.msk [vmem:[#allocation4 + $0x268] sm:$0xff] %vm79, 0.0
  %5334 = vst.msk [vmem:[#allocation4 + $0x270] sm:$0xff] %vm79, 0.0
  %5335 = vst.msk [vmem:[#allocation4 + $0x278] sm:$0xff] %vm79, 0.0
  %5336 = vst.msk [vmem:[#allocation4 + $0x280] sm:$0xff] %vm79, 0.0
  %5337 = vst.msk [vmem:[#allocation4 + $0x288] sm:$0xff] %vm79, 0.0
  %5338 = vst.msk [vmem:[#allocation4 + $0x290] sm:$0xff] %vm79, 0.0
  %5339 = vst.msk [vmem:[#allocation4 + $0x298] sm:$0xff] %vm79, 0.0
  %5340 = vst.msk [vmem:[#allocation4 + $0x2a0] sm:$0xff] %vm79, 0.0
  %5341 = vst.msk [vmem:[#allocation4 + $0x2a8] sm:$0xff] %vm79, 0.0
  %5342 = vst.msk [vmem:[#allocation4 + $0x2b0] sm:$0xff] %vm79, 0.0
  %5343 = vst.msk [vmem:[#allocation4 + $0x2b8] sm:$0xff] %vm79, 0.0
  %s5344 = scalar_lea.vmem [#allocation4], 48
  %5345 = vst.msk [vmem:[%s5344] sm:$0xff] %vm79, %v5192
  %5346 = vst.msk [vmem:[%s5344 + $0x8] sm:$0xff] %vm79, %v5193
  %5347 = vst.msk [vmem:[%s5344 + $0x10] sm:$0xff] %vm79, %v5194
  %5348 = vst.msk [vmem:[%s5344 + $0x18] sm:$0xff] %vm79, %v5195
  %5349 = vst.msk [vmem:[%s5344 + $0x20] sm:$0xff] %vm79, %v5196
  %5350 = vst.msk [vmem:[%s5344 + $0x28] sm:$0xff] %vm79, %v5197
  %5351 = vst.msk [vmem:[%s5344 + $0x30] sm:$0xff] %vm79, %v5198
  %5352 = vst.msk [vmem:[%s5344 + $0x38] sm:$0xff] %vm79, %v5199
  %5353 = vst.msk [vmem:[%s5344 + $0x40] sm:$0xff] %vm79, %v5200
  %5354 = vst.msk [vmem:[%s5344 + $0x48] sm:$0xff] %vm79, %v5201
  %5355 = vst.msk [vmem:[%s5344 + $0x50] sm:$0xff] %vm79, %v5202
  %5356 = vst.msk [vmem:[%s5344 + $0x58] sm:$0xff] %vm79, %v5203
  %5357 = vst.msk [vmem:[%s5344 + $0x60] sm:$0xff] %vm79, %v5204
  %5358 = vst.msk [vmem:[%s5344 + $0x68] sm:$0xff] %vm79, %v5205
  %5359 = vst.msk [vmem:[%s5344 + $0x70] sm:$0xff] %vm79, %v5206
  %5360 = vst.msk [vmem:[%s5344 + $0x78] sm:$0xff] %vm79, %v5207
  %5361 = vst.msk [vmem:[%s5344 + $0x80] sm:$0xff] %vm79, %v5208
  %5362 = vst.msk [vmem:[%s5344 + $0x88] sm:$0xff] %vm79, %v5209
  %5363 = vst.msk [vmem:[%s5344 + $0x90] sm:$0xff] %vm79, %v5210
  %5364 = vst.msk [vmem:[%s5344 + $0x98] sm:$0xff] %vm79, %v5211
  %5365 = vst.msk [vmem:[%s5344 + $0xa0] sm:$0xff] %vm79, %v5212
  %5366 = vst.msk [vmem:[%s5344 + $0xa8] sm:$0xff] %vm79, %v5213
  %5367 = vst.msk [vmem:[%s5344 + $0xb0] sm:$0xff] %vm79, %v5214
  %5368 = vst.msk [vmem:[%s5344 + $0xb8] sm:$0xff] %vm79, %v5215
  %5369 = vst.msk [vmem:[%s5344 + $0xc0] sm:$0xff] %vm79, %v5216
  %5370 = vst.msk [vmem:[%s5344 + $0xc8] sm:$0xff] %vm79, %v5217
  %5371 = vst.msk [vmem:[%s5344 + $0xd0] sm:$0xff] %vm79, %v5218
  %5372 = vst.msk [vmem:[%s5344 + $0xd8] sm:$0xff] %vm79, %v5219
  %5373 = vst.msk [vmem:[%s5344 + $0xe0] sm:$0xff] %vm79, %v5220
  %5374 = vst.msk [vmem:[%s5344 + $0xe8] sm:$0xff] %vm79, %v5221
  %5375 = vst.msk [vmem:[%s5344 + $0xf0] sm:$0xff] %vm79, %v5222
  %5376 = vst.msk [vmem:[%s5344 + $0xf8] sm:$0xff] %vm79, %v5223
  %5377 = vst.msk [vmem:[%s5344 + $0x160] sm:$0xff] %vm79, %v5224
  %5378 = vst.msk [vmem:[%s5344 + $0x168] sm:$0xff] %vm79, %v5225
  %5379 = vst.msk [vmem:[%s5344 + $0x170] sm:$0xff] %vm79, %v5226
  %5380 = vst.msk [vmem:[%s5344 + $0x178] sm:$0xff] %vm79, %v5227
  %5381 = vst.msk [vmem:[%s5344 + $0x180] sm:$0xff] %vm79, %v5228
  %5382 = vst.msk [vmem:[%s5344 + $0x188] sm:$0xff] %vm79, %v5229
  %5383 = vst.msk [vmem:[%s5344 + $0x190] sm:$0xff] %vm79, %v5230
  %5384 = vst.msk [vmem:[%s5344 + $0x198] sm:$0xff] %vm79, %v5231
  %5385 = vst.msk [vmem:[%s5344 + $0x1a0] sm:$0xff] %vm79, %v5232
  %5386 = vst.msk [vmem:[%s5344 + $0x1a8] sm:$0xff] %vm79, %v5233
  %5387 = vst.msk [vmem:[%s5344 + $0x1b0] sm:$0xff] %vm79, %v5234
  %5388 = vst.msk [vmem:[%s5344 + $0x1b8] sm:$0xff] %vm79, %v5235
  %5389 = vst.msk [vmem:[%s5344 + $0x1c0] sm:$0xff] %vm79, %v5236
  %5390 = vst.msk [vmem:[%s5344 + $0x1c8] sm:$0xff] %vm79, %v5237
  %5391 = vst.msk [vmem:[%s5344 + $0x1d0] sm:$0xff] %vm79, %v5238
  %5392 = vst.msk [vmem:[%s5344 + $0x1d8] sm:$0xff] %vm79, %v5239
  %5393 = vst.msk [vmem:[%s5344 + $0x1e0] sm:$0xff] %vm79, %v5240
  %5394 = vst.msk [vmem:[%s5344 + $0x1e8] sm:$0xff] %vm79, %v5241
  %5395 = vst.msk [vmem:[%s5344 + $0x1f0] sm:$0xff] %vm79, %v5242
  %5396 = vst.msk [vmem:[%s5344 + $0x1f8] sm:$0xff] %vm79, %v5243
  %5397 = vst.msk [vmem:[%s5344 + $0x200] sm:$0xff] %vm79, %v5244
  %5398 = vst.msk [vmem:[%s5344 + $0x208] sm:$0xff] %vm79, %v5245
  %5399 = vst.msk [vmem:[%s5344 + $0x210] sm:$0xff] %vm79, %v5246
  %5400 = vst.msk [vmem:[%s5344 + $0x218] sm:$0xff] %vm79, %v5247
  %5401 = vst.msk [vmem:[%s5344 + $0x220] sm:$0xff] %vm79, %v5248
  %5402 = vst.msk [vmem:[%s5344 + $0x228] sm:$0xff] %vm79, %v5249
  %5403 = vst.msk [vmem:[%s5344 + $0x230] sm:$0xff] %vm79, %v5250
  %5404 = vst.msk [vmem:[%s5344 + $0x238] sm:$0xff] %vm79, %v5251
  %5405 = vst.msk [vmem:[%s5344 + $0x240] sm:$0xff] %vm79, %v5252
  %5406 = vst.msk [vmem:[%s5344 + $0x248] sm:$0xff] %vm79, %v5253
  %5407 = vst.msk [vmem:[%s5344 + $0x250] sm:$0xff] %vm79, %v5254
  %5408 = vst.msk [vmem:[%s5344 + $0x258] sm:$0xff] %vm79, %v5255
  %v5409 = vld [vmem:[#allocation4] sm:$0xff]
  %v5410 = vld [vmem:[#allocation4 + $0x8] sm:$0xff]
  %v5411 = vld [vmem:[#allocation4 + $0x10] sm:$0xff]
  %v5412 = vld [vmem:[#allocation4 + $0x18] sm:$0xff]
  %v5413 = vld [vmem:[#allocation4 + $0x20] sm:$0xff]
  %v5414 = vld [vmem:[#allocation4 + $0x28] sm:$0xff]
  %v5415 = vld [vmem:[#allocation4 + $0x30] sm:$0xff]
  %v5416 = vld [vmem:[#allocation4 + $0x38] sm:$0xff]
  %v5417 = vld [vmem:[#allocation4 + $0x40] sm:$0xff]
  %v5418 = vld [vmem:[#allocation4 + $0x48] sm:$0xff]
  %v5419 = vld [vmem:[#allocation4 + $0x50] sm:$0xff]
  %v5420 = vld [vmem:[#allocation4 + $0x58] sm:$0xff]
  %v5421 = vld [vmem:[#allocation4 + $0x60] sm:$0xff]
  %v5422 = vld [vmem:[#allocation4 + $0x68] sm:$0xff]
  %v5423 = vld [vmem:[#allocation4 + $0x70] sm:$0xff]
  %v5424 = vld [vmem:[#allocation4 + $0x78] sm:$0xff]
  %v5425 = vld [vmem:[#allocation4 + $0x80] sm:$0xff]
  %v5426 = vld [vmem:[#allocation4 + $0x88] sm:$0xff]
  %v5427 = vld [vmem:[#allocation4 + $0x90] sm:$0xff]
  %v5428 = vld [vmem:[#allocation4 + $0x98] sm:$0xff]
  %v5429 = vld [vmem:[#allocation4 + $0xa0] sm:$0xff]
  %v5430 = vld [vmem:[#allocation4 + $0xa8] sm:$0xff]
  %v5431 = vld [vmem:[#allocation4 + $0xb0] sm:$0xff]
  %v5432 = vld [vmem:[#allocation4 + $0xb8] sm:$0xff]
  %v5433 = vld [vmem:[#allocation4 + $0xc0] sm:$0xff]
  %v5434 = vld [vmem:[#allocation4 + $0xc8] sm:$0xff]
  %v5435 = vld [vmem:[#allocation4 + $0xd0] sm:$0xff]
  %v5436 = vld [vmem:[#allocation4 + $0xd8] sm:$0xff]
  %v5437 = vld [vmem:[#allocation4 + $0xe0] sm:$0xff]
  %v5438 = vld [vmem:[#allocation4 + $0xe8] sm:$0xff]
  %v5439 = vld [vmem:[#allocation4 + $0xf0] sm:$0xff]
  %v5440 = vld [vmem:[#allocation4 + $0xf8] sm:$0xff]
  %v5441 = vld [vmem:[#allocation4 + $0x160] sm:$0xff]
  %v5442 = vld [vmem:[#allocation4 + $0x168] sm:$0xff]
  %v5443 = vld [vmem:[#allocation4 + $0x170] sm:$0xff]
  %v5444 = vld [vmem:[#allocation4 + $0x178] sm:$0xff]
  %v5445 = vld [vmem:[#allocation4 + $0x180] sm:$0xff]
  %v5446 = vld [vmem:[#allocation4 + $0x188] sm:$0xff]
  %v5447 = vld [vmem:[#allocation4 + $0x190] sm:$0xff]
  %v5448 = vld [vmem:[#allocation4 + $0x198] sm:$0xff]
  %v5449 = vld [vmem:[#allocation4 + $0x1a0] sm:$0xff]
  %v5450 = vld [vmem:[#allocation4 + $0x1a8] sm:$0xff]
  %v5451 = vld [vmem:[#allocation4 + $0x1b0] sm:$0xff]
  %v5452 = vld [vmem:[#allocation4 + $0x1b8] sm:$0xff]
  %v5453 = vld [vmem:[#allocation4 + $0x1c0] sm:$0xff]
  %v5454 = vld [vmem:[#allocation4 + $0x1c8] sm:$0xff]
  %v5455 = vld [vmem:[#allocation4 + $0x1d0] sm:$0xff]
  %v5456 = vld [vmem:[#allocation4 + $0x1d8] sm:$0xff]
  %v5457 = vld [vmem:[#allocation4 + $0x1e0] sm:$0xff]
  %v5458 = vld [vmem:[#allocation4 + $0x1e8] sm:$0xff]
  %v5459 = vld [vmem:[#allocation4 + $0x1f0] sm:$0xff]
  %v5460 = vld [vmem:[#allocation4 + $0x1f8] sm:$0xff]
  %v5461 = vld [vmem:[#allocation4 + $0x200] sm:$0xff]
  %v5462 = vld [vmem:[#allocation4 + $0x208] sm:$0xff]
  %v5463 = vld [vmem:[#allocation4 + $0x210] sm:$0xff]
  %v5464 = vld [vmem:[#allocation4 + $0x218] sm:$0xff]
  %v5465 = vld [vmem:[#allocation4 + $0x220] sm:$0xff]
  %v5466 = vld [vmem:[#allocation4 + $0x228] sm:$0xff]
  %v5467 = vld [vmem:[#allocation4 + $0x230] sm:$0xff]
  %v5468 = vld [vmem:[#allocation4 + $0x238] sm:$0xff]
  %v5469 = vld [vmem:[#allocation4 + $0x240] sm:$0xff]
  %v5470 = vld [vmem:[#allocation4 + $0x248] sm:$0xff]
  %v5471 = vld [vmem:[#allocation4 + $0x250] sm:$0xff]
  %v5472 = vld [vmem:[#allocation4 + $0x258] sm:$0xff]
  %s5473 = scalar_lea.vmem [#allocation4], 16
  %v5474 = vld [vmem:[%s5473] sm:$0xff]
  %v5475 = vld [vmem:[%s5473 + $0x8] sm:$0xff]
  %v5476 = vld [vmem:[%s5473 + $0x10] sm:$0xff]
  %v5477 = vld [vmem:[%s5473 + $0x18] sm:$0xff]
  %v5478 = vld [vmem:[%s5473 + $0x20] sm:$0xff]
  %v5479 = vld [vmem:[%s5473 + $0x28] sm:$0xff]
  %v5480 = vld [vmem:[%s5473 + $0x30] sm:$0xff]
  %v5481 = vld [vmem:[%s5473 + $0x38] sm:$0xff]
  %v5482 = vld [vmem:[%s5473 + $0x40] sm:$0xff]
  %v5483 = vld [vmem:[%s5473 + $0x48] sm:$0xff]
  %v5484 = vld [vmem:[%s5473 + $0x50] sm:$0xff]
  %v5485 = vld [vmem:[%s5473 + $0x58] sm:$0xff]
  %v5486 = vld [vmem:[%s5473 + $0x60] sm:$0xff]
  %v5487 = vld [vmem:[%s5473 + $0x68] sm:$0xff]
  %v5488 = vld [vmem:[%s5473 + $0x70] sm:$0xff]
  %v5489 = vld [vmem:[%s5473 + $0x78] sm:$0xff]
  %v5490 = vld [vmem:[%s5473 + $0x80] sm:$0xff]
  %v5491 = vld [vmem:[%s5473 + $0x88] sm:$0xff]
  %v5492 = vld [vmem:[%s5473 + $0x90] sm:$0xff]
  %v5493 = vld [vmem:[%s5473 + $0x98] sm:$0xff]
  %v5494 = vld [vmem:[%s5473 + $0xa0] sm:$0xff]
  %v5495 = vld [vmem:[%s5473 + $0xa8] sm:$0xff]
  %v5496 = vld [vmem:[%s5473 + $0xb0] sm:$0xff]
  %v5497 = vld [vmem:[%s5473 + $0xb8] sm:$0xff]
  %v5498 = vld [vmem:[%s5473 + $0xc0] sm:$0xff]
  %v5499 = vld [vmem:[%s5473 + $0xc8] sm:$0xff]
  %v5500 = vld [vmem:[%s5473 + $0xd0] sm:$0xff]
  %v5501 = vld [vmem:[%s5473 + $0xd8] sm:$0xff]
  %v5502 = vld [vmem:[%s5473 + $0xe0] sm:$0xff]
  %v5503 = vld [vmem:[%s5473 + $0xe8] sm:$0xff]
  %v5504 = vld [vmem:[%s5473 + $0xf0] sm:$0xff]
  %v5505 = vld [vmem:[%s5473 + $0xf8] sm:$0xff]
  %v5506 = vld [vmem:[%s5473 + $0x160] sm:$0xff]
  %v5507 = vld [vmem:[%s5473 + $0x168] sm:$0xff]
  %v5508 = vld [vmem:[%s5473 + $0x170] sm:$0xff]
  %v5509 = vld [vmem:[%s5473 + $0x178] sm:$0xff]
  %v5510 = vld [vmem:[%s5473 + $0x180] sm:$0xff]
  %v5511 = vld [vmem:[%s5473 + $0x188] sm:$0xff]
  %v5512 = vld [vmem:[%s5473 + $0x190] sm:$0xff]
  %v5513 = vld [vmem:[%s5473 + $0x198] sm:$0xff]
  %v5514 = vld [vmem:[%s5473 + $0x1a0] sm:$0xff]
  %v5515 = vld [vmem:[%s5473 + $0x1a8] sm:$0xff]
  %v5516 = vld [vmem:[%s5473 + $0x1b0] sm:$0xff]
  %v5517 = vld [vmem:[%s5473 + $0x1b8] sm:$0xff]
  %v5518 = vld [vmem:[%s5473 + $0x1c0] sm:$0xff]
  %v5519 = vld [vmem:[%s5473 + $0x1c8] sm:$0xff]
  %v5520 = vld [vmem:[%s5473 + $0x1d0] sm:$0xff]
  %v5521 = vld [vmem:[%s5473 + $0x1d8] sm:$0xff]
  %v5522 = vld [vmem:[%s5473 + $0x1e0] sm:$0xff]
  %v5523 = vld [vmem:[%s5473 + $0x1e8] sm:$0xff]
  %v5524 = vld [vmem:[%s5473 + $0x1f0] sm:$0xff]
  %v5525 = vld [vmem:[%s5473 + $0x1f8] sm:$0xff]
  %v5526 = vld [vmem:[%s5473 + $0x200] sm:$0xff]
  %v5527 = vld [vmem:[%s5473 + $0x208] sm:$0xff]
  %v5528 = vld [vmem:[%s5473 + $0x210] sm:$0xff]
  %v5529 = vld [vmem:[%s5473 + $0x218] sm:$0xff]
  %v5530 = vld [vmem:[%s5473 + $0x220] sm:$0xff]
  %v5531 = vld [vmem:[%s5473 + $0x228] sm:$0xff]
  %v5532 = vld [vmem:[%s5473 + $0x230] sm:$0xff]
  %v5533 = vld [vmem:[%s5473 + $0x238] sm:$0xff]
  %v5534 = vld [vmem:[%s5473 + $0x240] sm:$0xff]
  %v5535 = vld [vmem:[%s5473 + $0x248] sm:$0xff]
  %v5536 = vld [vmem:[%s5473 + $0x250] sm:$0xff]
  %v5537 = vld [vmem:[%s5473 + $0x258] sm:$0xff]
  %s5538 = scalar_lea.vmem [#allocation4], 32
  %v5539 = vld [vmem:[%s5538] sm:$0xff]
  %v5540 = vld [vmem:[%s5538 + $0x8] sm:$0xff]
  %v5541 = vld [vmem:[%s5538 + $0x10] sm:$0xff]
  %v5542 = vld [vmem:[%s5538 + $0x18] sm:$0xff]
  %v5543 = vld [vmem:[%s5538 + $0x20] sm:$0xff]
  %v5544 = vld [vmem:[%s5538 + $0x28] sm:$0xff]
  %v5545 = vld [vmem:[%s5538 + $0x30] sm:$0xff]
  %v5546 = vld [vmem:[%s5538 + $0x38] sm:$0xff]
  %v5547 = vld [vmem:[%s5538 + $0x40] sm:$0xff]
  %v5548 = vld [vmem:[%s5538 + $0x48] sm:$0xff]
  %v5549 = vld [vmem:[%s5538 + $0x50] sm:$0xff]
  %v5550 = vld [vmem:[%s5538 + $0x58] sm:$0xff]
  %v5551 = vld [vmem:[%s5538 + $0x60] sm:$0xff]
  %v5552 = vld [vmem:[%s5538 + $0x68] sm:$0xff]
  %v5553 = vld [vmem:[%s5538 + $0x70] sm:$0xff]
  %v5554 = vld [vmem:[%s5538 + $0x78] sm:$0xff]
  %v5555 = vld [vmem:[%s5538 + $0x80] sm:$0xff]
  %v5556 = vld [vmem:[%s5538 + $0x88] sm:$0xff]
  %v5557 = vld [vmem:[%s5538 + $0x90] sm:$0xff]
  %v5558 = vld [vmem:[%s5538 + $0x98] sm:$0xff]
  %v5559 = vld [vmem:[%s5538 + $0xa0] sm:$0xff]
  %v5560 = vld [vmem:[%s5538 + $0xa8] sm:$0xff]
  %v5561 = vld [vmem:[%s5538 + $0xb0] sm:$0xff]
  %v5562 = vld [vmem:[%s5538 + $0xb8] sm:$0xff]
  %v5563 = vld [vmem:[%s5538 + $0xc0] sm:$0xff]
  %v5564 = vld [vmem:[%s5538 + $0xc8] sm:$0xff]
  %v5565 = vld [vmem:[%s5538 + $0xd0] sm:$0xff]
  %v5566 = vld [vmem:[%s5538 + $0xd8] sm:$0xff]
  %v5567 = vld [vmem:[%s5538 + $0xe0] sm:$0xff]
  %v5568 = vld [vmem:[%s5538 + $0xe8] sm:$0xff]
  %v5569 = vld [vmem:[%s5538 + $0xf0] sm:$0xff]
  %v5570 = vld [vmem:[%s5538 + $0xf8] sm:$0xff]
  %v5571 = vld [vmem:[%s5538 + $0x160] sm:$0xff]
  %v5572 = vld [vmem:[%s5538 + $0x168] sm:$0xff]
  %v5573 = vld [vmem:[%s5538 + $0x170] sm:$0xff]
  %v5574 = vld [vmem:[%s5538 + $0x178] sm:$0xff]
  %v5575 = vld [vmem:[%s5538 + $0x180] sm:$0xff]
  %v5576 = vld [vmem:[%s5538 + $0x188] sm:$0xff]
  %v5577 = vld [vmem:[%s5538 + $0x190] sm:$0xff]
  %v5578 = vld [vmem:[%s5538 + $0x198] sm:$0xff]
  %v5579 = vld [vmem:[%s5538 + $0x1a0] sm:$0xff]
  %v5580 = vld [vmem:[%s5538 + $0x1a8] sm:$0xff]
  %v5581 = vld [vmem:[%s5538 + $0x1b0] sm:$0xff]
  %v5582 = vld [vmem:[%s5538 + $0x1b8] sm:$0xff]
  %v5583 = vld [vmem:[%s5538 + $0x1c0] sm:$0xff]
  %v5584 = vld [vmem:[%s5538 + $0x1c8] sm:$0xff]
  %v5585 = vld [vmem:[%s5538 + $0x1d0] sm:$0xff]
  %v5586 = vld [vmem:[%s5538 + $0x1d8] sm:$0xff]
  %v5587 = vld [vmem:[%s5538 + $0x1e0] sm:$0xff]
  %v5588 = vld [vmem:[%s5538 + $0x1e8] sm:$0xff]
  %v5589 = vld [vmem:[%s5538 + $0x1f0] sm:$0xff]
  %v5590 = vld [vmem:[%s5538 + $0x1f8] sm:$0xff]
  %v5591 = vld [vmem:[%s5538 + $0x200] sm:$0xff]
  %v5592 = vld [vmem:[%s5538 + $0x208] sm:$0xff]
  %v5593 = vld [vmem:[%s5538 + $0x210] sm:$0xff]
  %v5594 = vld [vmem:[%s5538 + $0x218] sm:$0xff]
  %v5595 = vld [vmem:[%s5538 + $0x220] sm:$0xff]
  %v5596 = vld [vmem:[%s5538 + $0x228] sm:$0xff]
  %v5597 = vld [vmem:[%s5538 + $0x230] sm:$0xff]
  %v5598 = vld [vmem:[%s5538 + $0x238] sm:$0xff]
  %v5599 = vld [vmem:[%s5538 + $0x240] sm:$0xff]
  %v5600 = vld [vmem:[%s5538 + $0x248] sm:$0xff]
  %v5601 = vld [vmem:[%s5538 + $0x250] sm:$0xff]
  %v5602 = vld [vmem:[%s5538 + $0x258] sm:$0xff]
  %v5603 = vld [vmem:[%s5344] sm:$0xff]
  %v5604 = vld [vmem:[%s5344 + $0x8] sm:$0xff]
  %v5605 = vld [vmem:[%s5344 + $0x10] sm:$0xff]
  %v5606 = vld [vmem:[%s5344 + $0x18] sm:$0xff]
  %v5607 = vld [vmem:[%s5344 + $0x20] sm:$0xff]
  %v5608 = vld [vmem:[%s5344 + $0x28] sm:$0xff]
  %v5609 = vld [vmem:[%s5344 + $0x30] sm:$0xff]
  %v5610 = vld [vmem:[%s5344 + $0x38] sm:$0xff]
  %v5611 = vld [vmem:[%s5344 + $0x40] sm:$0xff]
  %v5612 = vld [vmem:[%s5344 + $0x48] sm:$0xff]
  %v5613 = vld [vmem:[%s5344 + $0x50] sm:$0xff]
  %v5614 = vld [vmem:[%s5344 + $0x58] sm:$0xff]
  %v5615 = vld [vmem:[%s5344 + $0x60] sm:$0xff]
  %v5616 = vld [vmem:[%s5344 + $0x68] sm:$0xff]
  %v5617 = vld [vmem:[%s5344 + $0x70] sm:$0xff]
  %v5618 = vld [vmem:[%s5344 + $0x78] sm:$0xff]
  %v5619 = vld [vmem:[%s5344 + $0x80] sm:$0xff]
  %v5620 = vld [vmem:[%s5344 + $0x88] sm:$0xff]
  %v5621 = vld [vmem:[%s5344 + $0x90] sm:$0xff]
  %v5622 = vld [vmem:[%s5344 + $0x98] sm:$0xff]
  %v5623 = vld [vmem:[%s5344 + $0xa0] sm:$0xff]
  %v5624 = vld [vmem:[%s5344 + $0xa8] sm:$0xff]
  %v5625 = vld [vmem:[%s5344 + $0xb0] sm:$0xff]
  %v5626 = vld [vmem:[%s5344 + $0xb8] sm:$0xff]
  %v5627 = vld [vmem:[%s5344 + $0xc0] sm:$0xff]
  %v5628 = vld [vmem:[%s5344 + $0xc8] sm:$0xff]
  %v5629 = vld [vmem:[%s5344 + $0xd0] sm:$0xff]
  %v5630 = vld [vmem:[%s5344 + $0xd8] sm:$0xff]
  %v5631 = vld [vmem:[%s5344 + $0xe0] sm:$0xff]
  %v5632 = vld [vmem:[%s5344 + $0xe8] sm:$0xff]
  %v5633 = vld [vmem:[%s5344 + $0xf0] sm:$0xff]
  %v5634 = vld [vmem:[%s5344 + $0xf8] sm:$0xff]
  %v5635 = vld [vmem:[%s5344 + $0x160] sm:$0xff]
  %v5636 = vld [vmem:[%s5344 + $0x168] sm:$0xff]
  %v5637 = vld [vmem:[%s5344 + $0x170] sm:$0xff]
  %v5638 = vld [vmem:[%s5344 + $0x178] sm:$0xff]
  %v5639 = vld [vmem:[%s5344 + $0x180] sm:$0xff]
  %v5640 = vld [vmem:[%s5344 + $0x188] sm:$0xff]
  %v5641 = vld [vmem:[%s5344 + $0x190] sm:$0xff]
  %v5642 = vld [vmem:[%s5344 + $0x198] sm:$0xff]
  %v5643 = vld [vmem:[%s5344 + $0x1a0] sm:$0xff]
  %v5644 = vld [vmem:[%s5344 + $0x1a8] sm:$0xff]
  %v5645 = vld [vmem:[%s5344 + $0x1b0] sm:$0xff]
  %v5646 = vld [vmem:[%s5344 + $0x1b8] sm:$0xff]
  %v5647 = vld [vmem:[%s5344 + $0x1c0] sm:$0xff]
  %v5648 = vld [vmem:[%s5344 + $0x1c8] sm:$0xff]
  %v5649 = vld [vmem:[%s5344 + $0x1d0] sm:$0xff]
  %v5650 = vld [vmem:[%s5344 + $0x1d8] sm:$0xff]
  %v5651 = vld [vmem:[%s5344 + $0x1e0] sm:$0xff]
  %v5652 = vld [vmem:[%s5344 + $0x1e8] sm:$0xff]
  %v5653 = vld [vmem:[%s5344 + $0x1f0] sm:$0xff]
  %v5654 = vld [vmem:[%s5344 + $0x1f8] sm:$0xff]
  %v5655 = vld [vmem:[%s5344 + $0x200] sm:$0xff]
  %v5656 = vld [vmem:[%s5344 + $0x208] sm:$0xff]
  %v5657 = vld [vmem:[%s5344 + $0x210] sm:$0xff]
  %v5658 = vld [vmem:[%s5344 + $0x218] sm:$0xff]
  %v5659 = vld [vmem:[%s5344 + $0x220] sm:$0xff]
  %v5660 = vld [vmem:[%s5344 + $0x228] sm:$0xff]
  %v5661 = vld [vmem:[%s5344 + $0x230] sm:$0xff]
  %v5662 = vld [vmem:[%s5344 + $0x238] sm:$0xff]
  %v5663 = vld [vmem:[%s5344 + $0x240] sm:$0xff]
  %v5664 = vld [vmem:[%s5344 + $0x248] sm:$0xff]
  %v5665 = vld [vmem:[%s5344 + $0x250] sm:$0xff]
  %v5666 = vld [vmem:[%s5344 + $0x258] sm:$0xff]
  %s5667 = scalar_lea.vmem [#allocation4], 64
  %v5668 = vld [vmem:[%s5667] sm:$0xff]
  %v5669 = vld [vmem:[%s5667 + $0x8] sm:$0xff]
  %v5670 = vld [vmem:[%s5667 + $0x10] sm:$0xff]
  %v5671 = vld [vmem:[%s5667 + $0x18] sm:$0xff]
  %v5672 = vld [vmem:[%s5667 + $0x20] sm:$0xff]
  %v5673 = vld [vmem:[%s5667 + $0x28] sm:$0xff]
  %v5674 = vld [vmem:[%s5667 + $0x30] sm:$0xff]
  %v5675 = vld [vmem:[%s5667 + $0x38] sm:$0xff]
  %v5676 = vld [vmem:[%s5667 + $0x40] sm:$0xff]
  %v5677 = vld [vmem:[%s5667 + $0x48] sm:$0xff]
  %v5678 = vld [vmem:[%s5667 + $0x50] sm:$0xff]
  %v5679 = vld [vmem:[%s5667 + $0x58] sm:$0xff]
  %v5680 = vld [vmem:[%s5667 + $0x60] sm:$0xff]
  %v5681 = vld [vmem:[%s5667 + $0x68] sm:$0xff]
  %v5682 = vld [vmem:[%s5667 + $0x70] sm:$0xff]
  %v5683 = vld [vmem:[%s5667 + $0x78] sm:$0xff]
  %v5684 = vld [vmem:[%s5667 + $0x80] sm:$0xff]
  %v5685 = vld [vmem:[%s5667 + $0x88] sm:$0xff]
  %v5686 = vld [vmem:[%s5667 + $0x90] sm:$0xff]
  %v5687 = vld [vmem:[%s5667 + $0x98] sm:$0xff]
  %v5688 = vld [vmem:[%s5667 + $0xa0] sm:$0xff]
  %v5689 = vld [vmem:[%s5667 + $0xa8] sm:$0xff]
  %v5690 = vld [vmem:[%s5667 + $0xb0] sm:$0xff]
  %v5691 = vld [vmem:[%s5667 + $0xb8] sm:$0xff]
  %v5692 = vld [vmem:[%s5667 + $0xc0] sm:$0xff]
  %v5693 = vld [vmem:[%s5667 + $0xc8] sm:$0xff]
  %v5694 = vld [vmem:[%s5667 + $0xd0] sm:$0xff]
  %v5695 = vld [vmem:[%s5667 + $0xd8] sm:$0xff]
  %v5696 = vld [vmem:[%s5667 + $0xe0] sm:$0xff]
  %v5697 = vld [vmem:[%s5667 + $0xe8] sm:$0xff]
  %v5698 = vld [vmem:[%s5667 + $0xf0] sm:$0xff]
  %v5699 = vld [vmem:[%s5667 + $0xf8] sm:$0xff]
  %v5700 = vld [vmem:[%s5667 + $0x160] sm:$0xff]
  %v5701 = vld [vmem:[%s5667 + $0x168] sm:$0xff]
  %v5702 = vld [vmem:[%s5667 + $0x170] sm:$0xff]
  %v5703 = vld [vmem:[%s5667 + $0x178] sm:$0xff]
  %v5704 = vld [vmem:[%s5667 + $0x180] sm:$0xff]
  %v5705 = vld [vmem:[%s5667 + $0x188] sm:$0xff]
  %v5706 = vld [vmem:[%s5667 + $0x190] sm:$0xff]
  %v5707 = vld [vmem:[%s5667 + $0x198] sm:$0xff]
  %v5708 = vld [vmem:[%s5667 + $0x1a0] sm:$0xff]
  %v5709 = vld [vmem:[%s5667 + $0x1a8] sm:$0xff]
  %v5710 = vld [vmem:[%s5667 + $0x1b0] sm:$0xff]
  %v5711 = vld [vmem:[%s5667 + $0x1b8] sm:$0xff]
  %v5712 = vld [vmem:[%s5667 + $0x1c0] sm:$0xff]
  %v5713 = vld [vmem:[%s5667 + $0x1c8] sm:$0xff]
  %v5714 = vld [vmem:[%s5667 + $0x1d0] sm:$0xff]
  %v5715 = vld [vmem:[%s5667 + $0x1d8] sm:$0xff]
  %v5716 = vld [vmem:[%s5667 + $0x1e0] sm:$0xff]
  %v5717 = vld [vmem:[%s5667 + $0x1e8] sm:$0xff]
  %v5718 = vld [vmem:[%s5667 + $0x1f0] sm:$0xff]
  %v5719 = vld [vmem:[%s5667 + $0x1f8] sm:$0xff]
  %v5720 = vld [vmem:[%s5667 + $0x200] sm:$0xff]
  %v5721 = vld [vmem:[%s5667 + $0x208] sm:$0xff]
  %v5722 = vld [vmem:[%s5667 + $0x210] sm:$0xff]
  %v5723 = vld [vmem:[%s5667 + $0x218] sm:$0xff]
  %v5724 = vld [vmem:[%s5667 + $0x220] sm:$0xff]
  %v5725 = vld [vmem:[%s5667 + $0x228] sm:$0xff]
  %v5726 = vld [vmem:[%s5667 + $0x230] sm:$0xff]
  %v5727 = vld [vmem:[%s5667 + $0x238] sm:$0xff]
  %v5728 = vld [vmem:[%s5667 + $0x240] sm:$0xff]
  %v5729 = vld [vmem:[%s5667 + $0x248] sm:$0xff]
  %v5730 = vld [vmem:[%s5667 + $0x250] sm:$0xff]
  %v5731 = vld [vmem:[%s5667 + $0x258] sm:$0xff]
  %s5732 = scalar_lea.vmem [#allocation4], 80
  %v5733 = vld [vmem:[%s5732] sm:$0xff]
  %v5734 = vld [vmem:[%s5732 + $0x8] sm:$0xff]
  %v5735 = vld [vmem:[%s5732 + $0x10] sm:$0xff]
  %v5736 = vld [vmem:[%s5732 + $0x18] sm:$0xff]
  %v5737 = vld [vmem:[%s5732 + $0x20] sm:$0xff]
  %v5738 = vld [vmem:[%s5732 + $0x28] sm:$0xff]
  %v5739 = vld [vmem:[%s5732 + $0x30] sm:$0xff]
  %v5740 = vld [vmem:[%s5732 + $0x38] sm:$0xff]
  %v5741 = vld [vmem:[%s5732 + $0x40] sm:$0xff]
  %v5742 = vld [vmem:[%s5732 + $0x48] sm:$0xff]
  %v5743 = vld [vmem:[%s5732 + $0x50] sm:$0xff]
  %v5744 = vld [vmem:[%s5732 + $0x58] sm:$0xff]
  %v5745 = vld [vmem:[%s5732 + $0x60] sm:$0xff]
  %v5746 = vld [vmem:[%s5732 + $0x68] sm:$0xff]
  %v5747 = vld [vmem:[%s5732 + $0x70] sm:$0xff]
  %v5748 = vld [vmem:[%s5732 + $0x78] sm:$0xff]
  %v5749 = vld [vmem:[%s5732 + $0x80] sm:$0xff]
  %v5750 = vld [vmem:[%s5732 + $0x88] sm:$0xff]
  %v5751 = vld [vmem:[%s5732 + $0x90] sm:$0xff]
  %v5752 = vld [vmem:[%s5732 + $0x98] sm:$0xff]
  %v5753 = vld [vmem:[%s5732 + $0xa0] sm:$0xff]
  %v5754 = vld [vmem:[%s5732 + $0xa8] sm:$0xff]
  %v5755 = vld [vmem:[%s5732 + $0xb0] sm:$0xff]
  %v5756 = vld [vmem:[%s5732 + $0xb8] sm:$0xff]
  %v5757 = vld [vmem:[%s5732 + $0xc0] sm:$0xff]
  %v5758 = vld [vmem:[%s5732 + $0xc8] sm:$0xff]
  %v5759 = vld [vmem:[%s5732 + $0xd0] sm:$0xff]
  %v5760 = vld [vmem:[%s5732 + $0xd8] sm:$0xff]
  %v5761 = vld [vmem:[%s5732 + $0xe0] sm:$0xff]
  %v5762 = vld [vmem:[%s5732 + $0xe8] sm:$0xff]
  %v5763 = vld [vmem:[%s5732 + $0xf0] sm:$0xff]
  %v5764 = vld [vmem:[%s5732 + $0xf8] sm:$0xff]
  %v5765 = vld [vmem:[%s5732 + $0x160] sm:$0xff]
  %v5766 = vld [vmem:[%s5732 + $0x168] sm:$0xff]
  %v5767 = vld [vmem:[%s5732 + $0x170] sm:$0xff]
  %v5768 = vld [vmem:[%s5732 + $0x178] sm:$0xff]
  %v5769 = vld [vmem:[%s5732 + $0x180] sm:$0xff]
  %v5770 = vld [vmem:[%s5732 + $0x188] sm:$0xff]
  %v5771 = vld [vmem:[%s5732 + $0x190] sm:$0xff]
  %v5772 = vld [vmem:[%s5732 + $0x198] sm:$0xff]
  %v5773 = vld [vmem:[%s5732 + $0x1a0] sm:$0xff]
  %v5774 = vld [vmem:[%s5732 + $0x1a8] sm:$0xff]
  %v5775 = vld [vmem:[%s5732 + $0x1b0] sm:$0xff]
  %v5776 = vld [vmem:[%s5732 + $0x1b8] sm:$0xff]
  %v5777 = vld [vmem:[%s5732 + $0x1c0] sm:$0xff]
  %v5778 = vld [vmem:[%s5732 + $0x1c8] sm:$0xff]
  %v5779 = vld [vmem:[%s5732 + $0x1d0] sm:$0xff]
  %v5780 = vld [vmem:[%s5732 + $0x1d8] sm:$0xff]
  %v5781 = vld [vmem:[%s5732 + $0x1e0] sm:$0xff]
  %v5782 = vld [vmem:[%s5732 + $0x1e8] sm:$0xff]
  %v5783 = vld [vmem:[%s5732 + $0x1f0] sm:$0xff]
  %v5784 = vld [vmem:[%s5732 + $0x1f8] sm:$0xff]
  %v5785 = vld [vmem:[%s5732 + $0x200] sm:$0xff]
  %v5786 = vld [vmem:[%s5732 + $0x208] sm:$0xff]
  %v5787 = vld [vmem:[%s5732 + $0x210] sm:$0xff]
  %v5788 = vld [vmem:[%s5732 + $0x218] sm:$0xff]
  %v5789 = vld [vmem:[%s5732 + $0x220] sm:$0xff]
  %v5790 = vld [vmem:[%s5732 + $0x228] sm:$0xff]
  %v5791 = vld [vmem:[%s5732 + $0x230] sm:$0xff]
  %v5792 = vld [vmem:[%s5732 + $0x238] sm:$0xff]
  %v5793 = vld [vmem:[%s5732 + $0x240] sm:$0xff]
  %v5794 = vld [vmem:[%s5732 + $0x248] sm:$0xff]
  %v5795 = vld [vmem:[%s5732 + $0x250] sm:$0xff]
  %v5796 = vld [vmem:[%s5732 + $0x258] sm:$0xff]
  %s5797 = scalar_lea.vmem [#allocation4], 96
  %v5798 = vld [vmem:[%s5797] sm:$0xff]
  %v5799 = vld [vmem:[%s5797 + $0x8] sm:$0xff]
  %v5800 = vld [vmem:[%s5797 + $0x10] sm:$0xff]
  %v5801 = vld [vmem:[%s5797 + $0x18] sm:$0xff]
  %v5802 = vld [vmem:[%s5797 + $0x20] sm:$0xff]
  %v5803 = vld [vmem:[%s5797 + $0x28] sm:$0xff]
  %v5804 = vld [vmem:[%s5797 + $0x30] sm:$0xff]
  %v5805 = vld [vmem:[%s5797 + $0x38] sm:$0xff]
  %v5806 = vld [vmem:[%s5797 + $0x40] sm:$0xff]
  %v5807 = vld [vmem:[%s5797 + $0x48] sm:$0xff]
  %v5808 = vld [vmem:[%s5797 + $0x50] sm:$0xff]
  %v5809 = vld [vmem:[%s5797 + $0x58] sm:$0xff]
  %v5810 = vld [vmem:[%s5797 + $0x60] sm:$0xff]
  %v5811 = vld [vmem:[%s5797 + $0x68] sm:$0xff]
  %v5812 = vld [vmem:[%s5797 + $0x70] sm:$0xff]
  %v5813 = vld [vmem:[%s5797 + $0x78] sm:$0xff]
  %v5814 = vld [vmem:[%s5797 + $0x80] sm:$0xff]
  %v5815 = vld [vmem:[%s5797 + $0x88] sm:$0xff]
  %v5816 = vld [vmem:[%s5797 + $0x90] sm:$0xff]
  %v5817 = vld [vmem:[%s5797 + $0x98] sm:$0xff]
  %v5818 = vld [vmem:[%s5797 + $0xa0] sm:$0xff]
  %v5819 = vld [vmem:[%s5797 + $0xa8] sm:$0xff]
  %v5820 = vld [vmem:[%s5797 + $0xb0] sm:$0xff]
  %v5821 = vld [vmem:[%s5797 + $0xb8] sm:$0xff]
  %v5822 = vld [vmem:[%s5797 + $0xc0] sm:$0xff]
  %v5823 = vld [vmem:[%s5797 + $0xc8] sm:$0xff]
  %v5824 = vld [vmem:[%s5797 + $0xd0] sm:$0xff]
  %v5825 = vld [vmem:[%s5797 + $0xd8] sm:$0xff]
  %v5826 = vld [vmem:[%s5797 + $0xe0] sm:$0xff]
  %v5827 = vld [vmem:[%s5797 + $0xe8] sm:$0xff]
  %v5828 = vld [vmem:[%s5797 + $0xf0] sm:$0xff]
  %v5829 = vld [vmem:[%s5797 + $0xf8] sm:$0xff]
  %v5830 = vld [vmem:[%s5797 + $0x160] sm:$0xff]
  %v5831 = vld [vmem:[%s5797 + $0x168] sm:$0xff]
  %v5832 = vld [vmem:[%s5797 + $0x170] sm:$0xff]
  %v5833 = vld [vmem:[%s5797 + $0x178] sm:$0xff]
  %v5834 = vld [vmem:[%s5797 + $0x180] sm:$0xff]
  %v5835 = vld [vmem:[%s5797 + $0x188] sm:$0xff]
  %v5836 = vld [vmem:[%s5797 + $0x190] sm:$0xff]
  %v5837 = vld [vmem:[%s5797 + $0x198] sm:$0xff]
  %v5838 = vld [vmem:[%s5797 + $0x1a0] sm:$0xff]
  %v5839 = vld [vmem:[%s5797 + $0x1a8] sm:$0xff]
  %v5840 = vld [vmem:[%s5797 + $0x1b0] sm:$0xff]
  %v5841 = vld [vmem:[%s5797 + $0x1b8] sm:$0xff]
  %v5842 = vld [vmem:[%s5797 + $0x1c0] sm:$0xff]
  %v5843 = vld [vmem:[%s5797 + $0x1c8] sm:$0xff]
  %v5844 = vld [vmem:[%s5797 + $0x1d0] sm:$0xff]
  %v5845 = vld [vmem:[%s5797 + $0x1d8] sm:$0xff]
  %v5846 = vld [vmem:[%s5797 + $0x1e0] sm:$0xff]
  %v5847 = vld [vmem:[%s5797 + $0x1e8] sm:$0xff]
  %v5848 = vld [vmem:[%s5797 + $0x1f0] sm:$0xff]
  %v5849 = vld [vmem:[%s5797 + $0x1f8] sm:$0xff]
  %v5850 = vld [vmem:[%s5797 + $0x200] sm:$0xff]
  %v5851 = vld [vmem:[%s5797 + $0x208] sm:$0xff]
  %v5852 = vld [vmem:[%s5797 + $0x210] sm:$0xff]
  %v5853 = vld [vmem:[%s5797 + $0x218] sm:$0xff]
  %v5854 = vld [vmem:[%s5797 + $0x220] sm:$0xff]
  %v5855 = vld [vmem:[%s5797 + $0x228] sm:$0xff]
  %v5856 = vld [vmem:[%s5797 + $0x230] sm:$0xff]
  %v5857 = vld [vmem:[%s5797 + $0x238] sm:$0xff]
  %v5858 = vld [vmem:[%s5797 + $0x240] sm:$0xff]
  %v5859 = vld [vmem:[%s5797 + $0x248] sm:$0xff]
  %v5860 = vld [vmem:[%s5797 + $0x250] sm:$0xff]
  %v5861 = vld [vmem:[%s5797 + $0x258] sm:$0xff]
  %5926 = vrot.lane.b32.xlu0 %v5474, 8
  %v5927 = vpop.permute.xlu0 %5926
  %5928 = vrot.lane.b32.xlu0 %v5475, 8
  %v5929 = vpop.permute.xlu0 %5928
  %5930 = vrot.lane.b32.xlu0 %v5476, 8
  %v5931 = vpop.permute.xlu0 %5930
  %5932 = vrot.lane.b32.xlu0 %v5477, 8
  %v5933 = vpop.permute.xlu0 %5932
  %5934 = vrot.lane.b32.xlu0 %v5478, 8
  %v5935 = vpop.permute.xlu0 %5934
  %5936 = vrot.lane.b32.xlu0 %v5479, 8
  %v5937 = vpop.permute.xlu0 %5936
  %5938 = vrot.lane.b32.xlu0 %v5480, 8
  %v5939 = vpop.permute.xlu0 %5938
  %5940 = vrot.lane.b32.xlu0 %v5481, 8
  %v5941 = vpop.permute.xlu0 %5940
  %5942 = vrot.lane.b32.xlu0 %v5482, 8
  %v5943 = vpop.permute.xlu0 %5942
  %5944 = vrot.lane.b32.xlu0 %v5483, 8
  %v5945 = vpop.permute.xlu0 %5944
  %5946 = vrot.lane.b32.xlu0 %v5484, 8
  %v5947 = vpop.permute.xlu0 %5946
  %5948 = vrot.lane.b32.xlu0 %v5485, 8
  %v5949 = vpop.permute.xlu0 %5948
  %5950 = vrot.lane.b32.xlu0 %v5486, 8
  %v5951 = vpop.permute.xlu0 %5950
  %5952 = vrot.lane.b32.xlu0 %v5487, 8
  %v5953 = vpop.permute.xlu0 %5952
  %5954 = vrot.lane.b32.xlu0 %v5488, 8
  %v5955 = vpop.permute.xlu0 %5954
  %5956 = vrot.lane.b32.xlu0 %v5489, 8
  %v5957 = vpop.permute.xlu0 %5956
  %5958 = vrot.lane.b32.xlu0 %v5490, 8
  %v5959 = vpop.permute.xlu0 %5958
  %5960 = vrot.lane.b32.xlu0 %v5491, 8
  %v5961 = vpop.permute.xlu0 %5960
  %5962 = vrot.lane.b32.xlu0 %v5492, 8
  %v5963 = vpop.permute.xlu0 %5962
  %5964 = vrot.lane.b32.xlu0 %v5493, 8
  %v5965 = vpop.permute.xlu0 %5964
  %5966 = vrot.lane.b32.xlu0 %v5494, 8
  %v5967 = vpop.permute.xlu0 %5966
  %5968 = vrot.lane.b32.xlu0 %v5495, 8
  %v5969 = vpop.permute.xlu0 %5968
  %5970 = vrot.lane.b32.xlu0 %v5496, 8
  %v5971 = vpop.permute.xlu0 %5970
  %5972 = vrot.lane.b32.xlu0 %v5497, 8
  %v5973 = vpop.permute.xlu0 %5972
  %5974 = vrot.lane.b32.xlu0 %v5498, 8
  %v5975 = vpop.permute.xlu0 %5974
  %5976 = vrot.lane.b32.xlu0 %v5499, 8
  %v5977 = vpop.permute.xlu0 %5976
  %5978 = vrot.lane.b32.xlu0 %v5500, 8
  %v5979 = vpop.permute.xlu0 %5978
  %5980 = vrot.lane.b32.xlu0 %v5501, 8
  %v5981 = vpop.permute.xlu0 %5980
  %5982 = vrot.lane.b32.xlu0 %v5502, 8
  %v5983 = vpop.permute.xlu0 %5982
  %5984 = vrot.lane.b32.xlu0 %v5503, 8
  %v5985 = vpop.permute.xlu0 %5984
  %5986 = vrot.lane.b32.xlu0 %v5504, 8
  %v5987 = vpop.permute.xlu0 %5986
  %5988 = vrot.lane.b32.xlu0 %v5505, 8
  %v5989 = vpop.permute.xlu0 %5988
  %5990 = vrot.lane.b32.xlu0 %v5506, 8
  %v5991 = vpop.permute.xlu0 %5990
  %5992 = vrot.lane.b32.xlu0 %v5507, 8
  %v5993 = vpop.permute.xlu0 %5992
  %5994 = vrot.lane.b32.xlu0 %v5508, 8
  %v5995 = vpop.permute.xlu0 %5994
  %5996 = vrot.lane.b32.xlu0 %v5509, 8
  %v5997 = vpop.permute.xlu0 %5996
  %5998 = vrot.lane.b32.xlu0 %v5510, 8
  %v5999 = vpop.permute.xlu0 %5998
  %6000 = vrot.lane.b32.xlu0 %v5511, 8
  %v6001 = vpop.permute.xlu0 %6000
  %6002 = vrot.lane.b32.xlu0 %v5512, 8
  %v6003 = vpop.permute.xlu0 %6002
  %6004 = vrot.lane.b32.xlu0 %v5513, 8
  %v6005 = vpop.permute.xlu0 %6004
  %6006 = vrot.lane.b32.xlu0 %v5514, 8
  %v6007 = vpop.permute.xlu0 %6006
  %6008 = vrot.lane.b32.xlu0 %v5515, 8
  %v6009 = vpop.permute.xlu0 %6008
  %6010 = vrot.lane.b32.xlu0 %v5516, 8
  %v6011 = vpop.permute.xlu0 %6010
  %6012 = vrot.lane.b32.xlu0 %v5517, 8
  %v6013 = vpop.permute.xlu0 %6012
  %6014 = vrot.lane.b32.xlu0 %v5518, 8
  %v6015 = vpop.permute.xlu0 %6014
  %6016 = vrot.lane.b32.xlu0 %v5519, 8
  %v6017 = vpop.permute.xlu0 %6016
  %6018 = vrot.lane.b32.xlu0 %v5520, 8
  %v6019 = vpop.permute.xlu0 %6018
  %6020 = vrot.lane.b32.xlu0 %v5521, 8
  %v6021 = vpop.permute.xlu0 %6020
  %6022 = vrot.lane.b32.xlu0 %v5522, 8
  %v6023 = vpop.permute.xlu0 %6022
  %6024 = vrot.lane.b32.xlu0 %v5523, 8
  %v6025 = vpop.permute.xlu0 %6024
  %6026 = vrot.lane.b32.xlu0 %v5524, 8
  %v6027 = vpop.permute.xlu0 %6026
  %6028 = vrot.lane.b32.xlu0 %v5525, 8
  %v6029 = vpop.permute.xlu0 %6028
  %6030 = vrot.lane.b32.xlu0 %v5526, 8
  %v6031 = vpop.permute.xlu0 %6030
  %6032 = vrot.lane.b32.xlu0 %v5527, 8
  %v6033 = vpop.permute.xlu0 %6032
  %6034 = vrot.lane.b32.xlu0 %v5528, 8
  %v6035 = vpop.permute.xlu0 %6034
  %6036 = vrot.lane.b32.xlu0 %v5529, 8
  %v6037 = vpop.permute.xlu0 %6036
  %6038 = vrot.lane.b32.xlu0 %v5530, 8
  %v6039 = vpop.permute.xlu0 %6038
  %6040 = vrot.lane.b32.xlu0 %v5531, 8
  %v6041 = vpop.permute.xlu0 %6040
  %6042 = vrot.lane.b32.xlu0 %v5532, 8
  %v6043 = vpop.permute.xlu0 %6042
  %6044 = vrot.lane.b32.xlu0 %v5533, 8
  %v6045 = vpop.permute.xlu0 %6044
  %6046 = vrot.lane.b32.xlu0 %v5534, 8
  %v6047 = vpop.permute.xlu0 %6046
  %6048 = vrot.lane.b32.xlu0 %v5535, 8
  %v6049 = vpop.permute.xlu0 %6048
  %6050 = vrot.lane.b32.xlu0 %v5536, 8
  %v6051 = vpop.permute.xlu0 %6050
  %6052 = vrot.lane.b32.xlu0 %v5537, 8
  %v6053 = vpop.permute.xlu0 %6052
  %6182 = vrot.lane.b32.xlu0 %v5539, 16
  %v6183 = vpop.permute.xlu0 %6182
  %6184 = vrot.lane.b32.xlu0 %v5540, 16
  %v6185 = vpop.permute.xlu0 %6184
  %6186 = vrot.lane.b32.xlu0 %v5541, 16
  %v6187 = vpop.permute.xlu0 %6186
  %6188 = vrot.lane.b32.xlu0 %v5542, 16
  %v6189 = vpop.permute.xlu0 %6188
  %6190 = vrot.lane.b32.xlu0 %v5543, 16
  %v6191 = vpop.permute.xlu0 %6190
  %6192 = vrot.lane.b32.xlu0 %v5544, 16
  %v6193 = vpop.permute.xlu0 %6192
  %6194 = vrot.lane.b32.xlu0 %v5545, 16
  %v6195 = vpop.permute.xlu0 %6194
  %6196 = vrot.lane.b32.xlu0 %v5546, 16
  %v6197 = vpop.permute.xlu0 %6196
  %6198 = vrot.lane.b32.xlu0 %v5547, 16
  %v6199 = vpop.permute.xlu0 %6198
  %6200 = vrot.lane.b32.xlu0 %v5548, 16
  %v6201 = vpop.permute.xlu0 %6200
  %6202 = vrot.lane.b32.xlu0 %v5549, 16
  %v6203 = vpop.permute.xlu0 %6202
  %6204 = vrot.lane.b32.xlu0 %v5550, 16
  %v6205 = vpop.permute.xlu0 %6204
  %6206 = vrot.lane.b32.xlu0 %v5551, 16
  %v6207 = vpop.permute.xlu0 %6206
  %6208 = vrot.lane.b32.xlu0 %v5552, 16
  %v6209 = vpop.permute.xlu0 %6208
  %6210 = vrot.lane.b32.xlu0 %v5553, 16
  %v6211 = vpop.permute.xlu0 %6210
  %6212 = vrot.lane.b32.xlu0 %v5554, 16
  %v6213 = vpop.permute.xlu0 %6212
  %6214 = vrot.lane.b32.xlu0 %v5555, 16
  %v6215 = vpop.permute.xlu0 %6214
  %6216 = vrot.lane.b32.xlu0 %v5556, 16
  %v6217 = vpop.permute.xlu0 %6216
  %6218 = vrot.lane.b32.xlu0 %v5557, 16
  %v6219 = vpop.permute.xlu0 %6218
  %6220 = vrot.lane.b32.xlu0 %v5558, 16
  %v6221 = vpop.permute.xlu0 %6220
  %6222 = vrot.lane.b32.xlu0 %v5559, 16
  %v6223 = vpop.permute.xlu0 %6222
  %6224 = vrot.lane.b32.xlu0 %v5560, 16
  %v6225 = vpop.permute.xlu0 %6224
  %6226 = vrot.lane.b32.xlu0 %v5561, 16
  %v6227 = vpop.permute.xlu0 %6226
  %6228 = vrot.lane.b32.xlu0 %v5562, 16
  %v6229 = vpop.permute.xlu0 %6228
  %6230 = vrot.lane.b32.xlu0 %v5563, 16
  %v6231 = vpop.permute.xlu0 %6230
  %6232 = vrot.lane.b32.xlu0 %v5564, 16
  %v6233 = vpop.permute.xlu0 %6232
  %6234 = vrot.lane.b32.xlu0 %v5565, 16
  %v6235 = vpop.permute.xlu0 %6234
  %6236 = vrot.lane.b32.xlu0 %v5566, 16
  %v6237 = vpop.permute.xlu0 %6236
  %6238 = vrot.lane.b32.xlu0 %v5567, 16
  %v6239 = vpop.permute.xlu0 %6238
  %6240 = vrot.lane.b32.xlu0 %v5568, 16
  %v6241 = vpop.permute.xlu0 %6240
  %6242 = vrot.lane.b32.xlu0 %v5569, 16
  %v6243 = vpop.permute.xlu0 %6242
  %6244 = vrot.lane.b32.xlu0 %v5570, 16
  %v6245 = vpop.permute.xlu0 %6244
  %6246 = vrot.lane.b32.xlu0 %v5571, 16
  %v6247 = vpop.permute.xlu0 %6246
  %6248 = vrot.lane.b32.xlu0 %v5572, 16
  %v6249 = vpop.permute.xlu0 %6248
  %6250 = vrot.lane.b32.xlu0 %v5573, 16
  %v6251 = vpop.permute.xlu0 %6250
  %6252 = vrot.lane.b32.xlu0 %v5574, 16
  %v6253 = vpop.permute.xlu0 %6252
  %6254 = vrot.lane.b32.xlu0 %v5575, 16
  %v6255 = vpop.permute.xlu0 %6254
  %6256 = vrot.lane.b32.xlu0 %v5576, 16
  %v6257 = vpop.permute.xlu0 %6256
  %6258 = vrot.lane.b32.xlu0 %v5577, 16
  %v6259 = vpop.permute.xlu0 %6258
  %6260 = vrot.lane.b32.xlu0 %v5578, 16
  %v6261 = vpop.permute.xlu0 %6260
  %6262 = vrot.lane.b32.xlu0 %v5579, 16
  %v6263 = vpop.permute.xlu0 %6262
  %6264 = vrot.lane.b32.xlu0 %v5580, 16
  %v6265 = vpop.permute.xlu0 %6264
  %6266 = vrot.lane.b32.xlu0 %v5581, 16
  %v6267 = vpop.permute.xlu0 %6266
  %6268 = vrot.lane.b32.xlu0 %v5582, 16
  %v6269 = vpop.permute.xlu0 %6268
  %6270 = vrot.lane.b32.xlu0 %v5583, 16
  %v6271 = vpop.permute.xlu0 %6270
  %6272 = vrot.lane.b32.xlu0 %v5584, 16
  %v6273 = vpop.permute.xlu0 %6272
  %6274 = vrot.lane.b32.xlu0 %v5585, 16
  %v6275 = vpop.permute.xlu0 %6274
  %6276 = vrot.lane.b32.xlu0 %v5586, 16
  %v6277 = vpop.permute.xlu0 %6276
  %6278 = vrot.lane.b32.xlu0 %v5587, 16
  %v6279 = vpop.permute.xlu0 %6278
  %6280 = vrot.lane.b32.xlu0 %v5588, 16
  %v6281 = vpop.permute.xlu0 %6280
  %6282 = vrot.lane.b32.xlu0 %v5589, 16
  %v6283 = vpop.permute.xlu0 %6282
  %6284 = vrot.lane.b32.xlu0 %v5590, 16
  %v6285 = vpop.permute.xlu0 %6284
  %6286 = vrot.lane.b32.xlu0 %v5591, 16
  %v6287 = vpop.permute.xlu0 %6286
  %6288 = vrot.lane.b32.xlu0 %v5592, 16
  %v6289 = vpop.permute.xlu0 %6288
  %6290 = vrot.lane.b32.xlu0 %v5593, 16
  %v6291 = vpop.permute.xlu0 %6290
  %6292 = vrot.lane.b32.xlu0 %v5594, 16
  %v6293 = vpop.permute.xlu0 %6292
  %6294 = vrot.lane.b32.xlu0 %v5595, 16
  %v6295 = vpop.permute.xlu0 %6294
  %6296 = vrot.lane.b32.xlu0 %v5596, 16
  %v6297 = vpop.permute.xlu0 %6296
  %6298 = vrot.lane.b32.xlu0 %v5597, 16
  %v6299 = vpop.permute.xlu0 %6298
  %6300 = vrot.lane.b32.xlu0 %v5598, 16
  %v6301 = vpop.permute.xlu0 %6300
  %6302 = vrot.lane.b32.xlu0 %v5599, 16
  %v6303 = vpop.permute.xlu0 %6302
  %6304 = vrot.lane.b32.xlu0 %v5600, 16
  %v6305 = vpop.permute.xlu0 %6304
  %6306 = vrot.lane.b32.xlu0 %v5601, 16
  %v6307 = vpop.permute.xlu0 %6306
  %6308 = vrot.lane.b32.xlu0 %v5602, 16
  %v6309 = vpop.permute.xlu0 %6308
  %6438 = vrot.lane.b32.xlu0 %v5603, 24
  %v6439 = vpop.permute.xlu0 %6438
  %6440 = vrot.lane.b32.xlu0 %v5604, 24
  %v6441 = vpop.permute.xlu0 %6440
  %6442 = vrot.lane.b32.xlu0 %v5605, 24
  %v6443 = vpop.permute.xlu0 %6442
  %6444 = vrot.lane.b32.xlu0 %v5606, 24
  %v6445 = vpop.permute.xlu0 %6444
  %6446 = vrot.lane.b32.xlu0 %v5607, 24
  %v6447 = vpop.permute.xlu0 %6446
  %6448 = vrot.lane.b32.xlu0 %v5608, 24
  %v6449 = vpop.permute.xlu0 %6448
  %6450 = vrot.lane.b32.xlu0 %v5609, 24
  %v6451 = vpop.permute.xlu0 %6450
  %6452 = vrot.lane.b32.xlu0 %v5610, 24
  %v6453 = vpop.permute.xlu0 %6452
  %6454 = vrot.lane.b32.xlu0 %v5611, 24
  %v6455 = vpop.permute.xlu0 %6454
  %6456 = vrot.lane.b32.xlu0 %v5612, 24
  %v6457 = vpop.permute.xlu0 %6456
  %6458 = vrot.lane.b32.xlu0 %v5613, 24
  %v6459 = vpop.permute.xlu0 %6458
  %6460 = vrot.lane.b32.xlu0 %v5614, 24
  %v6461 = vpop.permute.xlu0 %6460
  %6462 = vrot.lane.b32.xlu0 %v5615, 24
  %v6463 = vpop.permute.xlu0 %6462
  %6464 = vrot.lane.b32.xlu0 %v5616, 24
  %v6465 = vpop.permute.xlu0 %6464
  %6466 = vrot.lane.b32.xlu0 %v5617, 24
  %v6467 = vpop.permute.xlu0 %6466
  %6468 = vrot.lane.b32.xlu0 %v5618, 24
  %v6469 = vpop.permute.xlu0 %6468
  %6470 = vrot.lane.b32.xlu0 %v5619, 24
  %v6471 = vpop.permute.xlu0 %6470
  %6472 = vrot.lane.b32.xlu0 %v5620, 24
  %v6473 = vpop.permute.xlu0 %6472
  %6474 = vrot.lane.b32.xlu0 %v5621, 24
  %v6475 = vpop.permute.xlu0 %6474
  %6476 = vrot.lane.b32.xlu0 %v5622, 24
  %v6477 = vpop.permute.xlu0 %6476
  %6478 = vrot.lane.b32.xlu0 %v5623, 24
  %v6479 = vpop.permute.xlu0 %6478
  %6480 = vrot.lane.b32.xlu0 %v5624, 24
  %v6481 = vpop.permute.xlu0 %6480
  %6482 = vrot.lane.b32.xlu0 %v5625, 24
  %v6483 = vpop.permute.xlu0 %6482
  %6484 = vrot.lane.b32.xlu0 %v5626, 24
  %v6485 = vpop.permute.xlu0 %6484
  %6486 = vrot.lane.b32.xlu0 %v5627, 24
  %v6487 = vpop.permute.xlu0 %6486
  %6488 = vrot.lane.b32.xlu0 %v5628, 24
  %v6489 = vpop.permute.xlu0 %6488
  %6490 = vrot.lane.b32.xlu0 %v5629, 24
  %v6491 = vpop.permute.xlu0 %6490
  %6492 = vrot.lane.b32.xlu0 %v5630, 24
  %v6493 = vpop.permute.xlu0 %6492
  %6494 = vrot.lane.b32.xlu0 %v5631, 24
  %v6495 = vpop.permute.xlu0 %6494
  %6496 = vrot.lane.b32.xlu0 %v5632, 24
  %v6497 = vpop.permute.xlu0 %6496
  %6498 = vrot.lane.b32.xlu0 %v5633, 24
  %v6499 = vpop.permute.xlu0 %6498
  %6500 = vrot.lane.b32.xlu0 %v5634, 24
  %v6501 = vpop.permute.xlu0 %6500
  %6502 = vrot.lane.b32.xlu0 %v5635, 24
  %v6503 = vpop.permute.xlu0 %6502
  %6504 = vrot.lane.b32.xlu0 %v5636, 24
  %v6505 = vpop.permute.xlu0 %6504
  %6506 = vrot.lane.b32.xlu0 %v5637, 24
  %v6507 = vpop.permute.xlu0 %6506
  %6508 = vrot.lane.b32.xlu0 %v5638, 24
  %v6509 = vpop.permute.xlu0 %6508
  %6510 = vrot.lane.b32.xlu0 %v5639, 24
  %v6511 = vpop.permute.xlu0 %6510
  %6512 = vrot.lane.b32.xlu0 %v5640, 24
  %v6513 = vpop.permute.xlu0 %6512
  %6514 = vrot.lane.b32.xlu0 %v5641, 24
  %v6515 = vpop.permute.xlu0 %6514
  %6516 = vrot.lane.b32.xlu0 %v5642, 24
  %v6517 = vpop.permute.xlu0 %6516
  %6518 = vrot.lane.b32.xlu0 %v5643, 24
  %v6519 = vpop.permute.xlu0 %6518
  %6520 = vrot.lane.b32.xlu0 %v5644, 24
  %v6521 = vpop.permute.xlu0 %6520
  %6522 = vrot.lane.b32.xlu0 %v5645, 24
  %v6523 = vpop.permute.xlu0 %6522
  %6524 = vrot.lane.b32.xlu0 %v5646, 24
  %v6525 = vpop.permute.xlu0 %6524
  %6526 = vrot.lane.b32.xlu0 %v5647, 24
  %v6527 = vpop.permute.xlu0 %6526
  %6528 = vrot.lane.b32.xlu0 %v5648, 24
  %v6529 = vpop.permute.xlu0 %6528
  %6530 = vrot.lane.b32.xlu0 %v5649, 24
  %v6531 = vpop.permute.xlu0 %6530
  %6532 = vrot.lane.b32.xlu0 %v5650, 24
  %v6533 = vpop.permute.xlu0 %6532
  %6534 = vrot.lane.b32.xlu0 %v5651, 24
  %v6535 = vpop.permute.xlu0 %6534
  %6536 = vrot.lane.b32.xlu0 %v5652, 24
  %v6537 = vpop.permute.xlu0 %6536
  %6538 = vrot.lane.b32.xlu0 %v5653, 24
  %v6539 = vpop.permute.xlu0 %6538
  %6540 = vrot.lane.b32.xlu0 %v5654, 24
  %v6541 = vpop.permute.xlu0 %6540
  %6542 = vrot.lane.b32.xlu0 %v5655, 24
  %v6543 = vpop.permute.xlu0 %6542
  %6544 = vrot.lane.b32.xlu0 %v5656, 24
  %v6545 = vpop.permute.xlu0 %6544
  %6546 = vrot.lane.b32.xlu0 %v5657, 24
  %v6547 = vpop.permute.xlu0 %6546
  %6548 = vrot.lane.b32.xlu0 %v5658, 24
  %v6549 = vpop.permute.xlu0 %6548
  %6550 = vrot.lane.b32.xlu0 %v5659, 24
  %v6551 = vpop.permute.xlu0 %6550
  %6552 = vrot.lane.b32.xlu0 %v5660, 24
  %v6553 = vpop.permute.xlu0 %6552
  %6554 = vrot.lane.b32.xlu0 %v5661, 24
  %v6555 = vpop.permute.xlu0 %6554
  %6556 = vrot.lane.b32.xlu0 %v5662, 24
  %v6557 = vpop.permute.xlu0 %6556
  %6558 = vrot.lane.b32.xlu0 %v5663, 24
  %v6559 = vpop.permute.xlu0 %6558
  %6560 = vrot.lane.b32.xlu0 %v5664, 24
  %v6561 = vpop.permute.xlu0 %6560
  %6562 = vrot.lane.b32.xlu0 %v5665, 24
  %v6563 = vpop.permute.xlu0 %6562
  %6564 = vrot.lane.b32.xlu0 %v5666, 24
  %v6565 = vpop.permute.xlu0 %6564
  %6694 = vrot.lane.b32.xlu0 %v5668, 32
  %v6695 = vpop.permute.xlu0 %6694
  %6696 = vrot.lane.b32.xlu0 %v5669, 32
  %v6697 = vpop.permute.xlu0 %6696
  %6698 = vrot.lane.b32.xlu0 %v5670, 32
  %v6699 = vpop.permute.xlu0 %6698
  %6700 = vrot.lane.b32.xlu0 %v5671, 32
  %v6701 = vpop.permute.xlu0 %6700
  %6702 = vrot.lane.b32.xlu0 %v5672, 32
  %v6703 = vpop.permute.xlu0 %6702
  %6704 = vrot.lane.b32.xlu0 %v5673, 32
  %v6705 = vpop.permute.xlu0 %6704
  %6706 = vrot.lane.b32.xlu0 %v5674, 32
  %v6707 = vpop.permute.xlu0 %6706
  %6708 = vrot.lane.b32.xlu0 %v5675, 32
  %v6709 = vpop.permute.xlu0 %6708
  %6710 = vrot.lane.b32.xlu0 %v5676, 32
  %v6711 = vpop.permute.xlu0 %6710
  %6712 = vrot.lane.b32.xlu0 %v5677, 32
  %v6713 = vpop.permute.xlu0 %6712
  %6714 = vrot.lane.b32.xlu0 %v5678, 32
  %v6715 = vpop.permute.xlu0 %6714
  %6716 = vrot.lane.b32.xlu0 %v5679, 32
  %v6717 = vpop.permute.xlu0 %6716
  %6718 = vrot.lane.b32.xlu0 %v5680, 32
  %v6719 = vpop.permute.xlu0 %6718
  %6720 = vrot.lane.b32.xlu0 %v5681, 32
  %v6721 = vpop.permute.xlu0 %6720
  %6722 = vrot.lane.b32.xlu0 %v5682, 32
  %v6723 = vpop.permute.xlu0 %6722
  %6724 = vrot.lane.b32.xlu0 %v5683, 32
  %v6725 = vpop.permute.xlu0 %6724
  %6726 = vrot.lane.b32.xlu0 %v5684, 32
  %v6727 = vpop.permute.xlu0 %6726
  %6728 = vrot.lane.b32.xlu0 %v5685, 32
  %v6729 = vpop.permute.xlu0 %6728
  %6730 = vrot.lane.b32.xlu0 %v5686, 32
  %v6731 = vpop.permute.xlu0 %6730
  %6732 = vrot.lane.b32.xlu0 %v5687, 32
  %v6733 = vpop.permute.xlu0 %6732
  %6734 = vrot.lane.b32.xlu0 %v5688, 32
  %v6735 = vpop.permute.xlu0 %6734
  %6736 = vrot.lane.b32.xlu0 %v5689, 32
  %v6737 = vpop.permute.xlu0 %6736
  %6738 = vrot.lane.b32.xlu0 %v5690, 32
  %v6739 = vpop.permute.xlu0 %6738
  %6740 = vrot.lane.b32.xlu0 %v5691, 32
  %v6741 = vpop.permute.xlu0 %6740
  %6742 = vrot.lane.b32.xlu0 %v5692, 32
  %v6743 = vpop.permute.xlu0 %6742
  %6744 = vrot.lane.b32.xlu0 %v5693, 32
  %v6745 = vpop.permute.xlu0 %6744
  %6746 = vrot.lane.b32.xlu0 %v5694, 32
  %v6747 = vpop.permute.xlu0 %6746
  %6748 = vrot.lane.b32.xlu0 %v5695, 32
  %v6749 = vpop.permute.xlu0 %6748
  %6750 = vrot.lane.b32.xlu0 %v5696, 32
  %v6751 = vpop.permute.xlu0 %6750
  %6752 = vrot.lane.b32.xlu0 %v5697, 32
  %v6753 = vpop.permute.xlu0 %6752
  %6754 = vrot.lane.b32.xlu0 %v5698, 32
  %v6755 = vpop.permute.xlu0 %6754
  %6756 = vrot.lane.b32.xlu0 %v5699, 32
  %v6757 = vpop.permute.xlu0 %6756
  %6758 = vrot.lane.b32.xlu0 %v5700, 32
  %v6759 = vpop.permute.xlu0 %6758
  %6760 = vrot.lane.b32.xlu0 %v5701, 32
  %v6761 = vpop.permute.xlu0 %6760
  %6762 = vrot.lane.b32.xlu0 %v5702, 32
  %v6763 = vpop.permute.xlu0 %6762
  %6764 = vrot.lane.b32.xlu0 %v5703, 32
  %v6765 = vpop.permute.xlu0 %6764
  %6766 = vrot.lane.b32.xlu0 %v5704, 32
  %v6767 = vpop.permute.xlu0 %6766
  %6768 = vrot.lane.b32.xlu0 %v5705, 32
  %v6769 = vpop.permute.xlu0 %6768
  %6770 = vrot.lane.b32.xlu0 %v5706, 32
  %v6771 = vpop.permute.xlu0 %6770
  %6772 = vrot.lane.b32.xlu0 %v5707, 32
  %v6773 = vpop.permute.xlu0 %6772
  %6774 = vrot.lane.b32.xlu0 %v5708, 32
  %v6775 = vpop.permute.xlu0 %6774
  %6776 = vrot.lane.b32.xlu0 %v5709, 32
  %v6777 = vpop.permute.xlu0 %6776
  %6778 = vrot.lane.b32.xlu0 %v5710, 32
  %v6779 = vpop.permute.xlu0 %6778
  %6780 = vrot.lane.b32.xlu0 %v5711, 32
  %v6781 = vpop.permute.xlu0 %6780
  %6782 = vrot.lane.b32.xlu0 %v5712, 32
  %v6783 = vpop.permute.xlu0 %6782
  %6784 = vrot.lane.b32.xlu0 %v5713, 32
  %v6785 = vpop.permute.xlu0 %6784
  %6786 = vrot.lane.b32.xlu0 %v5714, 32
  %v6787 = vpop.permute.xlu0 %6786
  %6788 = vrot.lane.b32.xlu0 %v5715, 32
  %v6789 = vpop.permute.xlu0 %6788
  %6790 = vrot.lane.b32.xlu0 %v5716, 32
  %v6791 = vpop.permute.xlu0 %6790
  %6792 = vrot.lane.b32.xlu0 %v5717, 32
  %v6793 = vpop.permute.xlu0 %6792
  %6794 = vrot.lane.b32.xlu0 %v5718, 32
  %v6795 = vpop.permute.xlu0 %6794
  %6796 = vrot.lane.b32.xlu0 %v5719, 32
  %v6797 = vpop.permute.xlu0 %6796
  %6798 = vrot.lane.b32.xlu0 %v5720, 32
  %v6799 = vpop.permute.xlu0 %6798
  %6800 = vrot.lane.b32.xlu0 %v5721, 32
  %v6801 = vpop.permute.xlu0 %6800
  %6802 = vrot.lane.b32.xlu0 %v5722, 32
  %v6803 = vpop.permute.xlu0 %6802
  %6804 = vrot.lane.b32.xlu0 %v5723, 32
  %v6805 = vpop.permute.xlu0 %6804
  %6806 = vrot.lane.b32.xlu0 %v5724, 32
  %v6807 = vpop.permute.xlu0 %6806
  %6808 = vrot.lane.b32.xlu0 %v5725, 32
  %v6809 = vpop.permute.xlu0 %6808
  %6810 = vrot.lane.b32.xlu0 %v5726, 32
  %v6811 = vpop.permute.xlu0 %6810
  %6812 = vrot.lane.b32.xlu0 %v5727, 32
  %v6813 = vpop.permute.xlu0 %6812
  %6814 = vrot.lane.b32.xlu0 %v5728, 32
  %v6815 = vpop.permute.xlu0 %6814
  %6816 = vrot.lane.b32.xlu0 %v5729, 32
  %v6817 = vpop.permute.xlu0 %6816
  %6818 = vrot.lane.b32.xlu0 %v5730, 32
  %v6819 = vpop.permute.xlu0 %6818
  %6820 = vrot.lane.b32.xlu0 %v5731, 32
  %v6821 = vpop.permute.xlu0 %6820
  %6950 = vrot.lane.b32.xlu0 %v5733, 40
  %v6951 = vpop.permute.xlu0 %6950
  %6952 = vrot.lane.b32.xlu0 %v5734, 40
  %v6953 = vpop.permute.xlu0 %6952
  %6954 = vrot.lane.b32.xlu0 %v5735, 40
  %v6955 = vpop.permute.xlu0 %6954
  %6956 = vrot.lane.b32.xlu0 %v5736, 40
  %v6957 = vpop.permute.xlu0 %6956
  %6958 = vrot.lane.b32.xlu0 %v5737, 40
  %v6959 = vpop.permute.xlu0 %6958
  %6960 = vrot.lane.b32.xlu0 %v5738, 40
  %v6961 = vpop.permute.xlu0 %6960
  %6962 = vrot.lane.b32.xlu0 %v5739, 40
  %v6963 = vpop.permute.xlu0 %6962
  %6964 = vrot.lane.b32.xlu0 %v5740, 40
  %v6965 = vpop.permute.xlu0 %6964
  %6966 = vrot.lane.b32.xlu0 %v5741, 40
  %v6967 = vpop.permute.xlu0 %6966
  %6968 = vrot.lane.b32.xlu0 %v5742, 40
  %v6969 = vpop.permute.xlu0 %6968
  %6970 = vrot.lane.b32.xlu0 %v5743, 40
  %v6971 = vpop.permute.xlu0 %6970
  %6972 = vrot.lane.b32.xlu0 %v5744, 40
  %v6973 = vpop.permute.xlu0 %6972
  %6974 = vrot.lane.b32.xlu0 %v5745, 40
  %v6975 = vpop.permute.xlu0 %6974
  %6976 = vrot.lane.b32.xlu0 %v5746, 40
  %v6977 = vpop.permute.xlu0 %6976
  %6978 = vrot.lane.b32.xlu0 %v5747, 40
  %v6979 = vpop.permute.xlu0 %6978
  %6980 = vrot.lane.b32.xlu0 %v5748, 40
  %v6981 = vpop.permute.xlu0 %6980
  %6982 = vrot.lane.b32.xlu0 %v5749, 40
  %v6983 = vpop.permute.xlu0 %6982
  %6984 = vrot.lane.b32.xlu0 %v5750, 40
  %v6985 = vpop.permute.xlu0 %6984
  %6986 = vrot.lane.b32.xlu0 %v5751, 40
  %v6987 = vpop.permute.xlu0 %6986
  %6988 = vrot.lane.b32.xlu0 %v5752, 40
  %v6989 = vpop.permute.xlu0 %6988
  %6990 = vrot.lane.b32.xlu0 %v5753, 40
  %v6991 = vpop.permute.xlu0 %6990
  %6992 = vrot.lane.b32.xlu0 %v5754, 40
  %v6993 = vpop.permute.xlu0 %6992
  %6994 = vrot.lane.b32.xlu0 %v5755, 40
  %v6995 = vpop.permute.xlu0 %6994
  %6996 = vrot.lane.b32.xlu0 %v5756, 40
  %v6997 = vpop.permute.xlu0 %6996
  %6998 = vrot.lane.b32.xlu0 %v5757, 40
  %v6999 = vpop.permute.xlu0 %6998
  %7000 = vrot.lane.b32.xlu0 %v5758, 40
  %v7001 = vpop.permute.xlu0 %7000
  %7002 = vrot.lane.b32.xlu0 %v5759, 40
  %v7003 = vpop.permute.xlu0 %7002
  %7004 = vrot.lane.b32.xlu0 %v5760, 40
  %v7005 = vpop.permute.xlu0 %7004
  %7006 = vrot.lane.b32.xlu0 %v5761, 40
  %v7007 = vpop.permute.xlu0 %7006
  %7008 = vrot.lane.b32.xlu0 %v5762, 40
  %v7009 = vpop.permute.xlu0 %7008
  %7010 = vrot.lane.b32.xlu0 %v5763, 40
  %v7011 = vpop.permute.xlu0 %7010
  %7012 = vrot.lane.b32.xlu0 %v5764, 40
  %v7013 = vpop.permute.xlu0 %7012
  %7014 = vrot.lane.b32.xlu0 %v5765, 40
  %v7015 = vpop.permute.xlu0 %7014
  %7016 = vrot.lane.b32.xlu0 %v5766, 40
  %v7017 = vpop.permute.xlu0 %7016
  %7018 = vrot.lane.b32.xlu0 %v5767, 40
  %v7019 = vpop.permute.xlu0 %7018
  %7020 = vrot.lane.b32.xlu0 %v5768, 40
  %v7021 = vpop.permute.xlu0 %7020
  %7022 = vrot.lane.b32.xlu0 %v5769, 40
  %v7023 = vpop.permute.xlu0 %7022
  %7024 = vrot.lane.b32.xlu0 %v5770, 40
  %v7025 = vpop.permute.xlu0 %7024
  %7026 = vrot.lane.b32.xlu0 %v5771, 40
  %v7027 = vpop.permute.xlu0 %7026
  %7028 = vrot.lane.b32.xlu0 %v5772, 40
  %v7029 = vpop.permute.xlu0 %7028
  %7030 = vrot.lane.b32.xlu0 %v5773, 40
  %v7031 = vpop.permute.xlu0 %7030
  %7032 = vrot.lane.b32.xlu0 %v5774, 40
  %v7033 = vpop.permute.xlu0 %7032
  %7034 = vrot.lane.b32.xlu0 %v5775, 40
  %v7035 = vpop.permute.xlu0 %7034
  %7036 = vrot.lane.b32.xlu0 %v5776, 40
  %v7037 = vpop.permute.xlu0 %7036
  %7038 = vrot.lane.b32.xlu0 %v5777, 40
  %v7039 = vpop.permute.xlu0 %7038
  %7040 = vrot.lane.b32.xlu0 %v5778, 40
  %v7041 = vpop.permute.xlu0 %7040
  %7042 = vrot.lane.b32.xlu0 %v5779, 40
  %v7043 = vpop.permute.xlu0 %7042
  %7044 = vrot.lane.b32.xlu0 %v5780, 40
  %v7045 = vpop.permute.xlu0 %7044
  %7046 = vrot.lane.b32.xlu0 %v5781, 40
  %v7047 = vpop.permute.xlu0 %7046
  %7048 = vrot.lane.b32.xlu0 %v5782, 40
  %v7049 = vpop.permute.xlu0 %7048
  %7050 = vrot.lane.b32.xlu0 %v5783, 40
  %v7051 = vpop.permute.xlu0 %7050
  %7052 = vrot.lane.b32.xlu0 %v5784, 40
  %v7053 = vpop.permute.xlu0 %7052
  %7054 = vrot.lane.b32.xlu0 %v5785, 40
  %v7055 = vpop.permute.xlu0 %7054
  %7056 = vrot.lane.b32.xlu0 %v5786, 40
  %v7057 = vpop.permute.xlu0 %7056
  %7058 = vrot.lane.b32.xlu0 %v5787, 40
  %v7059 = vpop.permute.xlu0 %7058
  %7060 = vrot.lane.b32.xlu0 %v5788, 40
  %v7061 = vpop.permute.xlu0 %7060
  %7062 = vrot.lane.b32.xlu0 %v5789, 40
  %v7063 = vpop.permute.xlu0 %7062
  %7064 = vrot.lane.b32.xlu0 %v5790, 40
  %v7065 = vpop.permute.xlu0 %7064
  %7066 = vrot.lane.b32.xlu0 %v5791, 40
  %v7067 = vpop.permute.xlu0 %7066
  %7068 = vrot.lane.b32.xlu0 %v5792, 40
  %v7069 = vpop.permute.xlu0 %7068
  %7070 = vrot.lane.b32.xlu0 %v5793, 40
  %v7071 = vpop.permute.xlu0 %7070
  %7072 = vrot.lane.b32.xlu0 %v5794, 40
  %v7073 = vpop.permute.xlu0 %7072
  %7074 = vrot.lane.b32.xlu0 %v5795, 40
  %v7075 = vpop.permute.xlu0 %7074
  %7076 = vrot.lane.b32.xlu0 %v5796, 40
  %v7077 = vpop.permute.xlu0 %7076
  %7206 = vrot.lane.b32.xlu0 %v5798, 48
  %v7207 = vpop.permute.xlu0 %7206
  %7208 = vrot.lane.b32.xlu0 %v5799, 48
  %v7209 = vpop.permute.xlu0 %7208
  %7210 = vrot.lane.b32.xlu0 %v5800, 48
  %v7211 = vpop.permute.xlu0 %7210
  %7212 = vrot.lane.b32.xlu0 %v5801, 48
  %v7213 = vpop.permute.xlu0 %7212
  %7214 = vrot.lane.b32.xlu0 %v5802, 48
  %v7215 = vpop.permute.xlu0 %7214
  %7216 = vrot.lane.b32.xlu0 %v5803, 48
  %v7217 = vpop.permute.xlu0 %7216
  %7218 = vrot.lane.b32.xlu0 %v5804, 48
  %v7219 = vpop.permute.xlu0 %7218
  %7220 = vrot.lane.b32.xlu0 %v5805, 48
  %v7221 = vpop.permute.xlu0 %7220
  %7222 = vrot.lane.b32.xlu0 %v5806, 48
  %v7223 = vpop.permute.xlu0 %7222
  %7224 = vrot.lane.b32.xlu0 %v5807, 48
  %v7225 = vpop.permute.xlu0 %7224
  %7226 = vrot.lane.b32.xlu0 %v5808, 48
  %v7227 = vpop.permute.xlu0 %7226
  %7228 = vrot.lane.b32.xlu0 %v5809, 48
  %v7229 = vpop.permute.xlu0 %7228
  %7230 = vrot.lane.b32.xlu0 %v5810, 48
  %v7231 = vpop.permute.xlu0 %7230
  %7232 = vrot.lane.b32.xlu0 %v5811, 48
  %v7233 = vpop.permute.xlu0 %7232
  %7234 = vrot.lane.b32.xlu0 %v5812, 48
  %v7235 = vpop.permute.xlu0 %7234
  %7236 = vrot.lane.b32.xlu0 %v5813, 48
  %v7237 = vpop.permute.xlu0 %7236
  %7238 = vrot.lane.b32.xlu0 %v5814, 48
  %v7239 = vpop.permute.xlu0 %7238
  %7240 = vrot.lane.b32.xlu0 %v5815, 48
  %v7241 = vpop.permute.xlu0 %7240
  %7242 = vrot.lane.b32.xlu0 %v5816, 48
  %v7243 = vpop.permute.xlu0 %7242
  %7244 = vrot.lane.b32.xlu0 %v5817, 48
  %v7245 = vpop.permute.xlu0 %7244
  %7246 = vrot.lane.b32.xlu0 %v5818, 48
  %v7247 = vpop.permute.xlu0 %7246
  %7248 = vrot.lane.b32.xlu0 %v5819, 48
  %v7249 = vpop.permute.xlu0 %7248
  %7250 = vrot.lane.b32.xlu0 %v5820, 48
  %v7251 = vpop.permute.xlu0 %7250
  %7252 = vrot.lane.b32.xlu0 %v5821, 48
  %v7253 = vpop.permute.xlu0 %7252
  %7254 = vrot.lane.b32.xlu0 %v5822, 48
  %v7255 = vpop.permute.xlu0 %7254
  %7256 = vrot.lane.b32.xlu0 %v5823, 48
  %v7257 = vpop.permute.xlu0 %7256
  %7258 = vrot.lane.b32.xlu0 %v5824, 48
  %v7259 = vpop.permute.xlu0 %7258
  %7260 = vrot.lane.b32.xlu0 %v5825, 48
  %v7261 = vpop.permute.xlu0 %7260
  %7262 = vrot.lane.b32.xlu0 %v5826, 48
  %v7263 = vpop.permute.xlu0 %7262
  %7264 = vrot.lane.b32.xlu0 %v5827, 48
  %v7265 = vpop.permute.xlu0 %7264
  %7266 = vrot.lane.b32.xlu0 %v5828, 48
  %v7267 = vpop.permute.xlu0 %7266
  %7268 = vrot.lane.b32.xlu0 %v5829, 48
  %v7269 = vpop.permute.xlu0 %7268
  %7270 = vrot.lane.b32.xlu0 %v5830, 48
  %v7271 = vpop.permute.xlu0 %7270
  %7272 = vrot.lane.b32.xlu0 %v5831, 48
  %v7273 = vpop.permute.xlu0 %7272
  %7274 = vrot.lane.b32.xlu0 %v5832, 48
  %v7275 = vpop.permute.xlu0 %7274
  %7276 = vrot.lane.b32.xlu0 %v5833, 48
  %v7277 = vpop.permute.xlu0 %7276
  %7278 = vrot.lane.b32.xlu0 %v5834, 48
  %v7279 = vpop.permute.xlu0 %7278
  %7280 = vrot.lane.b32.xlu0 %v5835, 48
  %v7281 = vpop.permute.xlu0 %7280
  %7282 = vrot.lane.b32.xlu0 %v5836, 48
  %v7283 = vpop.permute.xlu0 %7282
  %7284 = vrot.lane.b32.xlu0 %v5837, 48
  %v7285 = vpop.permute.xlu0 %7284
  %7286 = vrot.lane.b32.xlu0 %v5838, 48
  %v7287 = vpop.permute.xlu0 %7286
  %7288 = vrot.lane.b32.xlu0 %v5839, 48
  %v7289 = vpop.permute.xlu0 %7288
  %7290 = vrot.lane.b32.xlu0 %v5840, 48
  %v7291 = vpop.permute.xlu0 %7290
  %7292 = vrot.lane.b32.xlu0 %v5841, 48
  %v7293 = vpop.permute.xlu0 %7292
  %7294 = vrot.lane.b32.xlu0 %v5842, 48
  %v7295 = vpop.permute.xlu0 %7294
  %7296 = vrot.lane.b32.xlu0 %v5843, 48
  %v7297 = vpop.permute.xlu0 %7296
  %7298 = vrot.lane.b32.xlu0 %v5844, 48
  %v7299 = vpop.permute.xlu0 %7298
  %7300 = vrot.lane.b32.xlu0 %v5845, 48
  %v7301 = vpop.permute.xlu0 %7300
  %7302 = vrot.lane.b32.xlu0 %v5846, 48
  %v7303 = vpop.permute.xlu0 %7302
  %7304 = vrot.lane.b32.xlu0 %v5847, 48
  %v7305 = vpop.permute.xlu0 %7304
  %7306 = vrot.lane.b32.xlu0 %v5848, 48
  %v7307 = vpop.permute.xlu0 %7306
  %7308 = vrot.lane.b32.xlu0 %v5849, 48
  %v7309 = vpop.permute.xlu0 %7308
  %7310 = vrot.lane.b32.xlu0 %v5850, 48
  %v7311 = vpop.permute.xlu0 %7310
  %7312 = vrot.lane.b32.xlu0 %v5851, 48
  %v7313 = vpop.permute.xlu0 %7312
  %7314 = vrot.lane.b32.xlu0 %v5852, 48
  %v7315 = vpop.permute.xlu0 %7314
  %7316 = vrot.lane.b32.xlu0 %v5853, 48
  %v7317 = vpop.permute.xlu0 %7316
  %7318 = vrot.lane.b32.xlu0 %v5854, 48
  %v7319 = vpop.permute.xlu0 %7318
  %7320 = vrot.lane.b32.xlu0 %v5855, 48
  %v7321 = vpop.permute.xlu0 %7320
  %7322 = vrot.lane.b32.xlu0 %v5856, 48
  %v7323 = vpop.permute.xlu0 %7322
  %7324 = vrot.lane.b32.xlu0 %v5857, 48
  %v7325 = vpop.permute.xlu0 %7324
  %7326 = vrot.lane.b32.xlu0 %v5858, 48
  %v7327 = vpop.permute.xlu0 %7326
  %7328 = vrot.lane.b32.xlu0 %v5859, 48
  %v7329 = vpop.permute.xlu0 %7328
  %7330 = vrot.lane.b32.xlu0 %v5860, 48
  %v7331 = vpop.permute.xlu0 %7330
  %7332 = vrot.lane.b32.xlu0 %v5861, 48
  %v7333 = vpop.permute.xlu0 %7332
  %v7398 = vsel %vm79, %v5409, %v5927
  %v7399 = vsel %vm79, %v5410, %v5929
  %v7400 = vsel %vm79, %v5411, %v5931
  %v7401 = vsel %vm79, %v5412, %v5933
  %v7402 = vsel %vm79, %v5413, %v5935
  %v7403 = vsel %vm79, %v5414, %v5937
  %v7404 = vsel %vm79, %v5415, %v5939
  %v7405 = vsel %vm79, %v5416, %v5941
  %v7406 = vsel %vm79, %v5417, %v5943
  %v7407 = vsel %vm79, %v5418, %v5945
  %v7408 = vsel %vm79, %v5419, %v5947
  %v7409 = vsel %vm79, %v5420, %v5949
  %v7410 = vsel %vm79, %v5421, %v5951
  %v7411 = vsel %vm79, %v5422, %v5953
  %v7412 = vsel %vm79, %v5423, %v5955
  %v7413 = vsel %vm79, %v5424, %v5957
  %v7414 = vsel %vm79, %v5425, %v5959
  %v7415 = vsel %vm79, %v5426, %v5961
  %v7416 = vsel %vm79, %v5427, %v5963
  %v7417 = vsel %vm79, %v5428, %v5965
  %v7418 = vsel %vm79, %v5429, %v5967
  %v7419 = vsel %vm79, %v5430, %v5969
  %v7420 = vsel %vm79, %v5431, %v5971
  %v7421 = vsel %vm79, %v5432, %v5973
  %v7422 = vsel %vm79, %v5433, %v5975
  %v7423 = vsel %vm79, %v5434, %v5977
  %v7424 = vsel %vm79, %v5435, %v5979
  %v7425 = vsel %vm79, %v5436, %v5981
  %v7426 = vsel %vm79, %v5437, %v5983
  %v7427 = vsel %vm79, %v5438, %v5985
  %v7428 = vsel %vm79, %v5439, %v5987
  %v7429 = vsel %vm79, %v5440, %v5989
  %v7430 = vsel %vm79, %v5441, %v5991
  %v7431 = vsel %vm79, %v5442, %v5993
  %v7432 = vsel %vm79, %v5443, %v5995
  %v7433 = vsel %vm79, %v5444, %v5997
  %v7434 = vsel %vm79, %v5445, %v5999
  %v7435 = vsel %vm79, %v5446, %v6001
  %v7436 = vsel %vm79, %v5447, %v6003
  %v7437 = vsel %vm79, %v5448, %v6005
  %v7438 = vsel %vm79, %v5449, %v6007
  %v7439 = vsel %vm79, %v5450, %v6009
  %v7440 = vsel %vm79, %v5451, %v6011
  %v7441 = vsel %vm79, %v5452, %v6013
  %v7442 = vsel %vm79, %v5453, %v6015
  %v7443 = vsel %vm79, %v5454, %v6017
  %v7444 = vsel %vm79, %v5455, %v6019
  %v7445 = vsel %vm79, %v5456, %v6021
  %v7446 = vsel %vm79, %v5457, %v6023
  %v7447 = vsel %vm79, %v5458, %v6025
  %v7448 = vsel %vm79, %v5459, %v6027
  %v7449 = vsel %vm79, %v5460, %v6029
  %v7450 = vsel %vm79, %v5461, %v6031
  %v7451 = vsel %vm79, %v5462, %v6033
  %v7452 = vsel %vm79, %v5463, %v6035
  %v7453 = vsel %vm79, %v5464, %v6037
  %v7454 = vsel %vm79, %v5465, %v6039
  %v7455 = vsel %vm79, %v5466, %v6041
  %v7456 = vsel %vm79, %v5467, %v6043
  %v7457 = vsel %vm79, %v5468, %v6045
  %v7458 = vsel %vm79, %v5469, %v6047
  %v7459 = vsel %vm79, %v5470, %v6049
  %v7460 = vsel %vm79, %v5471, %v6051
  %v7461 = vsel %vm79, %v5472, %v6053
  %v7462 = vsel %vm1190, %v7398, %v6183
  %v7463 = vsel %vm1190, %v7399, %v6185
  %v7464 = vsel %vm1190, %v7400, %v6187
  %v7465 = vsel %vm1190, %v7401, %v6189
  %v7466 = vsel %vm1190, %v7402, %v6191
  %v7467 = vsel %vm1190, %v7403, %v6193
  %v7468 = vsel %vm1190, %v7404, %v6195
  %v7469 = vsel %vm1190, %v7405, %v6197
  %v7470 = vsel %vm1190, %v7406, %v6199
  %v7471 = vsel %vm1190, %v7407, %v6201
  %v7472 = vsel %vm1190, %v7408, %v6203
  %v7473 = vsel %vm1190, %v7409, %v6205
  %v7474 = vsel %vm1190, %v7410, %v6207
  %v7475 = vsel %vm1190, %v7411, %v6209
  %v7476 = vsel %vm1190, %v7412, %v6211
  %v7477 = vsel %vm1190, %v7413, %v6213
  %v7478 = vsel %vm1190, %v7414, %v6215
  %v7479 = vsel %vm1190, %v7415, %v6217
  %v7480 = vsel %vm1190, %v7416, %v6219
  %v7481 = vsel %vm1190, %v7417, %v6221
  %v7482 = vsel %vm1190, %v7418, %v6223
  %v7483 = vsel %vm1190, %v7419, %v6225
  %v7484 = vsel %vm1190, %v7420, %v6227
  %v7485 = vsel %vm1190, %v7421, %v6229
  %v7486 = vsel %vm1190, %v7422, %v6231
  %v7487 = vsel %vm1190, %v7423, %v6233
  %v7488 = vsel %vm1190, %v7424, %v6235
  %v7489 = vsel %vm1190, %v7425, %v6237
  %v7490 = vsel %vm1190, %v7426, %v6239
  %v7491 = vsel %vm1190, %v7427, %v6241
  %v7492 = vsel %vm1190, %v7428, %v6243
  %v7493 = vsel %vm1190, %v7429, %v6245
  %v7494 = vsel %vm1190, %v7430, %v6247
  %v7495 = vsel %vm1190, %v7431, %v6249
  %v7496 = vsel %vm1190, %v7432, %v6251
  %v7497 = vsel %vm1190, %v7433, %v6253
  %v7498 = vsel %vm1190, %v7434, %v6255
  %v7499 = vsel %vm1190, %v7435, %v6257
  %v7500 = vsel %vm1190, %v7436, %v6259
  %v7501 = vsel %vm1190, %v7437, %v6261
  %v7502 = vsel %vm1190, %v7438, %v6263
  %v7503 = vsel %vm1190, %v7439, %v6265
  %v7504 = vsel %vm1190, %v7440, %v6267
  %v7505 = vsel %vm1190, %v7441, %v6269
  %v7506 = vsel %vm1190, %v7442, %v6271
  %v7507 = vsel %vm1190, %v7443, %v6273
  %v7508 = vsel %vm1190, %v7444, %v6275
  %v7509 = vsel %vm1190, %v7445, %v6277
  %v7510 = vsel %vm1190, %v7446, %v6279
  %v7511 = vsel %vm1190, %v7447, %v6281
  %v7512 = vsel %vm1190, %v7448, %v6283
  %v7513 = vsel %vm1190, %v7449, %v6285
  %v7514 = vsel %vm1190, %v7450, %v6287
  %v7515 = vsel %vm1190, %v7451, %v6289
  %v7516 = vsel %vm1190, %v7452, %v6291
  %v7517 = vsel %vm1190, %v7453, %v6293
  %v7518 = vsel %vm1190, %v7454, %v6295
  %v7519 = vsel %vm1190, %v7455, %v6297
  %v7520 = vsel %vm1190, %v7456, %v6299
  %v7521 = vsel %vm1190, %v7457, %v6301
  %v7522 = vsel %vm1190, %v7458, %v6303
  %v7523 = vsel %vm1190, %v7459, %v6305
  %v7524 = vsel %vm1190, %v7460, %v6307
  %v7525 = vsel %vm1190, %v7461, %v6309
  %v7526 = vsel %vm1333, %v7462, %v6439
  %v7527 = vsel %vm1333, %v7463, %v6441
  %v7528 = vsel %vm1333, %v7464, %v6443
  %v7529 = vsel %vm1333, %v7465, %v6445
  %v7530 = vsel %vm1333, %v7466, %v6447
  %v7531 = vsel %vm1333, %v7467, %v6449
  %v7532 = vsel %vm1333, %v7468, %v6451
  %v7533 = vsel %vm1333, %v7469, %v6453
  %v7534 = vsel %vm1333, %v7470, %v6455
  %v7535 = vsel %vm1333, %v7471, %v6457
  %v7536 = vsel %vm1333, %v7472, %v6459
  %v7537 = vsel %vm1333, %v7473, %v6461
  %v7538 = vsel %vm1333, %v7474, %v6463
  %v7539 = vsel %vm1333, %v7475, %v6465
  %v7540 = vsel %vm1333, %v7476, %v6467
  %v7541 = vsel %vm1333, %v7477, %v6469
  %v7542 = vsel %vm1333, %v7478, %v6471
  %v7543 = vsel %vm1333, %v7479, %v6473
  %v7544 = vsel %vm1333, %v7480, %v6475
  %v7545 = vsel %vm1333, %v7481, %v6477
  %v7546 = vsel %vm1333, %v7482, %v6479
  %v7547 = vsel %vm1333, %v7483, %v6481
  %v7548 = vsel %vm1333, %v7484, %v6483
  %v7549 = vsel %vm1333, %v7485, %v6485
  %v7550 = vsel %vm1333, %v7486, %v6487
  %v7551 = vsel %vm1333, %v7487, %v6489
  %v7552 = vsel %vm1333, %v7488, %v6491
  %v7553 = vsel %vm1333, %v7489, %v6493
  %v7554 = vsel %vm1333, %v7490, %v6495
  %v7555 = vsel %vm1333, %v7491, %v6497
  %v7556 = vsel %vm1333, %v7492, %v6499
  %v7557 = vsel %vm1333, %v7493, %v6501
  %v7558 = vsel %vm1333, %v7494, %v6503
  %v7559 = vsel %vm1333, %v7495, %v6505
  %v7560 = vsel %vm1333, %v7496, %v6507
  %v7561 = vsel %vm1333, %v7497, %v6509
  %v7562 = vsel %vm1333, %v7498, %v6511
  %v7563 = vsel %vm1333, %v7499, %v6513
  %v7564 = vsel %vm1333, %v7500, %v6515
  %v7565 = vsel %vm1333, %v7501, %v6517
  %v7566 = vsel %vm1333, %v7502, %v6519
  %v7567 = vsel %vm1333, %v7503, %v6521
  %v7568 = vsel %vm1333, %v7504, %v6523
  %v7569 = vsel %vm1333, %v7505, %v6525
  %v7570 = vsel %vm1333, %v7506, %v6527
  %v7571 = vsel %vm1333, %v7507, %v6529
  %v7572 = vsel %vm1333, %v7508, %v6531
  %v7573 = vsel %vm1333, %v7509, %v6533
  %v7574 = vsel %vm1333, %v7510, %v6535
  %v7575 = vsel %vm1333, %v7511, %v6537
  %v7576 = vsel %vm1333, %v7512, %v6539
  %v7577 = vsel %vm1333, %v7513, %v6541
  %v7578 = vsel %vm1333, %v7514, %v6543
  %v7579 = vsel %vm1333, %v7515, %v6545
  %v7580 = vsel %vm1333, %v7516, %v6547
  %v7581 = vsel %vm1333, %v7517, %v6549
  %v7582 = vsel %vm1333, %v7518, %v6551
  %v7583 = vsel %vm1333, %v7519, %v6553
  %v7584 = vsel %vm1333, %v7520, %v6555
  %v7585 = vsel %vm1333, %v7521, %v6557
  %v7586 = vsel %vm1333, %v7522, %v6559
  %v7587 = vsel %vm1333, %v7523, %v6561
  %v7588 = vsel %vm1333, %v7524, %v6563
  %v7589 = vsel %vm1333, %v7525, %v6565
  %v7590 = vsel %vm4457, %v7526, %v6695
  %v7591 = vsel %vm4457, %v7527, %v6697
  %v7592 = vsel %vm4457, %v7528, %v6699
  %v7593 = vsel %vm4457, %v7529, %v6701
  %v7594 = vsel %vm4457, %v7530, %v6703
  %v7595 = vsel %vm4457, %v7531, %v6705
  %v7596 = vsel %vm4457, %v7532, %v6707
  %v7597 = vsel %vm4457, %v7533, %v6709
  %v7598 = vsel %vm4457, %v7534, %v6711
  %v7599 = vsel %vm4457, %v7535, %v6713
  %v7600 = vsel %vm4457, %v7536, %v6715
  %v7601 = vsel %vm4457, %v7537, %v6717
  %v7602 = vsel %vm4457, %v7538, %v6719
  %v7603 = vsel %vm4457, %v7539, %v6721
  %v7604 = vsel %vm4457, %v7540, %v6723
  %v7605 = vsel %vm4457, %v7541, %v6725
  %v7606 = vsel %vm4457, %v7542, %v6727
  %v7607 = vsel %vm4457, %v7543, %v6729
  %v7608 = vsel %vm4457, %v7544, %v6731
  %v7609 = vsel %vm4457, %v7545, %v6733
  %v7610 = vsel %vm4457, %v7546, %v6735
  %v7611 = vsel %vm4457, %v7547, %v6737
  %v7612 = vsel %vm4457, %v7548, %v6739
  %v7613 = vsel %vm4457, %v7549, %v6741
  %v7614 = vsel %vm4457, %v7550, %v6743
  %v7615 = vsel %vm4457, %v7551, %v6745
  %v7616 = vsel %vm4457, %v7552, %v6747
  %v7617 = vsel %vm4457, %v7553, %v6749
  %v7618 = vsel %vm4457, %v7554, %v6751
  %v7619 = vsel %vm4457, %v7555, %v6753
  %v7620 = vsel %vm4457, %v7556, %v6755
  %v7621 = vsel %vm4457, %v7557, %v6757
  %v7622 = vsel %vm4457, %v7558, %v6759
  %v7623 = vsel %vm4457, %v7559, %v6761
  %v7624 = vsel %vm4457, %v7560, %v6763
  %v7625 = vsel %vm4457, %v7561, %v6765
  %v7626 = vsel %vm4457, %v7562, %v6767
  %v7627 = vsel %vm4457, %v7563, %v6769
  %v7628 = vsel %vm4457, %v7564, %v6771
  %v7629 = vsel %vm4457, %v7565, %v6773
  %v7630 = vsel %vm4457, %v7566, %v6775
  %v7631 = vsel %vm4457, %v7567, %v6777
  %v7632 = vsel %vm4457, %v7568, %v6779
  %v7633 = vsel %vm4457, %v7569, %v6781
  %v7634 = vsel %vm4457, %v7570, %v6783
  %v7635 = vsel %vm4457, %v7571, %v6785
  %v7636 = vsel %vm4457, %v7572, %v6787
  %v7637 = vsel %vm4457, %v7573, %v6789
  %v7638 = vsel %vm4457, %v7574, %v6791
  %v7639 = vsel %vm4457, %v7575, %v6793
  %v7640 = vsel %vm4457, %v7576, %v6795
  %v7641 = vsel %vm4457, %v7577, %v6797
  %v7642 = vsel %vm4457, %v7578, %v6799
  %v7643 = vsel %vm4457, %v7579, %v6801
  %v7644 = vsel %vm4457, %v7580, %v6803
  %v7645 = vsel %vm4457, %v7581, %v6805
  %v7646 = vsel %vm4457, %v7582, %v6807
  %v7647 = vsel %vm4457, %v7583, %v6809
  %v7648 = vsel %vm4457, %v7584, %v6811
  %v7649 = vsel %vm4457, %v7585, %v6813
  %v7650 = vsel %vm4457, %v7586, %v6815
  %v7651 = vsel %vm4457, %v7587, %v6817
  %v7652 = vsel %vm4457, %v7588, %v6819
  %v7653 = vsel %vm4457, %v7589, %v6821
  %v7654 = vsel %vm4522, %v7590, %v6951
  %v7655 = vsel %vm4522, %v7591, %v6953
  %v7656 = vsel %vm4522, %v7592, %v6955
  %v7657 = vsel %vm4522, %v7593, %v6957
  %v7658 = vsel %vm4522, %v7594, %v6959
  %v7659 = vsel %vm4522, %v7595, %v6961
  %v7660 = vsel %vm4522, %v7596, %v6963
  %v7661 = vsel %vm4522, %v7597, %v6965
  %v7662 = vsel %vm4522, %v7598, %v6967
  %v7663 = vsel %vm4522, %v7599, %v6969
  %v7664 = vsel %vm4522, %v7600, %v6971
  %v7665 = vsel %vm4522, %v7601, %v6973
  %v7666 = vsel %vm4522, %v7602, %v6975
  %v7667 = vsel %vm4522, %v7603, %v6977
  %v7668 = vsel %vm4522, %v7604, %v6979
  %v7669 = vsel %vm4522, %v7605, %v6981
  %v7670 = vsel %vm4522, %v7606, %v6983
  %v7671 = vsel %vm4522, %v7607, %v6985
  %v7672 = vsel %vm4522, %v7608, %v6987
  %v7673 = vsel %vm4522, %v7609, %v6989
  %v7674 = vsel %vm4522, %v7610, %v6991
  %v7675 = vsel %vm4522, %v7611, %v6993
  %v7676 = vsel %vm4522, %v7612, %v6995
  %v7677 = vsel %vm4522, %v7613, %v6997
  %v7678 = vsel %vm4522, %v7614, %v6999
  %v7679 = vsel %vm4522, %v7615, %v7001
  %v7680 = vsel %vm4522, %v7616, %v7003
  %v7681 = vsel %vm4522, %v7617, %v7005
  %v7682 = vsel %vm4522, %v7618, %v7007
  %v7683 = vsel %vm4522, %v7619, %v7009
  %v7684 = vsel %vm4522, %v7620, %v7011
  %v7685 = vsel %vm4522, %v7621, %v7013
  %v7686 = vsel %vm4522, %v7622, %v7015
  %v7687 = vsel %vm4522, %v7623, %v7017
  %v7688 = vsel %vm4522, %v7624, %v7019
  %v7689 = vsel %vm4522, %v7625, %v7021
  %v7690 = vsel %vm4522, %v7626, %v7023
  %v7691 = vsel %vm4522, %v7627, %v7025
  %v7692 = vsel %vm4522, %v7628, %v7027
  %v7693 = vsel %vm4522, %v7629, %v7029
  %v7694 = vsel %vm4522, %v7630, %v7031
  %v7695 = vsel %vm4522, %v7631, %v7033
  %v7696 = vsel %vm4522, %v7632, %v7035
  %v7697 = vsel %vm4522, %v7633, %v7037
  %v7698 = vsel %vm4522, %v7634, %v7039
  %v7699 = vsel %vm4522, %v7635, %v7041
  %v7700 = vsel %vm4522, %v7636, %v7043
  %v7701 = vsel %vm4522, %v7637, %v7045
  %v7702 = vsel %vm4522, %v7638, %v7047
  %v7703 = vsel %vm4522, %v7639, %v7049
  %v7704 = vsel %vm4522, %v7640, %v7051
  %v7705 = vsel %vm4522, %v7641, %v7053
  %v7706 = vsel %vm4522, %v7642, %v7055
  %v7707 = vsel %vm4522, %v7643, %v7057
  %v7708 = vsel %vm4522, %v7644, %v7059
  %v7709 = vsel %vm4522, %v7645, %v7061
  %v7710 = vsel %vm4522, %v7646, %v7063
  %v7711 = vsel %vm4522, %v7647, %v7065
  %v7712 = vsel %vm4522, %v7648, %v7067
  %v7713 = vsel %vm4522, %v7649, %v7069
  %v7714 = vsel %vm4522, %v7650, %v7071
  %v7715 = vsel %vm4522, %v7651, %v7073
  %v7716 = vsel %vm4522, %v7652, %v7075
  %v7717 = vsel %vm4522, %v7653, %v7077
  %v7718 = vsel %vm1348, %v7654, %v7207
  %v7719 = vsel %vm1348, %v7655, %v7209
  %v7720 = vsel %vm1348, %v7656, %v7211
  %v7721 = vsel %vm1348, %v7657, %v7213
  %v7722 = vsel %vm1348, %v7658, %v7215
  %v7723 = vsel %vm1348, %v7659, %v7217
  %v7724 = vsel %vm1348, %v7660, %v7219
  %v7725 = vsel %vm1348, %v7661, %v7221
  %v7726 = vsel %vm1348, %v7662, %v7223
  %v7727 = vsel %vm1348, %v7663, %v7225
  %v7728 = vsel %vm1348, %v7664, %v7227
  %v7729 = vsel %vm1348, %v7665, %v7229
  %v7730 = vsel %vm1348, %v7666, %v7231
  %v7731 = vsel %vm1348, %v7667, %v7233
  %v7732 = vsel %vm1348, %v7668, %v7235
  %v7733 = vsel %vm1348, %v7669, %v7237
  %v7734 = vsel %vm1348, %v7670, %v7239
  %v7735 = vsel %vm1348, %v7671, %v7241
  %v7736 = vsel %vm1348, %v7672, %v7243
  %v7737 = vsel %vm1348, %v7673, %v7245
  %v7738 = vsel %vm1348, %v7674, %v7247
  %v7739 = vsel %vm1348, %v7675, %v7249
  %v7740 = vsel %vm1348, %v7676, %v7251
  %v7741 = vsel %vm1348, %v7677, %v7253
  %v7742 = vsel %vm1348, %v7678, %v7255
  %v7743 = vsel %vm1348, %v7679, %v7257
  %v7744 = vsel %vm1348, %v7680, %v7259
  %v7745 = vsel %vm1348, %v7681, %v7261
  %v7746 = vsel %vm1348, %v7682, %v7263
  %v7747 = vsel %vm1348, %v7683, %v7265
  %v7748 = vsel %vm1348, %v7684, %v7267
  %v7749 = vsel %vm1348, %v7685, %v7269
  %v7750 = vsel %vm1348, %v7686, %v7271
  %v7751 = vsel %vm1348, %v7687, %v7273
  %v7752 = vsel %vm1348, %v7688, %v7275
  %v7753 = vsel %vm1348, %v7689, %v7277
  %v7754 = vsel %vm1348, %v7690, %v7279
  %v7755 = vsel %vm1348, %v7691, %v7281
  %v7756 = vsel %vm1348, %v7692, %v7283
  %v7757 = vsel %vm1348, %v7693, %v7285
  %v7758 = vsel %vm1348, %v7694, %v7287
  %v7759 = vsel %vm1348, %v7695, %v7289
  %v7760 = vsel %vm1348, %v7696, %v7291
  %v7761 = vsel %vm1348, %v7697, %v7293
  %v7762 = vsel %vm1348, %v7698, %v7295
  %v7763 = vsel %vm1348, %v7699, %v7297
  %v7764 = vsel %vm1348, %v7700, %v7299
  %v7765 = vsel %vm1348, %v7701, %v7301
  %v7766 = vsel %vm1348, %v7702, %v7303
  %v7767 = vsel %vm1348, %v7703, %v7305
  %v7768 = vsel %vm1348, %v7704, %v7307
  %v7769 = vsel %vm1348, %v7705, %v7309
  %v7770 = vsel %vm1348, %v7706, %v7311
  %v7771 = vsel %vm1348, %v7707, %v7313
  %v7772 = vsel %vm1348, %v7708, %v7315
  %v7773 = vsel %vm1348, %v7709, %v7317
  %v7774 = vsel %vm1348, %v7710, %v7319
  %v7775 = vsel %vm1348, %v7711, %v7321
  %v7776 = vsel %vm1348, %v7712, %v7323
  %v7777 = vsel %vm1348, %v7713, %v7325
  %v7778 = vsel %vm1348, %v7714, %v7327
  %v7779 = vsel %vm1348, %v7715, %v7329
  %v7780 = vsel %vm1348, %v7716, %v7331
  %v7781 = vsel %vm1348, %v7717, %v7333
  %v7782 = vld [vmem:[%s1 + $0x90] sm:$0xff]
  %v7783 = vld [vmem:[%s1 + $0x98] sm:$0xff]
  %v7784 = vld [vmem:[%s1 + $0xa0] sm:$0xff]
  %v7785 = vld [vmem:[%s1 + $0xa8] sm:$0xff]
  %v7786 = vld [vmem:[%s1 + $0xb0] sm:$0xff]
  %v7787 = vld [vmem:[%s1 + $0xb8] sm:$0xff]
  %v7788 = vld [vmem:[%s1 + $0xc0] sm:$0xff]
  %v7790 = vsel %vm4658, %v7718, 0
  %v7793 = vsel %vm4658, %v7719, 0
  %v7796 = vsel %vm4658, %v7720, 0
  %v7799 = vsel %vm4658, %v7721, 0
  %v7802 = vsel %vm4658, %v7722, 0
  %v7805 = vsel %vm4658, %v7723, 0
  %v7808 = vsel %vm4658, %v7724, 0
  %v7811 = vsel %vm4658, %v7725, 0
  %v7814 = vsel %vm4658, %v7726, 0
  %v7817 = vsel %vm4658, %v7727, 0
  %v7820 = vsel %vm4658, %v7728, 0
  %v7823 = vsel %vm4658, %v7729, 0
  %v7826 = vsel %vm4658, %v7730, 0
  %v7829 = vsel %vm4658, %v7731, 0
  %v7832 = vsel %vm4658, %v7732, 0
  %v7835 = vsel %vm4658, %v7733, 0
  %v7838 = vsel %vm4658, %v7734, 0
  %v7841 = vsel %vm4658, %v7735, 0
  %v7844 = vsel %vm4658, %v7736, 0
  %v7847 = vsel %vm4658, %v7737, 0
  %v7850 = vsel %vm4658, %v7738, 0
  %v7853 = vsel %vm4658, %v7739, 0
  %v7856 = vsel %vm4658, %v7740, 0
  %v7859 = vsel %vm4658, %v7741, 0
  %v7862 = vsel %vm4658, %v7742, 0
  %v7865 = vsel %vm4658, %v7743, 0
  %v7868 = vsel %vm4658, %v7744, 0
  %v7871 = vsel %vm4658, %v7745, 0
  %v7874 = vsel %vm4658, %v7746, 0
  %v7877 = vsel %vm4658, %v7747, 0
  %v7880 = vsel %vm4658, %v7748, 0
  %v7883 = vsel %vm4658, %v7749, 0
  %v7886 = vsel %vm4658, %v7750, 0
  %v7889 = vsel %vm4658, %v7751, 0
  %v7892 = vsel %vm4658, %v7752, 0
  %v7895 = vsel %vm4658, %v7753, 0
  %v7898 = vsel %vm4658, %v7754, 0
  %v7901 = vsel %vm4658, %v7755, 0
  %v7904 = vsel %vm4658, %v7756, 0
  %v7907 = vsel %vm4658, %v7757, 0
  %v7910 = vsel %vm4658, %v7758, 0
  %v7913 = vsel %vm4658, %v7759, 0
  %v7916 = vsel %vm4658, %v7760, 0
  %v7919 = vsel %vm4658, %v7761, 0
  %v7922 = vsel %vm4658, %v7762, 0
  %v7925 = vsel %vm4658, %v7763, 0
  %v7928 = vsel %vm4658, %v7764, 0
  %v7931 = vsel %vm4658, %v7765, 0
  %v7934 = vsel %vm4658, %v7766, 0
  %v7937 = vsel %vm4658, %v7767, 0
  %v7940 = vsel %vm4658, %v7768, 0
  %v7943 = vsel %vm4658, %v7769, 0
  %v7946 = vsel %vm4658, %v7770, 0
  %v7949 = vsel %vm4658, %v7771, 0
  %v7952 = vsel %vm4658, %v7772, 0
  %v7955 = vsel %vm4658, %v7773, 0
  %v7958 = vsel %vm4658, %v7774, 0
  %v7961 = vsel %vm4658, %v7775, 0
  %v7964 = vsel %vm4658, %v7776, 0
  %v7967 = vsel %vm4658, %v7777, 0
  %v7970 = vsel %vm4658, %v7778, 0
  %v7973 = vsel %vm4658, %v7779, 0
  %v7976 = vsel %vm4658, %v7780, 0
  %v7979 = vsel %vm4658, %v7781, 0
  %7981 = vmatpush.msra.mxu0 0.0
  %7982 = vmatpush.msra.mxu0 0.0
  %7983 = vmatpush.msra.mxu0 0.0
  %7984 = vmatpush.msra.mxu0 0.0
  %7985 = vmatpush.msra.mxu0 0.0
  %7986 = vmatpush.msra.mxu0 0.0
  %7987 = vmatpush.msra.mxu0 0.0
  %7988 = vmatpush.msra.mxu0 0.0
  %7989 = vmatpush.msra.mxu0 0.0
  %7990 = vmatpush.msra.mxu0 %v7788
  %7991 = vmatpush.msra.mxu0 %v7787
  %7992 = vmatpush.msra.mxu0 %v7786
  %7993 = vmatpush.msra.mxu0 %v7785
  %7994 = vmatpush.msra.mxu0 %v7784
  %7995 = vmatpush.msra.mxu0 %v7783
  %7996 = vmatpush.msra.mxu0 %v7782
  %7997 = vmatmul.f32.gmra.mxu0 %v7790
  %v7998 = vpop.f32.mrf.mxu0
  %v7999 = vadd.f32 0.0, %v7998
  %8000 = vmatmul.f32.gmra.mxu0 %v7793
  %v8001 = vpop.f32.mrf.mxu0
  %v8002 = vadd.f32 0.0, %v8001
  %8003 = vmatmul.f32.gmra.mxu0 %v7796
  %v8004 = vpop.f32.mrf.mxu0
  %v8005 = vadd.f32 0.0, %v8004
  %8006 = vmatmul.f32.gmra.mxu0 %v7799
  %v8007 = vpop.f32.mrf.mxu0
  %v8008 = vadd.f32 0.0, %v8007
  %8009 = vmatmul.f32.gmra.mxu0 %v7802
  %v8010 = vpop.f32.mrf.mxu0
  %v8011 = vadd.f32 0.0, %v8010
  %8012 = vmatmul.f32.gmra.mxu0 %v7805
  %v8013 = vpop.f32.mrf.mxu0
  %v8014 = vadd.f32 0.0, %v8013
  %8015 = vmatmul.f32.gmra.mxu0 %v7808
  %v8016 = vpop.f32.mrf.mxu0
  %v8017 = vadd.f32 0.0, %v8016
  %8018 = vmatmul.f32.gmra.mxu0 %v7811
  %v8019 = vpop.f32.mrf.mxu0
  %v8020 = vadd.f32 0.0, %v8019
  %8021 = vmatmul.f32.gmra.mxu0 %v7814
  %v8022 = vpop.f32.mrf.mxu0
  %v8023 = vadd.f32 0.0, %v8022
  %8024 = vmatmul.f32.gmra.mxu0 %v7817
  %v8025 = vpop.f32.mrf.mxu0
  %v8026 = vadd.f32 0.0, %v8025
  %8027 = vmatmul.f32.gmra.mxu0 %v7820
  %v8028 = vpop.f32.mrf.mxu0
  %v8029 = vadd.f32 0.0, %v8028
  %8030 = vmatmul.f32.gmra.mxu0 %v7823
  %v8031 = vpop.f32.mrf.mxu0
  %v8032 = vadd.f32 0.0, %v8031
  %8033 = vmatmul.f32.gmra.mxu0 %v7826
  %v8034 = vpop.f32.mrf.mxu0
  %v8035 = vadd.f32 0.0, %v8034
  %8036 = vmatmul.f32.gmra.mxu0 %v7829
  %v8037 = vpop.f32.mrf.mxu0
  %v8038 = vadd.f32 0.0, %v8037
  %8039 = vmatmul.f32.gmra.mxu0 %v7832
  %v8040 = vpop.f32.mrf.mxu0
  %v8041 = vadd.f32 0.0, %v8040
  %8042 = vmatmul.f32.gmra.mxu0 %v7835
  %v8043 = vpop.f32.mrf.mxu0
  %v8044 = vadd.f32 0.0, %v8043
  %8045 = vmatmul.f32.gmra.mxu0 %v7838
  %v8046 = vpop.f32.mrf.mxu0
  %v8047 = vadd.f32 0.0, %v8046
  %8048 = vmatmul.f32.gmra.mxu0 %v7841
  %v8049 = vpop.f32.mrf.mxu0
  %v8050 = vadd.f32 0.0, %v8049
  %8051 = vmatmul.f32.gmra.mxu0 %v7844
  %v8052 = vpop.f32.mrf.mxu0
  %v8053 = vadd.f32 0.0, %v8052
  %8054 = vmatmul.f32.gmra.mxu0 %v7847
  %v8055 = vpop.f32.mrf.mxu0
  %v8056 = vadd.f32 0.0, %v8055
  %8057 = vmatmul.f32.gmra.mxu0 %v7850
  %v8058 = vpop.f32.mrf.mxu0
  %v8059 = vadd.f32 0.0, %v8058
  %8060 = vmatmul.f32.gmra.mxu0 %v7853
  %v8061 = vpop.f32.mrf.mxu0
  %v8062 = vadd.f32 0.0, %v8061
  %8063 = vmatmul.f32.gmra.mxu0 %v7856
  %v8064 = vpop.f32.mrf.mxu0
  %v8065 = vadd.f32 0.0, %v8064
  %8066 = vmatmul.f32.gmra.mxu0 %v7859
  %v8067 = vpop.f32.mrf.mxu0
  %v8068 = vadd.f32 0.0, %v8067
  %8069 = vmatmul.f32.gmra.mxu0 %v7862
  %v8070 = vpop.f32.mrf.mxu0
  %v8071 = vadd.f32 0.0, %v8070
  %8072 = vmatmul.f32.gmra.mxu0 %v7865
  %v8073 = vpop.f32.mrf.mxu0
  %v8074 = vadd.f32 0.0, %v8073
  %8075 = vmatmul.f32.gmra.mxu0 %v7868
  %v8076 = vpop.f32.mrf.mxu0
  %v8077 = vadd.f32 0.0, %v8076
  %8078 = vmatmul.f32.gmra.mxu0 %v7871
  %v8079 = vpop.f32.mrf.mxu0
  %v8080 = vadd.f32 0.0, %v8079
  %8081 = vmatmul.f32.gmra.mxu0 %v7874
  %v8082 = vpop.f32.mrf.mxu0
  %v8083 = vadd.f32 0.0, %v8082
  %8084 = vmatmul.f32.gmra.mxu0 %v7877
  %v8085 = vpop.f32.mrf.mxu0
  %v8086 = vadd.f32 0.0, %v8085
  %8087 = vmatmul.f32.gmra.mxu0 %v7880
  %v8088 = vpop.f32.mrf.mxu0
  %v8089 = vadd.f32 0.0, %v8088
  %8090 = vmatmul.f32.gmra.mxu0 %v7883
  %v8091 = vpop.f32.mrf.mxu0
  %v8092 = vadd.f32 0.0, %v8091
  %8093 = vmatmul.f32.gmra.mxu0 %v7886
  %v8094 = vpop.f32.mrf.mxu0
  %v8095 = vadd.f32 0.0, %v8094
  %8096 = vmatmul.f32.gmra.mxu0 %v7889
  %v8097 = vpop.f32.mrf.mxu0
  %v8098 = vadd.f32 0.0, %v8097
  %8099 = vmatmul.f32.gmra.mxu0 %v7892
  %v8100 = vpop.f32.mrf.mxu0
  %v8101 = vadd.f32 0.0, %v8100
  %8102 = vmatmul.f32.gmra.mxu0 %v7895
  %v8103 = vpop.f32.mrf.mxu0
  %v8104 = vadd.f32 0.0, %v8103
  %8105 = vmatmul.f32.gmra.mxu0 %v7898
  %v8106 = vpop.f32.mrf.mxu0
  %v8107 = vadd.f32 0.0, %v8106
  %8108 = vmatmul.f32.gmra.mxu0 %v7901
  %v8109 = vpop.f32.mrf.mxu0
  %v8110 = vadd.f32 0.0, %v8109
  %8111 = vmatmul.f32.gmra.mxu0 %v7904
  %v8112 = vpop.f32.mrf.mxu0
  %v8113 = vadd.f32 0.0, %v8112
  %8114 = vmatmul.f32.gmra.mxu0 %v7907
  %v8115 = vpop.f32.mrf.mxu0
  %v8116 = vadd.f32 0.0, %v8115
  %8117 = vmatmul.f32.gmra.mxu0 %v7910
  %v8118 = vpop.f32.mrf.mxu0
  %v8119 = vadd.f32 0.0, %v8118
  %8120 = vmatmul.f32.gmra.mxu0 %v7913
  %v8121 = vpop.f32.mrf.mxu0
  %v8122 = vadd.f32 0.0, %v8121
  %8123 = vmatmul.f32.gmra.mxu0 %v7916
  %v8124 = vpop.f32.mrf.mxu0
  %v8125 = vadd.f32 0.0, %v8124
  %8126 = vmatmul.f32.gmra.mxu0 %v7919
  %v8127 = vpop.f32.mrf.mxu0
  %v8128 = vadd.f32 0.0, %v8127
  %8129 = vmatmul.f32.gmra.mxu0 %v7922
  %v8130 = vpop.f32.mrf.mxu0
  %v8131 = vadd.f32 0.0, %v8130
  %8132 = vmatmul.f32.gmra.mxu0 %v7925
  %v8133 = vpop.f32.mrf.mxu0
  %v8134 = vadd.f32 0.0, %v8133
  %8135 = vmatmul.f32.gmra.mxu0 %v7928
  %v8136 = vpop.f32.mrf.mxu0
  %v8137 = vadd.f32 0.0, %v8136
  %8138 = vmatmul.f32.gmra.mxu0 %v7931
  %v8139 = vpop.f32.mrf.mxu0
  %v8140 = vadd.f32 0.0, %v8139
  %8141 = vmatmul.f32.gmra.mxu0 %v7934
  %v8142 = vpop.f32.mrf.mxu0
  %v8143 = vadd.f32 0.0, %v8142
  %8144 = vmatmul.f32.gmra.mxu0 %v7937
  %v8145 = vpop.f32.mrf.mxu0
  %v8146 = vadd.f32 0.0, %v8145
  %8147 = vmatmul.f32.gmra.mxu0 %v7940
  %v8148 = vpop.f32.mrf.mxu0
  %v8149 = vadd.f32 0.0, %v8148
  %8150 = vmatmul.f32.gmra.mxu0 %v7943
  %v8151 = vpop.f32.mrf.mxu0
  %v8152 = vadd.f32 0.0, %v8151
  %8153 = vmatmul.f32.gmra.mxu0 %v7946
  %v8154 = vpop.f32.mrf.mxu0
  %v8155 = vadd.f32 0.0, %v8154
  %8156 = vmatmul.f32.gmra.mxu0 %v7949
  %v8157 = vpop.f32.mrf.mxu0
  %v8158 = vadd.f32 0.0, %v8157
  %8159 = vmatmul.f32.gmra.mxu0 %v7952
  %v8160 = vpop.f32.mrf.mxu0
  %v8161 = vadd.f32 0.0, %v8160
  %8162 = vmatmul.f32.gmra.mxu0 %v7955
  %v8163 = vpop.f32.mrf.mxu0
  %v8164 = vadd.f32 0.0, %v8163
  %8165 = vmatmul.f32.gmra.mxu0 %v7958
  %v8166 = vpop.f32.mrf.mxu0
  %v8167 = vadd.f32 0.0, %v8166
  %8168 = vmatmul.f32.gmra.mxu0 %v7961
  %v8169 = vpop.f32.mrf.mxu0
  %v8170 = vadd.f32 0.0, %v8169
  %8171 = vmatmul.f32.gmra.mxu0 %v7964
  %v8172 = vpop.f32.mrf.mxu0
  %v8173 = vadd.f32 0.0, %v8172
  %8174 = vmatmul.f32.gmra.mxu0 %v7967
  %v8175 = vpop.f32.mrf.mxu0
  %v8176 = vadd.f32 0.0, %v8175
  %8177 = vmatmul.f32.gmra.mxu0 %v7970
  %v8178 = vpop.f32.mrf.mxu0
  %v8179 = vadd.f32 0.0, %v8178
  %8180 = vmatmul.f32.gmra.mxu0 %v7973
  %v8181 = vpop.f32.mrf.mxu0
  %v8182 = vadd.f32 0.0, %v8181
  %8183 = vmatmul.f32.gmra.mxu0 %v7976
  %v8184 = vpop.f32.mrf.mxu0
  %v8185 = vadd.f32 0.0, %v8184
  %8186 = vmatmul.f32.gmra.mxu0 %v7979
  %v8187 = vpop.f32.mrf.mxu0
  %v8188 = vadd.f32 0.0, %v8187
  %8189 = vdwg.mxu0
  %v8190 = vld [vmem:[%s2 + $0x8] sm:$0x1]
  %v8191 = vld [vmem:[%s2 + $0x9] sm:$0x1]
  %v8192 = vperm.slane %v8190, 0
  %v8193 = vmul.f32 %v7999, %v8192
  %v8194 = vmul.f32 %v8002, %v8192
  %v8195 = vmul.f32 %v8005, %v8192
  %v8196 = vmul.f32 %v8008, %v8192
  %v8197 = vmul.f32 %v8011, %v8192
  %v8198 = vmul.f32 %v8014, %v8192
  %v8199 = vmul.f32 %v8017, %v8192
  %v8200 = vmul.f32 %v8020, %v8192
  %v8201 = vmul.f32 %v8023, %v8192
  %v8202 = vmul.f32 %v8026, %v8192
  %v8203 = vmul.f32 %v8029, %v8192
  %v8204 = vmul.f32 %v8032, %v8192
  %v8205 = vmul.f32 %v8035, %v8192
  %v8206 = vmul.f32 %v8038, %v8192
  %v8207 = vmul.f32 %v8041, %v8192
  %v8208 = vmul.f32 %v8044, %v8192
  %v8209 = vmul.f32 %v8047, %v8192
  %v8210 = vmul.f32 %v8050, %v8192
  %v8211 = vmul.f32 %v8053, %v8192
  %v8212 = vmul.f32 %v8056, %v8192
  %v8213 = vmul.f32 %v8059, %v8192
  %v8214 = vmul.f32 %v8062, %v8192
  %v8215 = vmul.f32 %v8065, %v8192
  %v8216 = vmul.f32 %v8068, %v8192
  %v8217 = vmul.f32 %v8071, %v8192
  %v8218 = vmul.f32 %v8074, %v8192
  %v8219 = vmul.f32 %v8077, %v8192
  %v8220 = vmul.f32 %v8080, %v8192
  %v8221 = vmul.f32 %v8083, %v8192
  %v8222 = vmul.f32 %v8086, %v8192
  %v8223 = vmul.f32 %v8089, %v8192
  %v8224 = vmul.f32 %v8092, %v8192
  %v8225 = vmul.f32 %v8095, %v8192
  %v8226 = vmul.f32 %v8098, %v8192
  %v8227 = vmul.f32 %v8101, %v8192
  %v8228 = vmul.f32 %v8104, %v8192
  %v8229 = vmul.f32 %v8107, %v8192
  %v8230 = vmul.f32 %v8110, %v8192
  %v8231 = vmul.f32 %v8113, %v8192
  %v8232 = vmul.f32 %v8116, %v8192
  %v8233 = vmul.f32 %v8119, %v8192
  %v8234 = vmul.f32 %v8122, %v8192
  %v8235 = vmul.f32 %v8125, %v8192
  %v8236 = vmul.f32 %v8128, %v8192
  %v8237 = vmul.f32 %v8131, %v8192
  %v8238 = vmul.f32 %v8134, %v8192
  %v8239 = vmul.f32 %v8137, %v8192
  %v8240 = vmul.f32 %v8140, %v8192
  %v8241 = vmul.f32 %v8143, %v8192
  %v8242 = vmul.f32 %v8146, %v8192
  %v8243 = vmul.f32 %v8149, %v8192
  %v8244 = vmul.f32 %v8152, %v8192
  %v8245 = vmul.f32 %v8155, %v8192
  %v8246 = vmul.f32 %v8158, %v8192
  %v8247 = vmul.f32 %v8161, %v8192
  %v8248 = vmul.f32 %v8164, %v8192
  %v8249 = vmul.f32 %v8167, %v8192
  %v8250 = vmul.f32 %v8170, %v8192
  %v8251 = vmul.f32 %v8173, %v8192
  %v8252 = vmul.f32 %v8176, %v8192
  %v8253 = vmul.f32 %v8179, %v8192
  %v8254 = vmul.f32 %v8182, %v8192
  %v8255 = vmul.f32 %v8185, %v8192
  %v8256 = vmul.f32 %v8188, %v8192
  %v8257 = vperm.slane %v8191, 0
  %v8258 = vadd.f32 %v8193, %v8257
  %v8259 = vadd.f32 %v8194, %v8257
  %v8260 = vadd.f32 %v8195, %v8257
  %v8261 = vadd.f32 %v8196, %v8257
  %v8262 = vadd.f32 %v8197, %v8257
  %v8263 = vadd.f32 %v8198, %v8257
  %v8264 = vadd.f32 %v8199, %v8257
  %v8265 = vadd.f32 %v8200, %v8257
  %v8266 = vadd.f32 %v8201, %v8257
  %v8267 = vadd.f32 %v8202, %v8257
  %v8268 = vadd.f32 %v8203, %v8257
  %v8269 = vadd.f32 %v8204, %v8257
  %v8270 = vadd.f32 %v8205, %v8257
  %v8271 = vadd.f32 %v8206, %v8257
  %v8272 = vadd.f32 %v8207, %v8257
  %v8273 = vadd.f32 %v8208, %v8257
  %v8274 = vadd.f32 %v8209, %v8257
  %v8275 = vadd.f32 %v8210, %v8257
  %v8276 = vadd.f32 %v8211, %v8257
  %v8277 = vadd.f32 %v8212, %v8257
  %v8278 = vadd.f32 %v8213, %v8257
  %v8279 = vadd.f32 %v8214, %v8257
  %v8280 = vadd.f32 %v8215, %v8257
  %v8281 = vadd.f32 %v8216, %v8257
  %v8282 = vadd.f32 %v8217, %v8257
  %v8283 = vadd.f32 %v8218, %v8257
  %v8284 = vadd.f32 %v8219, %v8257
  %v8285 = vadd.f32 %v8220, %v8257
  %v8286 = vadd.f32 %v8221, %v8257
  %v8287 = vadd.f32 %v8222, %v8257
  %v8288 = vadd.f32 %v8223, %v8257
  %v8289 = vadd.f32 %v8224, %v8257
  %v8290 = vadd.f32 %v8225, %v8257
  %v8291 = vadd.f32 %v8226, %v8257
  %v8292 = vadd.f32 %v8227, %v8257
  %v8293 = vadd.f32 %v8228, %v8257
  %v8294 = vadd.f32 %v8229, %v8257
  %v8295 = vadd.f32 %v8230, %v8257
  %v8296 = vadd.f32 %v8231, %v8257
  %v8297 = vadd.f32 %v8232, %v8257
  %v8298 = vadd.f32 %v8233, %v8257
  %v8299 = vadd.f32 %v8234, %v8257
  %v8300 = vadd.f32 %v8235, %v8257
  %v8301 = vadd.f32 %v8236, %v8257
  %v8302 = vadd.f32 %v8237, %v8257
  %v8303 = vadd.f32 %v8238, %v8257
  %v8304 = vadd.f32 %v8239, %v8257
  %v8305 = vadd.f32 %v8240, %v8257
  %v8306 = vadd.f32 %v8241, %v8257
  %v8307 = vadd.f32 %v8242, %v8257
  %v8308 = vadd.f32 %v8243, %v8257
  %v8309 = vadd.f32 %v8244, %v8257
  %v8310 = vadd.f32 %v8245, %v8257
  %v8311 = vadd.f32 %v8246, %v8257
  %v8312 = vadd.f32 %v8247, %v8257
  %v8313 = vadd.f32 %v8248, %v8257
  %v8314 = vadd.f32 %v8249, %v8257
  %v8315 = vadd.f32 %v8250, %v8257
  %v8316 = vadd.f32 %v8251, %v8257
  %v8317 = vadd.f32 %v8252, %v8257
  %v8318 = vadd.f32 %v8253, %v8257
  %v8319 = vadd.f32 %v8254, %v8257
  %v8320 = vadd.f32 %v8255, %v8257
  %v8321 = vadd.f32 %v8256, %v8257
  %v8322 = vmax.f32 %v8258, 0.0
  %v8323 = vmax.f32 %v8259, 0.0
  %v8324 = vmax.f32 %v8260, 0.0
  %v8325 = vmax.f32 %v8261, 0.0
  %v8326 = vmax.f32 %v8262, 0.0
  %v8327 = vmax.f32 %v8263, 0.0
  %v8328 = vmax.f32 %v8264, 0.0
  %v8329 = vmax.f32 %v8265, 0.0
  %v8330 = vmax.f32 %v8266, 0.0
  %v8331 = vmax.f32 %v8267, 0.0
  %v8332 = vmax.f32 %v8268, 0.0
  %v8333 = vmax.f32 %v8269, 0.0
  %v8334 = vmax.f32 %v8270, 0.0
  %v8335 = vmax.f32 %v8271, 0.0
  %v8336 = vmax.f32 %v8272, 0.0
  %v8337 = vmax.f32 %v8273, 0.0
  %v8338 = vmax.f32 %v8274, 0.0
  %v8339 = vmax.f32 %v8275, 0.0
  %v8340 = vmax.f32 %v8276, 0.0
  %v8341 = vmax.f32 %v8277, 0.0
  %v8342 = vmax.f32 %v8278, 0.0
  %v8343 = vmax.f32 %v8279, 0.0
  %v8344 = vmax.f32 %v8280, 0.0
  %v8345 = vmax.f32 %v8281, 0.0
  %v8346 = vmax.f32 %v8282, 0.0
  %v8347 = vmax.f32 %v8283, 0.0
  %v8348 = vmax.f32 %v8284, 0.0
  %v8349 = vmax.f32 %v8285, 0.0
  %v8350 = vmax.f32 %v8286, 0.0
  %v8351 = vmax.f32 %v8287, 0.0
  %v8352 = vmax.f32 %v8288, 0.0
  %v8353 = vmax.f32 %v8289, 0.0
  %v8354 = vmax.f32 %v8290, 0.0
  %v8355 = vmax.f32 %v8291, 0.0
  %v8356 = vmax.f32 %v8292, 0.0
  %v8357 = vmax.f32 %v8293, 0.0
  %v8358 = vmax.f32 %v8294, 0.0
  %v8359 = vmax.f32 %v8295, 0.0
  %v8360 = vmax.f32 %v8296, 0.0
  %v8361 = vmax.f32 %v8297, 0.0
  %v8362 = vmax.f32 %v8298, 0.0
  %v8363 = vmax.f32 %v8299, 0.0
  %v8364 = vmax.f32 %v8300, 0.0
  %v8365 = vmax.f32 %v8301, 0.0
  %v8366 = vmax.f32 %v8302, 0.0
  %v8367 = vmax.f32 %v8303, 0.0
  %v8368 = vmax.f32 %v8304, 0.0
  %v8369 = vmax.f32 %v8305, 0.0
  %v8370 = vmax.f32 %v8306, 0.0
  %v8371 = vmax.f32 %v8307, 0.0
  %v8372 = vmax.f32 %v8308, 0.0
  %v8373 = vmax.f32 %v8309, 0.0
  %v8374 = vmax.f32 %v8310, 0.0
  %v8375 = vmax.f32 %v8311, 0.0
  %v8376 = vmax.f32 %v8312, 0.0
  %v8377 = vmax.f32 %v8313, 0.0
  %v8378 = vmax.f32 %v8314, 0.0
  %v8379 = vmax.f32 %v8315, 0.0
  %v8380 = vmax.f32 %v8316, 0.0
  %v8381 = vmax.f32 %v8317, 0.0
  %v8382 = vmax.f32 %v8318, 0.0
  %v8383 = vmax.f32 %v8319, 0.0
  %v8384 = vmax.f32 %v8320, 0.0
  %v8385 = vmax.f32 %v8321, 0.0
  %8386 = vst.msk [vmem:[#allocation5] sm:$0xff] %vm79, %v8322
  %8387 = vst.msk [vmem:[#allocation5 + $0x8] sm:$0xff] %vm79, %v8323
  %8388 = vst.msk [vmem:[#allocation5 + $0x10] sm:$0xff] %vm79, %v8324
  %8389 = vst.msk [vmem:[#allocation5 + $0x18] sm:$0xff] %vm79, %v8325
  %8390 = vst.msk [vmem:[#allocation5 + $0x20] sm:$0xff] %vm79, %v8326
  %8391 = vst.msk [vmem:[#allocation5 + $0x28] sm:$0xff] %vm79, %v8327
  %8392 = vst.msk [vmem:[#allocation5 + $0x30] sm:$0xff] %vm79, %v8328
  %8393 = vst.msk [vmem:[#allocation5 + $0x38] sm:$0xff] %vm79, %v8329
  %8394 = vst.msk [vmem:[#allocation5 + $0x40] sm:$0xff] %vm79, %v8330
  %8395 = vst.msk [vmem:[#allocation5 + $0x48] sm:$0xff] %vm79, %v8331
  %8396 = vst.msk [vmem:[#allocation5 + $0x50] sm:$0xff] %vm79, %v8332
  %8397 = vst.msk [vmem:[#allocation5 + $0x58] sm:$0xff] %vm79, %v8333
  %8398 = vst.msk [vmem:[#allocation5 + $0x60] sm:$0xff] %vm79, %v8334
  %8399 = vst.msk [vmem:[#allocation5 + $0x68] sm:$0xff] %vm79, %v8335
  %8400 = vst.msk [vmem:[#allocation5 + $0x70] sm:$0xff] %vm79, %v8336
  %8401 = vst.msk [vmem:[#allocation5 + $0x78] sm:$0xff] %vm79, %v8337
  %8402 = vst.msk [vmem:[#allocation5 + $0x80] sm:$0xff] %vm79, %v8338
  %8403 = vst.msk [vmem:[#allocation5 + $0x88] sm:$0xff] %vm79, %v8339
  %8404 = vst.msk [vmem:[#allocation5 + $0x90] sm:$0xff] %vm79, %v8340
  %8405 = vst.msk [vmem:[#allocation5 + $0x98] sm:$0xff] %vm79, %v8341
  %8406 = vst.msk [vmem:[#allocation5 + $0xa0] sm:$0xff] %vm79, %v8342
  %8407 = vst.msk [vmem:[#allocation5 + $0xa8] sm:$0xff] %vm79, %v8343
  %8408 = vst.msk [vmem:[#allocation5 + $0xb0] sm:$0xff] %vm79, %v8344
  %8409 = vst.msk [vmem:[#allocation5 + $0xb8] sm:$0xff] %vm79, %v8345
  %8410 = vst.msk [vmem:[#allocation5 + $0xc0] sm:$0xff] %vm79, %v8346
  %8411 = vst.msk [vmem:[#allocation5 + $0xc8] sm:$0xff] %vm79, %v8347
  %8412 = vst.msk [vmem:[#allocation5 + $0xd0] sm:$0xff] %vm79, %v8348
  %8413 = vst.msk [vmem:[#allocation5 + $0xd8] sm:$0xff] %vm79, %v8349
  %8414 = vst.msk [vmem:[#allocation5 + $0xe0] sm:$0xff] %vm79, %v8350
  %8415 = vst.msk [vmem:[#allocation5 + $0xe8] sm:$0xff] %vm79, %v8351
  %8416 = vst.msk [vmem:[#allocation5 + $0xf0] sm:$0xff] %vm79, %v8352
  %8417 = vst.msk [vmem:[#allocation5 + $0xf8] sm:$0xff] %vm79, %v8353
  %8418 = vst.msk [vmem:[#allocation5 + $0x100] sm:$0xff] %vm79, %v8354
  %8419 = vst.msk [vmem:[#allocation5 + $0x108] sm:$0xff] %vm79, %v8355
  %8420 = vst.msk [vmem:[#allocation5 + $0x110] sm:$0xff] %vm79, %v8356
  %8421 = vst.msk [vmem:[#allocation5 + $0x118] sm:$0xff] %vm79, %v8357
  %8422 = vst.msk [vmem:[#allocation5 + $0x120] sm:$0xff] %vm79, %v8358
  %8423 = vst.msk [vmem:[#allocation5 + $0x128] sm:$0xff] %vm79, %v8359
  %8424 = vst.msk [vmem:[#allocation5 + $0x130] sm:$0xff] %vm79, %v8360
  %8425 = vst.msk [vmem:[#allocation5 + $0x138] sm:$0xff] %vm79, %v8361
  %8426 = vst.msk [vmem:[#allocation5 + $0x140] sm:$0xff] %vm79, %v8362
  %8427 = vst.msk [vmem:[#allocation5 + $0x148] sm:$0xff] %vm79, %v8363
  %8428 = vst.msk [vmem:[#allocation5 + $0x150] sm:$0xff] %vm79, %v8364
  %8429 = vst.msk [vmem:[#allocation5 + $0x158] sm:$0xff] %vm79, %v8365
  %8430 = vst.msk [vmem:[#allocation5 + $0x160] sm:$0xff] %vm79, %v8366
  %8431 = vst.msk [vmem:[#allocation5 + $0x168] sm:$0xff] %vm79, %v8367
  %8432 = vst.msk [vmem:[#allocation5 + $0x170] sm:$0xff] %vm79, %v8368
  %8433 = vst.msk [vmem:[#allocation5 + $0x178] sm:$0xff] %vm79, %v8369
  %8434 = vst.msk [vmem:[#allocation5 + $0x180] sm:$0xff] %vm79, %v8370
  %8435 = vst.msk [vmem:[#allocation5 + $0x188] sm:$0xff] %vm79, %v8371
  %8436 = vst.msk [vmem:[#allocation5 + $0x190] sm:$0xff] %vm79, %v8372
  %8437 = vst.msk [vmem:[#allocation5 + $0x198] sm:$0xff] %vm79, %v8373
  %8438 = vst.msk [vmem:[#allocation5 + $0x1a0] sm:$0xff] %vm79, %v8374
  %8439 = vst.msk [vmem:[#allocation5 + $0x1a8] sm:$0xff] %vm79, %v8375
  %8440 = vst.msk [vmem:[#allocation5 + $0x1b0] sm:$0xff] %vm79, %v8376
  %8441 = vst.msk [vmem:[#allocation5 + $0x1b8] sm:$0xff] %vm79, %v8377
  %8442 = vst.msk [vmem:[#allocation5 + $0x1c0] sm:$0xff] %vm79, %v8378
  %8443 = vst.msk [vmem:[#allocation5 + $0x1c8] sm:$0xff] %vm79, %v8379
  %8444 = vst.msk [vmem:[#allocation5 + $0x1d0] sm:$0xff] %vm79, %v8380
  %8445 = vst.msk [vmem:[#allocation5 + $0x1d8] sm:$0xff] %vm79, %v8381
  %8446 = vst.msk [vmem:[#allocation5 + $0x1e0] sm:$0xff] %vm79, %v8382
  %8447 = vst.msk [vmem:[#allocation5 + $0x1e8] sm:$0xff] %vm79, %v8383
  %8448 = vst.msk [vmem:[#allocation5 + $0x1f0] sm:$0xff] %vm79, %v8384
  %8449 = vst.msk [vmem:[#allocation5 + $0x1f8] sm:$0xff] %vm79, %v8385
  %v8450 = vld [vmem:[#allocation5] ss:$2 sm:$0x7f]
  %s8451 = scalar_lea.vmem [#allocation5], 16
  %v8452 = vld [vmem:[%s8451] ss:$2 sm:$0x7f]
  %s8453 = scalar_lea.vmem [#allocation5], 32
  %v8454 = vld [vmem:[%s8453] ss:$2 sm:$0x7f]
  %s8455 = scalar_lea.vmem [#allocation5], 48
  %v8456 = vld [vmem:[%s8455] ss:$2 sm:$0x7f]
  %s8457 = scalar_lea.vmem [#allocation5], 64
  %v8458 = vld [vmem:[%s8457] ss:$2 sm:$0x7f]
  %s8459 = scalar_lea.vmem [#allocation5], 80
  %v8460 = vld [vmem:[%s8459] ss:$2 sm:$0x7f]
  %s8461 = scalar_lea.vmem [#allocation5], 96
  %v8462 = vld [vmem:[%s8461] ss:$2 sm:$0x7f]
  %s8463 = scalar_lea.vmem [#allocation5], 112
  %v8464 = vld [vmem:[%s8463] ss:$2 sm:$0x7f]
  %s8465 = scalar_lea.vmem [#allocation5], 128
  %v8466 = vld [vmem:[%s8465] ss:$2 sm:$0x7f]
  %s8467 = scalar_lea.vmem [#allocation5], 144
  %v8468 = vld [vmem:[%s8467] ss:$2 sm:$0x7f]
  %s8469 = scalar_lea.vmem [#allocation5], 160
  %v8470 = vld [vmem:[%s8469] ss:$2 sm:$0x7f]
  %s8471 = scalar_lea.vmem [#allocation5], 176
  %v8472 = vld [vmem:[%s8471] ss:$2 sm:$0x7f]
  %s8473 = scalar_lea.vmem [#allocation5], 192
  %v8474 = vld [vmem:[%s8473] ss:$2 sm:$0x7f]
  %s8475 = scalar_lea.vmem [#allocation5], 208
  %v8476 = vld [vmem:[%s8475] ss:$2 sm:$0x7f]
  %s8477 = scalar_lea.vmem [#allocation5], 224
  %v8478 = vld [vmem:[%s8477] ss:$2 sm:$0x7f]
  %s8479 = scalar_lea.vmem [#allocation5], 256
  %v8480 = vld [vmem:[%s8479] ss:$2 sm:$0x7f]
  %s8481 = scalar_lea.vmem [#allocation5], 272
  %v8482 = vld [vmem:[%s8481] ss:$2 sm:$0x7f]
  %s8483 = scalar_lea.vmem [#allocation5], 288
  %v8484 = vld [vmem:[%s8483] ss:$2 sm:$0x7f]
  %s8485 = scalar_lea.vmem [#allocation5], 304
  %v8486 = vld [vmem:[%s8485] ss:$2 sm:$0x7f]
  %s8487 = scalar_lea.vmem [#allocation5], 320
  %v8488 = vld [vmem:[%s8487] ss:$2 sm:$0x7f]
  %s8489 = scalar_lea.vmem [#allocation5], 336
  %v8490 = vld [vmem:[%s8489] ss:$2 sm:$0x7f]
  %s8491 = scalar_lea.vmem [#allocation5], 352
  %v8492 = vld [vmem:[%s8491] ss:$2 sm:$0x7f]
  %s8493 = scalar_lea.vmem [#allocation5], 368
  %v8494 = vld [vmem:[%s8493] ss:$2 sm:$0x7f]
  %s8495 = scalar_lea.vmem [#allocation5], 384
  %v8496 = vld [vmem:[%s8495] ss:$2 sm:$0x7f]
  %s8497 = scalar_lea.vmem [#allocation5], 400
  %v8498 = vld [vmem:[%s8497] ss:$2 sm:$0x7f]
  %s8499 = scalar_lea.vmem [#allocation5], 416
  %v8500 = vld [vmem:[%s8499] ss:$2 sm:$0x7f]
  %s8501 = scalar_lea.vmem [#allocation5], 432
  %v8502 = vld [vmem:[%s8501] ss:$2 sm:$0x7f]
  %s8503 = scalar_lea.vmem [#allocation5], 448
  %v8504 = vld [vmem:[%s8503] ss:$2 sm:$0x7f]
  %s8505 = scalar_lea.vmem [#allocation5], 464
  %v8506 = vld [vmem:[%s8505] ss:$2 sm:$0x7f]
  %s8507 = scalar_lea.vmem [#allocation5], 480
  %v8508 = vld [vmem:[%s8507] ss:$2 sm:$0x7f]
  %s8509 = scalar_lea.vmem [#allocation5], 1
  %v8510 = vld [vmem:[%s8509] ss:$2 sm:$0x7f]
  %s8511 = scalar_lea.vmem [#allocation5], 17
  %v8512 = vld [vmem:[%s8511] ss:$2 sm:$0x7f]
  %s8513 = scalar_lea.vmem [#allocation5], 33
  %v8514 = vld [vmem:[%s8513] ss:$2 sm:$0x7f]
  %s8515 = scalar_lea.vmem [#allocation5], 49
  %v8516 = vld [vmem:[%s8515] ss:$2 sm:$0x7f]
  %s8517 = scalar_lea.vmem [#allocation5], 65
  %v8518 = vld [vmem:[%s8517] ss:$2 sm:$0x7f]
  %s8519 = scalar_lea.vmem [#allocation5], 81
  %v8520 = vld [vmem:[%s8519] ss:$2 sm:$0x7f]
  %s8521 = scalar_lea.vmem [#allocation5], 97
  %v8522 = vld [vmem:[%s8521] ss:$2 sm:$0x7f]
  %s8523 = scalar_lea.vmem [#allocation5], 113
  %v8524 = vld [vmem:[%s8523] ss:$2 sm:$0x7f]
  %s8525 = scalar_lea.vmem [#allocation5], 129
  %v8526 = vld [vmem:[%s8525] ss:$2 sm:$0x7f]
  %s8527 = scalar_lea.vmem [#allocation5], 145
  %v8528 = vld [vmem:[%s8527] ss:$2 sm:$0x7f]
  %s8529 = scalar_lea.vmem [#allocation5], 161
  %v8530 = vld [vmem:[%s8529] ss:$2 sm:$0x7f]
  %s8531 = scalar_lea.vmem [#allocation5], 177
  %v8532 = vld [vmem:[%s8531] ss:$2 sm:$0x7f]
  %s8533 = scalar_lea.vmem [#allocation5], 193
  %v8534 = vld [vmem:[%s8533] ss:$2 sm:$0x7f]
  %s8535 = scalar_lea.vmem [#allocation5], 209
  %v8536 = vld [vmem:[%s8535] ss:$2 sm:$0x7f]
  %s8537 = scalar_lea.vmem [#allocation5], 225
  %v8538 = vld [vmem:[%s8537] ss:$2 sm:$0x7f]
  %s8539 = scalar_lea.vmem [#allocation5], 257
  %v8540 = vld [vmem:[%s8539] ss:$2 sm:$0x7f]
  %s8541 = scalar_lea.vmem [#allocation5], 273
  %v8542 = vld [vmem:[%s8541] ss:$2 sm:$0x7f]
  %s8543 = scalar_lea.vmem [#allocation5], 289
  %v8544 = vld [vmem:[%s8543] ss:$2 sm:$0x7f]
  %s8545 = scalar_lea.vmem [#allocation5], 305
  %v8546 = vld [vmem:[%s8545] ss:$2 sm:$0x7f]
  %s8547 = scalar_lea.vmem [#allocation5], 321
  %v8548 = vld [vmem:[%s8547] ss:$2 sm:$0x7f]
  %s8549 = scalar_lea.vmem [#allocation5], 337
  %v8550 = vld [vmem:[%s8549] ss:$2 sm:$0x7f]
  %s8551 = scalar_lea.vmem [#allocation5], 353
  %v8552 = vld [vmem:[%s8551] ss:$2 sm:$0x7f]
  %s8553 = scalar_lea.vmem [#allocation5], 369
  %v8554 = vld [vmem:[%s8553] ss:$2 sm:$0x7f]
  %s8555 = scalar_lea.vmem [#allocation5], 385
  %v8556 = vld [vmem:[%s8555] ss:$2 sm:$0x7f]
  %s8557 = scalar_lea.vmem [#allocation5], 401
  %v8558 = vld [vmem:[%s8557] ss:$2 sm:$0x7f]
  %s8559 = scalar_lea.vmem [#allocation5], 417
  %v8560 = vld [vmem:[%s8559] ss:$2 sm:$0x7f]
  %s8561 = scalar_lea.vmem [#allocation5], 433
  %v8562 = vld [vmem:[%s8561] ss:$2 sm:$0x7f]
  %s8563 = scalar_lea.vmem [#allocation5], 449
  %v8564 = vld [vmem:[%s8563] ss:$2 sm:$0x7f]
  %s8565 = scalar_lea.vmem [#allocation5], 465
  %v8566 = vld [vmem:[%s8565] ss:$2 sm:$0x7f]
  %s8567 = scalar_lea.vmem [#allocation5], 481
  %v8568 = vld [vmem:[%s8567] ss:$2 sm:$0x7f]
  %s8569 = scalar_lea.vmem [#allocation5], 2
  %v8570 = vld [vmem:[%s8569] ss:$2 sm:$0x7f]
  %s8571 = scalar_lea.vmem [#allocation5], 18
  %v8572 = vld [vmem:[%s8571] ss:$2 sm:$0x7f]
  %s8573 = scalar_lea.vmem [#allocation5], 34
  %v8574 = vld [vmem:[%s8573] ss:$2 sm:$0x7f]
  %s8575 = scalar_lea.vmem [#allocation5], 50
  %v8576 = vld [vmem:[%s8575] ss:$2 sm:$0x7f]
  %s8577 = scalar_lea.vmem [#allocation5], 66
  %v8578 = vld [vmem:[%s8577] ss:$2 sm:$0x7f]
  %s8579 = scalar_lea.vmem [#allocation5], 82
  %v8580 = vld [vmem:[%s8579] ss:$2 sm:$0x7f]
  %s8581 = scalar_lea.vmem [#allocation5], 98
  %v8582 = vld [vmem:[%s8581] ss:$2 sm:$0x7f]
  %s8583 = scalar_lea.vmem [#allocation5], 114
  %v8584 = vld [vmem:[%s8583] ss:$2 sm:$0x7f]
  %s8585 = scalar_lea.vmem [#allocation5], 130
  %v8586 = vld [vmem:[%s8585] ss:$2 sm:$0x7f]
  %s8587 = scalar_lea.vmem [#allocation5], 146
  %v8588 = vld [vmem:[%s8587] ss:$2 sm:$0x7f]
  %s8589 = scalar_lea.vmem [#allocation5], 162
  %v8590 = vld [vmem:[%s8589] ss:$2 sm:$0x7f]
  %s8591 = scalar_lea.vmem [#allocation5], 178
  %v8592 = vld [vmem:[%s8591] ss:$2 sm:$0x7f]
  %s8593 = scalar_lea.vmem [#allocation5], 194
  %v8594 = vld [vmem:[%s8593] ss:$2 sm:$0x7f]
  %s8595 = scalar_lea.vmem [#allocation5], 210
  %v8596 = vld [vmem:[%s8595] ss:$2 sm:$0x7f]
  %s8597 = scalar_lea.vmem [#allocation5], 226
  %v8598 = vld [vmem:[%s8597] ss:$2 sm:$0x7f]
  %s8599 = scalar_lea.vmem [#allocation5], 258
  %v8600 = vld [vmem:[%s8599] ss:$2 sm:$0x7f]
  %s8601 = scalar_lea.vmem [#allocation5], 274
  %v8602 = vld [vmem:[%s8601] ss:$2 sm:$0x7f]
  %s8603 = scalar_lea.vmem [#allocation5], 290
  %v8604 = vld [vmem:[%s8603] ss:$2 sm:$0x7f]
  %s8605 = scalar_lea.vmem [#allocation5], 306
  %v8606 = vld [vmem:[%s8605] ss:$2 sm:$0x7f]
  %s8607 = scalar_lea.vmem [#allocation5], 322
  %v8608 = vld [vmem:[%s8607] ss:$2 sm:$0x7f]
  %s8609 = scalar_lea.vmem [#allocation5], 338
  %v8610 = vld [vmem:[%s8609] ss:$2 sm:$0x7f]
  %s8611 = scalar_lea.vmem [#allocation5], 354
  %v8612 = vld [vmem:[%s8611] ss:$2 sm:$0x7f]
  %s8613 = scalar_lea.vmem [#allocation5], 370
  %v8614 = vld [vmem:[%s8613] ss:$2 sm:$0x7f]
  %s8615 = scalar_lea.vmem [#allocation5], 386
  %v8616 = vld [vmem:[%s8615] ss:$2 sm:$0x7f]
  %s8617 = scalar_lea.vmem [#allocation5], 402
  %v8618 = vld [vmem:[%s8617] ss:$2 sm:$0x7f]
  %s8619 = scalar_lea.vmem [#allocation5], 418
  %v8620 = vld [vmem:[%s8619] ss:$2 sm:$0x7f]
  %s8621 = scalar_lea.vmem [#allocation5], 434
  %v8622 = vld [vmem:[%s8621] ss:$2 sm:$0x7f]
  %s8623 = scalar_lea.vmem [#allocation5], 450
  %v8624 = vld [vmem:[%s8623] ss:$2 sm:$0x7f]
  %s8625 = scalar_lea.vmem [#allocation5], 466
  %v8626 = vld [vmem:[%s8625] ss:$2 sm:$0x7f]
  %s8627 = scalar_lea.vmem [#allocation5], 482
  %v8628 = vld [vmem:[%s8627] ss:$2 sm:$0x7f]
  %8659 = vrot.lane.b32.xlu0 %v8510, 8
  %v8660 = vpop.permute.xlu0 %8659
  %8661 = vrot.lane.b32.xlu0 %v8512, 8
  %v8662 = vpop.permute.xlu0 %8661
  %8663 = vrot.lane.b32.xlu0 %v8514, 8
  %v8664 = vpop.permute.xlu0 %8663
  %8665 = vrot.lane.b32.xlu0 %v8516, 8
  %v8666 = vpop.permute.xlu0 %8665
  %8667 = vrot.lane.b32.xlu0 %v8518, 8
  %v8668 = vpop.permute.xlu0 %8667
  %8669 = vrot.lane.b32.xlu0 %v8520, 8
  %v8670 = vpop.permute.xlu0 %8669
  %8671 = vrot.lane.b32.xlu0 %v8522, 8
  %v8672 = vpop.permute.xlu0 %8671
  %8673 = vrot.lane.b32.xlu0 %v8524, 8
  %v8674 = vpop.permute.xlu0 %8673
  %8675 = vrot.lane.b32.xlu0 %v8526, 8
  %v8676 = vpop.permute.xlu0 %8675
  %8677 = vrot.lane.b32.xlu0 %v8528, 8
  %v8678 = vpop.permute.xlu0 %8677
  %8679 = vrot.lane.b32.xlu0 %v8530, 8
  %v8680 = vpop.permute.xlu0 %8679
  %8681 = vrot.lane.b32.xlu0 %v8532, 8
  %v8682 = vpop.permute.xlu0 %8681
  %8683 = vrot.lane.b32.xlu0 %v8534, 8
  %v8684 = vpop.permute.xlu0 %8683
  %8685 = vrot.lane.b32.xlu0 %v8536, 8
  %v8686 = vpop.permute.xlu0 %8685
  %8687 = vrot.lane.b32.xlu0 %v8538, 8
  %v8688 = vpop.permute.xlu0 %8687
  %8689 = vrot.lane.b32.xlu0 %v8540, 8
  %v8690 = vpop.permute.xlu0 %8689
  %8691 = vrot.lane.b32.xlu0 %v8542, 8
  %v8692 = vpop.permute.xlu0 %8691
  %8693 = vrot.lane.b32.xlu0 %v8544, 8
  %v8694 = vpop.permute.xlu0 %8693
  %8695 = vrot.lane.b32.xlu0 %v8546, 8
  %v8696 = vpop.permute.xlu0 %8695
  %8697 = vrot.lane.b32.xlu0 %v8548, 8
  %v8698 = vpop.permute.xlu0 %8697
  %8699 = vrot.lane.b32.xlu0 %v8550, 8
  %v8700 = vpop.permute.xlu0 %8699
  %8701 = vrot.lane.b32.xlu0 %v8552, 8
  %v8702 = vpop.permute.xlu0 %8701
  %8703 = vrot.lane.b32.xlu0 %v8554, 8
  %v8704 = vpop.permute.xlu0 %8703
  %8705 = vrot.lane.b32.xlu0 %v8556, 8
  %v8706 = vpop.permute.xlu0 %8705
  %8707 = vrot.lane.b32.xlu0 %v8558, 8
  %v8708 = vpop.permute.xlu0 %8707
  %8709 = vrot.lane.b32.xlu0 %v8560, 8
  %v8710 = vpop.permute.xlu0 %8709
  %8711 = vrot.lane.b32.xlu0 %v8562, 8
  %v8712 = vpop.permute.xlu0 %8711
  %8713 = vrot.lane.b32.xlu0 %v8564, 8
  %v8714 = vpop.permute.xlu0 %8713
  %8715 = vrot.lane.b32.xlu0 %v8566, 8
  %v8716 = vpop.permute.xlu0 %8715
  %8717 = vrot.lane.b32.xlu0 %v8568, 8
  %v8718 = vpop.permute.xlu0 %8717
  %8779 = vrot.lane.b32.xlu0 %v8570, 16
  %v8780 = vpop.permute.xlu0 %8779
  %8781 = vrot.lane.b32.xlu0 %v8572, 16
  %v8782 = vpop.permute.xlu0 %8781
  %8783 = vrot.lane.b32.xlu0 %v8574, 16
  %v8784 = vpop.permute.xlu0 %8783
  %8785 = vrot.lane.b32.xlu0 %v8576, 16
  %v8786 = vpop.permute.xlu0 %8785
  %8787 = vrot.lane.b32.xlu0 %v8578, 16
  %v8788 = vpop.permute.xlu0 %8787
  %8789 = vrot.lane.b32.xlu0 %v8580, 16
  %v8790 = vpop.permute.xlu0 %8789
  %8791 = vrot.lane.b32.xlu0 %v8582, 16
  %v8792 = vpop.permute.xlu0 %8791
  %8793 = vrot.lane.b32.xlu0 %v8584, 16
  %v8794 = vpop.permute.xlu0 %8793
  %8795 = vrot.lane.b32.xlu0 %v8586, 16
  %v8796 = vpop.permute.xlu0 %8795
  %8797 = vrot.lane.b32.xlu0 %v8588, 16
  %v8798 = vpop.permute.xlu0 %8797
  %8799 = vrot.lane.b32.xlu0 %v8590, 16
  %v8800 = vpop.permute.xlu0 %8799
  %8801 = vrot.lane.b32.xlu0 %v8592, 16
  %v8802 = vpop.permute.xlu0 %8801
  %8803 = vrot.lane.b32.xlu0 %v8594, 16
  %v8804 = vpop.permute.xlu0 %8803
  %8805 = vrot.lane.b32.xlu0 %v8596, 16
  %v8806 = vpop.permute.xlu0 %8805
  %8807 = vrot.lane.b32.xlu0 %v8598, 16
  %v8808 = vpop.permute.xlu0 %8807
  %8809 = vrot.lane.b32.xlu0 %v8600, 16
  %v8810 = vpop.permute.xlu0 %8809
  %8811 = vrot.lane.b32.xlu0 %v8602, 16
  %v8812 = vpop.permute.xlu0 %8811
  %8813 = vrot.lane.b32.xlu0 %v8604, 16
  %v8814 = vpop.permute.xlu0 %8813
  %8815 = vrot.lane.b32.xlu0 %v8606, 16
  %v8816 = vpop.permute.xlu0 %8815
  %8817 = vrot.lane.b32.xlu0 %v8608, 16
  %v8818 = vpop.permute.xlu0 %8817
  %8819 = vrot.lane.b32.xlu0 %v8610, 16
  %v8820 = vpop.permute.xlu0 %8819
  %8821 = vrot.lane.b32.xlu0 %v8612, 16
  %v8822 = vpop.permute.xlu0 %8821
  %8823 = vrot.lane.b32.xlu0 %v8614, 16
  %v8824 = vpop.permute.xlu0 %8823
  %8825 = vrot.lane.b32.xlu0 %v8616, 16
  %v8826 = vpop.permute.xlu0 %8825
  %8827 = vrot.lane.b32.xlu0 %v8618, 16
  %v8828 = vpop.permute.xlu0 %8827
  %8829 = vrot.lane.b32.xlu0 %v8620, 16
  %v8830 = vpop.permute.xlu0 %8829
  %8831 = vrot.lane.b32.xlu0 %v8622, 16
  %v8832 = vpop.permute.xlu0 %8831
  %8833 = vrot.lane.b32.xlu0 %v8624, 16
  %v8834 = vpop.permute.xlu0 %8833
  %8835 = vrot.lane.b32.xlu0 %v8626, 16
  %v8836 = vpop.permute.xlu0 %8835
  %8837 = vrot.lane.b32.xlu0 %v8628, 16
  %v8838 = vpop.permute.xlu0 %8837
  %v8869 = vsel %vm79, %v8450, %v8660
  %v8870 = vsel %vm79, %v8452, %v8662
  %v8871 = vsel %vm79, %v8454, %v8664
  %v8872 = vsel %vm79, %v8456, %v8666
  %v8873 = vsel %vm79, %v8458, %v8668
  %v8874 = vsel %vm79, %v8460, %v8670
  %v8875 = vsel %vm79, %v8462, %v8672
  %v8876 = vsel %vm79, %v8464, %v8674
  %v8877 = vsel %vm79, %v8466, %v8676
  %v8878 = vsel %vm79, %v8468, %v8678
  %v8879 = vsel %vm79, %v8470, %v8680
  %v8880 = vsel %vm79, %v8472, %v8682
  %v8881 = vsel %vm79, %v8474, %v8684
  %v8882 = vsel %vm79, %v8476, %v8686
  %v8883 = vsel %vm79, %v8478, %v8688
  %v8884 = vsel %vm79, %v8480, %v8690
  %v8885 = vsel %vm79, %v8482, %v8692
  %v8886 = vsel %vm79, %v8484, %v8694
  %v8887 = vsel %vm79, %v8486, %v8696
  %v8888 = vsel %vm79, %v8488, %v8698
  %v8889 = vsel %vm79, %v8490, %v8700
  %v8890 = vsel %vm79, %v8492, %v8702
  %v8891 = vsel %vm79, %v8494, %v8704
  %v8892 = vsel %vm79, %v8496, %v8706
  %v8893 = vsel %vm79, %v8498, %v8708
  %v8894 = vsel %vm79, %v8500, %v8710
  %v8895 = vsel %vm79, %v8502, %v8712
  %v8896 = vsel %vm79, %v8504, %v8714
  %v8897 = vsel %vm79, %v8506, %v8716
  %v8898 = vsel %vm79, %v8508, %v8718
  %v8899 = vsel %vm1190, %v8869, %v8780
  %v8900 = vsel %vm1190, %v8870, %v8782
  %v8901 = vsel %vm1190, %v8871, %v8784
  %v8902 = vsel %vm1190, %v8872, %v8786
  %v8903 = vsel %vm1190, %v8873, %v8788
  %v8904 = vsel %vm1190, %v8874, %v8790
  %v8905 = vsel %vm1190, %v8875, %v8792
  %v8906 = vsel %vm1190, %v8876, %v8794
  %v8907 = vsel %vm1190, %v8877, %v8796
  %v8908 = vsel %vm1190, %v8878, %v8798
  %v8909 = vsel %vm1190, %v8879, %v8800
  %v8910 = vsel %vm1190, %v8880, %v8802
  %v8911 = vsel %vm1190, %v8881, %v8804
  %v8912 = vsel %vm1190, %v8882, %v8806
  %v8913 = vsel %vm1190, %v8883, %v8808
  %v8914 = vsel %vm1190, %v8884, %v8810
  %v8915 = vsel %vm1190, %v8885, %v8812
  %v8916 = vsel %vm1190, %v8886, %v8814
  %v8917 = vsel %vm1190, %v8887, %v8816
  %v8918 = vsel %vm1190, %v8888, %v8818
  %v8919 = vsel %vm1190, %v8889, %v8820
  %v8920 = vsel %vm1190, %v8890, %v8822
  %v8921 = vsel %vm1190, %v8891, %v8824
  %v8922 = vsel %vm1190, %v8892, %v8826
  %v8923 = vsel %vm1190, %v8893, %v8828
  %v8924 = vsel %vm1190, %v8894, %v8830
  %v8925 = vsel %vm1190, %v8895, %v8832
  %v8926 = vsel %vm1190, %v8896, %v8834
  %v8927 = vsel %vm1190, %v8897, %v8836
  %v8928 = vsel %vm1190, %v8898, %v8838
  %8943 = vrot.lane.b32.xlu0 %v8900, 24
  %v8944 = vpop.permute.xlu0 %8943
  %8945 = vrot.lane.b32.xlu0 %v8902, 24
  %v8946 = vpop.permute.xlu0 %8945
  %8947 = vrot.lane.b32.xlu0 %v8904, 24
  %v8948 = vpop.permute.xlu0 %8947
  %8949 = vrot.lane.b32.xlu0 %v8906, 24
  %v8950 = vpop.permute.xlu0 %8949
  %8951 = vrot.lane.b32.xlu0 %v8908, 24
  %v8952 = vpop.permute.xlu0 %8951
  %8953 = vrot.lane.b32.xlu0 %v8910, 24
  %v8954 = vpop.permute.xlu0 %8953
  %8955 = vrot.lane.b32.xlu0 %v8912, 24
  %v8956 = vpop.permute.xlu0 %8955
  %8957 = vrot.lane.b32.xlu0 %v8915, 24
  %v8958 = vpop.permute.xlu0 %8957
  %8959 = vrot.lane.b32.xlu0 %v8917, 24
  %v8960 = vpop.permute.xlu0 %8959
  %8961 = vrot.lane.b32.xlu0 %v8919, 24
  %v8962 = vpop.permute.xlu0 %8961
  %8963 = vrot.lane.b32.xlu0 %v8921, 24
  %v8964 = vpop.permute.xlu0 %8963
  %8965 = vrot.lane.b32.xlu0 %v8923, 24
  %v8966 = vpop.permute.xlu0 %8965
  %8967 = vrot.lane.b32.xlu0 %v8925, 24
  %v8968 = vpop.permute.xlu0 %8967
  %8969 = vrot.lane.b32.xlu0 %v8927, 24
  %v8970 = vpop.permute.xlu0 %8969
  %8999 = vrot.lane.b32.xlu0 %v8901, 48
  %v9000 = vpop.permute.xlu0 %8999
  %9001 = vrot.lane.b32.xlu0 %v8903, 48
  %v9002 = vpop.permute.xlu0 %9001
  %9003 = vrot.lane.b32.xlu0 %v8905, 48
  %v9004 = vpop.permute.xlu0 %9003
  %9005 = vrot.lane.b32.xlu0 %v8907, 48
  %v9006 = vpop.permute.xlu0 %9005
  %9007 = vrot.lane.b32.xlu0 %v8909, 48
  %v9008 = vpop.permute.xlu0 %9007
  %9009 = vrot.lane.b32.xlu0 %v8911, 48
  %v9010 = vpop.permute.xlu0 %9009
  %9011 = vrot.lane.b32.xlu0 %v8913, 48
  %v9012 = vpop.permute.xlu0 %9011
  %9013 = vrot.lane.b32.xlu0 %v8916, 48
  %v9014 = vpop.permute.xlu0 %9013
  %9015 = vrot.lane.b32.xlu0 %v8918, 48
  %v9016 = vpop.permute.xlu0 %9015
  %9017 = vrot.lane.b32.xlu0 %v8920, 48
  %v9018 = vpop.permute.xlu0 %9017
  %9019 = vrot.lane.b32.xlu0 %v8922, 48
  %v9020 = vpop.permute.xlu0 %9019
  %9021 = vrot.lane.b32.xlu0 %v8924, 48
  %v9022 = vpop.permute.xlu0 %9021
  %9023 = vrot.lane.b32.xlu0 %v8926, 48
  %v9024 = vpop.permute.xlu0 %9023
  %9025 = vrot.lane.b32.xlu0 %v8928, 48
  %v9026 = vpop.permute.xlu0 %9025
  %v9041 = vsel %vm1333, %v8899, %v8944
  %v9042 = vsel %vm1333, %v8901, %v8946
  %v9043 = vsel %vm1333, %v8903, %v8948
  %v9044 = vsel %vm1333, %v8905, %v8950
  %v9045 = vsel %vm1333, %v8907, %v8952
  %v9046 = vsel %vm1333, %v8909, %v8954
  %v9047 = vsel %vm1333, %v8911, %v8956
  %v9048 = vsel %vm1333, %v8914, %v8958
  %v9049 = vsel %vm1333, %v8916, %v8960
  %v9050 = vsel %vm1333, %v8918, %v8962
  %v9051 = vsel %vm1333, %v8920, %v8964
  %v9052 = vsel %vm1333, %v8922, %v8966
  %v9053 = vsel %vm1333, %v8924, %v8968
  %v9054 = vsel %vm1333, %v8926, %v8970
  %v9055 = vsel %vm1348, %v9041, %v9000
  %v9056 = vsel %vm1348, %v9042, %v9002
  %v9057 = vsel %vm1348, %v9043, %v9004
  %v9058 = vsel %vm1348, %v9044, %v9006
  %v9059 = vsel %vm1348, %v9045, %v9008
  %v9060 = vsel %vm1348, %v9046, %v9010
  %v9061 = vsel %vm1348, %v9047, %v9012
  %v9062 = vsel %vm1348, %v9048, %v9014
  %v9063 = vsel %vm1348, %v9049, %v9016
  %v9064 = vsel %vm1348, %v9050, %v9018
  %v9065 = vsel %vm1348, %v9051, %v9020
  %v9066 = vsel %vm1348, %v9052, %v9022
  %v9067 = vsel %vm1348, %v9053, %v9024
  %v9068 = vsel %vm1348, %v9054, %v9026
  %v9083 = vrot.slane %v9055, 1
  %v9084 = vrot.slane %v9055, 2
  %v9085 = vrot.slane %v9055, 3
  %v9086 = vrot.slane %v9055, 4
  %v9087 = vrot.slane %v9055, 5
  %v9088 = vrot.slane %v9055, 6
  %v9089 = vrot.slane %v9056, 1
  %v9090 = vrot.slane %v9056, 2
  %v9091 = vrot.slane %v9056, 3
  %v9092 = vrot.slane %v9056, 4
  %v9093 = vrot.slane %v9056, 5
  %v9094 = vrot.slane %v9056, 6
  %v9095 = vrot.slane %v9057, 1
  %v9096 = vrot.slane %v9057, 2
  %v9097 = vrot.slane %v9057, 3
  %v9098 = vrot.slane %v9057, 4
  %v9099 = vrot.slane %v9057, 5
  %v9100 = vrot.slane %v9057, 6
  %v9101 = vrot.slane %v9058, 1
  %v9102 = vrot.slane %v9058, 2
  %v9103 = vrot.slane %v9058, 3
  %v9104 = vrot.slane %v9058, 4
  %v9105 = vrot.slane %v9058, 5
  %v9106 = vrot.slane %v9058, 6
  %v9107 = vrot.slane %v9059, 1
  %v9108 = vrot.slane %v9059, 2
  %v9109 = vrot.slane %v9059, 3
  %v9110 = vrot.slane %v9059, 4
  %v9111 = vrot.slane %v9059, 5
  %v9112 = vrot.slane %v9059, 6
  %v9113 = vrot.slane %v9060, 1
  %v9114 = vrot.slane %v9060, 2
  %v9115 = vrot.slane %v9060, 3
  %v9116 = vrot.slane %v9060, 4
  %v9117 = vrot.slane %v9060, 5
  %v9118 = vrot.slane %v9060, 6
  %v9119 = vrot.slane %v9061, 1
  %v9120 = vrot.slane %v9061, 2
  %v9121 = vrot.slane %v9061, 3
  %v9122 = vrot.slane %v9061, 4
  %v9123 = vrot.slane %v9061, 5
  %v9124 = vrot.slane %v9061, 6
  %v9125 = vrot.slane %v9062, 1
  %v9126 = vrot.slane %v9062, 2
  %v9127 = vrot.slane %v9062, 3
  %v9128 = vrot.slane %v9062, 4
  %v9129 = vrot.slane %v9062, 5
  %v9130 = vrot.slane %v9062, 6
  %v9131 = vrot.slane %v9063, 1
  %v9132 = vrot.slane %v9063, 2
  %v9133 = vrot.slane %v9063, 3
  %v9134 = vrot.slane %v9063, 4
  %v9135 = vrot.slane %v9063, 5
  %v9136 = vrot.slane %v9063, 6
  %v9137 = vrot.slane %v9064, 1
  %v9138 = vrot.slane %v9064, 2
  %v9139 = vrot.slane %v9064, 3
  %v9140 = vrot.slane %v9064, 4
  %v9141 = vrot.slane %v9064, 5
  %v9142 = vrot.slane %v9064, 6
  %v9143 = vrot.slane %v9065, 1
  %v9144 = vrot.slane %v9065, 2
  %v9145 = vrot.slane %v9065, 3
  %v9146 = vrot.slane %v9065, 4
  %v9147 = vrot.slane %v9065, 5
  %v9148 = vrot.slane %v9065, 6
  %v9149 = vrot.slane %v9066, 1
  %v9150 = vrot.slane %v9066, 2
  %v9151 = vrot.slane %v9066, 3
  %v9152 = vrot.slane %v9066, 4
  %v9153 = vrot.slane %v9066, 5
  %v9154 = vrot.slane %v9066, 6
  %v9155 = vrot.slane %v9067, 1
  %v9156 = vrot.slane %v9067, 2
  %v9157 = vrot.slane %v9067, 3
  %v9158 = vrot.slane %v9067, 4
  %v9159 = vrot.slane %v9067, 5
  %v9160 = vrot.slane %v9067, 6
  %v9161 = vrot.slane %v9068, 1
  %v9162 = vrot.slane %v9068, 2
  %v9163 = vrot.slane %v9068, 3
  %v9164 = vrot.slane %v9068, 4
  %v9165 = vrot.slane %v9068, 5
  %v9166 = vrot.slane %v9068, 6
  %v9167 = vld [vmem:[%s1 + $0xc8] sm:$0xff]
  %v9168 = vld [vmem:[%s1 + $0xd0] sm:$0xff]
  %v9169 = vld [vmem:[%s1 + $0xd8] sm:$0xff]
  %v9170 = vld [vmem:[%s1 + $0xe0] sm:$0xff]
  %v9171 = vld [vmem:[%s1 + $0xe8] sm:$0xff]
  %v9172 = vld [vmem:[%s1 + $0xf0] sm:$0xff]
  %v9173 = vld [vmem:[%s1 + $0xf8] sm:$0xff]
  %v9174 = vld [vmem:[%s1 + $0x100] sm:$0xff]
  %v9175 = vld [vmem:[%s1 + $0x108] sm:$0xff]
  %9176 = vst [vmem:[#allocation1] ss:$9 sm:$0xff] %v9055
  %s9177 = scalar_lea.vmem [#allocation1], 1
  %9178 = vst [vmem:[%s9177] ss:$9 sm:$0xff] %v9083
  %s9179 = scalar_lea.vmem [#allocation1], 2
  %9180 = vst [vmem:[%s9179] ss:$9 sm:$0xff] %v9084
  %s9181 = scalar_lea.vmem [#allocation1], 3
  %9182 = vst [vmem:[%s9181] ss:$9 sm:$0xff] %v9085
  %s9183 = scalar_lea.vmem [#allocation1], 4
  %9184 = vst [vmem:[%s9183] ss:$9 sm:$0xff] %v9086
  %s9185 = scalar_lea.vmem [#allocation1], 5
  %9186 = vst [vmem:[%s9185] ss:$9 sm:$0xff] %v9087
  %s9187 = scalar_lea.vmem [#allocation1], 6
  %9188 = vst [vmem:[%s9187] ss:$9 sm:$0xff] %v9088
  %s9189 = scalar_lea.vmem [#allocation1], 7
  %9190 = vst [vmem:[%s9189] ss:$9 sm:$0xff] %v9056
  %v9191 = vld [vmem:[#allocation1] sm:$0xff]
  %9192 = vst [vmem:[#allocation1] ss:$9 sm:$0xff] %v9089
  %9193 = vst [vmem:[%s9177] ss:$9 sm:$0xff] %v9090
  %9194 = vst [vmem:[%s9179] ss:$9 sm:$0xff] %v9091
  %9195 = vst [vmem:[%s9181] ss:$9 sm:$0xff] %v9092
  %9196 = vst [vmem:[%s9183] ss:$9 sm:$0xff] %v9093
  %9197 = vst [vmem:[%s9185] ss:$9 sm:$0xff] %v9094
  %9198 = vst [vmem:[%s9187] ss:$9 sm:$0xff] %v9057
  %9199 = vst [vmem:[%s9189] ss:$9 sm:$0xff] %v9095
  %v9200 = vld [vmem:[#allocation1] sm:$0xff]
  %9201 = vst [vmem:[#allocation1] ss:$9 sm:$0xff] %v9096
  %9202 = vst [vmem:[%s9177] ss:$9 sm:$0xff] %v9097
  %9203 = vst [vmem:[%s9179] ss:$9 sm:$0xff] %v9098
  %9204 = vst [vmem:[%s9181] ss:$9 sm:$0xff] %v9099
  %9205 = vst [vmem:[%s9183] ss:$9 sm:$0xff] %v9100
  %9206 = vst [vmem:[%s9185] ss:$9 sm:$0xff] %v9058
  %9207 = vst [vmem:[%s9187] ss:$9 sm:$0xff] %v9101
  %9208 = vst [vmem:[%s9189] ss:$9 sm:$0xff] %v9102
  %v9209 = vld [vmem:[#allocation1] sm:$0xff]
  %9210 = vst [vmem:[#allocation1] ss:$9 sm:$0xff] %v9103
  %9211 = vst [vmem:[%s9177] ss:$9 sm:$0xff] %v9104
  %9212 = vst [vmem:[%s9179] ss:$9 sm:$0xff] %v9105
  %9213 = vst [vmem:[%s9181] ss:$9 sm:$0xff] %v9106
  %9214 = vst [vmem:[%s9183] ss:$9 sm:$0xff] %v9059
  %9215 = vst [vmem:[%s9185] ss:$9 sm:$0xff] %v9107
  %9216 = vst [vmem:[%s9187] ss:$9 sm:$0xff] %v9108
  %9217 = vst [vmem:[%s9189] ss:$9 sm:$0xff] %v9109
  %v9218 = vld [vmem:[#allocation1] sm:$0xff]
  %9219 = vst [vmem:[#allocation1] ss:$9 sm:$0xff] %v9110
  %9220 = vst [vmem:[%s9177] ss:$9 sm:$0xff] %v9111
  %9221 = vst [vmem:[%s9179] ss:$9 sm:$0xff] %v9112
  %9222 = vst [vmem:[%s9181] ss:$9 sm:$0xff] %v9060
  %9223 = vst [vmem:[%s9183] ss:$9 sm:$0xff] %v9113
  %9224 = vst [vmem:[%s9185] ss:$9 sm:$0xff] %v9114
  %9225 = vst [vmem:[%s9187] ss:$9 sm:$0xff] %v9115
  %9226 = vst [vmem:[%s9189] ss:$9 sm:$0xff] %v9116
  %v9227 = vld [vmem:[#allocation1] sm:$0xff]
  %9228 = vst [vmem:[#allocation1] ss:$9 sm:$0xff] %v9117
  %9229 = vst [vmem:[%s9177] ss:$9 sm:$0xff] %v9118
  %9230 = vst [vmem:[%s9179] ss:$9 sm:$0xff] %v9061
  %9231 = vst [vmem:[%s9181] ss:$9 sm:$0xff] %v9119
  %9232 = vst [vmem:[%s9183] ss:$9 sm:$0xff] %v9120
  %9233 = vst [vmem:[%s9185] ss:$9 sm:$0xff] %v9121
  %9234 = vst [vmem:[%s9187] ss:$9 sm:$0xff] %v9122
  %9235 = vst [vmem:[%s9189] ss:$9 sm:$0xff] %v9123
  %v9236 = vld [vmem:[#allocation1] sm:$0xff]
  %9237 = vst [vmem:[#allocation1] ss:$9 sm:$0xff] %v9124
  %9238 = vst [vmem:[%s9177] ss:$9 sm:$0xff] %v9062
  %9239 = vst [vmem:[%s9179] ss:$9 sm:$0xff] %v9125
  %9240 = vst [vmem:[%s9181] ss:$9 sm:$0xff] %v9126
  %9241 = vst [vmem:[%s9183] ss:$9 sm:$0xff] %v9127
  %9242 = vst [vmem:[%s9185] ss:$9 sm:$0xff] %v9128
  %9243 = vst [vmem:[%s9187] ss:$9 sm:$0xff] %v9129
  %9244 = vst [vmem:[%s9189] ss:$9 sm:$0xff] %v9130
  %v9245 = vld [vmem:[#allocation1] sm:$0xff]
  %9246 = vst [vmem:[#allocation1] ss:$9 sm:$0xff] %v9063
  %9247 = vst [vmem:[%s9177] ss:$9 sm:$0xff] %v9131
  %9248 = vst [vmem:[%s9179] ss:$9 sm:$0xff] %v9132
  %9249 = vst [vmem:[%s9181] ss:$9 sm:$0xff] %v9133
  %9250 = vst [vmem:[%s9183] ss:$9 sm:$0xff] %v9134
  %9251 = vst [vmem:[%s9185] ss:$9 sm:$0xff] %v9135
  %9252 = vst [vmem:[%s9187] ss:$9 sm:$0xff] %v9136
  %9253 = vst [vmem:[%s9189] ss:$9 sm:$0xff] %v9064
  %v9254 = vld [vmem:[#allocation1] sm:$0xff]
  %9255 = vst [vmem:[#allocation1] ss:$9 sm:$0xff] %v9137
  %9256 = vst [vmem:[%s9177] ss:$9 sm:$0xff] %v9138
  %9257 = vst [vmem:[%s9179] ss:$9 sm:$0xff] %v9139
  %9258 = vst [vmem:[%s9181] ss:$9 sm:$0xff] %v9140
  %9259 = vst [vmem:[%s9183] ss:$9 sm:$0xff] %v9141
  %9260 = vst [vmem:[%s9185] ss:$9 sm:$0xff] %v9142
  %9261 = vst [vmem:[%s9187] ss:$9 sm:$0xff] %v9065
  %9262 = vst [vmem:[%s9189] ss:$9 sm:$0xff] %v9143
  %v9263 = vld [vmem:[#allocation1] sm:$0xff]
  %9264 = vst [vmem:[#allocation1] ss:$9 sm:$0xff] %v9144
  %9265 = vst [vmem:[%s9177] ss:$9 sm:$0xff] %v9145
  %9266 = vst [vmem:[%s9179] ss:$9 sm:$0xff] %v9146
  %9267 = vst [vmem:[%s9181] ss:$9 sm:$0xff] %v9147
  %9268 = vst [vmem:[%s9183] ss:$9 sm:$0xff] %v9148
  %9269 = vst [vmem:[%s9185] ss:$9 sm:$0xff] %v9066
  %9270 = vst [vmem:[%s9187] ss:$9 sm:$0xff] %v9149
  %9271 = vst [vmem:[%s9189] ss:$9 sm:$0xff] %v9150
  %v9272 = vld [vmem:[#allocation1] sm:$0xff]
  %9273 = vst [vmem:[#allocation1] ss:$9 sm:$0xff] %v9151
  %9274 = vst [vmem:[%s9177] ss:$9 sm:$0xff] %v9152
  %9275 = vst [vmem:[%s9179] ss:$9 sm:$0xff] %v9153
  %9276 = vst [vmem:[%s9181] ss:$9 sm:$0xff] %v9154
  %9277 = vst [vmem:[%s9183] ss:$9 sm:$0xff] %v9067
  %9278 = vst [vmem:[%s9185] ss:$9 sm:$0xff] %v9155
  %9279 = vst [vmem:[%s9187] ss:$9 sm:$0xff] %v9156
  %9280 = vst [vmem:[%s9189] ss:$9 sm:$0xff] %v9157
  %v9281 = vld [vmem:[#allocation1] sm:$0xff]
  %9282 = vst [vmem:[#allocation1] ss:$9 sm:$0xff] %v9158
  %9283 = vst [vmem:[%s9177] ss:$9 sm:$0xff] %v9159
  %9284 = vst [vmem:[%s9179] ss:$9 sm:$0xff] %v9160
  %9285 = vst [vmem:[%s9181] ss:$9 sm:$0xff] %v9068
  %9286 = vst [vmem:[%s9183] ss:$9 sm:$0xff] %v9161
  %9287 = vst [vmem:[%s9185] ss:$9 sm:$0xff] %v9162
  %9288 = vst [vmem:[%s9187] ss:$9 sm:$0xff] %v9163
  %9289 = vst [vmem:[%s9189] ss:$9 sm:$0xff] %v9164
  %v9290 = vld [vmem:[#allocation1] sm:$0xff]
  %9291 = vst [vmem:[#allocation1] ss:$9 sm:$0xff] %v9165
  %9292 = vst [vmem:[%s9177] ss:$9 sm:$0xff] %v9166
  %v9293 = vld [vmem:[#allocation1] sm:$0xff]
  %v9294 = vsel %vm1588, %v9191, 0
  %v9296 = vsel %vm1588, %v9200, 0
  %v9298 = vsel %vm1588, %v9209, 0
  %v9300 = vsel %vm1588, %v9218, 0
  %v9302 = vsel %vm1588, %v9227, 0
  %v9304 = vsel %vm1588, %v9236, 0
  %v9306 = vsel %vm1588, %v9245, 0
  %v9308 = vsel %vm1588, %v9254, 0
  %v9310 = vsel %vm1588, %v9263, 0
  %v9312 = vsel %vm1588, %v9272, 0
  %v9314 = vsel %vm1588, %v9281, 0
  %v9316 = vsel %vm1588, %v9290, 0
  %v9318 = vsel %vm1588, %v9293, 0
  %9320 = vmatpush.msra.mxu0 0.0
  %9321 = vmatpush.msra.mxu0 0.0
  %9322 = vmatpush.msra.mxu0 0.0
  %9323 = vmatpush.msra.mxu0 0.0
  %9324 = vmatpush.msra.mxu0 0.0
  %9325 = vmatpush.msra.mxu0 0.0
  %9326 = vmatpush.msra.mxu0 0.0
  %9327 = vmatpush.msra.mxu0 %v9175
  %9328 = vmatpush.msra.mxu0 %v9174
  %9329 = vmatpush.msra.mxu0 %v9173
  %9330 = vmatpush.msra.mxu0 %v9172
  %9331 = vmatpush.msra.mxu0 %v9171
  %9332 = vmatpush.msra.mxu0 %v9170
  %9333 = vmatpush.msra.mxu0 %v9169
  %9334 = vmatpush.msra.mxu0 %v9168
  %9335 = vmatpush.msra.mxu0 %v9167
  %9336 = vmatmul.f32.gmra.mxu0 %v9294
  %v9337 = vpop.f32.mrf.mxu0
  %v9338 = vadd.f32 0.0, %v9337
  %9339 = vmatmul.f32.gmra.mxu0 %v9296
  %v9340 = vpop.f32.mrf.mxu0
  %v9341 = vadd.f32 0.0, %v9340
  %9342 = vmatmul.f32.gmra.mxu0 %v9298
  %v9343 = vpop.f32.mrf.mxu0
  %v9344 = vadd.f32 0.0, %v9343
  %9345 = vmatmul.f32.gmra.mxu0 %v9300
  %v9346 = vpop.f32.mrf.mxu0
  %v9347 = vadd.f32 0.0, %v9346
  %9348 = vmatmul.f32.gmra.mxu0 %v9302
  %v9349 = vpop.f32.mrf.mxu0
  %v9350 = vadd.f32 0.0, %v9349
  %9351 = vmatmul.f32.gmra.mxu0 %v9304
  %v9352 = vpop.f32.mrf.mxu0
  %v9353 = vadd.f32 0.0, %v9352
  %9354 = vmatmul.f32.gmra.mxu0 %v9306
  %v9355 = vpop.f32.mrf.mxu0
  %v9356 = vadd.f32 0.0, %v9355
  %9357 = vmatmul.f32.gmra.mxu0 %v9308
  %v9358 = vpop.f32.mrf.mxu0
  %v9359 = vadd.f32 0.0, %v9358
  %9360 = vmatmul.f32.gmra.mxu0 %v9310
  %v9361 = vpop.f32.mrf.mxu0
  %v9362 = vadd.f32 0.0, %v9361
  %9363 = vmatmul.f32.gmra.mxu0 %v9312
  %v9364 = vpop.f32.mrf.mxu0
  %v9365 = vadd.f32 0.0, %v9364
  %9366 = vmatmul.f32.gmra.mxu0 %v9314
  %v9367 = vpop.f32.mrf.mxu0
  %v9368 = vadd.f32 0.0, %v9367
  %9369 = vmatmul.f32.gmra.mxu0 %v9316
  %v9370 = vpop.f32.mrf.mxu0
  %v9371 = vadd.f32 0.0, %v9370
  %9372 = vmatmul.f32.gmra.mxu0 %v9318
  %v9373 = vpop.f32.mrf.mxu0
  %v9374 = vadd.f32 0.0, %v9373
  %9375 = vdwg.mxu0
  %v9376 = vld [vmem:[%s2 + $0xa] sm:$0x1]
  %v9377 = vld [vmem:[%s2 + $0xb] sm:$0x1]
  %v9378 = vperm.slane %v9376, 0
  %v9379 = vmul.f32 %v9338, %v9378
  %v9380 = vmul.f32 %v9341, %v9378
  %v9381 = vmul.f32 %v9344, %v9378
  %v9382 = vmul.f32 %v9347, %v9378
  %v9383 = vmul.f32 %v9350, %v9378
  %v9384 = vmul.f32 %v9353, %v9378
  %v9385 = vmul.f32 %v9356, %v9378
  %v9386 = vmul.f32 %v9359, %v9378
  %v9387 = vmul.f32 %v9362, %v9378
  %v9388 = vmul.f32 %v9365, %v9378
  %v9389 = vmul.f32 %v9368, %v9378
  %v9390 = vmul.f32 %v9371, %v9378
  %v9391 = vmul.f32 %v9374, %v9378
  %v9392 = vperm.slane %v9377, 0
  %v9393 = vadd.f32 %v9379, %v9392
  %v9394 = vadd.f32 %v9380, %v9392
  %v9395 = vadd.f32 %v9381, %v9392
  %v9396 = vadd.f32 %v9382, %v9392
  %v9397 = vadd.f32 %v9383, %v9392
  %v9398 = vadd.f32 %v9384, %v9392
  %v9399 = vadd.f32 %v9385, %v9392
  %v9400 = vadd.f32 %v9386, %v9392
  %v9401 = vadd.f32 %v9387, %v9392
  %v9402 = vadd.f32 %v9388, %v9392
  %v9403 = vadd.f32 %v9389, %v9392
  %v9404 = vadd.f32 %v9390, %v9392
  %v9405 = vadd.f32 %v9391, %v9392
  %v9406 = vmax.f32 %v9393, 0.0
  %v9407 = vmax.f32 %v9394, 0.0
  %v9408 = vmax.f32 %v9395, 0.0
  %v9409 = vmax.f32 %v9396, 0.0
  %v9410 = vmax.f32 %v9397, 0.0
  %v9411 = vmax.f32 %v9398, 0.0
  %v9412 = vmax.f32 %v9399, 0.0
  %v9413 = vmax.f32 %v9400, 0.0
  %v9414 = vmax.f32 %v9401, 0.0
  %v9415 = vmax.f32 %v9402, 0.0
  %v9416 = vmax.f32 %v9403, 0.0
  %v9417 = vmax.f32 %v9404, 0.0
  %v9418 = vmax.f32 %v9405, 0.0
  %v9419 = vld [vmem:[%s0] ss:$2 sm:$0x7f]
  %s9420 = scalar_lea.vmem %s0, 16
  %v9421 = vld [vmem:[%s9420] ss:$2 sm:$0x7f]
  %s9422 = scalar_lea.vmem %s0, 32
  %v9423 = vld [vmem:[%s9422] ss:$2 sm:$0x7f]
  %s9424 = scalar_lea.vmem %s0, 48
  %v9425 = vld [vmem:[%s9424] ss:$2 sm:$0x7f]
  %s9426 = scalar_lea.vmem %s0, 64
  %v9427 = vld [vmem:[%s9426] ss:$2 sm:$0x7f]
  %s9428 = scalar_lea.vmem %s0, 80
  %v9429 = vld [vmem:[%s9428] ss:$2 sm:$0x7f]
  %s9430 = scalar_lea.vmem %s0, 96
  %v9431 = vld [vmem:[%s9430] ss:$2 sm:$0x7f]
  %s9432 = scalar_lea.vmem %s0, 112
  %v9433 = vld [vmem:[%s9432] ss:$2 sm:$0x7f]
  %s9434 = scalar_lea.vmem %s0, 128
  %v9435 = vld [vmem:[%s9434] ss:$2 sm:$0x7f]
  %s9436 = scalar_lea.vmem %s0, 144
  %v9437 = vld [vmem:[%s9436] ss:$2 sm:$0x7f]
  %s9438 = scalar_lea.vmem %s0, 160
  %v9439 = vld [vmem:[%s9438] ss:$2 sm:$0x7f]
  %s9440 = scalar_lea.vmem %s0, 176
  %v9441 = vld [vmem:[%s9440] ss:$2 sm:$0x7f]
  %s9442 = scalar_lea.vmem %s0, 192
  %v9443 = vld [vmem:[%s9442] ss:$2 sm:$0x7f]
  %s9444 = scalar_lea.vmem %s0, 208
  %v9445 = vld [vmem:[%s9444] ss:$2 sm:$0x7f]
  %s9446 = scalar_lea.vmem %s0, 224
  %v9447 = vld [vmem:[%s9446] ss:$2 sm:$0x7f]
  %s9448 = scalar_lea.vmem %s0, 256
  %v9449 = vld [vmem:[%s9448] ss:$2 sm:$0x7f]
  %s9450 = scalar_lea.vmem %s0, 272
  %v9451 = vld [vmem:[%s9450] ss:$2 sm:$0x7f]
  %s9452 = scalar_lea.vmem %s0, 288
  %v9453 = vld [vmem:[%s9452] ss:$2 sm:$0x7f]
  %s9454 = scalar_lea.vmem %s0, 304
  %v9455 = vld [vmem:[%s9454] ss:$2 sm:$0x7f]
  %s9456 = scalar_lea.vmem %s0, 320
  %v9457 = vld [vmem:[%s9456] ss:$2 sm:$0x7f]
  %s9458 = scalar_lea.vmem %s0, 336
  %v9459 = vld [vmem:[%s9458] ss:$2 sm:$0x7f]
  %s9460 = scalar_lea.vmem %s0, 352
  %v9461 = vld [vmem:[%s9460] ss:$2 sm:$0x7f]
  %s9462 = scalar_lea.vmem %s0, 368
  %v9463 = vld [vmem:[%s9462] ss:$2 sm:$0x7f]
  %s9464 = scalar_lea.vmem %s0, 384
  %v9465 = vld [vmem:[%s9464] ss:$2 sm:$0x7f]
  %s9466 = scalar_lea.vmem %s0, 400
  %v9467 = vld [vmem:[%s9466] ss:$2 sm:$0x7f]
  %s9468 = scalar_lea.vmem %s0, 416
  %v9469 = vld [vmem:[%s9468] ss:$2 sm:$0x7f]
  %s9470 = scalar_lea.vmem %s0, 432
  %v9471 = vld [vmem:[%s9470] ss:$2 sm:$0x7f]
  %s9472 = scalar_lea.vmem %s0, 448
  %v9473 = vld [vmem:[%s9472] ss:$2 sm:$0x7f]
  %s9474 = scalar_lea.vmem %s0, 464
  %v9475 = vld [vmem:[%s9474] ss:$2 sm:$0x7f]
  %s9476 = scalar_lea.vmem %s0, 480
  %v9477 = vld [vmem:[%s9476] ss:$2 sm:$0x7f]
  %s9478 = scalar_lea.vmem %s0, 1
  %v9479 = vld [vmem:[%s9478] ss:$2 sm:$0x7f]
  %s9480 = scalar_lea.vmem %s0, 17
  %v9481 = vld [vmem:[%s9480] ss:$2 sm:$0x7f]
  %s9482 = scalar_lea.vmem %s0, 33
  %v9483 = vld [vmem:[%s9482] ss:$2 sm:$0x7f]
  %s9484 = scalar_lea.vmem %s0, 49
  %v9485 = vld [vmem:[%s9484] ss:$2 sm:$0x7f]
  %s9486 = scalar_lea.vmem %s0, 65
  %v9487 = vld [vmem:[%s9486] ss:$2 sm:$0x7f]
  %s9488 = scalar_lea.vmem %s0, 81
  %v9489 = vld [vmem:[%s9488] ss:$2 sm:$0x7f]
  %s9490 = scalar_lea.vmem %s0, 97
  %v9491 = vld [vmem:[%s9490] ss:$2 sm:$0x7f]
  %s9492 = scalar_lea.vmem %s0, 113
  %v9493 = vld [vmem:[%s9492] ss:$2 sm:$0x7f]
  %s9494 = scalar_lea.vmem %s0, 129
  %v9495 = vld [vmem:[%s9494] ss:$2 sm:$0x7f]
  %s9496 = scalar_lea.vmem %s0, 145
  %v9497 = vld [vmem:[%s9496] ss:$2 sm:$0x7f]
  %s9498 = scalar_lea.vmem %s0, 161
  %v9499 = vld [vmem:[%s9498] ss:$2 sm:$0x7f]
  %s9500 = scalar_lea.vmem %s0, 177
  %v9501 = vld [vmem:[%s9500] ss:$2 sm:$0x7f]
  %s9502 = scalar_lea.vmem %s0, 193
  %v9503 = vld [vmem:[%s9502] ss:$2 sm:$0x7f]
  %s9504 = scalar_lea.vmem %s0, 209
  %v9505 = vld [vmem:[%s9504] ss:$2 sm:$0x7f]
  %s9506 = scalar_lea.vmem %s0, 225
  %v9507 = vld [vmem:[%s9506] ss:$2 sm:$0x7f]
  %s9508 = scalar_lea.vmem %s0, 257
  %v9509 = vld [vmem:[%s9508] ss:$2 sm:$0x7f]
  %s9510 = scalar_lea.vmem %s0, 273
  %v9511 = vld [vmem:[%s9510] ss:$2 sm:$0x7f]
  %s9512 = scalar_lea.vmem %s0, 289
  %v9513 = vld [vmem:[%s9512] ss:$2 sm:$0x7f]
  %s9514 = scalar_lea.vmem %s0, 305
  %v9515 = vld [vmem:[%s9514] ss:$2 sm:$0x7f]
  %s9516 = scalar_lea.vmem %s0, 321
  %v9517 = vld [vmem:[%s9516] ss:$2 sm:$0x7f]
  %s9518 = scalar_lea.vmem %s0, 337
  %v9519 = vld [vmem:[%s9518] ss:$2 sm:$0x7f]
  %s9520 = scalar_lea.vmem %s0, 353
  %v9521 = vld [vmem:[%s9520] ss:$2 sm:$0x7f]
  %s9522 = scalar_lea.vmem %s0, 369
  %v9523 = vld [vmem:[%s9522] ss:$2 sm:$0x7f]
  %s9524 = scalar_lea.vmem %s0, 385
  %v9525 = vld [vmem:[%s9524] ss:$2 sm:$0x7f]
  %s9526 = scalar_lea.vmem %s0, 401
  %v9527 = vld [vmem:[%s9526] ss:$2 sm:$0x7f]
  %s9528 = scalar_lea.vmem %s0, 417
  %v9529 = vld [vmem:[%s9528] ss:$2 sm:$0x7f]
  %s9530 = scalar_lea.vmem %s0, 433
  %v9531 = vld [vmem:[%s9530] ss:$2 sm:$0x7f]
  %s9532 = scalar_lea.vmem %s0, 449
  %v9533 = vld [vmem:[%s9532] ss:$2 sm:$0x7f]
  %s9534 = scalar_lea.vmem %s0, 465
  %v9535 = vld [vmem:[%s9534] ss:$2 sm:$0x7f]
  %s9536 = scalar_lea.vmem %s0, 481
  %v9537 = vld [vmem:[%s9536] ss:$2 sm:$0x7f]
  %v9538 = vadd.f32 %v9419, %v9479
  %v9539 = vadd.f32 %v9421, %v9481
  %v9540 = vadd.f32 %v9423, %v9483
  %v9541 = vadd.f32 %v9425, %v9485
  %v9542 = vadd.f32 %v9427, %v9487
  %v9543 = vadd.f32 %v9429, %v9489
  %v9544 = vadd.f32 %v9431, %v9491
  %v9545 = vadd.f32 %v9433, %v9493
  %v9546 = vadd.f32 %v9435, %v9495
  %v9547 = vadd.f32 %v9437, %v9497
  %v9548 = vadd.f32 %v9439, %v9499
  %v9549 = vadd.f32 %v9441, %v9501
  %v9550 = vadd.f32 %v9443, %v9503
  %v9551 = vadd.f32 %v9445, %v9505
  %v9552 = vadd.f32 %v9447, %v9507
  %v9553 = vadd.f32 %v9449, %v9509
  %v9554 = vadd.f32 %v9451, %v9511
  %v9555 = vadd.f32 %v9453, %v9513
  %v9556 = vadd.f32 %v9455, %v9515
  %v9557 = vadd.f32 %v9457, %v9517
  %v9558 = vadd.f32 %v9459, %v9519
  %v9559 = vadd.f32 %v9461, %v9521
  %v9560 = vadd.f32 %v9463, %v9523
  %v9561 = vadd.f32 %v9465, %v9525
  %v9562 = vadd.f32 %v9467, %v9527
  %v9563 = vadd.f32 %v9469, %v9529
  %v9564 = vadd.f32 %v9471, %v9531
  %v9565 = vadd.f32 %v9473, %v9533
  %v9566 = vadd.f32 %v9475, %v9535
  %v9567 = vadd.f32 %v9477, %v9537
  %s9568 = scalar_lea.vmem %s0, 2
  %v9569 = vld [vmem:[%s9568] ss:$2 sm:$0x7f]
  %s9570 = scalar_lea.vmem %s0, 18
  %v9571 = vld [vmem:[%s9570] ss:$2 sm:$0x7f]
  %s9572 = scalar_lea.vmem %s0, 34
  %v9573 = vld [vmem:[%s9572] ss:$2 sm:$0x7f]
  %s9574 = scalar_lea.vmem %s0, 50
  %v9575 = vld [vmem:[%s9574] ss:$2 sm:$0x7f]
  %s9576 = scalar_lea.vmem %s0, 66
  %v9577 = vld [vmem:[%s9576] ss:$2 sm:$0x7f]
  %s9578 = scalar_lea.vmem %s0, 82
  %v9579 = vld [vmem:[%s9578] ss:$2 sm:$0x7f]
  %s9580 = scalar_lea.vmem %s0, 98
  %v9581 = vld [vmem:[%s9580] ss:$2 sm:$0x7f]
  %s9582 = scalar_lea.vmem %s0, 114
  %v9583 = vld [vmem:[%s9582] ss:$2 sm:$0x7f]
  %s9584 = scalar_lea.vmem %s0, 130
  %v9585 = vld [vmem:[%s9584] ss:$2 sm:$0x7f]
  %s9586 = scalar_lea.vmem %s0, 146
  %v9587 = vld [vmem:[%s9586] ss:$2 sm:$0x7f]
  %s9588 = scalar_lea.vmem %s0, 162
  %v9589 = vld [vmem:[%s9588] ss:$2 sm:$0x7f]
  %s9590 = scalar_lea.vmem %s0, 178
  %v9591 = vld [vmem:[%s9590] ss:$2 sm:$0x7f]
  %s9592 = scalar_lea.vmem %s0, 194
  %v9593 = vld [vmem:[%s9592] ss:$2 sm:$0x7f]
  %s9594 = scalar_lea.vmem %s0, 210
  %v9595 = vld [vmem:[%s9594] ss:$2 sm:$0x7f]
  %s9596 = scalar_lea.vmem %s0, 226
  %v9597 = vld [vmem:[%s9596] ss:$2 sm:$0x7f]
  %s9598 = scalar_lea.vmem %s0, 258
  %v9599 = vld [vmem:[%s9598] ss:$2 sm:$0x7f]
  %s9600 = scalar_lea.vmem %s0, 274
  %v9601 = vld [vmem:[%s9600] ss:$2 sm:$0x7f]
  %s9602 = scalar_lea.vmem %s0, 290
  %v9603 = vld [vmem:[%s9602] ss:$2 sm:$0x7f]
  %s9604 = scalar_lea.vmem %s0, 306
  %v9605 = vld [vmem:[%s9604] ss:$2 sm:$0x7f]
  %s9606 = scalar_lea.vmem %s0, 322
  %v9607 = vld [vmem:[%s9606] ss:$2 sm:$0x7f]
  %s9608 = scalar_lea.vmem %s0, 338
  %v9609 = vld [vmem:[%s9608] ss:$2 sm:$0x7f]
  %s9610 = scalar_lea.vmem %s0, 354
  %v9611 = vld [vmem:[%s9610] ss:$2 sm:$0x7f]
  %s9612 = scalar_lea.vmem %s0, 370
  %v9613 = vld [vmem:[%s9612] ss:$2 sm:$0x7f]
  %s9614 = scalar_lea.vmem %s0, 386
  %v9615 = vld [vmem:[%s9614] ss:$2 sm:$0x7f]
  %s9616 = scalar_lea.vmem %s0, 402
  %v9617 = vld [vmem:[%s9616] ss:$2 sm:$0x7f]
  %s9618 = scalar_lea.vmem %s0, 418
  %v9619 = vld [vmem:[%s9618] ss:$2 sm:$0x7f]
  %s9620 = scalar_lea.vmem %s0, 434
  %v9621 = vld [vmem:[%s9620] ss:$2 sm:$0x7f]
  %s9622 = scalar_lea.vmem %s0, 450
  %v9623 = vld [vmem:[%s9622] ss:$2 sm:$0x7f]
  %s9624 = scalar_lea.vmem %s0, 466
  %v9625 = vld [vmem:[%s9624] ss:$2 sm:$0x7f]
  %s9626 = scalar_lea.vmem %s0, 482
  %v9627 = vld [vmem:[%s9626] ss:$2 sm:$0x7f]
  %v9628 = vadd.f32 %v9538, %v9569
  %v9629 = vadd.f32 %v9539, %v9571
  %v9630 = vadd.f32 %v9540, %v9573
  %v9631 = vadd.f32 %v9541, %v9575
  %v9632 = vadd.f32 %v9542, %v9577
  %v9633 = vadd.f32 %v9543, %v9579
  %v9634 = vadd.f32 %v9544, %v9581
  %v9635 = vadd.f32 %v9545, %v9583
  %v9636 = vadd.f32 %v9546, %v9585
  %v9637 = vadd.f32 %v9547, %v9587
  %v9638 = vadd.f32 %v9548, %v9589
  %v9639 = vadd.f32 %v9549, %v9591
  %v9640 = vadd.f32 %v9550, %v9593
  %v9641 = vadd.f32 %v9551, %v9595
  %v9642 = vadd.f32 %v9552, %v9597
  %v9643 = vadd.f32 %v9553, %v9599
  %v9644 = vadd.f32 %v9554, %v9601
  %v9645 = vadd.f32 %v9555, %v9603
  %v9646 = vadd.f32 %v9556, %v9605
  %v9647 = vadd.f32 %v9557, %v9607
  %v9648 = vadd.f32 %v9558, %v9609
  %v9649 = vadd.f32 %v9559, %v9611
  %v9650 = vadd.f32 %v9560, %v9613
  %v9651 = vadd.f32 %v9561, %v9615
  %v9652 = vadd.f32 %v9562, %v9617
  %v9653 = vadd.f32 %v9563, %v9619
  %v9654 = vadd.f32 %v9564, %v9621
  %v9655 = vadd.f32 %v9565, %v9623
  %v9656 = vadd.f32 %v9566, %v9625
  %v9657 = vadd.f32 %v9567, %v9627
  %v9658 = vadd.f32 %v9628, %v9629
  %v9659 = vadd.f32 %v9630, %v9631
  %v9660 = vadd.f32 %v9632, %v9633
  %v9661 = vadd.f32 %v9634, %v9635
  %v9662 = vadd.f32 %v9636, %v9637
  %v9663 = vadd.f32 %v9638, %v9639
  %v9664 = vadd.f32 %v9640, %v9641
  %v9665 = vadd.f32 %v9643, %v9644
  %v9666 = vadd.f32 %v9645, %v9646
  %v9667 = vadd.f32 %v9647, %v9648
  %v9668 = vadd.f32 %v9649, %v9650
  %v9669 = vadd.f32 %v9651, %v9652
  %v9670 = vadd.f32 %v9653, %v9654
  %v9671 = vadd.f32 %v9655, %v9656
  %v9672 = vadd.f32 %v9658, %v9630
  %v9673 = vadd.f32 %v9659, %v9632
  %v9674 = vadd.f32 %v9660, %v9634
  %v9675 = vadd.f32 %v9661, %v9636
  %v9676 = vadd.f32 %v9662, %v9638
  %v9677 = vadd.f32 %v9663, %v9640
  %v9678 = vadd.f32 %v9664, %v9642
  %v9679 = vadd.f32 %v9665, %v9645
  %v9680 = vadd.f32 %v9666, %v9647
  %v9681 = vadd.f32 %v9667, %v9649
  %v9682 = vadd.f32 %v9668, %v9651
  %v9683 = vadd.f32 %v9669, %v9653
  %v9684 = vadd.f32 %v9670, %v9655
  %v9685 = vadd.f32 %v9671, %v9657
  %v9686 = vmul.f32 %v9672, 0.11111111
  %v9687 = vmul.f32 %v9673, 0.11111111
  %v9688 = vmul.f32 %v9674, 0.11111111
  %v9689 = vmul.f32 %v9675, 0.11111111
  %v9690 = vmul.f32 %v9676, 0.11111111
  %v9691 = vmul.f32 %v9677, 0.11111111
  %v9692 = vmul.f32 %v9678, 0.11111111
  %v9693 = vmul.f32 %v9679, 0.11111111
  %v9694 = vmul.f32 %v9680, 0.11111111
  %v9695 = vmul.f32 %v9681, 0.11111111
  %v9696 = vmul.f32 %v9682, 0.11111111
  %v9697 = vmul.f32 %v9683, 0.11111111
  %v9698 = vmul.f32 %v9684, 0.11111111
  %v9699 = vmul.f32 %v9685, 0.11111111
  %v9714 = vrot.slane %v9686, 1
  %v9715 = vrot.slane %v9686, 2
  %v9716 = vrot.slane %v9686, 3
  %v9717 = vrot.slane %v9686, 4
  %v9718 = vrot.slane %v9686, 5
  %v9719 = vrot.slane %v9686, 6
  %v9720 = vrot.slane %v9687, 1
  %v9721 = vrot.slane %v9687, 2
  %v9722 = vrot.slane %v9687, 3
  %v9723 = vrot.slane %v9687, 4
  %v9724 = vrot.slane %v9687, 5
  %v9725 = vrot.slane %v9687, 6
  %v9726 = vrot.slane %v9688, 1
  %v9727 = vrot.slane %v9688, 2
  %v9728 = vrot.slane %v9688, 3
  %v9729 = vrot.slane %v9688, 4
  %v9730 = vrot.slane %v9688, 5
  %v9731 = vrot.slane %v9688, 6
  %v9732 = vrot.slane %v9689, 1
  %v9733 = vrot.slane %v9689, 2
  %v9734 = vrot.slane %v9689, 3
  %v9735 = vrot.slane %v9689, 4
  %v9736 = vrot.slane %v9689, 5
  %v9737 = vrot.slane %v9689, 6
  %v9738 = vrot.slane %v9690, 1
  %v9739 = vrot.slane %v9690, 2
  %v9740 = vrot.slane %v9690, 3
  %v9741 = vrot.slane %v9690, 4
  %v9742 = vrot.slane %v9690, 5
  %v9743 = vrot.slane %v9690, 6
  %v9744 = vrot.slane %v9691, 1
  %v9745 = vrot.slane %v9691, 2
  %v9746 = vrot.slane %v9691, 3
  %v9747 = vrot.slane %v9691, 4
  %v9748 = vrot.slane %v9691, 5
  %v9749 = vrot.slane %v9691, 6
  %v9750 = vrot.slane %v9692, 1
  %v9751 = vrot.slane %v9692, 2
  %v9752 = vrot.slane %v9692, 3
  %v9753 = vrot.slane %v9692, 4
  %v9754 = vrot.slane %v9692, 5
  %v9755 = vrot.slane %v9692, 6
  %v9756 = vrot.slane %v9693, 1
  %v9757 = vrot.slane %v9693, 2
  %v9758 = vrot.slane %v9693, 3
  %v9759 = vrot.slane %v9693, 4
  %v9760 = vrot.slane %v9693, 5
  %v9761 = vrot.slane %v9693, 6
  %v9762 = vrot.slane %v9694, 1
  %v9763 = vrot.slane %v9694, 2
  %v9764 = vrot.slane %v9694, 3
  %v9765 = vrot.slane %v9694, 4
  %v9766 = vrot.slane %v9694, 5
  %v9767 = vrot.slane %v9694, 6
  %v9768 = vrot.slane %v9695, 1
  %v9769 = vrot.slane %v9695, 2
  %v9770 = vrot.slane %v9695, 3
  %v9771 = vrot.slane %v9695, 4
  %v9772 = vrot.slane %v9695, 5
  %v9773 = vrot.slane %v9695, 6
  %v9774 = vrot.slane %v9696, 1
  %v9775 = vrot.slane %v9696, 2
  %v9776 = vrot.slane %v9696, 3
  %v9777 = vrot.slane %v9696, 4
  %v9778 = vrot.slane %v9696, 5
  %v9779 = vrot.slane %v9696, 6
  %v9780 = vrot.slane %v9697, 1
  %v9781 = vrot.slane %v9697, 2
  %v9782 = vrot.slane %v9697, 3
  %v9783 = vrot.slane %v9697, 4
  %v9784 = vrot.slane %v9697, 5
  %v9785 = vrot.slane %v9697, 6
  %v9786 = vrot.slane %v9698, 1
  %v9787 = vrot.slane %v9698, 2
  %v9788 = vrot.slane %v9698, 3
  %v9789 = vrot.slane %v9698, 4
  %v9790 = vrot.slane %v9698, 5
  %v9791 = vrot.slane %v9698, 6
  %v9792 = vrot.slane %v9699, 1
  %v9793 = vrot.slane %v9699, 2
  %v9794 = vrot.slane %v9699, 3
  %v9795 = vrot.slane %v9699, 4
  %v9796 = vrot.slane %v9699, 5
  %v9797 = vrot.slane %v9699, 6
  %9811 = vrot.lane.b32.xlu0 %v9406, 16
  %v9812 = vpop.permute.xlu0 %9811
  %9813 = vrot.lane.b32.xlu0 %v9407, 16
  %v9814 = vpop.permute.xlu0 %9813
  %9815 = vrot.lane.b32.xlu0 %v9408, 16
  %v9816 = vpop.permute.xlu0 %9815
  %9817 = vrot.lane.b32.xlu0 %v9409, 16
  %v9818 = vpop.permute.xlu0 %9817
  %9819 = vrot.lane.b32.xlu0 %v9410, 16
  %v9820 = vpop.permute.xlu0 %9819
  %9821 = vrot.lane.b32.xlu0 %v9411, 16
  %v9822 = vpop.permute.xlu0 %9821
  %9823 = vrot.lane.b32.xlu0 %v9412, 16
  %v9824 = vpop.permute.xlu0 %9823
  %9825 = vrot.lane.b32.xlu0 %v9413, 16
  %v9826 = vpop.permute.xlu0 %9825
  %9827 = vrot.lane.b32.xlu0 %v9414, 16
  %v9828 = vpop.permute.xlu0 %9827
  %9829 = vrot.lane.b32.xlu0 %v9415, 16
  %v9830 = vpop.permute.xlu0 %9829
  %9831 = vrot.lane.b32.xlu0 %v9416, 16
  %v9832 = vpop.permute.xlu0 %9831
  %9833 = vrot.lane.b32.xlu0 %v9417, 16
  %v9834 = vpop.permute.xlu0 %9833
  %9835 = vrot.lane.b32.xlu0 %v9418, 16
  %v9836 = vpop.permute.xlu0 %9835
  %9850 = vst [vmem:[#allocation1] ss:$9 sm:$0xff] %v9686
  %s9851 = scalar_lea.vmem [#allocation1], 1
  %9852 = vst [vmem:[%s9851] ss:$9 sm:$0xff] %v9714
  %s9853 = scalar_lea.vmem [#allocation1], 2
  %9854 = vst [vmem:[%s9853] ss:$9 sm:$0xff] %v9715
  %s9855 = scalar_lea.vmem [#allocation1], 3
  %9856 = vst [vmem:[%s9855] ss:$9 sm:$0xff] %v9716
  %s9857 = scalar_lea.vmem [#allocation1], 4
  %9858 = vst [vmem:[%s9857] ss:$9 sm:$0xff] %v9717
  %s9859 = scalar_lea.vmem [#allocation1], 5
  %9860 = vst [vmem:[%s9859] ss:$9 sm:$0xff] %v9718
  %s9861 = scalar_lea.vmem [#allocation1], 6
  %9862 = vst [vmem:[%s9861] ss:$9 sm:$0xff] %v9719
  %s9863 = scalar_lea.vmem [#allocation1], 7
  %9864 = vst [vmem:[%s9863] ss:$9 sm:$0xff] %v9687
  %v9865 = vld [vmem:[#allocation1] sm:$0xff]
  %9866 = vst [vmem:[#allocation1] ss:$9 sm:$0xff] %v9720
  %9867 = vst [vmem:[%s9851] ss:$9 sm:$0xff] %v9721
  %9868 = vst [vmem:[%s9853] ss:$9 sm:$0xff] %v9722
  %9869 = vst [vmem:[%s9855] ss:$9 sm:$0xff] %v9723
  %9870 = vst [vmem:[%s9857] ss:$9 sm:$0xff] %v9724
  %9871 = vst [vmem:[%s9859] ss:$9 sm:$0xff] %v9725
  %9872 = vst [vmem:[%s9861] ss:$9 sm:$0xff] %v9688
  %9873 = vst [vmem:[%s9863] ss:$9 sm:$0xff] %v9726
  %v9874 = vld [vmem:[#allocation1] sm:$0xff]
  %9875 = vst [vmem:[#allocation1] ss:$9 sm:$0xff] %v9727
  %9876 = vst [vmem:[%s9851] ss:$9 sm:$0xff] %v9728
  %9877 = vst [vmem:[%s9853] ss:$9 sm:$0xff] %v9729
  %9878 = vst [vmem:[%s9855] ss:$9 sm:$0xff] %v9730
  %9879 = vst [vmem:[%s9857] ss:$9 sm:$0xff] %v9731
  %9880 = vst [vmem:[%s9859] ss:$9 sm:$0xff] %v9689
  %9881 = vst [vmem:[%s9861] ss:$9 sm:$0xff] %v9732
  %9882 = vst [vmem:[%s9863] ss:$9 sm:$0xff] %v9733
  %v9883 = vld [vmem:[#allocation1] sm:$0xff]
  %9884 = vst [vmem:[#allocation1] ss:$9 sm:$0xff] %v9734
  %9885 = vst [vmem:[%s9851] ss:$9 sm:$0xff] %v9735
  %9886 = vst [vmem:[%s9853] ss:$9 sm:$0xff] %v9736
  %9887 = vst [vmem:[%s9855] ss:$9 sm:$0xff] %v9737
  %9888 = vst [vmem:[%s9857] ss:$9 sm:$0xff] %v9690
  %9889 = vst [vmem:[%s9859] ss:$9 sm:$0xff] %v9738
  %9890 = vst [vmem:[%s9861] ss:$9 sm:$0xff] %v9739
  %9891 = vst [vmem:[%s9863] ss:$9 sm:$0xff] %v9740
  %v9892 = vld [vmem:[#allocation1] sm:$0xff]
  %9893 = vst [vmem:[#allocation1] ss:$9 sm:$0xff] %v9741
  %9894 = vst [vmem:[%s9851] ss:$9 sm:$0xff] %v9742
  %9895 = vst [vmem:[%s9853] ss:$9 sm:$0xff] %v9743
  %9896 = vst [vmem:[%s9855] ss:$9 sm:$0xff] %v9691
  %9897 = vst [vmem:[%s9857] ss:$9 sm:$0xff] %v9744
  %9898 = vst [vmem:[%s9859] ss:$9 sm:$0xff] %v9745
  %9899 = vst [vmem:[%s9861] ss:$9 sm:$0xff] %v9746
  %9900 = vst [vmem:[%s9863] ss:$9 sm:$0xff] %v9747
  %v9901 = vld [vmem:[#allocation1] sm:$0xff]
  %9902 = vst [vmem:[#allocation1] ss:$9 sm:$0xff] %v9748
  %9903 = vst [vmem:[%s9851] ss:$9 sm:$0xff] %v9749
  %9904 = vst [vmem:[%s9853] ss:$9 sm:$0xff] %v9692
  %9905 = vst [vmem:[%s9855] ss:$9 sm:$0xff] %v9750
  %9906 = vst [vmem:[%s9857] ss:$9 sm:$0xff] %v9751
  %9907 = vst [vmem:[%s9859] ss:$9 sm:$0xff] %v9752
  %9908 = vst [vmem:[%s9861] ss:$9 sm:$0xff] %v9753
  %9909 = vst [vmem:[%s9863] ss:$9 sm:$0xff] %v9754
  %v9910 = vld [vmem:[#allocation1] sm:$0xff]
  %9911 = vst [vmem:[#allocation1] ss:$9 sm:$0xff] %v9755
  %9912 = vst [vmem:[%s9851] ss:$9 sm:$0xff] %v9693
  %9913 = vst [vmem:[%s9853] ss:$9 sm:$0xff] %v9756
  %9914 = vst [vmem:[%s9855] ss:$9 sm:$0xff] %v9757
  %9915 = vst [vmem:[%s9857] ss:$9 sm:$0xff] %v9758
  %9916 = vst [vmem:[%s9859] ss:$9 sm:$0xff] %v9759
  %9917 = vst [vmem:[%s9861] ss:$9 sm:$0xff] %v9760
  %9918 = vst [vmem:[%s9863] ss:$9 sm:$0xff] %v9761
  %v9919 = vld [vmem:[#allocation1] sm:$0xff]
  %9920 = vst [vmem:[#allocation1] ss:$9 sm:$0xff] %v9694
  %9921 = vst [vmem:[%s9851] ss:$9 sm:$0xff] %v9762
  %9922 = vst [vmem:[%s9853] ss:$9 sm:$0xff] %v9763
  %9923 = vst [vmem:[%s9855] ss:$9 sm:$0xff] %v9764
  %9924 = vst [vmem:[%s9857] ss:$9 sm:$0xff] %v9765
  %9925 = vst [vmem:[%s9859] ss:$9 sm:$0xff] %v9766
  %9926 = vst [vmem:[%s9861] ss:$9 sm:$0xff] %v9767
  %9927 = vst [vmem:[%s9863] ss:$9 sm:$0xff] %v9695
  %v9928 = vld [vmem:[#allocation1] sm:$0xff]
  %9929 = vst [vmem:[#allocation1] ss:$9 sm:$0xff] %v9768
  %9930 = vst [vmem:[%s9851] ss:$9 sm:$0xff] %v9769
  %9931 = vst [vmem:[%s9853] ss:$9 sm:$0xff] %v9770
  %9932 = vst [vmem:[%s9855] ss:$9 sm:$0xff] %v9771
  %9933 = vst [vmem:[%s9857] ss:$9 sm:$0xff] %v9772
  %9934 = vst [vmem:[%s9859] ss:$9 sm:$0xff] %v9773
  %9935 = vst [vmem:[%s9861] ss:$9 sm:$0xff] %v9696
  %9936 = vst [vmem:[%s9863] ss:$9 sm:$0xff] %v9774
  %v9937 = vld [vmem:[#allocation1] sm:$0xff]
  %9938 = vst [vmem:[#allocation1] ss:$9 sm:$0xff] %v9775
  %9939 = vst [vmem:[%s9851] ss:$9 sm:$0xff] %v9776
  %9940 = vst [vmem:[%s9853] ss:$9 sm:$0xff] %v9777
  %9941 = vst [vmem:[%s9855] ss:$9 sm:$0xff] %v9778
  %9942 = vst [vmem:[%s9857] ss:$9 sm:$0xff] %v9779
  %9943 = vst [vmem:[%s9859] ss:$9 sm:$0xff] %v9697
  %9944 = vst [vmem:[%s9861] ss:$9 sm:$0xff] %v9780
  %9945 = vst [vmem:[%s9863] ss:$9 sm:$0xff] %v9781
  %v9946 = vld [vmem:[#allocation1] sm:$0xff]
  %9947 = vst [vmem:[#allocation1] ss:$9 sm:$0xff] %v9782
  %9948 = vst [vmem:[%s9851] ss:$9 sm:$0xff] %v9783
  %9949 = vst [vmem:[%s9853] ss:$9 sm:$0xff] %v9784
  %9950 = vst [vmem:[%s9855] ss:$9 sm:$0xff] %v9785
  %9951 = vst [vmem:[%s9857] ss:$9 sm:$0xff] %v9698
  %9952 = vst [vmem:[%s9859] ss:$9 sm:$0xff] %v9786
  %9953 = vst [vmem:[%s9861] ss:$9 sm:$0xff] %v9787
  %9954 = vst [vmem:[%s9863] ss:$9 sm:$0xff] %v9788
  %v9955 = vld [vmem:[#allocation1] sm:$0xff]
  %9956 = vst [vmem:[#allocation1] ss:$9 sm:$0xff] %v9789
  %9957 = vst [vmem:[%s9851] ss:$9 sm:$0xff] %v9790
  %9958 = vst [vmem:[%s9853] ss:$9 sm:$0xff] %v9791
  %9959 = vst [vmem:[%s9855] ss:$9 sm:$0xff] %v9699
  %9960 = vst [vmem:[%s9857] ss:$9 sm:$0xff] %v9792
  %9961 = vst [vmem:[%s9859] ss:$9 sm:$0xff] %v9793
  %9962 = vst [vmem:[%s9861] ss:$9 sm:$0xff] %v9794
  %9963 = vst [vmem:[%s9863] ss:$9 sm:$0xff] %v9795
  %v9964 = vld [vmem:[#allocation1] sm:$0xff]
  %9965 = vst [vmem:[#allocation1] ss:$9 sm:$0xff] %v9796
  %9966 = vst [vmem:[%s9851] ss:$9 sm:$0xff] %v9797
  %v9967 = vld [vmem:[#allocation1] sm:$0xff]
  %9968 = vrot.lane.b32.xlu0 %v9865, 24
  %v9969 = vpop.permute.xlu0 %9968
  %9970 = vrot.lane.b32.xlu0 %v9874, 24
  %v9971 = vpop.permute.xlu0 %9970
  %9972 = vrot.lane.b32.xlu0 %v9883, 24
  %v9973 = vpop.permute.xlu0 %9972
  %9974 = vrot.lane.b32.xlu0 %v9892, 24
  %v9975 = vpop.permute.xlu0 %9974
  %9976 = vrot.lane.b32.xlu0 %v9901, 24
  %v9977 = vpop.permute.xlu0 %9976
  %9978 = vrot.lane.b32.xlu0 %v9910, 24
  %v9979 = vpop.permute.xlu0 %9978
  %9980 = vrot.lane.b32.xlu0 %v9919, 24
  %v9981 = vpop.permute.xlu0 %9980
  %9982 = vrot.lane.b32.xlu0 %v9928, 24
  %v9983 = vpop.permute.xlu0 %9982
  %9984 = vrot.lane.b32.xlu0 %v9937, 24
  %v9985 = vpop.permute.xlu0 %9984
  %9986 = vrot.lane.b32.xlu0 %v9946, 24
  %v9987 = vpop.permute.xlu0 %9986
  %9988 = vrot.lane.b32.xlu0 %v9955, 24
  %v9989 = vpop.permute.xlu0 %9988
  %9990 = vrot.lane.b32.xlu0 %v9964, 24
  %v9991 = vpop.permute.xlu0 %9990
  %9992 = vrot.lane.b32.xlu0 %v9967, 24
  %v9993 = vpop.permute.xlu0 %9992
  %v10007 = vsel %vm1190, %v1701, %v9812
  %v10008 = vsel %vm1190, %v1702, %v9814
  %v10009 = vsel %vm1190, %v1703, %v9816
  %v10010 = vsel %vm1190, %v1704, %v9818
  %v10011 = vsel %vm1190, %v1705, %v9820
  %v10012 = vsel %vm1190, %v1706, %v9822
  %v10013 = vsel %vm1190, %v1707, %v9824
  %v10014 = vsel %vm1190, %v1708, %v9826
  %v10015 = vsel %vm1190, %v1709, %v9828
  %v10016 = vsel %vm1190, %v1710, %v9830
  %v10017 = vsel %vm1190, %v1711, %v9832
  %v10018 = vsel %vm1190, %v1712, %v9834
  %v10019 = vsel %vm1190, %v1713, %v9836
  %v10020 = vsel %vm1333, %v10007, %v9969
  %v10021 = vsel %vm1333, %v10008, %v9971
  %v10022 = vsel %vm1333, %v10009, %v9973
  %v10023 = vsel %vm1333, %v10010, %v9975
  %v10024 = vsel %vm1333, %v10011, %v9977
  %v10025 = vsel %vm1333, %v10012, %v9979
  %v10026 = vsel %vm1333, %v10013, %v9981
  %v10027 = vsel %vm1333, %v10014, %v9983
  %v10028 = vsel %vm1333, %v10015, %v9985
  %v10029 = vsel %vm1333, %v10016, %v9987
  %v10030 = vsel %vm1333, %v10017, %v9989
  %v10031 = vsel %vm1333, %v10018, %v9991
  %v10032 = vsel %vm1333, %v10019, %v9993
  %10033 = vst.msk [vmem:[%s3] sm:$0xff] %vm4457, %v10020
  %10034 = vst.msk [vmem:[%s3 + $0x8] sm:$0xff] %vm4457, %v10021
  %10035 = vst.msk [vmem:[%s3 + $0x10] sm:$0xff] %vm4457, %v10022
  %10036 = vst.msk [vmem:[%s3 + $0x18] sm:$0xff] %vm4457, %v10023
  %10037 = vst.msk [vmem:[%s3 + $0x20] sm:$0xff] %vm4457, %v10024
  %10038 = vst.msk [vmem:[%s3 + $0x28] sm:$0xff] %vm4457, %v10025
  %10039 = vst.msk [vmem:[%s3 + $0x30] sm:$0xff] %vm4457, %v10026
  %10040 = vst.msk [vmem:[%s3 + $0x38] sm:$0xff] %vm4457, %v10027
  %10041 = vst.msk [vmem:[%s3 + $0x40] sm:$0xff] %vm4457, %v10028
  %10042 = vst.msk [vmem:[%s3 + $0x48] sm:$0xff] %vm4457, %v10029
  %10043 = vst.msk [vmem:[%s3 + $0x50] sm:$0xff] %vm4457, %v10030
  %10044 = vst.msk [vmem:[%s3 + $0x58] sm:$0xff] %vm4457, %v10031
  %vm10045 = vcmask 254976
  %10046 = vst.msk [vmem:[%s3 + $0x60] sm:$0x3] %vm10045, %v10032
  // Predicated region
  $region14: #{tpu_custom_call.1} parent=0 // pred_check
    _
  $region15: #{tpu_custom_call.1} parent=0 // pred_check_branch
    %10048 = sbr.rel (0) target = $region17
  $region16: #{tpu_custom_call.1} parent=0 // pred_region
    _
  $region17: #{tpu_custom_call.1} parent=0 // pred_fallthru
    _
  // Predicated region
  $region18: #{tpu_custom_call.1} parent=0 // pred_check
    _
  $region19: #{tpu_custom_call.1} parent=0 // pred_check_branch
    %10050 = sbr.rel (0) target = $region21
  $region20: #{tpu_custom_call.1} parent=0 // pred_region
    _
  $region21: #{tpu_custom_call.1} parent=0 // pred_fallthru
    _

</llo_original>
